<compile_context>
chip_gen: v7x
topology: tpu7x:2x2x1
jax: 0.10.0
libtpu: 0.0.40
codegen_flags: <defaults>
</compile_context>

<pallas_src>
from functools import partial

import jax
import jax.numpy as jnp
from jax.experimental import pallas as pl
from jax.experimental.pallas import tpu as pltpu


# -----------------------------------------------------------------------------
# Fused kernel:
#   (patches @ W1 + b1 -> ReLU) @ W2 + b2 -> ReLU  -> adaptive-avg-pool (per image)
# The (tm, 2048) feature tile never leaves VMEM; only the pooled (S*S, 2048)
# accumulator is stored to HBM, once per image, lane-dense (2048 lanes).
# -----------------------------------------------------------------------------
def _fused_encoder_kernel(a_ref, pm_ref, w1_ref, b1_ref, w2_ref, b2_ref,
                          o_ref, acc_ref, *, inv_area):
    j = pl.program_id(1)

    @pl.when(j == 0)
    def _():
        acc_ref[...] = jnp.zeros_like(acc_ref)

    # Stem 3x3/s2 conv-as-matmul: bf16 MXU, f32 accumulate (K padded to 128).
    h = jnp.dot(a_ref[...], w1_ref[...], preferred_element_type=jnp.float32)
    h = jnp.maximum(h + b1_ref[...], 0.0).astype(jnp.bfloat16)            # (tm, C1)

    # 1x1 projection to 2048 channels: bf16 MXU, f32 accumulate.
    f = jnp.dot(h, w2_ref[...], preferred_element_type=jnp.float32)
    f = jnp.maximum(f + b2_ref[...], 0.0)                                 # (tm, C2) f32

    # Pooled partial sums: 0/1 pooling matrix (S*S, tm) @ feature tile (tm, C2).
    # The 1/(kh*kw) scale is applied once, in f32, at finalize.
    acc_ref[...] += jnp.dot(pm_ref[...], f.astype(jnp.bfloat16),
                            preferred_element_type=jnp.float32)

    @pl.when(j == pl.num_programs(1) - 1)
    def _():
        o_ref[0] = (acc_ref[...] * inv_area).astype(o_ref.dtype)


def fused_encoder(patches, pm, w1, b1, w2, b2, *,
                  batch, hw, pool_out, inv_area, tm):
    """patches: (batch*hw, Kp) bf16;  pm: (S*S, hw) bf16 0/1;  returns (batch, S*S, 2048) f32."""
    _, kp = patches.shape
    c1 = w1.shape[1]
    c2 = w2.shape[1]
    nj = hw // tm
    ss = pool_out * pool_out
    kernel = partial(_fused_encoder_kernel, inv_area=inv_area)
    return pl.pallas_call(
        kernel,
        out_shape=jax.ShapeDtypeStruct((batch, ss, c2), jnp.float32),
        grid=(batch, nj),
        in_specs=[
            pl.BlockSpec((tm, kp), lambda b, j: (b * nj + j, 0)),   # patch tile
            pl.BlockSpec((ss, tm), lambda b, j: (0, j)),            # pooling-matrix tile
            pl.BlockSpec((kp, c1), lambda b, j: (0, 0)),            # stem weight (resident, tiny)
            pl.BlockSpec((1, c1), lambda b, j: (0, 0)),             # stem bias
            pl.BlockSpec((c1, c2), lambda b, j: (0, 0)),            # proj weight (resident, 256 KiB bf16)
            pl.BlockSpec((1, c2), lambda b, j: (0, 0)),             # proj bias
        ],
        out_specs=pl.BlockSpec((1, ss, c2), lambda b, j: (b, 0, 0)),
        scratch_shapes=[pltpu.VMEM((ss, c2), jnp.float32)],         # pooled accumulator
        compiler_params=pltpu.CompilerParams(
            dimension_semantics=("parallel", "arbitrary")),
    )(patches, pm, w1, b1.reshape(1, c1), w2, b2.reshape(1, c2))


# -----------------------------------------------------------------------------
# Glue: im2col (pure layout, K lane-padded), pooling matrix, params, forward
# -----------------------------------------------------------------------------
def im2col_nhwc(x, *, ksize, stride, pad):
    # TODO(synk): at real stem resolutions this gather should move inside the Pallas
    # kernel (index_map-driven row taps) to avoid an extra HBM pass.
    B, H, W, C = x.shape
    xp = jnp.pad(x, ((0, 0), (pad, pad), (pad, pad), (0, 0)))
    Ho = (H + 2 * pad - ksize) // stride + 1
    Wo = (W + 2 * pad - ksize) // stride + 1
    cols = []
    for i in range(ksize):
        for j in range(ksize):
            cols.append(xp[:, i:i + stride * Ho:stride, j:j + stride * Wo:stride, :])
    patches = jnp.concatenate(cols, axis=-1)                 # (B, Ho, Wo, k*k*C)
    k1 = ksize * ksize * C
    kp = pl.cdiv(k1, 128) * 128                              # lane-align the contraction depth
    if kp != k1:
        patches = jnp.pad(patches, ((0, 0), (0, 0), (0, 0), (0, kp - k1)))
    return patches.reshape(B * Ho * Wo, kp), (B, Ho, Wo)


def _pooling_matrix(Ho, Wo, S):
    """0/1 matrix mapping flattened (Ho*Wo) feature positions -> (S*S) pooled bins."""
    pos = jnp.arange(Ho * Wo)
    oh, ow = pos // Wo, pos % Wo
    q = (oh // (Ho // S)) * S + (ow // (Wo // S))
    return (q[None, :] == jnp.arange(S * S)[:, None]).astype(jnp.bfloat16)


def _pick_tm(hw, target=512):
    """Largest sublane-aligned tm <= target that divides hw (no pad / slice round-trip)."""
    tm = min(target, hw)
    tm -= tm % 8
    while tm > 8 and hw % tm != 0:
        tm -= 8
    return tm


def init_params(key, *, in_ch=3, stem_ch=64, feat_ch=2048, ksize=3):
    k1p = ksize * ksize * in_ch
    kp = pl.cdiv(k1p, 128) * 128
    k1, k2, k3, k4 = jax.random.split(key, 4)
    w_stem = jax.random.normal(k1, (k1p, stem_ch), jnp.float32) * 0.05
    b_stem = jax.random.normal(k2, (stem_ch,), jnp.float32) * 0.05
    w_proj = jax.random.normal(k3, (stem_ch, feat_ch), jnp.float32) * 0.05
    b_proj = jax.random.normal(k4, (feat_ch,), jnp.float32) * 0.05
    # Zero-pad stem K rows to the lane width (matches the lane-padded im2col patches).
    w_stem_p = jnp.zeros((kp, stem_ch), jnp.float32).at[:k1p].set(w_stem)
    return dict(
        w_stem=w_stem_p.astype(jnp.bfloat16), b_stem=b_stem,    # weights bf16 (MXU feed)
        w_proj=w_proj.astype(jnp.bfloat16), b_proj=b_proj,      # biases f32
    )


def encoder_cnn_forward(params, images_nchw, *, encoded_image_size):
    S = encoded_image_size
    x = jnp.transpose(images_nchw, (0, 2, 3, 1))              # NCHW -> NHWC (once)

    # --- backbone stand-in for resnet152[:-2] (see TODO(synk) above) ---
    patches, (B, Ho, Wo) = im2col_nhwc(x, ksize=3, stride=2, pad=1)
    patches = patches.astype(jnp.bfloat16)

    # --- AdaptiveAvgPool2d((S, S)) fused into the matmul kernel ---
    # TODO(synk): general nn.AdaptiveAvgPool2d (non-divisible H/W, e.g. 7x7 -> 28)
    # needs variable-size windows; only the exactly-divisible case is implemented.
    assert Ho % S == 0 and Wo % S == 0, "exact adaptive pooling requires divisible sizes"
    hw = Ho * Wo
    assert hw % 8 == 0
    tm = _pick_tm(hw)
    pm = _pooling_matrix(Ho, Wo, S)
    pooled = fused_encoder(
        patches, pm,
        params["w_stem"], params["b_stem"], params["w_proj"], params["b_proj"],
        batch=B, hw=hw, pool_out=S,
        inv_area=1.0 / ((Ho // S) * (Wo // S)), tm=tm)
    # Output already matches the reference's permute(0, 2, 3, 1): (B, S, S, 2048).
    return pooled.reshape(B, S, S, -1)


if __name__ == "__main__":
    key = jax.random.PRNGKey(0)
    kparam, kimg = jax.random.split(key)

    params = init_params(kparam)
    # Small example consistent with the module: NCHW images, 3 channels.
    images = jax.random.normal(kimg, (2, 3, 64, 64), jnp.float32)

    # encoded_image_size is a module hyper-parameter (default 28); use 8 so the
    # small 32x32 backbone feature map divides evenly (exact adaptive pooling).
    out = encoder_cnn_forward(params, images, encoded_image_size=8)
    out = jax.block_until_ready(out)
    assert out.shape == (2, 8, 8, 2048), out.shape
    assert out.dtype == jnp.float32

    # Pure-JAX f32 reference of the stand-in backbone + adaptive pool + permute
    # (loose tolerance: kernel uses bf16 MXU feeds with f32 accumulation).
    xr = jnp.transpose(images, (0, 2, 3, 1))
    pr, (B, Ho, Wo) = im2col_nhwc(xr, ksize=3, stride=2, pad=1)
    pr = pr.astype(jnp.bfloat16).astype(jnp.float32)
    hr = jnp.maximum(pr @ params["w_stem"].astype(jnp.float32) + params["b_stem"], 0.0)
    fr = jnp.maximum(hr @ params["w_proj"].astype(jnp.float32) + params["b_proj"], 0.0)
    feats = fr.reshape(B, Ho, Wo, -1)
    Sref = 8
    ref = feats.reshape(B, Sref, Ho // Sref, Sref, Wo // Sref, -1).mean(axis=(2, 4))
    rel_err = jnp.max(jnp.abs(out - ref)) / (jnp.max(jnp.abs(ref)) + 1e-6)
    assert float(rel_err) < 5e-2, float(rel_err)

    print("KERNEL_OK")
</pallas_src>

<mosaic_0001>
module attributes {stable_mosaic.version = 11 : i64} {
  func.func @_fused_encoder_kernel(%arg0: i32, %arg1: i32, %arg2: memref<512x128xbf16, #tpu.memory_space<vmem>>, %arg3: memref<64x512xbf16, #tpu.memory_space<vmem>>, %arg4: memref<128x64xbf16, #tpu.memory_space<vmem>>, %arg5: memref<1x64xf32, #tpu.memory_space<vmem>>, %arg6: memref<64x2048xbf16, #tpu.memory_space<vmem>>, %arg7: memref<1x2048xf32, #tpu.memory_space<vmem>>, %arg8: memref<1x64x2048xf32, #tpu.memory_space<vmem>>, %arg9: memref<64x2048xf32, #tpu.memory_space<vmem>>) attributes {dimension_semantics = [#tpu.dimension_semantics<parallel>, #tpu.dimension_semantics<arbitrary>], iteration_bounds = array<i64: 2, 2>, scalar_prefetch = 0 : i64, scratch_operands = 1 : i64, tpu.core_type = #tpu.core_type<tc>, window_params = [{transform_indices = @transform_0, window_bounds = array<i64: 512, 128>}, {transform_indices = @transform_1, window_bounds = array<i64: 64, 512>}, {pipeline_mode = #tpu.pipeline_mode<synchronous>, transform_indices = @transform_2, window_bounds = array<i64: 128, 64>}, {pipeline_mode = #tpu.pipeline_mode<synchronous>, transform_indices = @transform_3, window_bounds = array<i64: 1, 64>}, {pipeline_mode = #tpu.pipeline_mode<synchronous>, transform_indices = @transform_4, window_bounds = array<i64: 64, 2048>}, {pipeline_mode = #tpu.pipeline_mode<synchronous>, transform_indices = @transform_5, window_bounds = array<i64: 1, 2048>}, {transform_indices = @transform_6, window_bounds = array<i64: 1, 64, 2048>}]} {
    %c0_i32 = arith.constant 0 : i32
    %0 = arith.cmpi eq, %arg1, %c0_i32 : i32
    %1 = arith.extui %0 : i1 to i32
    %c0_i32_0 = arith.constant 0 : i32
    %2 = arith.cmpi ne, %1, %c0_i32_0 : i32
    scf.if %2 {
      %cst_21 = arith.constant 0.000000e+00 : f32
      %28 = vector.broadcast %cst_21 : f32 to vector<64x2048xf32>
      %c0_22 = arith.constant 0 : index
      %c0_23 = arith.constant 0 : index
      %29 = vector.load %arg9[%c0_22, %c0_23] : memref<64x2048xf32, #tpu.memory_space<vmem>>, vector<64x2048xf32>
      tpu.vector_store %arg9[%c0_22, %c0_23], %28 {strides = array<i32>} : memref<64x2048xf32, #tpu.memory_space<vmem>>, vector<64x2048xf32>,
    } else {
    }
    %c0 = arith.constant 0 : index
    %c0_1 = arith.constant 0 : index
    %3 = vector.load %arg2[%c0, %c0_1] : memref<512x128xbf16, #tpu.memory_space<vmem>>, vector<512x128xbf16>
    %c0_2 = arith.constant 0 : index
    %c0_3 = arith.constant 0 : index
    %4 = vector.load %arg4[%c0_2, %c0_3] : memref<128x64xbf16, #tpu.memory_space<vmem>>, vector<128x64xbf16>
    %cst = arith.constant dense<0.000000e+00> : vector<512x64xf32>
    %5 = tpu.matmul %3, %4, %cst {dimension_numbers = #tpu.dot_dimension_numbers<[1], [0], [0], [1], [0, 0, 1, 1], [], []>} : vector<512x128xbf16>, vector<128x64xbf16>, vector<512x64xf32> -> vector<512x64xf32>
    %c0_4 = arith.constant 0 : index
    %c0_5 = arith.constant 0 : index
    %6 = vector.load %arg5[%c0_4, %c0_5] : memref<1x64xf32, #tpu.memory_space<vmem>>, vector<1x64xf32>
    %7 = vector.broadcast %6 : vector<1x64xf32> to vector<512x64xf32>
    %8 = arith.addf %5, %7 : vector<512x64xf32>
    %cst_6 = arith.constant 0.000000e+00 : f32
    %9 = vector.broadcast %cst_6 : f32 to vector<512x64xf32>
    %10 = arith.maximumf %8, %9 : vector<512x64xf32>
    %11 = arith.truncf %10 : vector<512x64xf32> to vector<512x64xbf16>
    %c0_7 = arith.constant 0 : index
    %c0_8 = arith.constant 0 : index
    %12 = vector.load %arg6[%c0_7, %c0_8] : memref<64x2048xbf16, #tpu.memory_space<vmem>>, vector<64x2048xbf16>
    %cst_9 = arith.constant dense<0.000000e+00> : vector<512x2048xf32>
    %13 = tpu.matmul %11, %12, %cst_9 {dimension_numbers = #tpu.dot_dimension_numbers<[1], [0], [0], [1], [0, 0, 1, 1], [], []>} : vector<512x64xbf16>, vector<64x2048xbf16>, vector<512x2048xf32> -> vector<512x2048xf32>
    %c0_10 = arith.constant 0 : index
    %c0_11 = arith.constant 0 : index
    %14 = vector.load %arg7[%c0_10, %c0_11] : memref<1x2048xf32, #tpu.memory_space<vmem>>, vector<1x2048xf32>
    %15 = vector.broadcast %14 : vector<1x2048xf32> to vector<512x2048xf32>
    %16 = arith.addf %13, %15 : vector<512x2048xf32>
    %cst_12 = arith.constant 0.000000e+00 : f32
    %17 = vector.broadcast %cst_12 : f32 to vector<512x2048xf32>
    %18 = arith.maximumf %16, %17 : vector<512x2048xf32>
    %c0_13 = arith.constant 0 : index
    %c0_14 = arith.constant 0 : index
    %19 = vector.load %arg9[%c0_13, %c0_14] : memref<64x2048xf32, #tpu.memory_space<vmem>>, vector<64x2048xf32>
    %c0_15 = arith.constant 0 : index
    %c0_16 = arith.constant 0 : index
    %20 = vector.load %arg3[%c0_15, %c0_16] : memref<64x512xbf16, #tpu.memory_space<vmem>>, vector<64x512xbf16>
    %21 = arith.truncf %18 : vector<512x2048xf32> to vector<512x2048xbf16>
    %cst_17 = arith.constant dense<0.000000e+00> : vector<64x2048xf32>
    %22 = tpu.matmul %20, %21, %cst_17 {dimension_numbers = #tpu.dot_dimension_numbers<[1], [0], [0], [1], [0, 0, 1, 1], [], []>} : vector<64x512xbf16>, vector<512x2048xbf16>, vector<64x2048xf32> -> vector<64x2048xf32>
    %23 = arith.addf %19, %22 : vector<64x2048xf32>
    %c0_18 = arith.constant 0 : index
    %c0_19 = arith.constant 0 : index
    %24 = vector.load %arg9[%c0_18, %c0_19] : memref<64x2048xf32, #tpu.memory_space<vmem>>, vector<64x2048xf32>
    tpu.vector_store %arg9[%c0_18, %c0_19], %23 {strides = array<i32>} : memref<64x2048xf32, #tpu.memory_space<vmem>>, vector<64x2048xf32>,
    %c1_i32 = arith.constant 1 : i32
    %25 = arith.cmpi eq, %arg1, %c1_i32 : i32
    %26 = arith.extui %25 : i1 to i32
    %c0_i32_20 = arith.constant 0 : i32
    %27 = arith.cmpi ne, %26, %c0_i32_20 : i32
    scf.if %27 {
      %c0_21 = arith.constant 0 : index
      %c0_22 = arith.constant 0 : index
      %28 = vector.load %arg9[%c0_21, %c0_22] : memref<64x2048xf32, #tpu.memory_space<vmem>>, vector<64x2048xf32>
      %cst_23 = arith.constant 6.250000e-02 : f32
      %29 = vector.broadcast %cst_23 : f32 to vector<64x2048xf32>
      %30 = arith.mulf %28, %29 : vector<64x2048xf32>
      %c0_24 = arith.constant 0 : index
      %c0_25 = arith.constant 0 : index
      %c0_26 = arith.constant 0 : index
      %31 = vector.load %arg8[%c0_24, %c0_25, %c0_26] : memref<1x64x2048xf32, #tpu.memory_space<vmem>>, vector<1x64x2048xf32>
      %32 = vector.shape_cast %31 : vector<1x64x2048xf32> to vector<64x2048xf32>
      %33 = vector.shape_cast %30 : vector<64x2048xf32> to vector<1x64x2048xf32>
      tpu.vector_store %arg8[%c0_24, %c0_25, %c0_26], %33 {strides = array<i32>} : memref<1x64x2048xf32, #tpu.memory_space<vmem>>, vector<1x64x2048xf32>,
    } else {
    }
    return
  }
  func.func @transform_0(%arg0: i32, %arg1: i32) -> (i32, i32) {
    %c2_i32 = arith.constant 2 : i32
    %0 = arith.muli %arg0, %c2_i32 : i32
    %1 = arith.addi %0, %arg1 : i32
    %c0_i32 = arith.constant 0 : i32
    %c0_i32_0 = arith.constant 0 : i32
    return %1, %c0_i32 : i32, i32
  }
  func.func @transform_1(%arg0: i32, %arg1: i32) -> (i32, i32) {
    %c0_i32 = arith.constant 0 : i32
    %c0_i32_0 = arith.constant 0 : i32
    return %c0_i32, %arg1 : i32, i32
  }
  func.func @transform_2(%arg0: i32, %arg1: i32) -> (i32, i32) {
    %c0_i32 = arith.constant 0 : i32
    %c0_i32_0 = arith.constant 0 : i32
    %c0_i32_1 = arith.constant 0 : i32
    return %c0_i32, %c0_i32_0 : i32, i32
  }
  func.func @transform_3(%arg0: i32, %arg1: i32) -> (i32, i32) {
    %c0_i32 = arith.constant 0 : i32
    %c0_i32_0 = arith.constant 0 : i32
    %c0_i32_1 = arith.constant 0 : i32
    return %c0_i32, %c0_i32_0 : i32, i32
  }
  func.func @transform_4(%arg0: i32, %arg1: i32) -> (i32, i32) {
    %c0_i32 = arith.constant 0 : i32
    %c0_i32_0 = arith.constant 0 : i32
    %c0_i32_1 = arith.constant 0 : i32
    return %c0_i32, %c0_i32_0 : i32, i32
  }
  func.func @transform_5(%arg0: i32, %arg1: i32) -> (i32, i32) {
    %c0_i32 = arith.constant 0 : i32
    %c0_i32_0 = arith.constant 0 : i32
    %c0_i32_1 = arith.constant 0 : i32
    return %c0_i32, %c0_i32_0 : i32, i32
  }
  func.func @transform_6(%arg0: i32, %arg1: i32) -> (i32, i32, i32) {
    %c0_i32 = arith.constant 0 : i32
    %c0_i32_0 = arith.constant 0 : i32
    %c0_i32_1 = arith.constant 0 : i32
    return %arg0, %c0_i32, %c0_i32_0 : i32, i32, i32
  }
}

</mosaic_0001>

<llo_original>
// kernel: tpu_custom_call.1
$region0: #{tpu_custom_call.1}
  #allocation0 [shape = 'u32[]', space=smem, size = 0x4, offset = 0x4, fixed_abs, tag = 'smem constant byte address 0x4 - core index']
  #allocation1 [shape = 'u32[144,128]{1,0:T(1,128)}', space=vmem, size = 0x12000, scoped, tag = 'internal scratch']
  #allocation2 [shape = 'f32[64,2048]{1,0:T(8,128)}', space=vmem, size = 0x80000, scoped, tag = 'scratch operand']
  %s0 = inlined_call_operand.hbm [shape: bf16[2048,128], index: 0, kind: input, shape index: {}]
  %s1 = inlined_call_operand.hbm [shape: bf16[64,1024], index: 1, kind: input, shape index: {}]
  %s2 = inlined_call_operand.vmem [shape: bf16[128,64], index: 2, kind: input, shape index: {}]
  %s3 = inlined_call_operand.vmem [shape: f32[1,64], index: 3, kind: input, shape index: {}]
  %s4 = inlined_call_operand.hbm [shape: bf16[64,2048], index: 4, kind: input, shape index: {}]
  %s5 = inlined_call_operand.vmem [shape: f32[1,2048], index: 5, kind: input, shape index: {}]
  %s6 = inlined_call_operand.hbm [shape: f32[2,64,2048], index: 6, kind: output, shape index: {}]
  %s7 = sld [smem:[#allocation0]]
  $region77: #{tpu_custom_call.1} parent=0
    _
  %s9 = ssub.s32 1, %s7
  %s10 = scalar_select 0, %s9, %s7
  $region1: #{tpu_custom_call.1} parent=0
    #allocation3 [shape = 'u8[262144]{0}', space=vmem, size = 0x40000, scoped, tag = 'input window, operand 0']
    #allocation4 [shape = 's32[2]{0}', space=sflag, size = 0x8, scoped, tag = 'scoped memory for tpu_custom_call.1']
    #allocation5 [shape = 's32[2]{0}', space=sflag, size = 0x8, scoped, tag = 'scoped memory for tpu_custom_call.1']
    #allocation6 [shape = 'u8[131072]{0}', space=vmem, size = 0x20000, scoped, tag = 'input window, operand 1']
    #allocation7 [shape = 's32[2]{0}', space=sflag, size = 0x8, scoped, tag = 'scoped memory for tpu_custom_call.1']
    #allocation8 [shape = 'u8[262144]{0}', space=vmem, size = 0x40000, scoped, tag = 'input window, operand 4, single buffered']
    #allocation9 [shape = 'u8[1048576]{0}', space=vmem, size = 0x100000, scoped, tag = 'output window, operand 0']
    %11 = vsyncpa [#allocation4], 0
    %s12 = scalar_lea.sflag [#allocation4], 1
    %13 = vsyncpa %s12, 0
    %14 = vsyncpa [#allocation7], 0
    %s15 = scalar_lea.sflag [#allocation7], 1
    %16 = vsyncpa %s15, 0
    %17 = vsyncpa [#allocation5], 0
    %s18 = scalar_lea.sflag [#allocation5], 1
    %19 = vsyncpa %s18, 0
    loop: start=0, step=1, limit=6
    $region2: #{tpu_custom_call.1} parent=1 // loop_pre_header
      _
    $region3: #{tpu_custom_call.1} parent=1 // loop_header
      %s21 = sphi 0, %s25
      %p22 = scmp.ge.s32.totalorder %s21, 6
      %s28 = sphi 0, %s40
      %s29 = sphi 0, %s36
      %s30 = sphi 0, %s28
      %s31 = sphi 0, %s29
      %s32 = sphi 0, %s30
      %s33 = sphi 0, %s31
      %s47 = sphi 0, %s49
      %s50 = sphi 0, %s47
      %s51 = sphi 0, %s50
      %s67 = sphi 0, %s51
      %s73 = sphi 0, %s75
      %s76 = sphi 0, %s73
      %s77 = sphi 0, %s76
      %s93 = sphi 0, %s77
      %s97 = sphi 0, %s97
      %s99 = sphi 0, %s97
      %s100 = sphi 0, %s99
      %s114 = sphi 0, %s100
      %s118 = sphi 0, %s118
      %s120 = sphi 0, %s118
      %s121 = sphi 0, %s120
      %s135 = sphi 0, %s121
      %s139 = sphi 0, %s139
      %s141 = sphi 0, %s139
      %s142 = sphi 0, %s141
      %s156 = sphi 0, %s142
      %s160 = sphi 0, %s160
      %s162 = sphi 0, %s160
      %s163 = sphi 0, %s162
      %s177 = sphi 0, %s163
      %s183 = sphi 0, %s185
      %s186 = sphi 0, %s183
      %s187 = sphi 0, %s186
      %s203 = sphi 0, %s187
    $region4: #{tpu_custom_call.1} parent=1 // loop_header_branch
      %24 = sbr.rel (%p22) target = $region8
    $region5: #{tpu_custom_call.1} parent=1 // loop_body
      %s26 = ssub.s32 %s21, 1
      %s27 = ssub.s32 %s21, 2
      %s34 = sadd.s32 1, %s29
      %p35 = scmp.ge.s32.totalorder %s34, 2
      %s36 = scalar_select %p35, 0, %s34
      %s37 = sadd.s32 1, %s28
      %s38 = scalar_select %p35, %s37, %s28
      %p39 = scmp.ge.s32.totalorder %s38, 2
      %s40 = scalar_select %p39, 0, %s38
      %s41 = smul.u32 %s28, 2
      %s42 = sadd.s32 %s41, %s29
      %s43 = smul.u32 %s40, 2
      %s44 = sadd.s32 %s43, %s36
      %s45 = ssub.s32 %s42, %s44
      %p46 = scmp.eq.s32.totalorder %s45, 0
      %s48 = sadd.s32 %s47, 1
      %s49 = scalar_select %p46, %s47, %s48
      %p52 = pneg %p46
      %p53 = scmp.eq.s32.totalorder %s21, 3
      %p54 = por %p52, %p53
      %p55 = scmp.ne.s32.totalorder %s47, %s50
      %p56 = scmp.eq.s32.totalorder %s21, 0
      %p57 = por %p55, %p56
      %p58 = scmp.ne.s32.totalorder %s47, %s50
      %p59 = scmp.eq.s32.totalorder %s26, 3
      %p60 = por %p58, %p59
      %p61 = scmp.ne.s32.totalorder %s50, %s51
      %p62 = scmp.eq.s32.totalorder %s26, 0
      %p63 = por %p61, %p62
      %p64 = scmp.ne.s32.totalorder %s50, %s51
      %p65 = scmp.eq.s32.totalorder %s27, 3
      %p66 = por %p64, %p65
      %p68 = scmp.ne.s32.totalorder %s51, %s67
      %p69 = scmp.eq.s32.totalorder %s27, 0
      %p70 = por %p68, %p69
      %s71 = ssub.s32 %s29, %s36
      %p72 = scmp.eq.s32.totalorder %s71, 0
      %s74 = sadd.s32 %s73, 1
      %s75 = scalar_select %p72, %s73, %s74
      %p78 = pneg %p72
      %p79 = scmp.eq.s32.totalorder %s21, 3
      %p80 = por %p78, %p79
      %p81 = scmp.ne.s32.totalorder %s73, %s76
      %p82 = scmp.eq.s32.totalorder %s21, 0
      %p83 = por %p81, %p82
      %p84 = scmp.ne.s32.totalorder %s73, %s76
      %p85 = scmp.eq.s32.totalorder %s26, 3
      %p86 = por %p84, %p85
      %p87 = scmp.ne.s32.totalorder %s76, %s77
      %p88 = scmp.eq.s32.totalorder %s26, 0
      %p89 = por %p87, %p88
      %p90 = scmp.ne.s32.totalorder %s76, %s77
      %p91 = scmp.eq.s32.totalorder %s27, 3
      %p92 = por %p90, %p91
      %p94 = scmp.ne.s32.totalorder %s77, %s93
      %p95 = scmp.eq.s32.totalorder %s27, 0
      %p96 = por %p94, %p95
      %s98 = sadd.s32 %s97, 1
      %p101 = scmp.eq.s32.totalorder %s21, 3
      %p102 = scmp.ne.s32.totalorder %s97, %s99
      %p103 = scmp.eq.s32.totalorder %s21, 0
      %p104 = por %p102, %p103
      %p105 = scmp.ne.s32.totalorder %s97, %s99
      %p106 = scmp.eq.s32.totalorder %s26, 3
      %p107 = por %p105, %p106
      %p108 = scmp.ne.s32.totalorder %s99, %s100
      %p109 = scmp.eq.s32.totalorder %s26, 0
      %p110 = por %p108, %p109
      %p111 = scmp.ne.s32.totalorder %s99, %s100
      %p112 = scmp.eq.s32.totalorder %s27, 3
      %p113 = por %p111, %p112
      %p115 = scmp.ne.s32.totalorder %s100, %s114
      %p116 = scmp.eq.s32.totalorder %s27, 0
      %p117 = por %p115, %p116
      %s119 = sadd.s32 %s118, 1
      %p122 = scmp.eq.s32.totalorder %s21, 3
      %p123 = scmp.ne.s32.totalorder %s118, %s120
      %p124 = scmp.eq.s32.totalorder %s21, 0
      %p125 = por %p123, %p124
      %p126 = scmp.ne.s32.totalorder %s118, %s120
      %p127 = scmp.eq.s32.totalorder %s26, 3
      %p128 = por %p126, %p127
      %p129 = scmp.ne.s32.totalorder %s120, %s121
      %p130 = scmp.eq.s32.totalorder %s26, 0
      %p131 = por %p129, %p130
      %p132 = scmp.ne.s32.totalorder %s120, %s121
      %p133 = scmp.eq.s32.totalorder %s27, 3
      %p134 = por %p132, %p133
      %p136 = scmp.ne.s32.totalorder %s121, %s135
      %p137 = scmp.eq.s32.totalorder %s27, 0
      %p138 = por %p136, %p137
      %s140 = sadd.s32 %s139, 1
      %p143 = scmp.eq.s32.totalorder %s21, 3
      %p144 = scmp.ne.s32.totalorder %s139, %s141
      %p145 = scmp.eq.s32.totalorder %s21, 0
      %p146 = por %p144, %p145
      %p147 = scmp.ne.s32.totalorder %s139, %s141
      %p148 = scmp.eq.s32.totalorder %s26, 3
      %p149 = por %p147, %p148
      %p150 = scmp.ne.s32.totalorder %s141, %s142
      %p151 = scmp.eq.s32.totalorder %s26, 0
      %p152 = por %p150, %p151
      %p153 = scmp.ne.s32.totalorder %s141, %s142
      %p154 = scmp.eq.s32.totalorder %s27, 3
      %p155 = por %p153, %p154
      %p157 = scmp.ne.s32.totalorder %s142, %s156
      %p158 = scmp.eq.s32.totalorder %s27, 0
      %p159 = por %p157, %p158
      %s161 = sadd.s32 %s160, 1
      %p164 = scmp.eq.s32.totalorder %s21, 3
      %p165 = scmp.ne.s32.totalorder %s160, %s162
      %p166 = scmp.eq.s32.totalorder %s21, 0
      %p167 = por %p165, %p166
      %p168 = scmp.ne.s32.totalorder %s160, %s162
      %p169 = scmp.eq.s32.totalorder %s26, 3
      %p170 = por %p168, %p169
      %p171 = scmp.ne.s32.totalorder %s162, %s163
      %p172 = scmp.eq.s32.totalorder %s26, 0
      %p173 = por %p171, %p172
      %p174 = scmp.ne.s32.totalorder %s162, %s163
      %p175 = scmp.eq.s32.totalorder %s27, 3
      %p176 = por %p174, %p175
      %p178 = scmp.ne.s32.totalorder %s163, %s177
      %p179 = scmp.eq.s32.totalorder %s27, 0
      %p180 = por %p178, %p179
      %s181 = ssub.s32 %s28, %s40
      %p182 = scmp.eq.s32.totalorder %s181, 0
      %s184 = sadd.s32 %s183, 1
      %s185 = scalar_select %p182, %s183, %s184
      %p188 = pneg %p182
      %p189 = scmp.eq.s32.totalorder %s21, 3
      %p190 = por %p188, %p189
      %p191 = scmp.ne.s32.totalorder %s183, %s186
      %p192 = scmp.eq.s32.totalorder %s21, 0
      %p193 = por %p191, %p192
      %p194 = scmp.ne.s32.totalorder %s183, %s186
      %p195 = scmp.eq.s32.totalorder %s26, 3
      %p196 = por %p194, %p195
      %p197 = scmp.ne.s32.totalorder %s186, %s187
      %p198 = scmp.eq.s32.totalorder %s26, 0
      %p199 = por %p197, %p198
      %p200 = scmp.ne.s32.totalorder %s186, %s187
      %p201 = scmp.eq.s32.totalorder %s27, 3
      %p202 = por %p200, %p201
      %p204 = scmp.ne.s32.totalorder %s187, %s203
      %p205 = scmp.eq.s32.totalorder %s27, 0
      %p206 = por %p204, %p205
      %p207 = scmp.le.s32.totalorder 1, %s21
      %p208 = scmp.lt.s32.totalorder %s21, 5
      %p209 = pnand %p207, %p208
      %p210 = pneg %p209
      // Predicated region
      $region9: #{tpu_custom_call.1} parent=5 // pred_check
        _
      $region10: #{tpu_custom_call.1} parent=5 // pred_check_branch
        %212 = sbr.rel (%p209) target = $region12
      $region11: #{tpu_custom_call.1} parent=5 // pred_region
        %s213 = ssub.s32 %s21, 1
        // Predicated region
        $region13: #{tpu_custom_call.1} parent=11 // pred_check
          %p214 = pneg %p110
        $region14: #{tpu_custom_call.1} parent=11 // pred_check_branch
          %216 = sbr.rel (%p214) target = $region16
        $region15: #{tpu_custom_call.1} parent=11 // pred_region
          _
        $region16: #{tpu_custom_call.1} parent=11 // pred_fallthru
          _
        // Predicated region
        $region17: #{tpu_custom_call.1} parent=11 // pred_check
          %p217 = pneg %p131
        $region18: #{tpu_custom_call.1} parent=11 // pred_check_branch
          %219 = sbr.rel (%p217) target = $region20
        $region19: #{tpu_custom_call.1} parent=11 // pred_region
          _
        $region20: #{tpu_custom_call.1} parent=11 // pred_fallthru
          _
        // Predicated region
        $region21: #{tpu_custom_call.1} parent=11 // pred_check
          %p220 = pneg %p152
        $region22: #{tpu_custom_call.1} parent=11 // pred_check_branch
          %222 = sbr.rel (%p220) target = $region24
        $region23: #{tpu_custom_call.1} parent=11 // pred_region
          %s224 = ssub.s32 8192, 8192
          %225 = vsyncadd [#allocation7], %s224
          %s226 = sshll.u32 [#allocation8], 4
          %s227 = int_to_ptr.vmem [resolvable:$true] %s226
          %232 = dma.hbm_to_vmem [thread:$0]  %s4, 8192, %s227, [#allocation7], 1024, 1024, 64
        $region24: #{tpu_custom_call.1} parent=11 // pred_fallthru
          _
        // Predicated region
        $region25: #{tpu_custom_call.1} parent=11 // pred_check
          %p233 = pneg %p173
        $region26: #{tpu_custom_call.1} parent=11 // pred_check_branch
          %235 = sbr.rel (%p233) target = $region28
        $region27: #{tpu_custom_call.1} parent=11 // pred_region
          _
        $region28: #{tpu_custom_call.1} parent=11 // pred_fallthru
          _
      $region12: #{tpu_custom_call.1} parent=5 // pred_fallthru
        _
      %p236 = scmp.lt.s32.totalorder %s21, 4
      // Predicated region
      $region29: #{tpu_custom_call.1} parent=5 // pred_check
        %p237 = pneg %p236
      $region30: #{tpu_custom_call.1} parent=5 // pred_check_branch
        %239 = sbr.rel (%p237) target = $region32
      $region31: #{tpu_custom_call.1} parent=5 // pred_region
        // Predicated region
        $region33: #{tpu_custom_call.1} parent=31 // pred_check
          %p240 = pneg %p57
        $region34: #{tpu_custom_call.1} parent=31 // pred_check_branch
          %242 = sbr.rel (%p240) target = $region36
        $region35: #{tpu_custom_call.1} parent=31 // pred_region
          %s243 = sand.u32 %s47, 1
          %s244 = scalar_lea.sflag [#allocation4], %s243
          %s245 = sand.u32 %s47, 1
          %s246 = smul.addr %s245, 256
          %s247 = scalar_lea.vmem [#allocation3], %s246
          %s248 = smul.u32 %s28, 2
          %s249 = sadd.s32 %s248, %s29
          %s250 = smul.u32 64, %s249
          %s252 = ssub.s32 4096, 4096
          %253 = vsyncadd %s244, %s252
          %s254 = smul.addr %s250, 64
          %s255 = scalar_lea.hbm %s0, %s254
          %s256 = sshll.u32 %s247, 4
          %s257 = int_to_ptr.vmem [resolvable:$true] %s256
          %262 = dma.hbm_to_vmem [thread:$0]  %s255, 4096, %s257, %s244, 64, 64, 4
        $region36: #{tpu_custom_call.1} parent=31 // pred_fallthru
          _
        // Predicated region
        $region37: #{tpu_custom_call.1} parent=31 // pred_check
          %p263 = pneg %p83
        $region38: #{tpu_custom_call.1} parent=31 // pred_check_branch
          %265 = sbr.rel (%p263) target = $region40
        $region39: #{tpu_custom_call.1} parent=31 // pred_region
          %s266 = sand.u32 %s21, 1
          %s267 = scalar_lea.sflag [#allocation7], %s266
          %s268 = sand.u32 %s73, 1
          %s269 = smul.addr %s268, 128
          %s270 = scalar_lea.vmem [#allocation6], %s269
          %s271 = smul.u32 4, %s29
          %s273 = ssub.s32 2048, 2048
          %274 = vsyncadd %s267, %s273
          %s275 = smul.addr %s271, 64
          %s276 = scalar_lea.hbm %s1, %s275
          %s277 = sshll.u32 %s270, 4
          %s278 = int_to_ptr.vmem [resolvable:$true] %s277
          %283 = dma.hbm_to_vmem [thread:$0]  %s276, 2048, %s278, %s267, 512, 256, 16
        $region40: #{tpu_custom_call.1} parent=31 // pred_fallthru
          _
      $region32: #{tpu_custom_call.1} parent=5 // pred_fallthru
        _
      %p284 = scmp.le.s32.totalorder 1, %s21
      %p285 = scmp.lt.s32.totalorder %s21, 5
      %p286 = pnand %p284, %p285
      %p287 = pneg %p286
      // Predicated region
      $region41: #{tpu_custom_call.1} parent=5 // pred_check
        _
      $region42: #{tpu_custom_call.1} parent=5 // pred_check_branch
        %289 = sbr.rel (%p286) target = $region44
      $region43: #{tpu_custom_call.1} parent=5 // pred_region
        %s290 = ssub.s32 %s21, 1
        %s291 = sand.u32 %s50, 1
        %s292 = scalar_lea.sflag [#allocation4], %s291
        %s293 = sand.u32 %s50, 1
        %s294 = smul.addr %s293, 256
        %s295 = scalar_lea.vmem [#allocation3], %s294
        // Predicated region
        $region45: #{tpu_custom_call.1} parent=43 // pred_check
          %p296 = pneg %p63
        $region46: #{tpu_custom_call.1} parent=43 // pred_check_branch
          %298 = sbr.rel (%p296) target = $region48
        $region47: #{tpu_custom_call.1} parent=43 // pred_region
          %299 = dma.done %s292, 4096
        $region48: #{tpu_custom_call.1} parent=43 // pred_fallthru
          _
        %s300 = sand.u32 %s26, 1
        %s301 = scalar_lea.sflag [#allocation7], %s300
        %s302 = sand.u32 %s76, 1
        %s303 = smul.addr %s302, 128
        %s304 = scalar_lea.vmem [#allocation6], %s303
        // Predicated region
        $region49: #{tpu_custom_call.1} parent=43 // pred_check
          %p305 = pneg %p89
        $region50: #{tpu_custom_call.1} parent=43 // pred_check_branch
          %307 = sbr.rel (%p305) target = $region52
        $region51: #{tpu_custom_call.1} parent=43 // pred_region
          %308 = dma.done %s301, 2048
        $region52: #{tpu_custom_call.1} parent=43 // pred_fallthru
          _
        // Predicated region
        $region53: #{tpu_custom_call.1} parent=43 // pred_check
          %p309 = pneg %p152
        $region54: #{tpu_custom_call.1} parent=43 // pred_check_branch
          %311 = sbr.rel (%p309) target = $region56
        $region55: #{tpu_custom_call.1} parent=43 // pred_region
          %312 = dma.done [#allocation7], 8192
        $region56: #{tpu_custom_call.1} parent=43 // pred_fallthru
          _
        %s313 = sand.u32 %s50, 1
        %s314 = scalar_lea.sflag [#allocation4], %s313
        %s315 = sand.u32 %s50, 1
        %s316 = smul.addr %s315, 256
        %s317 = scalar_lea.vmem [#allocation3], %s316
        %p318 = pneg %p63
        %p319 = pneg %p60
        %s320 = sand.u32 %s26, 1
        %s321 = scalar_lea.sflag [#allocation7], %s320
        %s322 = sand.u32 %s76, 1
        %s323 = smul.addr %s322, 128
        %s324 = scalar_lea.vmem [#allocation6], %s323
        %p325 = pneg %p89
        %p326 = pneg %p86
        %p327 = pneg %p110
        %p328 = pneg %p107
        %p329 = pneg %p131
        %p330 = pneg %p128
        %p331 = pneg %p152
        %p332 = pneg %p149
        %p333 = pneg %p173
        %p334 = pneg %p170
        %p335 = pneg %p199
        %p336 = pneg %p196
        %s337 = sand.u32 %s186, 1
        %s338 = scalar_lea.sflag [#allocation5], %s337
        %s339 = sand.u32 %s186, 1
        %s340 = smul.addr %s339, 1024
        %s341 = scalar_lea.vmem [#allocation9], %s340
        %s342 = smul.u32 %s30, 2
        %s343 = sadd.s32 %s342, %s31
        %s344 = smul.u32 64, %s343
        %s345 = smul.u32 4, %s31
        %p347 = scmp.eq.s32.totalorder %s31, 0
        // Predicated region
        $region57: #{tpu_custom_call.1} parent=43 // pred_check
          %p348 = pneg %p347
        $region58: #{tpu_custom_call.1} parent=43 // pred_check_branch
          %350 = sbr.rel (%p348) target = $region60
        $region59: #{tpu_custom_call.1} parent=43 // pred_region
          %351 = vst [vmem:[#allocation2] sm:$0xff] 0.0
          %352 = vst [vmem:[#allocation2 + $0x8] sm:$0xff] 0.0
          %353 = vst [vmem:[#allocation2 + $0x10] sm:$0xff] 0.0
          %354 = vst [vmem:[#allocation2 + $0x18] sm:$0xff] 0.0
          %355 = vst [vmem:[#allocation2 + $0x20] sm:$0xff] 0.0
          %356 = vst [vmem:[#allocation2 + $0x28] sm:$0xff] 0.0
          %357 = vst [vmem:[#allocation2 + $0x30] sm:$0xff] 0.0
          %358 = vst [vmem:[#allocation2 + $0x38] sm:$0xff] 0.0
          %359 = vst [vmem:[#allocation2 + $0x40] sm:$0xff] 0.0
          %360 = vst [vmem:[#allocation2 + $0x48] sm:$0xff] 0.0
          %361 = vst [vmem:[#allocation2 + $0x50] sm:$0xff] 0.0
          %362 = vst [vmem:[#allocation2 + $0x58] sm:$0xff] 0.0
          %363 = vst [vmem:[#allocation2 + $0x60] sm:$0xff] 0.0
          %364 = vst [vmem:[#allocation2 + $0x68] sm:$0xff] 0.0
          %365 = vst [vmem:[#allocation2 + $0x70] sm:$0xff] 0.0
          %366 = vst [vmem:[#allocation2 + $0x78] sm:$0xff] 0.0
          %367 = vst [vmem:[#allocation2 + $0x80] sm:$0xff] 0.0
          %368 = vst [vmem:[#allocation2 + $0x88] sm:$0xff] 0.0
          %369 = vst [vmem:[#allocation2 + $0x90] sm:$0xff] 0.0
          %370 = vst [vmem:[#allocation2 + $0x98] sm:$0xff] 0.0
          %371 = vst [vmem:[#allocation2 + $0xa0] sm:$0xff] 0.0
          %372 = vst [vmem:[#allocation2 + $0xa8] sm:$0xff] 0.0
          %373 = vst [vmem:[#allocation2 + $0xb0] sm:$0xff] 0.0
          %374 = vst [vmem:[#allocation2 + $0xb8] sm:$0xff] 0.0
          %375 = vst [vmem:[#allocation2 + $0xc0] sm:$0xff] 0.0
          %376 = vst [vmem:[#allocation2 + $0xc8] sm:$0xff] 0.0
          %377 = vst [vmem:[#allocation2 + $0xd0] sm:$0xff] 0.0
          %378 = vst [vmem:[#allocation2 + $0xd8] sm:$0xff] 0.0
          %379 = vst [vmem:[#allocation2 + $0xe0] sm:$0xff] 0.0
          %380 = vst [vmem:[#allocation2 + $0xe8] sm:$0xff] 0.0
          %381 = vst [vmem:[#allocation2 + $0xf0] sm:$0xff] 0.0
          %382 = vst [vmem:[#allocation2 + $0xf8] sm:$0xff] 0.0
          %383 = vst [vmem:[#allocation2 + $0x100] sm:$0xff] 0.0
          %384 = vst [vmem:[#allocation2 + $0x108] sm:$0xff] 0.0
          %385 = vst [vmem:[#allocation2 + $0x110] sm:$0xff] 0.0
          %386 = vst [vmem:[#allocation2 + $0x118] sm:$0xff] 0.0
          %387 = vst [vmem:[#allocation2 + $0x120] sm:$0xff] 0.0
          %388 = vst [vmem:[#allocation2 + $0x128] sm:$0xff] 0.0
          %389 = vst [vmem:[#allocation2 + $0x130] sm:$0xff] 0.0
          %390 = vst [vmem:[#allocation2 + $0x138] sm:$0xff] 0.0
          %391 = vst [vmem:[#allocation2 + $0x140] sm:$0xff] 0.0
          %392 = vst [vmem:[#allocation2 + $0x148] sm:$0xff] 0.0
          %393 = vst [vmem:[#allocation2 + $0x150] sm:$0xff] 0.0
          %394 = vst [vmem:[#allocation2 + $0x158] sm:$0xff] 0.0
          %395 = vst [vmem:[#allocation2 + $0x160] sm:$0xff] 0.0
          %396 = vst [vmem:[#allocation2 + $0x168] sm:$0xff] 0.0
          %397 = vst [vmem:[#allocation2 + $0x170] sm:$0xff] 0.0
          %398 = vst [vmem:[#allocation2 + $0x178] sm:$0xff] 0.0
          %399 = vst [vmem:[#allocation2 + $0x180] sm:$0xff] 0.0
          %400 = vst [vmem:[#allocation2 + $0x188] sm:$0xff] 0.0
          %401 = vst [vmem:[#allocation2 + $0x190] sm:$0xff] 0.0
          %402 = vst [vmem:[#allocation2 + $0x198] sm:$0xff] 0.0
          %403 = vst [vmem:[#allocation2 + $0x1a0] sm:$0xff] 0.0
          %404 = vst [vmem:[#allocation2 + $0x1a8] sm:$0xff] 0.0
          %405 = vst [vmem:[#allocation2 + $0x1b0] sm:$0xff] 0.0
          %406 = vst [vmem:[#allocation2 + $0x1b8] sm:$0xff] 0.0
          %407 = vst [vmem:[#allocation2 + $0x1c0] sm:$0xff] 0.0
          %408 = vst [vmem:[#allocation2 + $0x1c8] sm:$0xff] 0.0
          %409 = vst [vmem:[#allocation2 + $0x1d0] sm:$0xff] 0.0
          %410 = vst [vmem:[#allocation2 + $0x1d8] sm:$0xff] 0.0
          %411 = vst [vmem:[#allocation2 + $0x1e0] sm:$0xff] 0.0
          %412 = vst [vmem:[#allocation2 + $0x1e8] sm:$0xff] 0.0
          %413 = vst [vmem:[#allocation2 + $0x1f0] sm:$0xff] 0.0
          %414 = vst [vmem:[#allocation2 + $0x1f8] sm:$0xff] 0.0
          %415 = vst [vmem:[#allocation2 + $0x200] sm:$0xff] 0.0
          %416 = vst [vmem:[#allocation2 + $0x208] sm:$0xff] 0.0
          %417 = vst [vmem:[#allocation2 + $0x210] sm:$0xff] 0.0
          %418 = vst [vmem:[#allocation2 + $0x218] sm:$0xff] 0.0
          %419 = vst [vmem:[#allocation2 + $0x220] sm:$0xff] 0.0
          %420 = vst [vmem:[#allocation2 + $0x228] sm:$0xff] 0.0
          %421 = vst [vmem:[#allocation2 + $0x230] sm:$0xff] 0.0
          %422 = vst [vmem:[#allocation2 + $0x238] sm:$0xff] 0.0
          %423 = vst [vmem:[#allocation2 + $0x240] sm:$0xff] 0.0
          %424 = vst [vmem:[#allocation2 + $0x248] sm:$0xff] 0.0
          %425 = vst [vmem:[#allocation2 + $0x250] sm:$0xff] 0.0
          %426 = vst [vmem:[#allocation2 + $0x258] sm:$0xff] 0.0
          %427 = vst [vmem:[#allocation2 + $0x260] sm:$0xff] 0.0
          %428 = vst [vmem:[#allocation2 + $0x268] sm:$0xff] 0.0
          %429 = vst [vmem:[#allocation2 + $0x270] sm:$0xff] 0.0
          %430 = vst [vmem:[#allocation2 + $0x278] sm:$0xff] 0.0
          %431 = vst [vmem:[#allocation2 + $0x280] sm:$0xff] 0.0
          %432 = vst [vmem:[#allocation2 + $0x288] sm:$0xff] 0.0
          %433 = vst [vmem:[#allocation2 + $0x290] sm:$0xff] 0.0
          %434 = vst [vmem:[#allocation2 + $0x298] sm:$0xff] 0.0
          %435 = vst [vmem:[#allocation2 + $0x2a0] sm:$0xff] 0.0
          %436 = vst [vmem:[#allocation2 + $0x2a8] sm:$0xff] 0.0
          %437 = vst [vmem:[#allocation2 + $0x2b0] sm:$0xff] 0.0
          %438 = vst [vmem:[#allocation2 + $0x2b8] sm:$0xff] 0.0
          %439 = vst [vmem:[#allocation2 + $0x2c0] sm:$0xff] 0.0
          %440 = vst [vmem:[#allocation2 + $0x2c8] sm:$0xff] 0.0
          %441 = vst [vmem:[#allocation2 + $0x2d0] sm:$0xff] 0.0
          %442 = vst [vmem:[#allocation2 + $0x2d8] sm:$0xff] 0.0
          %443 = vst [vmem:[#allocation2 + $0x2e0] sm:$0xff] 0.0
          %444 = vst [vmem:[#allocation2 + $0x2e8] sm:$0xff] 0.0
          %445 = vst [vmem:[#allocation2 + $0x2f0] sm:$0xff] 0.0
          %446 = vst [vmem:[#allocation2 + $0x2f8] sm:$0xff] 0.0
          %447 = vst [vmem:[#allocation2 + $0x300] sm:$0xff] 0.0
          %448 = vst [vmem:[#allocation2 + $0x308] sm:$0xff] 0.0
          %449 = vst [vmem:[#allocation2 + $0x310] sm:$0xff] 0.0
          %450 = vst [vmem:[#allocation2 + $0x318] sm:$0xff] 0.0
          %451 = vst [vmem:[#allocation2 + $0x320] sm:$0xff] 0.0
          %452 = vst [vmem:[#allocation2 + $0x328] sm:$0xff] 0.0
          %453 = vst [vmem:[#allocation2 + $0x330] sm:$0xff] 0.0
          %454 = vst [vmem:[#allocation2 + $0x338] sm:$0xff] 0.0
          %455 = vst [vmem:[#allocation2 + $0x340] sm:$0xff] 0.0
          %456 = vst [vmem:[#allocation2 + $0x348] sm:$0xff] 0.0
          %457 = vst [vmem:[#allocation2 + $0x350] sm:$0xff] 0.0
          %458 = vst [vmem:[#allocation2 + $0x358] sm:$0xff] 0.0
          %459 = vst [vmem:[#allocation2 + $0x360] sm:$0xff] 0.0
          %460 = vst [vmem:[#allocation2 + $0x368] sm:$0xff] 0.0
          %461 = vst [vmem:[#allocation2 + $0x370] sm:$0xff] 0.0
          %462 = vst [vmem:[#allocation2 + $0x378] sm:$0xff] 0.0
          %463 = vst [vmem:[#allocation2 + $0x380] sm:$0xff] 0.0
          %464 = vst [vmem:[#allocation2 + $0x388] sm:$0xff] 0.0
          %465 = vst [vmem:[#allocation2 + $0x390] sm:$0xff] 0.0
          %466 = vst [vmem:[#allocation2 + $0x398] sm:$0xff] 0.0
          %467 = vst [vmem:[#allocation2 + $0x3a0] sm:$0xff] 0.0
          %468 = vst [vmem:[#allocation2 + $0x3a8] sm:$0xff] 0.0
          %469 = vst [vmem:[#allocation2 + $0x3b0] sm:$0xff] 0.0
          %470 = vst [vmem:[#allocation2 + $0x3b8] sm:$0xff] 0.0
          %471 = vst [vmem:[#allocation2 + $0x3c0] sm:$0xff] 0.0
          %472 = vst [vmem:[#allocation2 + $0x3c8] sm:$0xff] 0.0
          %473 = vst [vmem:[#allocation2 + $0x3d0] sm:$0xff] 0.0
          %474 = vst [vmem:[#allocation2 + $0x3d8] sm:$0xff] 0.0
          %475 = vst [vmem:[#allocation2 + $0x3e0] sm:$0xff] 0.0
          %476 = vst [vmem:[#allocation2 + $0x3e8] sm:$0xff] 0.0
          %477 = vst [vmem:[#allocation2 + $0x3f0] sm:$0xff] 0.0
          %478 = vst [vmem:[#allocation2 + $0x3f8] sm:$0xff] 0.0
        $region60: #{tpu_custom_call.1} parent=43 // pred_fallthru
          _
        %v479 = vld [vmem:[%s295] sm:$0xf]
        %v480 = vld [vmem:[%s295 + $0x4] sm:$0xf]
        %v481 = vld [vmem:[%s295 + $0x8] sm:$0xf]
        %v482 = vld [vmem:[%s295 + $0xc] sm:$0xf]
        %v483 = vld [vmem:[%s295 + $0x10] sm:$0xf]
        %v484 = vld [vmem:[%s295 + $0x14] sm:$0xf]
        %v485 = vld [vmem:[%s295 + $0x18] sm:$0xf]
        %v486 = vld [vmem:[%s295 + $0x1c] sm:$0xf]
        %v487 = vld [vmem:[%s295 + $0x20] sm:$0xf]
        %v488 = vld [vmem:[%s295 + $0x24] sm:$0xf]
        %v489 = vld [vmem:[%s295 + $0x28] sm:$0xf]
        %v490 = vld [vmem:[%s295 + $0x2c] sm:$0xf]
        %v491 = vld [vmem:[%s295 + $0x30] sm:$0xf]
        %v492 = vld [vmem:[%s295 + $0x34] sm:$0xf]
        %v493 = vld [vmem:[%s295 + $0x38] sm:$0xf]
        %v494 = vld [vmem:[%s295 + $0x3c] sm:$0xf]
        %v495 = vld [vmem:[%s295 + $0x40] sm:$0xf]
        %v496 = vld [vmem:[%s295 + $0x44] sm:$0xf]
        %v497 = vld [vmem:[%s295 + $0x48] sm:$0xf]
        %v498 = vld [vmem:[%s295 + $0x4c] sm:$0xf]
        %v499 = vld [vmem:[%s295 + $0x50] sm:$0xf]
        %v500 = vld [vmem:[%s295 + $0x54] sm:$0xf]
        %v501 = vld [vmem:[%s295 + $0x58] sm:$0xf]
        %v502 = vld [vmem:[%s295 + $0x5c] sm:$0xf]
        %v503 = vld [vmem:[%s295 + $0x60] sm:$0xf]
        %v504 = vld [vmem:[%s295 + $0x64] sm:$0xf]
        %v505 = vld [vmem:[%s295 + $0x68] sm:$0xf]
        %v506 = vld [vmem:[%s295 + $0x6c] sm:$0xf]
        %v507 = vld [vmem:[%s295 + $0x70] sm:$0xf]
        %v508 = vld [vmem:[%s295 + $0x74] sm:$0xf]
        %v509 = vld [vmem:[%s295 + $0x78] sm:$0xf]
        %v510 = vld [vmem:[%s295 + $0x7c] sm:$0xf]
        %v511 = vld [vmem:[%s295 + $0x80] sm:$0xf]
        %v512 = vld [vmem:[%s295 + $0x84] sm:$0xf]
        %v513 = vld [vmem:[%s295 + $0x88] sm:$0xf]
        %v514 = vld [vmem:[%s295 + $0x8c] sm:$0xf]
        %v515 = vld [vmem:[%s295 + $0x90] sm:$0xf]
        %v516 = vld [vmem:[%s295 + $0x94] sm:$0xf]
        %v517 = vld [vmem:[%s295 + $0x98] sm:$0xf]
        %v518 = vld [vmem:[%s295 + $0x9c] sm:$0xf]
        %v519 = vld [vmem:[%s295 + $0xa0] sm:$0xf]
        %v520 = vld [vmem:[%s295 + $0xa4] sm:$0xf]
        %v521 = vld [vmem:[%s295 + $0xa8] sm:$0xf]
        %v522 = vld [vmem:[%s295 + $0xac] sm:$0xf]
        %v523 = vld [vmem:[%s295 + $0xb0] sm:$0xf]
        %v524 = vld [vmem:[%s295 + $0xb4] sm:$0xf]
        %v525 = vld [vmem:[%s295 + $0xb8] sm:$0xf]
        %v526 = vld [vmem:[%s295 + $0xbc] sm:$0xf]
        %v527 = vld [vmem:[%s295 + $0xc0] sm:$0xf]
        %v528 = vld [vmem:[%s295 + $0xc4] sm:$0xf]
        %v529 = vld [vmem:[%s295 + $0xc8] sm:$0xf]
        %v530 = vld [vmem:[%s295 + $0xcc] sm:$0xf]
        %v531 = vld [vmem:[%s295 + $0xd0] sm:$0xf]
        %v532 = vld [vmem:[%s295 + $0xd4] sm:$0xf]
        %v533 = vld [vmem:[%s295 + $0xd8] sm:$0xf]
        %v534 = vld [vmem:[%s295 + $0xdc] sm:$0xf]
        %v535 = vld [vmem:[%s295 + $0xe0] sm:$0xf]
        %v536 = vld [vmem:[%s295 + $0xe4] sm:$0xf]
        %v537 = vld [vmem:[%s295 + $0xe8] sm:$0xf]
        %v538 = vld [vmem:[%s295 + $0xec] sm:$0xf]
        %v539 = vld [vmem:[%s295 + $0xf0] sm:$0xf]
        %v540 = vld [vmem:[%s295 + $0xf4] sm:$0xf]
        %v541 = vld [vmem:[%s295 + $0xf8] sm:$0xf]
        %v542 = vld [vmem:[%s295 + $0xfc] sm:$0xf]
        %v543 = vld [vmem:[%s2] sm:$0xf]
        %v544 = vld [vmem:[%s2 + $0x4] sm:$0xf]
        %v545 = vld [vmem:[%s2 + $0x8] sm:$0xf]
        %v546 = vld [vmem:[%s2 + $0xc] sm:$0xf]
        %v547 = vld [vmem:[%s2 + $0x10] sm:$0xf]
        %v548 = vld [vmem:[%s2 + $0x14] sm:$0xf]
        %v549 = vld [vmem:[%s2 + $0x18] sm:$0xf]
        %v550 = vld [vmem:[%s2 + $0x1c] sm:$0xf]
        %v551 = vld [vmem:[%s2 + $0x20] sm:$0xf]
        %v552 = vld [vmem:[%s2 + $0x24] sm:$0xf]
        %v553 = vld [vmem:[%s2 + $0x28] sm:$0xf]
        %v554 = vld [vmem:[%s2 + $0x2c] sm:$0xf]
        %v555 = vld [vmem:[%s2 + $0x30] sm:$0xf]
        %v556 = vld [vmem:[%s2 + $0x34] sm:$0xf]
        %v557 = vld [vmem:[%s2 + $0x38] sm:$0xf]
        %v558 = vld [vmem:[%s2 + $0x3c] sm:$0xf]
        %v559 = vld [vmem:[%s3] sm:$0x1]
        %v561 = vlaneseq
        %v562 = vshrl.u32 %v561, 7
        %v563 = vsub.s32 0, %v562
        %v564 = vrot.slane %v559, %v563
        %v630 = vunpack.c.l.b16 %v479
        %v631 = vunpack.c.l.b16 %v480
        %v632 = vunpack.c.l.b16 %v481
        %v633 = vunpack.c.l.b16 %v482
        %v634 = vunpack.c.l.b16 %v483
        %v635 = vunpack.c.l.b16 %v484
        %v636 = vunpack.c.l.b16 %v485
        %v637 = vunpack.c.l.b16 %v486
        %v638 = vunpack.c.l.b16 %v487
        %v639 = vunpack.c.l.b16 %v488
        %v640 = vunpack.c.l.b16 %v489
        %v641 = vunpack.c.l.b16 %v490
        %v642 = vunpack.c.l.b16 %v491
        %v643 = vunpack.c.l.b16 %v492
        %v644 = vunpack.c.l.b16 %v493
        %v645 = vunpack.c.l.b16 %v494
        %v646 = vunpack.c.l.b16 %v495
        %v647 = vunpack.c.l.b16 %v496
        %v648 = vunpack.c.l.b16 %v497
        %v649 = vunpack.c.l.b16 %v498
        %v650 = vunpack.c.l.b16 %v499
        %v651 = vunpack.c.l.b16 %v500
        %v652 = vunpack.c.l.b16 %v501
        %v653 = vunpack.c.l.b16 %v502
        %v654 = vunpack.c.l.b16 %v503
        %v655 = vunpack.c.l.b16 %v504
        %v656 = vunpack.c.l.b16 %v505
        %v657 = vunpack.c.l.b16 %v506
        %v658 = vunpack.c.l.b16 %v507
        %v659 = vunpack.c.l.b16 %v508
        %v660 = vunpack.c.l.b16 %v509
        %v661 = vunpack.c.l.b16 %v510
        %v662 = vunpack.c.l.b16 %v511
        %v663 = vunpack.c.l.b16 %v512
        %v664 = vunpack.c.l.b16 %v513
        %v665 = vunpack.c.l.b16 %v514
        %v666 = vunpack.c.l.b16 %v515
        %v667 = vunpack.c.l.b16 %v516
        %v668 = vunpack.c.l.b16 %v517
        %v669 = vunpack.c.l.b16 %v518
        %v670 = vunpack.c.l.b16 %v519
        %v671 = vunpack.c.l.b16 %v520
        %v672 = vunpack.c.l.b16 %v521
        %v673 = vunpack.c.l.b16 %v522
        %v674 = vunpack.c.l.b16 %v523
        %v675 = vunpack.c.l.b16 %v524
        %v676 = vunpack.c.l.b16 %v525
        %v677 = vunpack.c.l.b16 %v526
        %v678 = vunpack.c.l.b16 %v527
        %v679 = vunpack.c.l.b16 %v528
        %v680 = vunpack.c.l.b16 %v529
        %v681 = vunpack.c.l.b16 %v530
        %v682 = vunpack.c.l.b16 %v531
        %v683 = vunpack.c.l.b16 %v532
        %v684 = vunpack.c.l.b16 %v533
        %v685 = vunpack.c.l.b16 %v534
        %v686 = vunpack.c.l.b16 %v535
        %v687 = vunpack.c.l.b16 %v536
        %v688 = vunpack.c.l.b16 %v537
        %v689 = vunpack.c.l.b16 %v538
        %v690 = vunpack.c.l.b16 %v539
        %v691 = vunpack.c.l.b16 %v540
        %v692 = vunpack.c.l.b16 %v541
        %v693 = vunpack.c.l.b16 %v542
        %v694 = vpack.c.b16 %v631, %v630
        %v695 = vpack.c.b16 %v633, %v632
        %v696 = vpack.c.b16 %v635, %v634
        %v697 = vpack.c.b16 %v637, %v636
        %v698 = vpack.c.b16 %v639, %v638
        %v699 = vpack.c.b16 %v641, %v640
        %v700 = vpack.c.b16 %v643, %v642
        %v701 = vpack.c.b16 %v645, %v644
        %v702 = vpack.c.b16 %v647, %v646
        %v703 = vpack.c.b16 %v649, %v648
        %v704 = vpack.c.b16 %v651, %v650
        %v705 = vpack.c.b16 %v653, %v652
        %v706 = vpack.c.b16 %v655, %v654
        %v707 = vpack.c.b16 %v657, %v656
        %v708 = vpack.c.b16 %v659, %v658
        %v709 = vpack.c.b16 %v661, %v660
        %v710 = vpack.c.b16 %v663, %v662
        %v711 = vpack.c.b16 %v665, %v664
        %v712 = vpack.c.b16 %v667, %v666
        %v713 = vpack.c.b16 %v669, %v668
        %v714 = vpack.c.b16 %v671, %v670
        %v715 = vpack.c.b16 %v673, %v672
        %v716 = vpack.c.b16 %v675, %v674
        %v717 = vpack.c.b16 %v677, %v676
        %v718 = vpack.c.b16 %v679, %v678
        %v719 = vpack.c.b16 %v681, %v680
        %v720 = vpack.c.b16 %v683, %v682
        %v721 = vpack.c.b16 %v685, %v684
        %v722 = vpack.c.b16 %v687, %v686
        %v723 = vpack.c.b16 %v689, %v688
        %v724 = vpack.c.b16 %v691, %v690
        %v725 = vpack.c.b16 %v693, %v692
        %v774 = vunpack.c.l.b16 %v543
        %v775 = vunpack.c.l.b16 %v544
        %v776 = vunpack.c.l.b16 %v545
        %v777 = vunpack.c.l.b16 %v546
        %v778 = vunpack.c.l.b16 %v547
        %v779 = vunpack.c.l.b16 %v548
        %v780 = vunpack.c.l.b16 %v549
        %v781 = vunpack.c.l.b16 %v550
        %v782 = vunpack.c.l.b16 %v551
        %v783 = vunpack.c.l.b16 %v552
        %v784 = vunpack.c.l.b16 %v553
        %v785 = vunpack.c.l.b16 %v554
        %v786 = vunpack.c.l.b16 %v555
        %v787 = vunpack.c.l.b16 %v556
        %v788 = vunpack.c.l.b16 %v557
        %v789 = vunpack.c.l.b16 %v558
        %v790 = vpack.c.b16 %v775, %v774
        %v791 = vpack.c.b16 %v777, %v776
        %v792 = vpack.c.b16 %v779, %v778
        %v793 = vpack.c.b16 %v781, %v780
        %v794 = vpack.c.b16 %v783, %v782
        %v795 = vpack.c.b16 %v785, %v784
        %v796 = vpack.c.b16 %v787, %v786
        %v797 = vpack.c.b16 %v789, %v788
        %806 = vmatprep.subr.bf16.mxu0 0
        %807 = vmatpush1.bf16.msra.mxu0 %v790
        %808 = vmatprep.subr.bf16.mxu0 0
        %809 = vmatpush1.bf16.msra.mxu0 %v791
        %810 = vmatprep.subr.bf16.mxu0 0
        %811 = vmatpush1.bf16.msra.mxu0 %v792
        %812 = vmatprep.subr.bf16.mxu0 0
        %813 = vmatpush1.bf16.msra.mxu0 %v793
        %814 = vmatprep.subr.bf16.mxu0 0
        %815 = vmatpush1.bf16.msra.mxu0 %v794
        %816 = vmatprep.subr.bf16.mxu0 0
        %817 = vmatpush1.bf16.msra.mxu0 %v795
        %818 = vmatprep.subr.bf16.mxu0 0
        %819 = vmatpush1.bf16.msra.mxu0 %v796
        %820 = vmatprep.subr.bf16.mxu0 0
        %821 = vmatpush1.bf16.msra.mxu0 %v797
        %822 = vmatprep.subr.bf16.mxu0 0
        %823 = vmatpush1.bf16.msra.mxu0 0
        %824 = vmatprep.subr.bf16.mxu0 0
        %825 = vmatpush1.bf16.msra.mxu0 0
        %826 = vmatprep.subr.bf16.mxu0 0
        %827 = vmatpush1.bf16.msra.mxu0 0
        %828 = vmatprep.subr.bf16.mxu0 0
        %829 = vmatpush1.bf16.msra.mxu0 0
        %830 = vmatprep.subr.bf16.mxu0 0
        %831 = vmatpush1.bf16.msra.mxu0 0
        %832 = vmatprep.subr.bf16.mxu0 0
        %833 = vmatpush1.bf16.msra.mxu0 0
        %834 = vmatprep.subr.bf16.mxu0 0
        %835 = vmatpush1.bf16.msra.mxu0 0
        %836 = vmatprep.subr.bf16.mxu0 0
        %837 = vmatpush1.bf16.msra.mxu0 0
        %838 = vmatprep.mubr.bf16.mxu0 0
        %839 = vmatmul.mubr.bf16.gmra.mrb[0].mxu0 %v694
        %v840 = vpop.f32.mrb[0].mxu0
        %v841 = vadd.f32 %v564, %v840
        %v842 = vpop.f32.mrb[0].mxu0
        %v843 = vpop.f32.mrb[0].mxu0
        %v844 = vadd.f32 %v564, %v843
        %v845 = vpop.f32.mrb[0].mxu0
        %846 = vmatprep.mubr.bf16.mxu0 0
        %847 = vmatmul.mubr.bf16.gmra.mrb[0].mxu0 %v695
        %v848 = vpop.f32.mrb[0].mxu0
        %v849 = vadd.f32 %v564, %v848
        %v850 = vpop.f32.mrb[0].mxu0
        %v851 = vpop.f32.mrb[0].mxu0
        %v852 = vadd.f32 %v564, %v851
        %v853 = vpop.f32.mrb[0].mxu0
        %854 = vmatprep.mubr.bf16.mxu0 0
        %855 = vmatmul.mubr.bf16.gmra.mrb[0].mxu0 %v696
        %v856 = vpop.f32.mrb[0].mxu0
        %v857 = vadd.f32 %v564, %v856
        %v858 = vpop.f32.mrb[0].mxu0
        %v859 = vpop.f32.mrb[0].mxu0
        %v860 = vadd.f32 %v564, %v859
        %v861 = vpop.f32.mrb[0].mxu0
        %862 = vmatprep.mubr.bf16.mxu0 0
        %863 = vmatmul.mubr.bf16.gmra.mrb[0].mxu0 %v697
        %v864 = vpop.f32.mrb[0].mxu0
        %v865 = vadd.f32 %v564, %v864
        %v866 = vpop.f32.mrb[0].mxu0
        %v867 = vpop.f32.mrb[0].mxu0
        %v868 = vadd.f32 %v564, %v867
        %v869 = vpop.f32.mrb[0].mxu0
        %870 = vmatprep.mubr.bf16.mxu0 0
        %871 = vmatmul.mubr.bf16.gmra.mrb[0].mxu0 %v698
        %v872 = vpop.f32.mrb[0].mxu0
        %v873 = vadd.f32 %v564, %v872
        %v874 = vpop.f32.mrb[0].mxu0
        %v875 = vpop.f32.mrb[0].mxu0
        %v876 = vadd.f32 %v564, %v875
        %v877 = vpop.f32.mrb[0].mxu0
        %878 = vmatprep.mubr.bf16.mxu0 0
        %879 = vmatmul.mubr.bf16.gmra.mrb[0].mxu0 %v699
        %v880 = vpop.f32.mrb[0].mxu0
        %v881 = vadd.f32 %v564, %v880
        %v882 = vpop.f32.mrb[0].mxu0
        %v883 = vpop.f32.mrb[0].mxu0
        %v884 = vadd.f32 %v564, %v883
        %v885 = vpop.f32.mrb[0].mxu0
        %886 = vmatprep.mubr.bf16.mxu0 0
        %887 = vmatmul.mubr.bf16.gmra.mrb[0].mxu0 %v700
        %v888 = vpop.f32.mrb[0].mxu0
        %v889 = vadd.f32 %v564, %v888
        %v890 = vpop.f32.mrb[0].mxu0
        %v891 = vpop.f32.mrb[0].mxu0
        %v892 = vadd.f32 %v564, %v891
        %v893 = vpop.f32.mrb[0].mxu0
        %894 = vmatprep.mubr.bf16.mxu0 0
        %895 = vmatmul.mubr.bf16.gmra.mrb[0].mxu0 %v701
        %v896 = vpop.f32.mrb[0].mxu0
        %v897 = vadd.f32 %v564, %v896
        %v898 = vpop.f32.mrb[0].mxu0
        %v899 = vpop.f32.mrb[0].mxu0
        %v900 = vadd.f32 %v564, %v899
        %v901 = vpop.f32.mrb[0].mxu0
        %902 = vmatprep.mubr.bf16.mxu0 0
        %903 = vmatmul.mubr.bf16.gmra.mrb[0].mxu0 %v702
        %v904 = vpop.f32.mrb[0].mxu0
        %v905 = vadd.f32 %v564, %v904
        %v906 = vpop.f32.mrb[0].mxu0
        %v907 = vpop.f32.mrb[0].mxu0
        %v908 = vadd.f32 %v564, %v907
        %v909 = vpop.f32.mrb[0].mxu0
        %910 = vmatprep.mubr.bf16.mxu0 0
        %911 = vmatmul.mubr.bf16.gmra.mrb[0].mxu0 %v703
        %v912 = vpop.f32.mrb[0].mxu0
        %v913 = vadd.f32 %v564, %v912
        %v914 = vpop.f32.mrb[0].mxu0
        %v915 = vpop.f32.mrb[0].mxu0
        %v916 = vadd.f32 %v564, %v915
        %v917 = vpop.f32.mrb[0].mxu0
        %918 = vmatprep.mubr.bf16.mxu0 0
        %919 = vmatmul.mubr.bf16.gmra.mrb[0].mxu0 %v704
        %v920 = vpop.f32.mrb[0].mxu0
        %v921 = vadd.f32 %v564, %v920
        %v922 = vpop.f32.mrb[0].mxu0
        %v923 = vpop.f32.mrb[0].mxu0
        %v924 = vadd.f32 %v564, %v923
        %v925 = vpop.f32.mrb[0].mxu0
        %926 = vmatprep.mubr.bf16.mxu0 0
        %927 = vmatmul.mubr.bf16.gmra.mrb[0].mxu0 %v705
        %v928 = vpop.f32.mrb[0].mxu0
        %v929 = vadd.f32 %v564, %v928
        %v930 = vpop.f32.mrb[0].mxu0
        %v931 = vpop.f32.mrb[0].mxu0
        %v932 = vadd.f32 %v564, %v931
        %v933 = vpop.f32.mrb[0].mxu0
        %934 = vmatprep.mubr.bf16.mxu0 0
        %935 = vmatmul.mubr.bf16.gmra.mrb[0].mxu0 %v706
        %v936 = vpop.f32.mrb[0].mxu0
        %v937 = vadd.f32 %v564, %v936
        %v938 = vpop.f32.mrb[0].mxu0
        %v939 = vpop.f32.mrb[0].mxu0
        %v940 = vadd.f32 %v564, %v939
        %v941 = vpop.f32.mrb[0].mxu0
        %942 = vmatprep.mubr.bf16.mxu0 0
        %943 = vmatmul.mubr.bf16.gmra.mrb[0].mxu0 %v707
        %v944 = vpop.f32.mrb[0].mxu0
        %v945 = vadd.f32 %v564, %v944
        %v946 = vpop.f32.mrb[0].mxu0
        %v947 = vpop.f32.mrb[0].mxu0
        %v948 = vadd.f32 %v564, %v947
        %v949 = vpop.f32.mrb[0].mxu0
        %950 = vmatprep.mubr.bf16.mxu0 0
        %951 = vmatmul.mubr.bf16.gmra.mrb[0].mxu0 %v708
        %v952 = vpop.f32.mrb[0].mxu0
        %v953 = vadd.f32 %v564, %v952
        %v954 = vpop.f32.mrb[0].mxu0
        %v955 = vpop.f32.mrb[0].mxu0
        %v956 = vadd.f32 %v564, %v955
        %v957 = vpop.f32.mrb[0].mxu0
        %958 = vmatprep.mubr.bf16.mxu0 0
        %959 = vmatmul.mubr.bf16.gmra.mrb[0].mxu0 %v709
        %v960 = vpop.f32.mrb[0].mxu0
        %v961 = vadd.f32 %v564, %v960
        %v962 = vpop.f32.mrb[0].mxu0
        %v963 = vpop.f32.mrb[0].mxu0
        %v964 = vadd.f32 %v564, %v963
        %v965 = vpop.f32.mrb[0].mxu0
        %966 = vmatprep.mubr.bf16.mxu0 0
        %967 = vmatmul.mubr.bf16.gmra.mrb[0].mxu0 %v710
        %v968 = vpop.f32.mrb[0].mxu0
        %v969 = vadd.f32 %v564, %v968
        %v970 = vpop.f32.mrb[0].mxu0
        %v971 = vpop.f32.mrb[0].mxu0
        %v972 = vadd.f32 %v564, %v971
        %v973 = vpop.f32.mrb[0].mxu0
        %974 = vmatprep.mubr.bf16.mxu0 0
        %975 = vmatmul.mubr.bf16.gmra.mrb[0].mxu0 %v711
        %v976 = vpop.f32.mrb[0].mxu0
        %v977 = vadd.f32 %v564, %v976
        %v978 = vpop.f32.mrb[0].mxu0
        %v979 = vpop.f32.mrb[0].mxu0
        %v980 = vadd.f32 %v564, %v979
        %v981 = vpop.f32.mrb[0].mxu0
        %982 = vmatprep.mubr.bf16.mxu0 0
        %983 = vmatmul.mubr.bf16.gmra.mrb[0].mxu0 %v712
        %v984 = vpop.f32.mrb[0].mxu0
        %v985 = vadd.f32 %v564, %v984
        %v986 = vpop.f32.mrb[0].mxu0
        %v987 = vpop.f32.mrb[0].mxu0
        %v988 = vadd.f32 %v564, %v987
        %v989 = vpop.f32.mrb[0].mxu0
        %990 = vmatprep.mubr.bf16.mxu0 0
        %991 = vmatmul.mubr.bf16.gmra.mrb[0].mxu0 %v713
        %v992 = vpop.f32.mrb[0].mxu0
        %v993 = vadd.f32 %v564, %v992
        %v994 = vpop.f32.mrb[0].mxu0
        %v995 = vpop.f32.mrb[0].mxu0
        %v996 = vadd.f32 %v564, %v995
        %v997 = vpop.f32.mrb[0].mxu0
        %998 = vmatprep.mubr.bf16.mxu0 0
        %999 = vmatmul.mubr.bf16.gmra.mrb[0].mxu0 %v714
        %v1000 = vpop.f32.mrb[0].mxu0
        %v1001 = vadd.f32 %v564, %v1000
        %v1002 = vpop.f32.mrb[0].mxu0
        %v1003 = vpop.f32.mrb[0].mxu0
        %v1004 = vadd.f32 %v564, %v1003
        %v1005 = vpop.f32.mrb[0].mxu0
        %1006 = vmatprep.mubr.bf16.mxu0 0
        %1007 = vmatmul.mubr.bf16.gmra.mrb[0].mxu0 %v715
        %v1008 = vpop.f32.mrb[0].mxu0
        %v1009 = vadd.f32 %v564, %v1008
        %v1010 = vpop.f32.mrb[0].mxu0
        %v1011 = vpop.f32.mrb[0].mxu0
        %v1012 = vadd.f32 %v564, %v1011
        %v1013 = vpop.f32.mrb[0].mxu0
        %1014 = vmatprep.mubr.bf16.mxu0 0
        %1015 = vmatmul.mubr.bf16.gmra.mrb[0].mxu0 %v716
        %v1016 = vpop.f32.mrb[0].mxu0
        %v1017 = vadd.f32 %v564, %v1016
        %v1018 = vpop.f32.mrb[0].mxu0
        %v1019 = vpop.f32.mrb[0].mxu0
        %v1020 = vadd.f32 %v564, %v1019
        %v1021 = vpop.f32.mrb[0].mxu0
        %1022 = vmatprep.mubr.bf16.mxu0 0
        %1023 = vmatmul.mubr.bf16.gmra.mrb[0].mxu0 %v717
        %v1024 = vpop.f32.mrb[0].mxu0
        %v1025 = vadd.f32 %v564, %v1024
        %v1026 = vpop.f32.mrb[0].mxu0
        %v1027 = vpop.f32.mrb[0].mxu0
        %v1028 = vadd.f32 %v564, %v1027
        %v1029 = vpop.f32.mrb[0].mxu0
        %1030 = vmatprep.mubr.bf16.mxu0 0
        %1031 = vmatmul.mubr.bf16.gmra.mrb[0].mxu0 %v718
        %v1032 = vpop.f32.mrb[0].mxu0
        %v1033 = vadd.f32 %v564, %v1032
        %v1034 = vpop.f32.mrb[0].mxu0
        %v1035 = vpop.f32.mrb[0].mxu0
        %v1036 = vadd.f32 %v564, %v1035
        %v1037 = vpop.f32.mrb[0].mxu0
        %1038 = vmatprep.mubr.bf16.mxu0 0
        %1039 = vmatmul.mubr.bf16.gmra.mrb[0].mxu0 %v719
        %v1040 = vpop.f32.mrb[0].mxu0
        %v1041 = vadd.f32 %v564, %v1040
        %v1042 = vpop.f32.mrb[0].mxu0
        %v1043 = vpop.f32.mrb[0].mxu0
        %v1044 = vadd.f32 %v564, %v1043
        %v1045 = vpop.f32.mrb[0].mxu0
        %1046 = vmatprep.mubr.bf16.mxu0 0
        %1047 = vmatmul.mubr.bf16.gmra.mrb[0].mxu0 %v720
        %v1048 = vpop.f32.mrb[0].mxu0
        %v1049 = vadd.f32 %v564, %v1048
        %v1050 = vpop.f32.mrb[0].mxu0
        %v1051 = vpop.f32.mrb[0].mxu0
        %v1052 = vadd.f32 %v564, %v1051
        %v1053 = vpop.f32.mrb[0].mxu0
        %1054 = vmatprep.mubr.bf16.mxu0 0
        %1055 = vmatmul.mubr.bf16.gmra.mrb[0].mxu0 %v721
        %v1056 = vpop.f32.mrb[0].mxu0
        %v1057 = vadd.f32 %v564, %v1056
        %v1058 = vpop.f32.mrb[0].mxu0
        %v1059 = vpop.f32.mrb[0].mxu0
        %v1060 = vadd.f32 %v564, %v1059
        %v1061 = vpop.f32.mrb[0].mxu0
        %1062 = vmatprep.mubr.bf16.mxu0 0
        %1063 = vmatmul.mubr.bf16.gmra.mrb[0].mxu0 %v722
        %v1064 = vpop.f32.mrb[0].mxu0
        %v1065 = vadd.f32 %v564, %v1064
        %v1066 = vpop.f32.mrb[0].mxu0
        %v1067 = vpop.f32.mrb[0].mxu0
        %v1068 = vadd.f32 %v564, %v1067
        %v1069 = vpop.f32.mrb[0].mxu0
        %1070 = vmatprep.mubr.bf16.mxu0 0
        %1071 = vmatmul.mubr.bf16.gmra.mrb[0].mxu0 %v723
        %v1072 = vpop.f32.mrb[0].mxu0
        %v1073 = vadd.f32 %v564, %v1072
        %v1074 = vpop.f32.mrb[0].mxu0
        %v1075 = vpop.f32.mrb[0].mxu0
        %v1076 = vadd.f32 %v564, %v1075
        %v1077 = vpop.f32.mrb[0].mxu0
        %1078 = vmatprep.mubr.bf16.mxu0 0
        %1079 = vmatmul.mubr.bf16.gmra.mrb[0].mxu0 %v724
        %v1080 = vpop.f32.mrb[0].mxu0
        %v1081 = vadd.f32 %v564, %v1080
        %v1082 = vpop.f32.mrb[0].mxu0
        %v1083 = vpop.f32.mrb[0].mxu0
        %v1084 = vadd.f32 %v564, %v1083
        %v1085 = vpop.f32.mrb[0].mxu0
        %1086 = vmatprep.mubr.bf16.mxu0 0
        %1087 = vmatmul.mubr.bf16.gmra.mrb[0].mxu0 %v725
        %v1088 = vpop.f32.mrb[0].mxu0
        %v1089 = vadd.f32 %v564, %v1088
        %v1090 = vpop.f32.mrb[0].mxu0
        %v1091 = vpop.f32.mrb[0].mxu0
        %v1092 = vadd.f32 %v564, %v1091
        %v1093 = vpop.f32.mrb[0].mxu0
        %1094 = vdwg.mxu0
        %v1095 = vmax.f32 %v841, 0.0
        %v1096 = vmax.f32 %v844, 0.0
        %v1097 = vmax.f32 %v849, 0.0
        %v1098 = vmax.f32 %v852, 0.0
        %v1099 = vmax.f32 %v857, 0.0
        %v1100 = vmax.f32 %v860, 0.0
        %v1101 = vmax.f32 %v865, 0.0
        %v1102 = vmax.f32 %v868, 0.0
        %v1103 = vmax.f32 %v873, 0.0
        %v1104 = vmax.f32 %v876, 0.0
        %v1105 = vmax.f32 %v881, 0.0
        %v1106 = vmax.f32 %v884, 0.0
        %v1107 = vmax.f32 %v889, 0.0
        %v1108 = vmax.f32 %v892, 0.0
        %v1109 = vmax.f32 %v897, 0.0
        %v1110 = vmax.f32 %v900, 0.0
        %v1111 = vmax.f32 %v905, 0.0
        %v1112 = vmax.f32 %v908, 0.0
        %v1113 = vmax.f32 %v913, 0.0
        %v1114 = vmax.f32 %v916, 0.0
        %v1115 = vmax.f32 %v921, 0.0
        %v1116 = vmax.f32 %v924, 0.0
        %v1117 = vmax.f32 %v929, 0.0
        %v1118 = vmax.f32 %v932, 0.0
        %v1119 = vmax.f32 %v937, 0.0
        %v1120 = vmax.f32 %v940, 0.0
        %v1121 = vmax.f32 %v945, 0.0
        %v1122 = vmax.f32 %v948, 0.0
        %v1123 = vmax.f32 %v953, 0.0
        %v1124 = vmax.f32 %v956, 0.0
        %v1125 = vmax.f32 %v961, 0.0
        %v1126 = vmax.f32 %v964, 0.0
        %v1127 = vmax.f32 %v969, 0.0
        %v1128 = vmax.f32 %v972, 0.0
        %v1129 = vmax.f32 %v977, 0.0
        %v1130 = vmax.f32 %v980, 0.0
        %v1131 = vmax.f32 %v985, 0.0
        %v1132 = vmax.f32 %v988, 0.0
        %v1133 = vmax.f32 %v993, 0.0
        %v1134 = vmax.f32 %v996, 0.0
        %v1135 = vmax.f32 %v1001, 0.0
        %v1136 = vmax.f32 %v1004, 0.0
        %v1137 = vmax.f32 %v1009, 0.0
        %v1138 = vmax.f32 %v1012, 0.0
        %v1139 = vmax.f32 %v1017, 0.0
        %v1140 = vmax.f32 %v1020, 0.0
        %v1141 = vmax.f32 %v1025, 0.0
        %v1142 = vmax.f32 %v1028, 0.0
        %v1143 = vmax.f32 %v1033, 0.0
        %v1144 = vmax.f32 %v1036, 0.0
        %v1145 = vmax.f32 %v1041, 0.0
        %v1146 = vmax.f32 %v1044, 0.0
        %v1147 = vmax.f32 %v1049, 0.0
        %v1148 = vmax.f32 %v1052, 0.0
        %v1149 = vmax.f32 %v1057, 0.0
        %v1150 = vmax.f32 %v1060, 0.0
        %v1151 = vmax.f32 %v1065, 0.0
        %v1152 = vmax.f32 %v1068, 0.0
        %v1153 = vmax.f32 %v1073, 0.0
        %v1154 = vmax.f32 %v1076, 0.0
        %v1155 = vmax.f32 %v1081, 0.0
        %v1156 = vmax.f32 %v1084, 0.0
        %v1157 = vmax.f32 %v1089, 0.0
        %v1158 = vmax.f32 %v1092, 0.0
        %v1159 = vpack.c.bf16 %v1096, %v1095
        %v1160 = vpack.c.bf16 %v1098, %v1097
        %v1161 = vpack.c.bf16 %v1100, %v1099
        %v1162 = vpack.c.bf16 %v1102, %v1101
        %v1163 = vpack.c.bf16 %v1104, %v1103
        %v1164 = vpack.c.bf16 %v1106, %v1105
        %v1165 = vpack.c.bf16 %v1108, %v1107
        %v1166 = vpack.c.bf16 %v1110, %v1109
        %v1167 = vpack.c.bf16 %v1112, %v1111
        %v1168 = vpack.c.bf16 %v1114, %v1113
        %v1169 = vpack.c.bf16 %v1116, %v1115
        %v1170 = vpack.c.bf16 %v1118, %v1117
        %v1171 = vpack.c.bf16 %v1120, %v1119
        %v1172 = vpack.c.bf16 %v1122, %v1121
        %v1173 = vpack.c.bf16 %v1124, %v1123
        %v1174 = vpack.c.bf16 %v1126, %v1125
        %v1175 = vpack.c.bf16 %v1128, %v1127
        %v1176 = vpack.c.bf16 %v1130, %v1129
        %v1177 = vpack.c.bf16 %v1132, %v1131
        %v1178 = vpack.c.bf16 %v1134, %v1133
        %v1179 = vpack.c.bf16 %v1136, %v1135
        %v1180 = vpack.c.bf16 %v1138, %v1137
        %v1181 = vpack.c.bf16 %v1140, %v1139
        %v1182 = vpack.c.bf16 %v1142, %v1141
        %v1183 = vpack.c.bf16 %v1144, %v1143
        %v1184 = vpack.c.bf16 %v1146, %v1145
        %v1185 = vpack.c.bf16 %v1148, %v1147
        %v1186 = vpack.c.bf16 %v1150, %v1149
        %v1187 = vpack.c.bf16 %v1152, %v1151
        %v1188 = vpack.c.bf16 %v1154, %v1153
        %v1189 = vpack.c.bf16 %v1156, %v1155
        %v1190 = vpack.c.bf16 %v1158, %v1157
        %v1191 = vld [vmem:[#allocation8] sm:$0xff]
        %v1192 = vld [vmem:[#allocation8 + $0x8] sm:$0xff]
        %v1193 = vld [vmem:[#allocation8 + $0x10] sm:$0xff]
        %v1194 = vld [vmem:[#allocation8 + $0x18] sm:$0xff]
        %v1195 = vld [vmem:[#allocation8 + $0x20] sm:$0xff]
        %v1196 = vld [vmem:[#allocation8 + $0x28] sm:$0xff]
        %v1197 = vld [vmem:[#allocation8 + $0x30] sm:$0xff]
        %v1198 = vld [vmem:[#allocation8 + $0x38] sm:$0xff]
        %v1199 = vld [vmem:[#allocation8 + $0x40] sm:$0xff]
        %v1200 = vld [vmem:[#allocation8 + $0x48] sm:$0xff]
        %v1201 = vld [vmem:[#allocation8 + $0x50] sm:$0xff]
        %v1202 = vld [vmem:[#allocation8 + $0x58] sm:$0xff]
        %v1203 = vld [vmem:[#allocation8 + $0x60] sm:$0xff]
        %v1204 = vld [vmem:[#allocation8 + $0x68] sm:$0xff]
        %v1205 = vld [vmem:[#allocation8 + $0x70] sm:$0xff]
        %v1206 = vld [vmem:[#allocation8 + $0x78] sm:$0xff]
        %v1207 = vld [vmem:[#allocation8 + $0x80] sm:$0xff]
        %v1208 = vld [vmem:[#allocation8 + $0x88] sm:$0xff]
        %v1209 = vld [vmem:[#allocation8 + $0x90] sm:$0xff]
        %v1210 = vld [vmem:[#allocation8 + $0x98] sm:$0xff]
        %v1211 = vld [vmem:[#allocation8 + $0xa0] sm:$0xff]
        %v1212 = vld [vmem:[#allocation8 + $0xa8] sm:$0xff]
        %v1213 = vld [vmem:[#allocation8 + $0xb0] sm:$0xff]
        %v1214 = vld [vmem:[#allocation8 + $0xb8] sm:$0xff]
        %v1215 = vld [vmem:[#allocation8 + $0xc0] sm:$0xff]
        %v1216 = vld [vmem:[#allocation8 + $0xc8] sm:$0xff]
        %v1217 = vld [vmem:[#allocation8 + $0xd0] sm:$0xff]
        %v1218 = vld [vmem:[#allocation8 + $0xd8] sm:$0xff]
        %v1219 = vld [vmem:[#allocation8 + $0xe0] sm:$0xff]
        %v1220 = vld [vmem:[#allocation8 + $0xe8] sm:$0xff]
        %v1221 = vld [vmem:[#allocation8 + $0xf0] sm:$0xff]
        %v1222 = vld [vmem:[#allocation8 + $0xf8] sm:$0xff]
        %v1223 = vld [vmem:[#allocation8 + $0x100] sm:$0xff]
        %v1224 = vld [vmem:[#allocation8 + $0x108] sm:$0xff]
        %v1225 = vld [vmem:[#allocation8 + $0x110] sm:$0xff]
        %v1226 = vld [vmem:[#allocation8 + $0x118] sm:$0xff]
        %v1227 = vld [vmem:[#allocation8 + $0x120] sm:$0xff]
        %v1228 = vld [vmem:[#allocation8 + $0x128] sm:$0xff]
        %v1229 = vld [vmem:[#allocation8 + $0x130] sm:$0xff]
        %v1230 = vld [vmem:[#allocation8 + $0x138] sm:$0xff]
        %v1231 = vld [vmem:[#allocation8 + $0x140] sm:$0xff]
        %v1232 = vld [vmem:[#allocation8 + $0x148] sm:$0xff]
        %v1233 = vld [vmem:[#allocation8 + $0x150] sm:$0xff]
        %v1234 = vld [vmem:[#allocation8 + $0x158] sm:$0xff]
        %v1235 = vld [vmem:[#allocation8 + $0x160] sm:$0xff]
        %v1236 = vld [vmem:[#allocation8 + $0x168] sm:$0xff]
        %v1237 = vld [vmem:[#allocation8 + $0x170] sm:$0xff]
        %v1238 = vld [vmem:[#allocation8 + $0x178] sm:$0xff]
        %v1239 = vld [vmem:[#allocation8 + $0x180] sm:$0xff]
        %v1240 = vld [vmem:[#allocation8 + $0x188] sm:$0xff]
        %v1241 = vld [vmem:[#allocation8 + $0x190] sm:$0xff]
        %v1242 = vld [vmem:[#allocation8 + $0x198] sm:$0xff]
        %v1243 = vld [vmem:[#allocation8 + $0x1a0] sm:$0xff]
        %v1244 = vld [vmem:[#allocation8 + $0x1a8] sm:$0xff]
        %v1245 = vld [vmem:[#allocation8 + $0x1b0] sm:$0xff]
        %v1246 = vld [vmem:[#allocation8 + $0x1b8] sm:$0xff]
        %v1247 = vld [vmem:[#allocation8 + $0x1c0] sm:$0xff]
        %v1248 = vld [vmem:[#allocation8 + $0x1c8] sm:$0xff]
        %v1249 = vld [vmem:[#allocation8 + $0x1d0] sm:$0xff]
        %v1250 = vld [vmem:[#allocation8 + $0x1d8] sm:$0xff]
        %v1251 = vld [vmem:[#allocation8 + $0x1e0] sm:$0xff]
        %v1252 = vld [vmem:[#allocation8 + $0x1e8] sm:$0xff]
        %v1253 = vld [vmem:[#allocation8 + $0x1f0] sm:$0xff]
        %v1254 = vld [vmem:[#allocation8 + $0x1f8] sm:$0xff]
        %v1255 = vld [vmem:[%s5] sm:$0xff]
        %v1256 = vld [vmem:[%s5 + $0x8] sm:$0xff]
        %v1259 = vlaneseq
        %v1260 = vshrl.u32 %v1259, 7
        %v1261 = vsub.s32 0, %v1260
        %v1262 = vrot.slane %v1255, %v1261
        %v1263 = vlaneseq
        %v1264 = vshrl.u32 %v1263, 7
        %v1265 = vsub.s32 1, %v1264
        %v1266 = vrot.slane %v1255, %v1265
        %v1267 = vlaneseq
        %v1268 = vshrl.u32 %v1267, 7
        %v1269 = vsub.s32 2, %v1268
        %v1270 = vrot.slane %v1255, %v1269
        %v1271 = vlaneseq
        %v1272 = vshrl.u32 %v1271, 7
        %v1273 = vsub.s32 3, %v1272
        %v1274 = vrot.slane %v1255, %v1273
        %v1275 = vlaneseq
        %v1276 = vshrl.u32 %v1275, 7
        %v1277 = vsub.s32 4, %v1276
        %v1278 = vrot.slane %v1255, %v1277
        %v1279 = vlaneseq
        %v1280 = vshrl.u32 %v1279, 7
        %v1281 = vsub.s32 5, %v1280
        %v1282 = vrot.slane %v1255, %v1281
        %v1283 = vlaneseq
        %v1284 = vshrl.u32 %v1283, 7
        %v1285 = vsub.s32 6, %v1284
        %v1286 = vrot.slane %v1255, %v1285
        %v1287 = vlaneseq
        %v1288 = vshrl.u32 %v1287, 7
        %v1289 = vsub.s32 7, %v1288
        %v1290 = vrot.slane %v1255, %v1289
        %v1291 = vlaneseq
        %v1292 = vshrl.u32 %v1291, 7
        %v1293 = vsub.s32 0, %v1292
        %v1294 = vrot.slane %v1256, %v1293
        %v1295 = vlaneseq
        %v1296 = vshrl.u32 %v1295, 7
        %v1297 = vsub.s32 1, %v1296
        %v1298 = vrot.slane %v1256, %v1297
        %v1299 = vlaneseq
        %v1300 = vshrl.u32 %v1299, 7
        %v1301 = vsub.s32 2, %v1300
        %v1302 = vrot.slane %v1256, %v1301
        %v1303 = vlaneseq
        %v1304 = vshrl.u32 %v1303, 7
        %v1305 = vsub.s32 3, %v1304
        %v1306 = vrot.slane %v1256, %v1305
        %v1307 = vlaneseq
        %v1308 = vshrl.u32 %v1307, 7
        %v1309 = vsub.s32 4, %v1308
        %v1310 = vrot.slane %v1256, %v1309
        %v1311 = vlaneseq
        %v1312 = vshrl.u32 %v1311, 7
        %v1313 = vsub.s32 5, %v1312
        %v1314 = vrot.slane %v1256, %v1313
        %v1315 = vlaneseq
        %v1316 = vshrl.u32 %v1315, 7
        %v1317 = vsub.s32 6, %v1316
        %v1318 = vrot.slane %v1256, %v1317
        %v1319 = vlaneseq
        %v1320 = vshrl.u32 %v1319, 7
        %v1321 = vsub.s32 7, %v1320
        %v1322 = vrot.slane %v1256, %v1321
        %v1403 = vunpack.c.l.b16 %v1191
        %v1404 = vunpack.c.h.b16 %v1191
        %v1405 = vunpack.c.l.b16 %v1192
        %v1406 = vunpack.c.h.b16 %v1192
        %v1407 = vunpack.c.l.b16 %v1193
        %v1408 = vunpack.c.h.b16 %v1193
        %v1409 = vunpack.c.l.b16 %v1194
        %v1410 = vunpack.c.h.b16 %v1194
        %v1411 = vunpack.c.l.b16 %v1195
        %v1412 = vunpack.c.h.b16 %v1195
        %v1413 = vunpack.c.l.b16 %v1196
        %v1414 = vunpack.c.h.b16 %v1196
        %v1415 = vunpack.c.l.b16 %v1197
        %v1416 = vunpack.c.h.b16 %v1197
        %v1417 = vunpack.c.l.b16 %v1198
        %v1418 = vunpack.c.h.b16 %v1198
        %v1419 = vunpack.c.l.b16 %v1199
        %v1420 = vunpack.c.h.b16 %v1199
        %v1421 = vunpack.c.l.b16 %v1200
        %v1422 = vunpack.c.h.b16 %v1200
        %v1423 = vunpack.c.l.b16 %v1201
        %v1424 = vunpack.c.h.b16 %v1201
        %v1425 = vunpack.c.l.b16 %v1202
        %v1426 = vunpack.c.h.b16 %v1202
        %v1427 = vunpack.c.l.b16 %v1203
        %v1428 = vunpack.c.h.b16 %v1203
        %v1429 = vunpack.c.l.b16 %v1204
        %v1430 = vunpack.c.h.b16 %v1204
        %v1431 = vunpack.c.l.b16 %v1205
        %v1432 = vunpack.c.h.b16 %v1205
        %v1433 = vunpack.c.l.b16 %v1206
        %v1434 = vunpack.c.h.b16 %v1206
        %v1435 = vunpack.c.l.b16 %v1207
        %v1436 = vunpack.c.h.b16 %v1207
        %v1437 = vunpack.c.l.b16 %v1208
        %v1438 = vunpack.c.h.b16 %v1208
        %v1439 = vunpack.c.l.b16 %v1209
        %v1440 = vunpack.c.h.b16 %v1209
        %v1441 = vunpack.c.l.b16 %v1210
        %v1442 = vunpack.c.h.b16 %v1210
        %v1443 = vunpack.c.l.b16 %v1211
        %v1444 = vunpack.c.h.b16 %v1211
        %v1445 = vunpack.c.l.b16 %v1212
        %v1446 = vunpack.c.h.b16 %v1212
        %v1447 = vunpack.c.l.b16 %v1213
        %v1448 = vunpack.c.h.b16 %v1213
        %v1449 = vunpack.c.l.b16 %v1214
        %v1450 = vunpack.c.h.b16 %v1214
        %v1451 = vunpack.c.l.b16 %v1215
        %v1452 = vunpack.c.h.b16 %v1215
        %v1453 = vunpack.c.l.b16 %v1216
        %v1454 = vunpack.c.h.b16 %v1216
        %v1455 = vunpack.c.l.b16 %v1217
        %v1456 = vunpack.c.h.b16 %v1217
        %v1457 = vunpack.c.l.b16 %v1218
        %v1458 = vunpack.c.h.b16 %v1218
        %v1459 = vunpack.c.l.b16 %v1219
        %v1460 = vunpack.c.h.b16 %v1219
        %v1461 = vunpack.c.l.b16 %v1220
        %v1462 = vunpack.c.h.b16 %v1220
        %v1463 = vunpack.c.l.b16 %v1221
        %v1464 = vunpack.c.h.b16 %v1221
        %v1465 = vunpack.c.l.b16 %v1222
        %v1466 = vunpack.c.h.b16 %v1222
        %v1467 = vunpack.c.l.b16 %v1223
        %v1468 = vunpack.c.h.b16 %v1223
        %v1469 = vunpack.c.l.b16 %v1224
        %v1470 = vunpack.c.h.b16 %v1224
        %v1471 = vunpack.c.l.b16 %v1225
        %v1472 = vunpack.c.h.b16 %v1225
        %v1473 = vunpack.c.l.b16 %v1226
        %v1474 = vunpack.c.h.b16 %v1226
        %v1475 = vunpack.c.l.b16 %v1227
        %v1476 = vunpack.c.h.b16 %v1227
        %v1477 = vunpack.c.l.b16 %v1228
        %v1478 = vunpack.c.h.b16 %v1228
        %v1479 = vunpack.c.l.b16 %v1229
        %v1480 = vunpack.c.h.b16 %v1229
        %v1481 = vunpack.c.l.b16 %v1230
        %v1482 = vunpack.c.h.b16 %v1230
        %v1483 = vunpack.c.l.b16 %v1231
        %v1484 = vunpack.c.h.b16 %v1231
        %v1485 = vunpack.c.l.b16 %v1232
        %v1486 = vunpack.c.h.b16 %v1232
        %v1487 = vunpack.c.l.b16 %v1233
        %v1488 = vunpack.c.h.b16 %v1233
        %v1489 = vunpack.c.l.b16 %v1234
        %v1490 = vunpack.c.h.b16 %v1234
        %v1491 = vunpack.c.l.b16 %v1235
        %v1492 = vunpack.c.h.b16 %v1235
        %v1493 = vunpack.c.l.b16 %v1236
        %v1494 = vunpack.c.h.b16 %v1236
        %v1495 = vunpack.c.l.b16 %v1237
        %v1496 = vunpack.c.h.b16 %v1237
        %v1497 = vunpack.c.l.b16 %v1238
        %v1498 = vunpack.c.h.b16 %v1238
        %v1499 = vunpack.c.l.b16 %v1239
        %v1500 = vunpack.c.h.b16 %v1239
        %v1501 = vunpack.c.l.b16 %v1240
        %v1502 = vunpack.c.h.b16 %v1240
        %v1503 = vunpack.c.l.b16 %v1241
        %v1504 = vunpack.c.h.b16 %v1241
        %v1505 = vunpack.c.l.b16 %v1242
        %v1506 = vunpack.c.h.b16 %v1242
        %v1507 = vunpack.c.l.b16 %v1243
        %v1508 = vunpack.c.h.b16 %v1243
        %v1509 = vunpack.c.l.b16 %v1244
        %v1510 = vunpack.c.h.b16 %v1244
        %v1511 = vunpack.c.l.b16 %v1245
        %v1512 = vunpack.c.h.b16 %v1245
        %v1513 = vunpack.c.l.b16 %v1246
        %v1514 = vunpack.c.h.b16 %v1246
        %v1515 = vunpack.c.l.b16 %v1247
        %v1516 = vunpack.c.h.b16 %v1247
        %v1517 = vunpack.c.l.b16 %v1248
        %v1518 = vunpack.c.h.b16 %v1248
        %v1519 = vunpack.c.l.b16 %v1249
        %v1520 = vunpack.c.h.b16 %v1249
        %v1521 = vunpack.c.l.b16 %v1250
        %v1522 = vunpack.c.h.b16 %v1250
        %v1523 = vunpack.c.l.b16 %v1251
        %v1524 = vunpack.c.h.b16 %v1251
        %v1525 = vunpack.c.l.b16 %v1252
        %v1526 = vunpack.c.h.b16 %v1252
        %v1527 = vunpack.c.l.b16 %v1253
        %v1528 = vunpack.c.h.b16 %v1253
        %v1529 = vunpack.c.l.b16 %v1254
        %v1530 = vunpack.c.h.b16 %v1254
        %v1531 = vpack.c.b16 %v1419, %v1403
        %v1532 = vpack.c.b16 %v1420, %v1404
        %v1533 = vpack.c.b16 %v1421, %v1405
        %v1534 = vpack.c.b16 %v1422, %v1406
        %v1535 = vpack.c.b16 %v1423, %v1407
        %v1536 = vpack.c.b16 %v1424, %v1408
        %v1537 = vpack.c.b16 %v1425, %v1409
        %v1538 = vpack.c.b16 %v1426, %v1410
        %v1539 = vpack.c.b16 %v1427, %v1411
        %v1540 = vpack.c.b16 %v1428, %v1412
        %v1541 = vpack.c.b16 %v1429, %v1413
        %v1542 = vpack.c.b16 %v1430, %v1414
        %v1543 = vpack.c.b16 %v1431, %v1415
        %v1544 = vpack.c.b16 %v1432, %v1416
        %v1545 = vpack.c.b16 %v1433, %v1417
        %v1546 = vpack.c.b16 %v1434, %v1418
        %v1547 = vpack.c.b16 %v1451, %v1435
        %v1548 = vpack.c.b16 %v1452, %v1436
        %v1549 = vpack.c.b16 %v1453, %v1437
        %v1550 = vpack.c.b16 %v1454, %v1438
        %v1551 = vpack.c.b16 %v1455, %v1439
        %v1552 = vpack.c.b16 %v1456, %v1440
        %v1553 = vpack.c.b16 %v1457, %v1441
        %v1554 = vpack.c.b16 %v1458, %v1442
        %v1555 = vpack.c.b16 %v1459, %v1443
        %v1556 = vpack.c.b16 %v1460, %v1444
        %v1557 = vpack.c.b16 %v1461, %v1445
        %v1558 = vpack.c.b16 %v1462, %v1446
        %v1559 = vpack.c.b16 %v1463, %v1447
        %v1560 = vpack.c.b16 %v1464, %v1448
        %v1561 = vpack.c.b16 %v1465, %v1449
        %v1562 = vpack.c.b16 %v1466, %v1450
        %v1563 = vpack.c.b16 %v1483, %v1467
        %v1564 = vpack.c.b16 %v1484, %v1468
        %v1565 = vpack.c.b16 %v1485, %v1469
        %v1566 = vpack.c.b16 %v1486, %v1470
        %v1567 = vpack.c.b16 %v1487, %v1471
        %v1568 = vpack.c.b16 %v1488, %v1472
        %v1569 = vpack.c.b16 %v1489, %v1473
        %v1570 = vpack.c.b16 %v1490, %v1474
        %v1571 = vpack.c.b16 %v1491, %v1475
        %v1572 = vpack.c.b16 %v1492, %v1476
        %v1573 = vpack.c.b16 %v1493, %v1477
        %v1574 = vpack.c.b16 %v1494, %v1478
        %v1575 = vpack.c.b16 %v1495, %v1479
        %v1576 = vpack.c.b16 %v1496, %v1480
        %v1577 = vpack.c.b16 %v1497, %v1481
        %v1578 = vpack.c.b16 %v1498, %v1482
        %v1579 = vpack.c.b16 %v1515, %v1499
        %v1580 = vpack.c.b16 %v1516, %v1500
        %v1581 = vpack.c.b16 %v1517, %v1501
        %v1582 = vpack.c.b16 %v1518, %v1502
        %v1583 = vpack.c.b16 %v1519, %v1503
        %v1584 = vpack.c.b16 %v1520, %v1504
        %v1585 = vpack.c.b16 %v1521, %v1505
        %v1586 = vpack.c.b16 %v1522, %v1506
        %v1587 = vpack.c.b16 %v1523, %v1507
        %v1588 = vpack.c.b16 %v1524, %v1508
        %v1589 = vpack.c.b16 %v1525, %v1509
        %v1590 = vpack.c.b16 %v1526, %v1510
        %v1591 = vpack.c.b16 %v1527, %v1511
        %v1592 = vpack.c.b16 %v1528, %v1512
        %v1593 = vpack.c.b16 %v1529, %v1513
        %v1594 = vpack.c.b16 %v1530, %v1514
        %vm1659 = vcmask 523264
        %v1661 = vsel %vm1659, %v1159, 0
        %v1664 = vsel %vm1659, %v1160, 0
        %v1667 = vsel %vm1659, %v1161, 0
        %v1670 = vsel %vm1659, %v1162, 0
        %v1673 = vsel %vm1659, %v1163, 0
        %v1676 = vsel %vm1659, %v1164, 0
        %v1679 = vsel %vm1659, %v1165, 0
        %v1682 = vsel %vm1659, %v1166, 0
        %v1685 = vsel %vm1659, %v1167, 0
        %v1688 = vsel %vm1659, %v1168, 0
        %v1691 = vsel %vm1659, %v1169, 0
        %v1694 = vsel %vm1659, %v1170, 0
        %v1697 = vsel %vm1659, %v1171, 0
        %v1700 = vsel %vm1659, %v1172, 0
        %v1703 = vsel %vm1659, %v1173, 0
        %v1706 = vsel %vm1659, %v1174, 0
        %v1709 = vsel %vm1659, %v1175, 0
        %v1712 = vsel %vm1659, %v1176, 0
        %v1715 = vsel %vm1659, %v1177, 0
        %v1718 = vsel %vm1659, %v1178, 0
        %v1721 = vsel %vm1659, %v1179, 0
        %v1724 = vsel %vm1659, %v1180, 0
        %v1727 = vsel %vm1659, %v1181, 0
        %v1730 = vsel %vm1659, %v1182, 0
        %v1733 = vsel %vm1659, %v1183, 0
        %v1736 = vsel %vm1659, %v1184, 0
        %v1739 = vsel %vm1659, %v1185, 0
        %v1742 = vsel %vm1659, %v1186, 0
        %v1745 = vsel %vm1659, %v1187, 0
        %v1748 = vsel %vm1659, %v1188, 0
        %v1751 = vsel %vm1659, %v1189, 0
        %v1754 = vsel %vm1659, %v1190, 0
        %1756 = vmatprep.subr.bf16.mxu0 %v1532
        %1757 = vmatpush1.bf16.msra.mxu0 %v1531
        %1758 = vmatprep.subr.bf16.mxu0 %v1548
        %1759 = vmatpush1.bf16.msra.mxu0 %v1547
        %1760 = vmatprep.subr.bf16.mxu0 %v1564
        %1761 = vmatpush1.bf16.msra.mxu0 %v1563
        %1762 = vmatprep.subr.bf16.mxu0 %v1580
        %1763 = vmatpush1.bf16.msra.mxu0 %v1579
        %1764 = vmatprep.subr.bf16.mxu0 0
        %1765 = vmatpush1.bf16.msra.mxu0 0
        %1766 = vmatprep.subr.bf16.mxu0 0
        %1767 = vmatpush1.bf16.msra.mxu0 0
        %1768 = vmatprep.subr.bf16.mxu0 0
        %1769 = vmatpush1.bf16.msra.mxu0 0
        %1770 = vmatprep.subr.bf16.mxu0 0
        %1771 = vmatpush1.bf16.msra.mxu0 0
        %1772 = vmatprep.subr.bf16.mxu0 0
        %1773 = vmatpush1.bf16.msra.mxu0 0
        %1774 = vmatprep.subr.bf16.mxu0 0
        %1775 = vmatpush1.bf16.msra.mxu0 0
        %1776 = vmatprep.subr.bf16.mxu0 0
        %1777 = vmatpush1.bf16.msra.mxu0 0
        %1778 = vmatprep.subr.bf16.mxu0 0
        %1779 = vmatpush1.bf16.msra.mxu0 0
        %1780 = vmatprep.subr.bf16.mxu0 0
        %1781 = vmatpush1.bf16.msra.mxu0 0
        %1782 = vmatprep.subr.bf16.mxu0 0
        %1783 = vmatpush1.bf16.msra.mxu0 0
        %1784 = vmatprep.subr.bf16.mxu0 0
        %1785 = vmatpush1.bf16.msra.mxu0 0
        %1786 = vmatprep.subr.bf16.mxu0 0
        %1787 = vmatpush1.bf16.msra.mxu0 0
        %1788 = vmatprep.mubr.bf16.mxu0 0
        %1789 = vmatmul.mubr.bf16.gmra.mrb[0].mxu0 %v1661
        %v1790 = vpop.f32.mrb[0].mxu0
        %v1791 = vadd.f32 %v1262, %v1790
        %v1792 = vpop.f32.mrb[0].mxu0
        %v1793 = vadd.f32 %v1266, %v1792
        %v1794 = vpop.f32.mrb[0].mxu0
        %v1795 = vadd.f32 %v1262, %v1794
        %v1796 = vpop.f32.mrb[0].mxu0
        %v1797 = vadd.f32 %v1266, %v1796
        %1798 = vmatprep.mubr.bf16.mxu0 0
        %1799 = vmatmul.mubr.bf16.gmra.mrb[0].mxu0 %v1664
        %v1800 = vpop.f32.mrb[0].mxu0
        %v1801 = vadd.f32 %v1262, %v1800
        %v1802 = vpop.f32.mrb[0].mxu0
        %v1803 = vadd.f32 %v1266, %v1802
        %v1804 = vpop.f32.mrb[0].mxu0
        %v1805 = vadd.f32 %v1262, %v1804
        %v1806 = vpop.f32.mrb[0].mxu0
        %v1807 = vadd.f32 %v1266, %v1806
        %1808 = vmatprep.mubr.bf16.mxu0 0
        %1809 = vmatmul.mubr.bf16.gmra.mrb[0].mxu0 %v1667
        %v1810 = vpop.f32.mrb[0].mxu0
        %v1811 = vadd.f32 %v1262, %v1810
        %v1812 = vpop.f32.mrb[0].mxu0
        %v1813 = vadd.f32 %v1266, %v1812
        %v1814 = vpop.f32.mrb[0].mxu0
        %v1815 = vadd.f32 %v1262, %v1814
        %v1816 = vpop.f32.mrb[0].mxu0
        %v1817 = vadd.f32 %v1266, %v1816
        %1818 = vmatprep.mubr.bf16.mxu0 0
        %1819 = vmatmul.mubr.bf16.gmra.mrb[0].mxu0 %v1670
        %v1820 = vpop.f32.mrb[0].mxu0
        %v1821 = vadd.f32 %v1262, %v1820
        %v1822 = vpop.f32.mrb[0].mxu0
        %v1823 = vadd.f32 %v1266, %v1822
        %v1824 = vpop.f32.mrb[0].mxu0
        %v1825 = vadd.f32 %v1262, %v1824
        %v1826 = vpop.f32.mrb[0].mxu0
        %v1827 = vadd.f32 %v1266, %v1826
        %1828 = vmatprep.mubr.bf16.mxu0 0
        %1829 = vmatmul.mubr.bf16.gmra.mrb[0].mxu0 %v1673
        %v1830 = vpop.f32.mrb[0].mxu0
        %v1831 = vadd.f32 %v1262, %v1830
        %v1832 = vpop.f32.mrb[0].mxu0
        %v1833 = vadd.f32 %v1266, %v1832
        %v1834 = vpop.f32.mrb[0].mxu0
        %v1835 = vadd.f32 %v1262, %v1834
        %v1836 = vpop.f32.mrb[0].mxu0
        %v1837 = vadd.f32 %v1266, %v1836
        %1838 = vmatprep.mubr.bf16.mxu0 0
        %1839 = vmatmul.mubr.bf16.gmra.mrb[0].mxu0 %v1676
        %v1840 = vpop.f32.mrb[0].mxu0
        %v1841 = vadd.f32 %v1262, %v1840
        %v1842 = vpop.f32.mrb[0].mxu0
        %v1843 = vadd.f32 %v1266, %v1842
        %v1844 = vpop.f32.mrb[0].mxu0
        %v1845 = vadd.f32 %v1262, %v1844
        %v1846 = vpop.f32.mrb[0].mxu0
        %v1847 = vadd.f32 %v1266, %v1846
        %1848 = vmatprep.mubr.bf16.mxu0 0
        %1849 = vmatmul.mubr.bf16.gmra.mrb[0].mxu0 %v1679
        %v1850 = vpop.f32.mrb[0].mxu0
        %v1851 = vadd.f32 %v1262, %v1850
        %v1852 = vpop.f32.mrb[0].mxu0
        %v1853 = vadd.f32 %v1266, %v1852
        %v1854 = vpop.f32.mrb[0].mxu0
        %v1855 = vadd.f32 %v1262, %v1854
        %v1856 = vpop.f32.mrb[0].mxu0
        %v1857 = vadd.f32 %v1266, %v1856
        %1858 = vmatprep.mubr.bf16.mxu0 0
        %1859 = vmatmul.mubr.bf16.gmra.mrb[0].mxu0 %v1682
        %v1860 = vpop.f32.mrb[0].mxu0
        %v1861 = vadd.f32 %v1262, %v1860
        %v1862 = vpop.f32.mrb[0].mxu0
        %v1863 = vadd.f32 %v1266, %v1862
        %v1864 = vpop.f32.mrb[0].mxu0
        %v1865 = vadd.f32 %v1262, %v1864
        %v1866 = vpop.f32.mrb[0].mxu0
        %v1867 = vadd.f32 %v1266, %v1866
        %1868 = vmatprep.mubr.bf16.mxu0 0
        %1869 = vmatmul.mubr.bf16.gmra.mrb[0].mxu0 %v1685
        %v1870 = vpop.f32.mrb[0].mxu0
        %v1871 = vadd.f32 %v1262, %v1870
        %v1872 = vpop.f32.mrb[0].mxu0
        %v1873 = vadd.f32 %v1266, %v1872
        %v1874 = vpop.f32.mrb[0].mxu0
        %v1875 = vadd.f32 %v1262, %v1874
        %v1876 = vpop.f32.mrb[0].mxu0
        %v1877 = vadd.f32 %v1266, %v1876
        %1878 = vmatprep.mubr.bf16.mxu0 0
        %1879 = vmatmul.mubr.bf16.gmra.mrb[0].mxu0 %v1688
        %v1880 = vpop.f32.mrb[0].mxu0
        %v1881 = vadd.f32 %v1262, %v1880
        %v1882 = vpop.f32.mrb[0].mxu0
        %v1883 = vadd.f32 %v1266, %v1882
        %v1884 = vpop.f32.mrb[0].mxu0
        %v1885 = vadd.f32 %v1262, %v1884
        %v1886 = vpop.f32.mrb[0].mxu0
        %v1887 = vadd.f32 %v1266, %v1886
        %1888 = vmatprep.mubr.bf16.mxu0 0
        %1889 = vmatmul.mubr.bf16.gmra.mrb[0].mxu0 %v1691
        %v1890 = vpop.f32.mrb[0].mxu0
        %v1891 = vadd.f32 %v1262, %v1890
        %v1892 = vpop.f32.mrb[0].mxu0
        %v1893 = vadd.f32 %v1266, %v1892
        %v1894 = vpop.f32.mrb[0].mxu0
        %v1895 = vadd.f32 %v1262, %v1894
        %v1896 = vpop.f32.mrb[0].mxu0
        %v1897 = vadd.f32 %v1266, %v1896
        %1898 = vmatprep.mubr.bf16.mxu0 0
        %1899 = vmatmul.mubr.bf16.gmra.mrb[0].mxu0 %v1694
        %v1900 = vpop.f32.mrb[0].mxu0
        %v1901 = vadd.f32 %v1262, %v1900
        %v1902 = vpop.f32.mrb[0].mxu0
        %v1903 = vadd.f32 %v1266, %v1902
        %v1904 = vpop.f32.mrb[0].mxu0
        %v1905 = vadd.f32 %v1262, %v1904
        %v1906 = vpop.f32.mrb[0].mxu0
        %v1907 = vadd.f32 %v1266, %v1906
        %1908 = vmatprep.mubr.bf16.mxu0 0
        %1909 = vmatmul.mubr.bf16.gmra.mrb[0].mxu0 %v1697
        %v1910 = vpop.f32.mrb[0].mxu0
        %v1911 = vadd.f32 %v1262, %v1910
        %v1912 = vpop.f32.mrb[0].mxu0
        %v1913 = vadd.f32 %v1266, %v1912
        %v1914 = vpop.f32.mrb[0].mxu0
        %v1915 = vadd.f32 %v1262, %v1914
        %v1916 = vpop.f32.mrb[0].mxu0
        %v1917 = vadd.f32 %v1266, %v1916
        %1918 = vmatprep.mubr.bf16.mxu0 0
        %1919 = vmatmul.mubr.bf16.gmra.mrb[0].mxu0 %v1700
        %v1920 = vpop.f32.mrb[0].mxu0
        %v1921 = vadd.f32 %v1262, %v1920
        %v1922 = vpop.f32.mrb[0].mxu0
        %v1923 = vadd.f32 %v1266, %v1922
        %v1924 = vpop.f32.mrb[0].mxu0
        %v1925 = vadd.f32 %v1262, %v1924
        %v1926 = vpop.f32.mrb[0].mxu0
        %v1927 = vadd.f32 %v1266, %v1926
        %1928 = vmatprep.mubr.bf16.mxu0 0
        %1929 = vmatmul.mubr.bf16.gmra.mrb[0].mxu0 %v1703
        %v1930 = vpop.f32.mrb[0].mxu0
        %v1931 = vadd.f32 %v1262, %v1930
        %v1932 = vpop.f32.mrb[0].mxu0
        %v1933 = vadd.f32 %v1266, %v1932
        %v1934 = vpop.f32.mrb[0].mxu0
        %v1935 = vadd.f32 %v1262, %v1934
        %v1936 = vpop.f32.mrb[0].mxu0
        %v1937 = vadd.f32 %v1266, %v1936
        %1938 = vmatprep.mubr.bf16.mxu0 0
        %1939 = vmatmul.mubr.bf16.gmra.mrb[0].mxu0 %v1706
        %v1940 = vpop.f32.mrb[0].mxu0
        %v1941 = vadd.f32 %v1262, %v1940
        %v1942 = vpop.f32.mrb[0].mxu0
        %v1943 = vadd.f32 %v1266, %v1942
        %v1944 = vpop.f32.mrb[0].mxu0
        %v1945 = vadd.f32 %v1262, %v1944
        %v1946 = vpop.f32.mrb[0].mxu0
        %v1947 = vadd.f32 %v1266, %v1946
        %1948 = vmatprep.mubr.bf16.mxu0 0
        %1949 = vmatmul.mubr.bf16.gmra.mrb[0].mxu0 %v1709
        %v1950 = vpop.f32.mrb[0].mxu0
        %v1951 = vadd.f32 %v1262, %v1950
        %v1952 = vpop.f32.mrb[0].mxu0
        %v1953 = vadd.f32 %v1266, %v1952
        %v1954 = vpop.f32.mrb[0].mxu0
        %v1955 = vadd.f32 %v1262, %v1954
        %v1956 = vpop.f32.mrb[0].mxu0
        %v1957 = vadd.f32 %v1266, %v1956
        %1958 = vmatprep.mubr.bf16.mxu0 0
        %1959 = vmatmul.mubr.bf16.gmra.mrb[0].mxu0 %v1712
        %v1960 = vpop.f32.mrb[0].mxu0
        %v1961 = vadd.f32 %v1262, %v1960
        %v1962 = vpop.f32.mrb[0].mxu0
        %v1963 = vadd.f32 %v1266, %v1962
        %v1964 = vpop.f32.mrb[0].mxu0
        %v1965 = vadd.f32 %v1262, %v1964
        %v1966 = vpop.f32.mrb[0].mxu0
        %v1967 = vadd.f32 %v1266, %v1966
        %1968 = vmatprep.mubr.bf16.mxu0 0
        %1969 = vmatmul.mubr.bf16.gmra.mrb[0].mxu0 %v1715
        %v1970 = vpop.f32.mrb[0].mxu0
        %v1971 = vadd.f32 %v1262, %v1970
        %v1972 = vpop.f32.mrb[0].mxu0
        %v1973 = vadd.f32 %v1266, %v1972
        %v1974 = vpop.f32.mrb[0].mxu0
        %v1975 = vadd.f32 %v1262, %v1974
        %v1976 = vpop.f32.mrb[0].mxu0
        %v1977 = vadd.f32 %v1266, %v1976
        %1978 = vmatprep.mubr.bf16.mxu0 0
        %1979 = vmatmul.mubr.bf16.gmra.mrb[0].mxu0 %v1718
        %v1980 = vpop.f32.mrb[0].mxu0
        %v1981 = vadd.f32 %v1262, %v1980
        %v1982 = vpop.f32.mrb[0].mxu0
        %v1983 = vadd.f32 %v1266, %v1982
        %v1984 = vpop.f32.mrb[0].mxu0
        %v1985 = vadd.f32 %v1262, %v1984
        %v1986 = vpop.f32.mrb[0].mxu0
        %v1987 = vadd.f32 %v1266, %v1986
        %1988 = vmatprep.mubr.bf16.mxu0 0
        %1989 = vmatmul.mubr.bf16.gmra.mrb[0].mxu0 %v1721
        %v1990 = vpop.f32.mrb[0].mxu0
        %v1991 = vadd.f32 %v1262, %v1990
        %v1992 = vpop.f32.mrb[0].mxu0
        %v1993 = vadd.f32 %v1266, %v1992
        %v1994 = vpop.f32.mrb[0].mxu0
        %v1995 = vadd.f32 %v1262, %v1994
        %v1996 = vpop.f32.mrb[0].mxu0
        %v1997 = vadd.f32 %v1266, %v1996
        %1998 = vmatprep.mubr.bf16.mxu0 0
        %1999 = vmatmul.mubr.bf16.gmra.mrb[0].mxu0 %v1724
        %v2000 = vpop.f32.mrb[0].mxu0
        %v2001 = vadd.f32 %v1262, %v2000
        %v2002 = vpop.f32.mrb[0].mxu0
        %v2003 = vadd.f32 %v1266, %v2002
        %v2004 = vpop.f32.mrb[0].mxu0
        %v2005 = vadd.f32 %v1262, %v2004
        %v2006 = vpop.f32.mrb[0].mxu0
        %v2007 = vadd.f32 %v1266, %v2006
        %2008 = vmatprep.mubr.bf16.mxu0 0
        %2009 = vmatmul.mubr.bf16.gmra.mrb[0].mxu0 %v1727
        %v2010 = vpop.f32.mrb[0].mxu0
        %v2011 = vadd.f32 %v1262, %v2010
        %v2012 = vpop.f32.mrb[0].mxu0
        %v2013 = vadd.f32 %v1266, %v2012
        %v2014 = vpop.f32.mrb[0].mxu0
        %v2015 = vadd.f32 %v1262, %v2014
        %v2016 = vpop.f32.mrb[0].mxu0
        %v2017 = vadd.f32 %v1266, %v2016
        %2018 = vmatprep.mubr.bf16.mxu0 0
        %2019 = vmatmul.mubr.bf16.gmra.mrb[0].mxu0 %v1730
        %v2020 = vpop.f32.mrb[0].mxu0
        %v2021 = vadd.f32 %v1262, %v2020
        %v2022 = vpop.f32.mrb[0].mxu0
        %v2023 = vadd.f32 %v1266, %v2022
        %v2024 = vpop.f32.mrb[0].mxu0
        %v2025 = vadd.f32 %v1262, %v2024
        %v2026 = vpop.f32.mrb[0].mxu0
        %v2027 = vadd.f32 %v1266, %v2026
        %2028 = vmatprep.mubr.bf16.mxu0 0
        %2029 = vmatmul.mubr.bf16.gmra.mrb[0].mxu0 %v1733
        %v2030 = vpop.f32.mrb[0].mxu0
        %v2031 = vadd.f32 %v1262, %v2030
        %v2032 = vpop.f32.mrb[0].mxu0
        %v2033 = vadd.f32 %v1266, %v2032
        %v2034 = vpop.f32.mrb[0].mxu0
        %v2035 = vadd.f32 %v1262, %v2034
        %v2036 = vpop.f32.mrb[0].mxu0
        %v2037 = vadd.f32 %v1266, %v2036
        %2038 = vmatprep.mubr.bf16.mxu0 0
        %2039 = vmatmul.mubr.bf16.gmra.mrb[0].mxu0 %v1736
        %v2040 = vpop.f32.mrb[0].mxu0
        %v2041 = vadd.f32 %v1262, %v2040
        %v2042 = vpop.f32.mrb[0].mxu0
        %v2043 = vadd.f32 %v1266, %v2042
        %v2044 = vpop.f32.mrb[0].mxu0
        %v2045 = vadd.f32 %v1262, %v2044
        %v2046 = vpop.f32.mrb[0].mxu0
        %v2047 = vadd.f32 %v1266, %v2046
        %2048 = vmatprep.mubr.bf16.mxu0 0
        %2049 = vmatmul.mubr.bf16.gmra.mrb[0].mxu0 %v1739
        %v2050 = vpop.f32.mrb[0].mxu0
        %v2051 = vadd.f32 %v1262, %v2050
        %v2052 = vpop.f32.mrb[0].mxu0
        %v2053 = vadd.f32 %v1266, %v2052
        %v2054 = vpop.f32.mrb[0].mxu0
        %v2055 = vadd.f32 %v1262, %v2054
        %v2056 = vpop.f32.mrb[0].mxu0
        %v2057 = vadd.f32 %v1266, %v2056
        %2058 = vmatprep.mubr.bf16.mxu0 0
        %2059 = vmatmul.mubr.bf16.gmra.mrb[0].mxu0 %v1742
        %v2060 = vpop.f32.mrb[0].mxu0
        %v2061 = vadd.f32 %v1262, %v2060
        %v2062 = vpop.f32.mrb[0].mxu0
        %v2063 = vadd.f32 %v1266, %v2062
        %v2064 = vpop.f32.mrb[0].mxu0
        %v2065 = vadd.f32 %v1262, %v2064
        %v2066 = vpop.f32.mrb[0].mxu0
        %v2067 = vadd.f32 %v1266, %v2066
        %2068 = vmatprep.mubr.bf16.mxu0 0
        %2069 = vmatmul.mubr.bf16.gmra.mrb[0].mxu0 %v1745
        %v2070 = vpop.f32.mrb[0].mxu0
        %v2071 = vadd.f32 %v1262, %v2070
        %v2072 = vpop.f32.mrb[0].mxu0
        %v2073 = vadd.f32 %v1266, %v2072
        %v2074 = vpop.f32.mrb[0].mxu0
        %v2075 = vadd.f32 %v1262, %v2074
        %v2076 = vpop.f32.mrb[0].mxu0
        %v2077 = vadd.f32 %v1266, %v2076
        %2078 = vmatprep.mubr.bf16.mxu0 0
        %2079 = vmatmul.mubr.bf16.gmra.mrb[0].mxu0 %v1748
        %v2080 = vpop.f32.mrb[0].mxu0
        %v2081 = vadd.f32 %v1262, %v2080
        %v2082 = vpop.f32.mrb[0].mxu0
        %v2083 = vadd.f32 %v1266, %v2082
        %v2084 = vpop.f32.mrb[0].mxu0
        %v2085 = vadd.f32 %v1262, %v2084
        %v2086 = vpop.f32.mrb[0].mxu0
        %v2087 = vadd.f32 %v1266, %v2086
        %2088 = vmatprep.mubr.bf16.mxu0 0
        %2089 = vmatmul.mubr.bf16.gmra.mrb[0].mxu0 %v1751
        %v2090 = vpop.f32.mrb[0].mxu0
        %v2091 = vadd.f32 %v1262, %v2090
        %v2092 = vpop.f32.mrb[0].mxu0
        %v2093 = vadd.f32 %v1266, %v2092
        %v2094 = vpop.f32.mrb[0].mxu0
        %v2095 = vadd.f32 %v1262, %v2094
        %v2096 = vpop.f32.mrb[0].mxu0
        %v2097 = vadd.f32 %v1266, %v2096
        %2098 = vmatprep.mubr.bf16.mxu0 0
        %2099 = vmatmul.mubr.bf16.gmra.mrb[0].mxu0 %v1754
        %v2100 = vpop.f32.mrb[0].mxu0
        %v2101 = vadd.f32 %v1262, %v2100
        %v2102 = vpop.f32.mrb[0].mxu0
        %v2103 = vadd.f32 %v1266, %v2102
        %v2104 = vpop.f32.mrb[0].mxu0
        %v2105 = vadd.f32 %v1262, %v2104
        %v2106 = vpop.f32.mrb[0].mxu0
        %v2107 = vadd.f32 %v1266, %v2106
        %2108 = vdwg.mxu0
        %2109 = vmatprep.subr.bf16.mxu0 %v1534
        %2110 = vmatpush1.bf16.msra.mxu0 %v1533
        %2111 = vmatprep.subr.bf16.mxu0 %v1550
        %2112 = vmatpush1.bf16.msra.mxu0 %v1549
        %2113 = vmatprep.subr.bf16.mxu0 %v1566
        %2114 = vmatpush1.bf16.msra.mxu0 %v1565
        %2115 = vmatprep.subr.bf16.mxu0 %v1582
        %2116 = vmatpush1.bf16.msra.mxu0 %v1581
        %2117 = vmatprep.subr.bf16.mxu0 0
        %2118 = vmatpush1.bf16.msra.mxu0 0
        %2119 = vmatprep.subr.bf16.mxu0 0
        %2120 = vmatpush1.bf16.msra.mxu0 0
        %2121 = vmatprep.subr.bf16.mxu0 0
        %2122 = vmatpush1.bf16.msra.mxu0 0
        %2123 = vmatprep.subr.bf16.mxu0 0
        %2124 = vmatpush1.bf16.msra.mxu0 0
        %2125 = vmatprep.subr.bf16.mxu0 0
        %2126 = vmatpush1.bf16.msra.mxu0 0
        %2127 = vmatprep.subr.bf16.mxu0 0
        %2128 = vmatpush1.bf16.msra.mxu0 0
        %2129 = vmatprep.subr.bf16.mxu0 0
        %2130 = vmatpush1.bf16.msra.mxu0 0
        %2131 = vmatprep.subr.bf16.mxu0 0
        %2132 = vmatpush1.bf16.msra.mxu0 0
        %2133 = vmatprep.subr.bf16.mxu0 0
        %2134 = vmatpush1.bf16.msra.mxu0 0
        %2135 = vmatprep.subr.bf16.mxu0 0
        %2136 = vmatpush1.bf16.msra.mxu0 0
        %2137 = vmatprep.subr.bf16.mxu0 0
        %2138 = vmatpush1.bf16.msra.mxu0 0
        %2139 = vmatprep.subr.bf16.mxu0 0
        %2140 = vmatpush1.bf16.msra.mxu0 0
        %2141 = vmatprep.mubr.bf16.mxu0 0
        %2142 = vmatmul.mubr.bf16.gmra.mrb[0].mxu0 %v1661
        %v2143 = vpop.f32.mrb[0].mxu0
        %v2144 = vadd.f32 %v1270, %v2143
        %v2145 = vpop.f32.mrb[0].mxu0
        %v2146 = vadd.f32 %v1274, %v2145
        %v2147 = vpop.f32.mrb[0].mxu0
        %v2148 = vadd.f32 %v1270, %v2147
        %v2149 = vpop.f32.mrb[0].mxu0
        %v2150 = vadd.f32 %v1274, %v2149
        %2151 = vmatprep.mubr.bf16.mxu0 0
        %2152 = vmatmul.mubr.bf16.gmra.mrb[0].mxu0 %v1664
        %v2153 = vpop.f32.mrb[0].mxu0
        %v2154 = vadd.f32 %v1270, %v2153
        %v2155 = vpop.f32.mrb[0].mxu0
        %v2156 = vadd.f32 %v1274, %v2155
        %v2157 = vpop.f32.mrb[0].mxu0
        %v2158 = vadd.f32 %v1270, %v2157
        %v2159 = vpop.f32.mrb[0].mxu0
        %v2160 = vadd.f32 %v1274, %v2159
        %2161 = vmatprep.mubr.bf16.mxu0 0
        %2162 = vmatmul.mubr.bf16.gmra.mrb[0].mxu0 %v1667
        %v2163 = vpop.f32.mrb[0].mxu0
        %v2164 = vadd.f32 %v1270, %v2163
        %v2165 = vpop.f32.mrb[0].mxu0
        %v2166 = vadd.f32 %v1274, %v2165
        %v2167 = vpop.f32.mrb[0].mxu0
        %v2168 = vadd.f32 %v1270, %v2167
        %v2169 = vpop.f32.mrb[0].mxu0
        %v2170 = vadd.f32 %v1274, %v2169
        %2171 = vmatprep.mubr.bf16.mxu0 0
        %2172 = vmatmul.mubr.bf16.gmra.mrb[0].mxu0 %v1670
        %v2173 = vpop.f32.mrb[0].mxu0
        %v2174 = vadd.f32 %v1270, %v2173
        %v2175 = vpop.f32.mrb[0].mxu0
        %v2176 = vadd.f32 %v1274, %v2175
        %v2177 = vpop.f32.mrb[0].mxu0
        %v2178 = vadd.f32 %v1270, %v2177
        %v2179 = vpop.f32.mrb[0].mxu0
        %v2180 = vadd.f32 %v1274, %v2179
        %2181 = vmatprep.mubr.bf16.mxu0 0
        %2182 = vmatmul.mubr.bf16.gmra.mrb[0].mxu0 %v1673
        %v2183 = vpop.f32.mrb[0].mxu0
        %v2184 = vadd.f32 %v1270, %v2183
        %v2185 = vpop.f32.mrb[0].mxu0
        %v2186 = vadd.f32 %v1274, %v2185
        %v2187 = vpop.f32.mrb[0].mxu0
        %v2188 = vadd.f32 %v1270, %v2187
        %v2189 = vpop.f32.mrb[0].mxu0
        %v2190 = vadd.f32 %v1274, %v2189
        %2191 = vmatprep.mubr.bf16.mxu0 0
        %2192 = vmatmul.mubr.bf16.gmra.mrb[0].mxu0 %v1676
        %v2193 = vpop.f32.mrb[0].mxu0
        %v2194 = vadd.f32 %v1270, %v2193
        %v2195 = vpop.f32.mrb[0].mxu0
        %v2196 = vadd.f32 %v1274, %v2195
        %v2197 = vpop.f32.mrb[0].mxu0
        %v2198 = vadd.f32 %v1270, %v2197
        %v2199 = vpop.f32.mrb[0].mxu0
        %v2200 = vadd.f32 %v1274, %v2199
        %2201 = vmatprep.mubr.bf16.mxu0 0
        %2202 = vmatmul.mubr.bf16.gmra.mrb[0].mxu0 %v1679
        %v2203 = vpop.f32.mrb[0].mxu0
        %v2204 = vadd.f32 %v1270, %v2203
        %v2205 = vpop.f32.mrb[0].mxu0
        %v2206 = vadd.f32 %v1274, %v2205
        %v2207 = vpop.f32.mrb[0].mxu0
        %v2208 = vadd.f32 %v1270, %v2207
        %v2209 = vpop.f32.mrb[0].mxu0
        %v2210 = vadd.f32 %v1274, %v2209
        %2211 = vmatprep.mubr.bf16.mxu0 0
        %2212 = vmatmul.mubr.bf16.gmra.mrb[0].mxu0 %v1682
        %v2213 = vpop.f32.mrb[0].mxu0
        %v2214 = vadd.f32 %v1270, %v2213
        %v2215 = vpop.f32.mrb[0].mxu0
        %v2216 = vadd.f32 %v1274, %v2215
        %v2217 = vpop.f32.mrb[0].mxu0
        %v2218 = vadd.f32 %v1270, %v2217
        %v2219 = vpop.f32.mrb[0].mxu0
        %v2220 = vadd.f32 %v1274, %v2219
        %2221 = vmatprep.mubr.bf16.mxu0 0
        %2222 = vmatmul.mubr.bf16.gmra.mrb[0].mxu0 %v1685
        %v2223 = vpop.f32.mrb[0].mxu0
        %v2224 = vadd.f32 %v1270, %v2223
        %v2225 = vpop.f32.mrb[0].mxu0
        %v2226 = vadd.f32 %v1274, %v2225
        %v2227 = vpop.f32.mrb[0].mxu0
        %v2228 = vadd.f32 %v1270, %v2227
        %v2229 = vpop.f32.mrb[0].mxu0
        %v2230 = vadd.f32 %v1274, %v2229
        %2231 = vmatprep.mubr.bf16.mxu0 0
        %2232 = vmatmul.mubr.bf16.gmra.mrb[0].mxu0 %v1688
        %v2233 = vpop.f32.mrb[0].mxu0
        %v2234 = vadd.f32 %v1270, %v2233
        %v2235 = vpop.f32.mrb[0].mxu0
        %v2236 = vadd.f32 %v1274, %v2235
        %v2237 = vpop.f32.mrb[0].mxu0
        %v2238 = vadd.f32 %v1270, %v2237
        %v2239 = vpop.f32.mrb[0].mxu0
        %v2240 = vadd.f32 %v1274, %v2239
        %2241 = vmatprep.mubr.bf16.mxu0 0
        %2242 = vmatmul.mubr.bf16.gmra.mrb[0].mxu0 %v1691
        %v2243 = vpop.f32.mrb[0].mxu0
        %v2244 = vadd.f32 %v1270, %v2243
        %v2245 = vpop.f32.mrb[0].mxu0
        %v2246 = vadd.f32 %v1274, %v2245
        %v2247 = vpop.f32.mrb[0].mxu0
        %v2248 = vadd.f32 %v1270, %v2247
        %v2249 = vpop.f32.mrb[0].mxu0
        %v2250 = vadd.f32 %v1274, %v2249
        %2251 = vmatprep.mubr.bf16.mxu0 0
        %2252 = vmatmul.mubr.bf16.gmra.mrb[0].mxu0 %v1694
        %v2253 = vpop.f32.mrb[0].mxu0
        %v2254 = vadd.f32 %v1270, %v2253
        %v2255 = vpop.f32.mrb[0].mxu0
        %v2256 = vadd.f32 %v1274, %v2255
        %v2257 = vpop.f32.mrb[0].mxu0
        %v2258 = vadd.f32 %v1270, %v2257
        %v2259 = vpop.f32.mrb[0].mxu0
        %v2260 = vadd.f32 %v1274, %v2259
        %2261 = vmatprep.mubr.bf16.mxu0 0
        %2262 = vmatmul.mubr.bf16.gmra.mrb[0].mxu0 %v1697
        %v2263 = vpop.f32.mrb[0].mxu0
        %v2264 = vadd.f32 %v1270, %v2263
        %v2265 = vpop.f32.mrb[0].mxu0
        %v2266 = vadd.f32 %v1274, %v2265
        %v2267 = vpop.f32.mrb[0].mxu0
        %v2268 = vadd.f32 %v1270, %v2267
        %v2269 = vpop.f32.mrb[0].mxu0
        %v2270 = vadd.f32 %v1274, %v2269
        %2271 = vmatprep.mubr.bf16.mxu0 0
        %2272 = vmatmul.mubr.bf16.gmra.mrb[0].mxu0 %v1700
        %v2273 = vpop.f32.mrb[0].mxu0
        %v2274 = vadd.f32 %v1270, %v2273
        %v2275 = vpop.f32.mrb[0].mxu0
        %v2276 = vadd.f32 %v1274, %v2275
        %v2277 = vpop.f32.mrb[0].mxu0
        %v2278 = vadd.f32 %v1270, %v2277
        %v2279 = vpop.f32.mrb[0].mxu0
        %v2280 = vadd.f32 %v1274, %v2279
        %2281 = vmatprep.mubr.bf16.mxu0 0
        %2282 = vmatmul.mubr.bf16.gmra.mrb[0].mxu0 %v1703
        %v2283 = vpop.f32.mrb[0].mxu0
        %v2284 = vadd.f32 %v1270, %v2283
        %v2285 = vpop.f32.mrb[0].mxu0
        %v2286 = vadd.f32 %v1274, %v2285
        %v2287 = vpop.f32.mrb[0].mxu0
        %v2288 = vadd.f32 %v1270, %v2287
        %v2289 = vpop.f32.mrb[0].mxu0
        %v2290 = vadd.f32 %v1274, %v2289
        %2291 = vmatprep.mubr.bf16.mxu0 0
        %2292 = vmatmul.mubr.bf16.gmra.mrb[0].mxu0 %v1706
        %v2293 = vpop.f32.mrb[0].mxu0
        %v2294 = vadd.f32 %v1270, %v2293
        %v2295 = vpop.f32.mrb[0].mxu0
        %v2296 = vadd.f32 %v1274, %v2295
        %v2297 = vpop.f32.mrb[0].mxu0
        %v2298 = vadd.f32 %v1270, %v2297
        %v2299 = vpop.f32.mrb[0].mxu0
        %v2300 = vadd.f32 %v1274, %v2299
        %2301 = vmatprep.mubr.bf16.mxu0 0
        %2302 = vmatmul.mubr.bf16.gmra.mrb[0].mxu0 %v1709
        %v2303 = vpop.f32.mrb[0].mxu0
        %v2304 = vadd.f32 %v1270, %v2303
        %v2305 = vpop.f32.mrb[0].mxu0
        %v2306 = vadd.f32 %v1274, %v2305
        %v2307 = vpop.f32.mrb[0].mxu0
        %v2308 = vadd.f32 %v1270, %v2307
        %v2309 = vpop.f32.mrb[0].mxu0
        %v2310 = vadd.f32 %v1274, %v2309
        %2311 = vmatprep.mubr.bf16.mxu0 0
        %2312 = vmatmul.mubr.bf16.gmra.mrb[0].mxu0 %v1712
        %v2313 = vpop.f32.mrb[0].mxu0
        %v2314 = vadd.f32 %v1270, %v2313
        %v2315 = vpop.f32.mrb[0].mxu0
        %v2316 = vadd.f32 %v1274, %v2315
        %v2317 = vpop.f32.mrb[0].mxu0
        %v2318 = vadd.f32 %v1270, %v2317
        %v2319 = vpop.f32.mrb[0].mxu0
        %v2320 = vadd.f32 %v1274, %v2319
        %2321 = vmatprep.mubr.bf16.mxu0 0
        %2322 = vmatmul.mubr.bf16.gmra.mrb[0].mxu0 %v1715
        %v2323 = vpop.f32.mrb[0].mxu0
        %v2324 = vadd.f32 %v1270, %v2323
        %v2325 = vpop.f32.mrb[0].mxu0
        %v2326 = vadd.f32 %v1274, %v2325
        %v2327 = vpop.f32.mrb[0].mxu0
        %v2328 = vadd.f32 %v1270, %v2327
        %v2329 = vpop.f32.mrb[0].mxu0
        %v2330 = vadd.f32 %v1274, %v2329
        %2331 = vmatprep.mubr.bf16.mxu0 0
        %2332 = vmatmul.mubr.bf16.gmra.mrb[0].mxu0 %v1718
        %v2333 = vpop.f32.mrb[0].mxu0
        %v2334 = vadd.f32 %v1270, %v2333
        %v2335 = vpop.f32.mrb[0].mxu0
        %v2336 = vadd.f32 %v1274, %v2335
        %v2337 = vpop.f32.mrb[0].mxu0
        %v2338 = vadd.f32 %v1270, %v2337
        %v2339 = vpop.f32.mrb[0].mxu0
        %v2340 = vadd.f32 %v1274, %v2339
        %2341 = vmatprep.mubr.bf16.mxu0 0
        %2342 = vmatmul.mubr.bf16.gmra.mrb[0].mxu0 %v1721
        %v2343 = vpop.f32.mrb[0].mxu0
        %v2344 = vadd.f32 %v1270, %v2343
        %v2345 = vpop.f32.mrb[0].mxu0
        %v2346 = vadd.f32 %v1274, %v2345
        %v2347 = vpop.f32.mrb[0].mxu0
        %v2348 = vadd.f32 %v1270, %v2347
        %v2349 = vpop.f32.mrb[0].mxu0
        %v2350 = vadd.f32 %v1274, %v2349
        %2351 = vmatprep.mubr.bf16.mxu0 0
        %2352 = vmatmul.mubr.bf16.gmra.mrb[0].mxu0 %v1724
        %v2353 = vpop.f32.mrb[0].mxu0
        %v2354 = vadd.f32 %v1270, %v2353
        %v2355 = vpop.f32.mrb[0].mxu0
        %v2356 = vadd.f32 %v1274, %v2355
        %v2357 = vpop.f32.mrb[0].mxu0
        %v2358 = vadd.f32 %v1270, %v2357
        %v2359 = vpop.f32.mrb[0].mxu0
        %v2360 = vadd.f32 %v1274, %v2359
        %2361 = vmatprep.mubr.bf16.mxu0 0
        %2362 = vmatmul.mubr.bf16.gmra.mrb[0].mxu0 %v1727
        %v2363 = vpop.f32.mrb[0].mxu0
        %v2364 = vadd.f32 %v1270, %v2363
        %v2365 = vpop.f32.mrb[0].mxu0
        %v2366 = vadd.f32 %v1274, %v2365
        %v2367 = vpop.f32.mrb[0].mxu0
        %v2368 = vadd.f32 %v1270, %v2367
        %v2369 = vpop.f32.mrb[0].mxu0
        %v2370 = vadd.f32 %v1274, %v2369
        %2371 = vmatprep.mubr.bf16.mxu0 0
        %2372 = vmatmul.mubr.bf16.gmra.mrb[0].mxu0 %v1730
        %v2373 = vpop.f32.mrb[0].mxu0
        %v2374 = vadd.f32 %v1270, %v2373
        %v2375 = vpop.f32.mrb[0].mxu0
        %v2376 = vadd.f32 %v1274, %v2375
        %v2377 = vpop.f32.mrb[0].mxu0
        %v2378 = vadd.f32 %v1270, %v2377
        %v2379 = vpop.f32.mrb[0].mxu0
        %v2380 = vadd.f32 %v1274, %v2379
        %2381 = vmatprep.mubr.bf16.mxu0 0
        %2382 = vmatmul.mubr.bf16.gmra.mrb[0].mxu0 %v1733
        %v2383 = vpop.f32.mrb[0].mxu0
        %v2384 = vadd.f32 %v1270, %v2383
        %v2385 = vpop.f32.mrb[0].mxu0
        %v2386 = vadd.f32 %v1274, %v2385
        %v2387 = vpop.f32.mrb[0].mxu0
        %v2388 = vadd.f32 %v1270, %v2387
        %v2389 = vpop.f32.mrb[0].mxu0
        %v2390 = vadd.f32 %v1274, %v2389
        %2391 = vmatprep.mubr.bf16.mxu0 0
        %2392 = vmatmul.mubr.bf16.gmra.mrb[0].mxu0 %v1736
        %v2393 = vpop.f32.mrb[0].mxu0
        %v2394 = vadd.f32 %v1270, %v2393
        %v2395 = vpop.f32.mrb[0].mxu0
        %v2396 = vadd.f32 %v1274, %v2395
        %v2397 = vpop.f32.mrb[0].mxu0
        %v2398 = vadd.f32 %v1270, %v2397
        %v2399 = vpop.f32.mrb[0].mxu0
        %v2400 = vadd.f32 %v1274, %v2399
        %2401 = vmatprep.mubr.bf16.mxu0 0
        %2402 = vmatmul.mubr.bf16.gmra.mrb[0].mxu0 %v1739
        %v2403 = vpop.f32.mrb[0].mxu0
        %v2404 = vadd.f32 %v1270, %v2403
        %v2405 = vpop.f32.mrb[0].mxu0
        %v2406 = vadd.f32 %v1274, %v2405
        %v2407 = vpop.f32.mrb[0].mxu0
        %v2408 = vadd.f32 %v1270, %v2407
        %v2409 = vpop.f32.mrb[0].mxu0
        %v2410 = vadd.f32 %v1274, %v2409
        %2411 = vmatprep.mubr.bf16.mxu0 0
        %2412 = vmatmul.mubr.bf16.gmra.mrb[0].mxu0 %v1742
        %v2413 = vpop.f32.mrb[0].mxu0
        %v2414 = vadd.f32 %v1270, %v2413
        %v2415 = vpop.f32.mrb[0].mxu0
        %v2416 = vadd.f32 %v1274, %v2415
        %v2417 = vpop.f32.mrb[0].mxu0
        %v2418 = vadd.f32 %v1270, %v2417
        %v2419 = vpop.f32.mrb[0].mxu0
        %v2420 = vadd.f32 %v1274, %v2419
        %2421 = vmatprep.mubr.bf16.mxu0 0
        %2422 = vmatmul.mubr.bf16.gmra.mrb[0].mxu0 %v1745
        %v2423 = vpop.f32.mrb[0].mxu0
        %v2424 = vadd.f32 %v1270, %v2423
        %v2425 = vpop.f32.mrb[0].mxu0
        %v2426 = vadd.f32 %v1274, %v2425
        %v2427 = vpop.f32.mrb[0].mxu0
        %v2428 = vadd.f32 %v1270, %v2427
        %v2429 = vpop.f32.mrb[0].mxu0
        %v2430 = vadd.f32 %v1274, %v2429
        %2431 = vmatprep.mubr.bf16.mxu0 0
        %2432 = vmatmul.mubr.bf16.gmra.mrb[0].mxu0 %v1748
        %v2433 = vpop.f32.mrb[0].mxu0
        %v2434 = vadd.f32 %v1270, %v2433
        %v2435 = vpop.f32.mrb[0].mxu0
        %v2436 = vadd.f32 %v1274, %v2435
        %v2437 = vpop.f32.mrb[0].mxu0
        %v2438 = vadd.f32 %v1270, %v2437
        %v2439 = vpop.f32.mrb[0].mxu0
        %v2440 = vadd.f32 %v1274, %v2439
        %2441 = vmatprep.mubr.bf16.mxu0 0
        %2442 = vmatmul.mubr.bf16.gmra.mrb[0].mxu0 %v1751
        %v2443 = vpop.f32.mrb[0].mxu0
        %v2444 = vadd.f32 %v1270, %v2443
        %v2445 = vpop.f32.mrb[0].mxu0
        %v2446 = vadd.f32 %v1274, %v2445
        %v2447 = vpop.f32.mrb[0].mxu0
        %v2448 = vadd.f32 %v1270, %v2447
        %v2449 = vpop.f32.mrb[0].mxu0
        %v2450 = vadd.f32 %v1274, %v2449
        %2451 = vmatprep.mubr.bf16.mxu0 0
        %2452 = vmatmul.mubr.bf16.gmra.mrb[0].mxu0 %v1754
        %v2453 = vpop.f32.mrb[0].mxu0
        %v2454 = vadd.f32 %v1270, %v2453
        %v2455 = vpop.f32.mrb[0].mxu0
        %v2456 = vadd.f32 %v1274, %v2455
        %v2457 = vpop.f32.mrb[0].mxu0
        %v2458 = vadd.f32 %v1270, %v2457
        %v2459 = vpop.f32.mrb[0].mxu0
        %v2460 = vadd.f32 %v1274, %v2459
        %2461 = vdwg.mxu0
        %2462 = vmatprep.subr.bf16.mxu0 %v1536
        %2463 = vmatpush1.bf16.msra.mxu0 %v1535
        %2464 = vmatprep.subr.bf16.mxu0 %v1552
        %2465 = vmatpush1.bf16.msra.mxu0 %v1551
        %2466 = vmatprep.subr.bf16.mxu0 %v1568
        %2467 = vmatpush1.bf16.msra.mxu0 %v1567
        %2468 = vmatprep.subr.bf16.mxu0 %v1584
        %2469 = vmatpush1.bf16.msra.mxu0 %v1583
        %2470 = vmatprep.subr.bf16.mxu0 0
        %2471 = vmatpush1.bf16.msra.mxu0 0
        %2472 = vmatprep.subr.bf16.mxu0 0
        %2473 = vmatpush1.bf16.msra.mxu0 0
        %2474 = vmatprep.subr.bf16.mxu0 0
        %2475 = vmatpush1.bf16.msra.mxu0 0
        %2476 = vmatprep.subr.bf16.mxu0 0
        %2477 = vmatpush1.bf16.msra.mxu0 0
        %2478 = vmatprep.subr.bf16.mxu0 0
        %2479 = vmatpush1.bf16.msra.mxu0 0
        %2480 = vmatprep.subr.bf16.mxu0 0
        %2481 = vmatpush1.bf16.msra.mxu0 0
        %2482 = vmatprep.subr.bf16.mxu0 0
        %2483 = vmatpush1.bf16.msra.mxu0 0
        %2484 = vmatprep.subr.bf16.mxu0 0
        %2485 = vmatpush1.bf16.msra.mxu0 0
        %2486 = vmatprep.subr.bf16.mxu0 0
        %2487 = vmatpush1.bf16.msra.mxu0 0
        %2488 = vmatprep.subr.bf16.mxu0 0
        %2489 = vmatpush1.bf16.msra.mxu0 0
        %2490 = vmatprep.subr.bf16.mxu0 0
        %2491 = vmatpush1.bf16.msra.mxu0 0
        %2492 = vmatprep.subr.bf16.mxu0 0
        %2493 = vmatpush1.bf16.msra.mxu0 0
        %2494 = vmatprep.mubr.bf16.mxu0 0
        %2495 = vmatmul.mubr.bf16.gmra.mrb[0].mxu0 %v1661
        %v2496 = vpop.f32.mrb[0].mxu0
        %v2497 = vadd.f32 %v1278, %v2496
        %v2498 = vpop.f32.mrb[0].mxu0
        %v2499 = vadd.f32 %v1282, %v2498
        %v2500 = vpop.f32.mrb[0].mxu0
        %v2501 = vadd.f32 %v1278, %v2500
        %v2502 = vpop.f32.mrb[0].mxu0
        %v2503 = vadd.f32 %v1282, %v2502
        %2504 = vmatprep.mubr.bf16.mxu0 0
        %2505 = vmatmul.mubr.bf16.gmra.mrb[0].mxu0 %v1664
        %v2506 = vpop.f32.mrb[0].mxu0
        %v2507 = vadd.f32 %v1278, %v2506
        %v2508 = vpop.f32.mrb[0].mxu0
        %v2509 = vadd.f32 %v1282, %v2508
        %v2510 = vpop.f32.mrb[0].mxu0
        %v2511 = vadd.f32 %v1278, %v2510
        %v2512 = vpop.f32.mrb[0].mxu0
        %v2513 = vadd.f32 %v1282, %v2512
        %2514 = vmatprep.mubr.bf16.mxu0 0
        %2515 = vmatmul.mubr.bf16.gmra.mrb[0].mxu0 %v1667
        %v2516 = vpop.f32.mrb[0].mxu0
        %v2517 = vadd.f32 %v1278, %v2516
        %v2518 = vpop.f32.mrb[0].mxu0
        %v2519 = vadd.f32 %v1282, %v2518
        %v2520 = vpop.f32.mrb[0].mxu0
        %v2521 = vadd.f32 %v1278, %v2520
        %v2522 = vpop.f32.mrb[0].mxu0
        %v2523 = vadd.f32 %v1282, %v2522
        %2524 = vmatprep.mubr.bf16.mxu0 0
        %2525 = vmatmul.mubr.bf16.gmra.mrb[0].mxu0 %v1670
        %v2526 = vpop.f32.mrb[0].mxu0
        %v2527 = vadd.f32 %v1278, %v2526
        %v2528 = vpop.f32.mrb[0].mxu0
        %v2529 = vadd.f32 %v1282, %v2528
        %v2530 = vpop.f32.mrb[0].mxu0
        %v2531 = vadd.f32 %v1278, %v2530
        %v2532 = vpop.f32.mrb[0].mxu0
        %v2533 = vadd.f32 %v1282, %v2532
        %2534 = vmatprep.mubr.bf16.mxu0 0
        %2535 = vmatmul.mubr.bf16.gmra.mrb[0].mxu0 %v1673
        %v2536 = vpop.f32.mrb[0].mxu0
        %v2537 = vadd.f32 %v1278, %v2536
        %v2538 = vpop.f32.mrb[0].mxu0
        %v2539 = vadd.f32 %v1282, %v2538
        %v2540 = vpop.f32.mrb[0].mxu0
        %v2541 = vadd.f32 %v1278, %v2540
        %v2542 = vpop.f32.mrb[0].mxu0
        %v2543 = vadd.f32 %v1282, %v2542
        %2544 = vmatprep.mubr.bf16.mxu0 0
        %2545 = vmatmul.mubr.bf16.gmra.mrb[0].mxu0 %v1676
        %v2546 = vpop.f32.mrb[0].mxu0
        %v2547 = vadd.f32 %v1278, %v2546
        %v2548 = vpop.f32.mrb[0].mxu0
        %v2549 = vadd.f32 %v1282, %v2548
        %v2550 = vpop.f32.mrb[0].mxu0
        %v2551 = vadd.f32 %v1278, %v2550
        %v2552 = vpop.f32.mrb[0].mxu0
        %v2553 = vadd.f32 %v1282, %v2552
        %2554 = vmatprep.mubr.bf16.mxu0 0
        %2555 = vmatmul.mubr.bf16.gmra.mrb[0].mxu0 %v1679
        %v2556 = vpop.f32.mrb[0].mxu0
        %v2557 = vadd.f32 %v1278, %v2556
        %v2558 = vpop.f32.mrb[0].mxu0
        %v2559 = vadd.f32 %v1282, %v2558
        %v2560 = vpop.f32.mrb[0].mxu0
        %v2561 = vadd.f32 %v1278, %v2560
        %v2562 = vpop.f32.mrb[0].mxu0
        %v2563 = vadd.f32 %v1282, %v2562
        %2564 = vmatprep.mubr.bf16.mxu0 0
        %2565 = vmatmul.mubr.bf16.gmra.mrb[0].mxu0 %v1682
        %v2566 = vpop.f32.mrb[0].mxu0
        %v2567 = vadd.f32 %v1278, %v2566
        %v2568 = vpop.f32.mrb[0].mxu0
        %v2569 = vadd.f32 %v1282, %v2568
        %v2570 = vpop.f32.mrb[0].mxu0
        %v2571 = vadd.f32 %v1278, %v2570
        %v2572 = vpop.f32.mrb[0].mxu0
        %v2573 = vadd.f32 %v1282, %v2572
        %2574 = vmatprep.mubr.bf16.mxu0 0
        %2575 = vmatmul.mubr.bf16.gmra.mrb[0].mxu0 %v1685
        %v2576 = vpop.f32.mrb[0].mxu0
        %v2577 = vadd.f32 %v1278, %v2576
        %v2578 = vpop.f32.mrb[0].mxu0
        %v2579 = vadd.f32 %v1282, %v2578
        %v2580 = vpop.f32.mrb[0].mxu0
        %v2581 = vadd.f32 %v1278, %v2580
        %v2582 = vpop.f32.mrb[0].mxu0
        %v2583 = vadd.f32 %v1282, %v2582
        %2584 = vmatprep.mubr.bf16.mxu0 0
        %2585 = vmatmul.mubr.bf16.gmra.mrb[0].mxu0 %v1688
        %v2586 = vpop.f32.mrb[0].mxu0
        %v2587 = vadd.f32 %v1278, %v2586
        %v2588 = vpop.f32.mrb[0].mxu0
        %v2589 = vadd.f32 %v1282, %v2588
        %v2590 = vpop.f32.mrb[0].mxu0
        %v2591 = vadd.f32 %v1278, %v2590
        %v2592 = vpop.f32.mrb[0].mxu0
        %v2593 = vadd.f32 %v1282, %v2592
        %2594 = vmatprep.mubr.bf16.mxu0 0
        %2595 = vmatmul.mubr.bf16.gmra.mrb[0].mxu0 %v1691
        %v2596 = vpop.f32.mrb[0].mxu0
        %v2597 = vadd.f32 %v1278, %v2596
        %v2598 = vpop.f32.mrb[0].mxu0
        %v2599 = vadd.f32 %v1282, %v2598
        %v2600 = vpop.f32.mrb[0].mxu0
        %v2601 = vadd.f32 %v1278, %v2600
        %v2602 = vpop.f32.mrb[0].mxu0
        %v2603 = vadd.f32 %v1282, %v2602
        %2604 = vmatprep.mubr.bf16.mxu0 0
        %2605 = vmatmul.mubr.bf16.gmra.mrb[0].mxu0 %v1694
        %v2606 = vpop.f32.mrb[0].mxu0
        %v2607 = vadd.f32 %v1278, %v2606
        %v2608 = vpop.f32.mrb[0].mxu0
        %v2609 = vadd.f32 %v1282, %v2608
        %v2610 = vpop.f32.mrb[0].mxu0
        %v2611 = vadd.f32 %v1278, %v2610
        %v2612 = vpop.f32.mrb[0].mxu0
        %v2613 = vadd.f32 %v1282, %v2612
        %2614 = vmatprep.mubr.bf16.mxu0 0
        %2615 = vmatmul.mubr.bf16.gmra.mrb[0].mxu0 %v1697
        %v2616 = vpop.f32.mrb[0].mxu0
        %v2617 = vadd.f32 %v1278, %v2616
        %v2618 = vpop.f32.mrb[0].mxu0
        %v2619 = vadd.f32 %v1282, %v2618
        %v2620 = vpop.f32.mrb[0].mxu0
        %v2621 = vadd.f32 %v1278, %v2620
        %v2622 = vpop.f32.mrb[0].mxu0
        %v2623 = vadd.f32 %v1282, %v2622
        %2624 = vmatprep.mubr.bf16.mxu0 0
        %2625 = vmatmul.mubr.bf16.gmra.mrb[0].mxu0 %v1700
        %v2626 = vpop.f32.mrb[0].mxu0
        %v2627 = vadd.f32 %v1278, %v2626
        %v2628 = vpop.f32.mrb[0].mxu0
        %v2629 = vadd.f32 %v1282, %v2628
        %v2630 = vpop.f32.mrb[0].mxu0
        %v2631 = vadd.f32 %v1278, %v2630
        %v2632 = vpop.f32.mrb[0].mxu0
        %v2633 = vadd.f32 %v1282, %v2632
        %2634 = vmatprep.mubr.bf16.mxu0 0
        %2635 = vmatmul.mubr.bf16.gmra.mrb[0].mxu0 %v1703
        %v2636 = vpop.f32.mrb[0].mxu0
        %v2637 = vadd.f32 %v1278, %v2636
        %v2638 = vpop.f32.mrb[0].mxu0
        %v2639 = vadd.f32 %v1282, %v2638
        %v2640 = vpop.f32.mrb[0].mxu0
        %v2641 = vadd.f32 %v1278, %v2640
        %v2642 = vpop.f32.mrb[0].mxu0
        %v2643 = vadd.f32 %v1282, %v2642
        %2644 = vmatprep.mubr.bf16.mxu0 0
        %2645 = vmatmul.mubr.bf16.gmra.mrb[0].mxu0 %v1706
        %v2646 = vpop.f32.mrb[0].mxu0
        %v2647 = vadd.f32 %v1278, %v2646
        %v2648 = vpop.f32.mrb[0].mxu0
        %v2649 = vadd.f32 %v1282, %v2648
        %v2650 = vpop.f32.mrb[0].mxu0
        %v2651 = vadd.f32 %v1278, %v2650
        %v2652 = vpop.f32.mrb[0].mxu0
        %v2653 = vadd.f32 %v1282, %v2652
        %2654 = vmatprep.mubr.bf16.mxu0 0
        %2655 = vmatmul.mubr.bf16.gmra.mrb[0].mxu0 %v1709
        %v2656 = vpop.f32.mrb[0].mxu0
        %v2657 = vadd.f32 %v1278, %v2656
        %v2658 = vpop.f32.mrb[0].mxu0
        %v2659 = vadd.f32 %v1282, %v2658
        %v2660 = vpop.f32.mrb[0].mxu0
        %v2661 = vadd.f32 %v1278, %v2660
        %v2662 = vpop.f32.mrb[0].mxu0
        %v2663 = vadd.f32 %v1282, %v2662
        %2664 = vmatprep.mubr.bf16.mxu0 0
        %2665 = vmatmul.mubr.bf16.gmra.mrb[0].mxu0 %v1712
        %v2666 = vpop.f32.mrb[0].mxu0
        %v2667 = vadd.f32 %v1278, %v2666
        %v2668 = vpop.f32.mrb[0].mxu0
        %v2669 = vadd.f32 %v1282, %v2668
        %v2670 = vpop.f32.mrb[0].mxu0
        %v2671 = vadd.f32 %v1278, %v2670
        %v2672 = vpop.f32.mrb[0].mxu0
        %v2673 = vadd.f32 %v1282, %v2672
        %2674 = vmatprep.mubr.bf16.mxu0 0
        %2675 = vmatmul.mubr.bf16.gmra.mrb[0].mxu0 %v1715
        %v2676 = vpop.f32.mrb[0].mxu0
        %v2677 = vadd.f32 %v1278, %v2676
        %v2678 = vpop.f32.mrb[0].mxu0
        %v2679 = vadd.f32 %v1282, %v2678
        %v2680 = vpop.f32.mrb[0].mxu0
        %v2681 = vadd.f32 %v1278, %v2680
        %v2682 = vpop.f32.mrb[0].mxu0
        %v2683 = vadd.f32 %v1282, %v2682
        %2684 = vmatprep.mubr.bf16.mxu0 0
        %2685 = vmatmul.mubr.bf16.gmra.mrb[0].mxu0 %v1718
        %v2686 = vpop.f32.mrb[0].mxu0
        %v2687 = vadd.f32 %v1278, %v2686
        %v2688 = vpop.f32.mrb[0].mxu0
        %v2689 = vadd.f32 %v1282, %v2688
        %v2690 = vpop.f32.mrb[0].mxu0
        %v2691 = vadd.f32 %v1278, %v2690
        %v2692 = vpop.f32.mrb[0].mxu0
        %v2693 = vadd.f32 %v1282, %v2692
        %2694 = vmatprep.mubr.bf16.mxu0 0
        %2695 = vmatmul.mubr.bf16.gmra.mrb[0].mxu0 %v1721
        %v2696 = vpop.f32.mrb[0].mxu0
        %v2697 = vadd.f32 %v1278, %v2696
        %v2698 = vpop.f32.mrb[0].mxu0
        %v2699 = vadd.f32 %v1282, %v2698
        %v2700 = vpop.f32.mrb[0].mxu0
        %v2701 = vadd.f32 %v1278, %v2700
        %v2702 = vpop.f32.mrb[0].mxu0
        %v2703 = vadd.f32 %v1282, %v2702
        %2704 = vmatprep.mubr.bf16.mxu0 0
        %2705 = vmatmul.mubr.bf16.gmra.mrb[0].mxu0 %v1724
        %v2706 = vpop.f32.mrb[0].mxu0
        %v2707 = vadd.f32 %v1278, %v2706
        %v2708 = vpop.f32.mrb[0].mxu0
        %v2709 = vadd.f32 %v1282, %v2708
        %v2710 = vpop.f32.mrb[0].mxu0
        %v2711 = vadd.f32 %v1278, %v2710
        %v2712 = vpop.f32.mrb[0].mxu0
        %v2713 = vadd.f32 %v1282, %v2712
        %2714 = vmatprep.mubr.bf16.mxu0 0
        %2715 = vmatmul.mubr.bf16.gmra.mrb[0].mxu0 %v1727
        %v2716 = vpop.f32.mrb[0].mxu0
        %v2717 = vadd.f32 %v1278, %v2716
        %v2718 = vpop.f32.mrb[0].mxu0
        %v2719 = vadd.f32 %v1282, %v2718
        %v2720 = vpop.f32.mrb[0].mxu0
        %v2721 = vadd.f32 %v1278, %v2720
        %v2722 = vpop.f32.mrb[0].mxu0
        %v2723 = vadd.f32 %v1282, %v2722
        %2724 = vmatprep.mubr.bf16.mxu0 0
        %2725 = vmatmul.mubr.bf16.gmra.mrb[0].mxu0 %v1730
        %v2726 = vpop.f32.mrb[0].mxu0
        %v2727 = vadd.f32 %v1278, %v2726
        %v2728 = vpop.f32.mrb[0].mxu0
        %v2729 = vadd.f32 %v1282, %v2728
        %v2730 = vpop.f32.mrb[0].mxu0
        %v2731 = vadd.f32 %v1278, %v2730
        %v2732 = vpop.f32.mrb[0].mxu0
        %v2733 = vadd.f32 %v1282, %v2732
        %2734 = vmatprep.mubr.bf16.mxu0 0
        %2735 = vmatmul.mubr.bf16.gmra.mrb[0].mxu0 %v1733
        %v2736 = vpop.f32.mrb[0].mxu0
        %v2737 = vadd.f32 %v1278, %v2736
        %v2738 = vpop.f32.mrb[0].mxu0
        %v2739 = vadd.f32 %v1282, %v2738
        %v2740 = vpop.f32.mrb[0].mxu0
        %v2741 = vadd.f32 %v1278, %v2740
        %v2742 = vpop.f32.mrb[0].mxu0
        %v2743 = vadd.f32 %v1282, %v2742
        %2744 = vmatprep.mubr.bf16.mxu0 0
        %2745 = vmatmul.mubr.bf16.gmra.mrb[0].mxu0 %v1736
        %v2746 = vpop.f32.mrb[0].mxu0
        %v2747 = vadd.f32 %v1278, %v2746
        %v2748 = vpop.f32.mrb[0].mxu0
        %v2749 = vadd.f32 %v1282, %v2748
        %v2750 = vpop.f32.mrb[0].mxu0
        %v2751 = vadd.f32 %v1278, %v2750
        %v2752 = vpop.f32.mrb[0].mxu0
        %v2753 = vadd.f32 %v1282, %v2752
        %2754 = vmatprep.mubr.bf16.mxu0 0
        %2755 = vmatmul.mubr.bf16.gmra.mrb[0].mxu0 %v1739
        %v2756 = vpop.f32.mrb[0].mxu0
        %v2757 = vadd.f32 %v1278, %v2756
        %v2758 = vpop.f32.mrb[0].mxu0
        %v2759 = vadd.f32 %v1282, %v2758
        %v2760 = vpop.f32.mrb[0].mxu0
        %v2761 = vadd.f32 %v1278, %v2760
        %v2762 = vpop.f32.mrb[0].mxu0
        %v2763 = vadd.f32 %v1282, %v2762
        %2764 = vmatprep.mubr.bf16.mxu0 0
        %2765 = vmatmul.mubr.bf16.gmra.mrb[0].mxu0 %v1742
        %v2766 = vpop.f32.mrb[0].mxu0
        %v2767 = vadd.f32 %v1278, %v2766
        %v2768 = vpop.f32.mrb[0].mxu0
        %v2769 = vadd.f32 %v1282, %v2768
        %v2770 = vpop.f32.mrb[0].mxu0
        %v2771 = vadd.f32 %v1278, %v2770
        %v2772 = vpop.f32.mrb[0].mxu0
        %v2773 = vadd.f32 %v1282, %v2772
        %2774 = vmatprep.mubr.bf16.mxu0 0
        %2775 = vmatmul.mubr.bf16.gmra.mrb[0].mxu0 %v1745
        %v2776 = vpop.f32.mrb[0].mxu0
        %v2777 = vadd.f32 %v1278, %v2776
        %v2778 = vpop.f32.mrb[0].mxu0
        %v2779 = vadd.f32 %v1282, %v2778
        %v2780 = vpop.f32.mrb[0].mxu0
        %v2781 = vadd.f32 %v1278, %v2780
        %v2782 = vpop.f32.mrb[0].mxu0
        %v2783 = vadd.f32 %v1282, %v2782
        %2784 = vmatprep.mubr.bf16.mxu0 0
        %2785 = vmatmul.mubr.bf16.gmra.mrb[0].mxu0 %v1748
        %v2786 = vpop.f32.mrb[0].mxu0
        %v2787 = vadd.f32 %v1278, %v2786
        %v2788 = vpop.f32.mrb[0].mxu0
        %v2789 = vadd.f32 %v1282, %v2788
        %v2790 = vpop.f32.mrb[0].mxu0
        %v2791 = vadd.f32 %v1278, %v2790
        %v2792 = vpop.f32.mrb[0].mxu0
        %v2793 = vadd.f32 %v1282, %v2792
        %2794 = vmatprep.mubr.bf16.mxu0 0
        %2795 = vmatmul.mubr.bf16.gmra.mrb[0].mxu0 %v1751
        %v2796 = vpop.f32.mrb[0].mxu0
        %v2797 = vadd.f32 %v1278, %v2796
        %v2798 = vpop.f32.mrb[0].mxu0
        %v2799 = vadd.f32 %v1282, %v2798
        %v2800 = vpop.f32.mrb[0].mxu0
        %v2801 = vadd.f32 %v1278, %v2800
        %v2802 = vpop.f32.mrb[0].mxu0
        %v2803 = vadd.f32 %v1282, %v2802
        %2804 = vmatprep.mubr.bf16.mxu0 0
        %2805 = vmatmul.mubr.bf16.gmra.mrb[0].mxu0 %v1754
        %v2806 = vpop.f32.mrb[0].mxu0
        %v2807 = vadd.f32 %v1278, %v2806
        %v2808 = vpop.f32.mrb[0].mxu0
        %v2809 = vadd.f32 %v1282, %v2808
        %v2810 = vpop.f32.mrb[0].mxu0
        %v2811 = vadd.f32 %v1278, %v2810
        %v2812 = vpop.f32.mrb[0].mxu0
        %v2813 = vadd.f32 %v1282, %v2812
        %2814 = vdwg.mxu0
        %2815 = vmatprep.subr.bf16.mxu0 %v1538
        %2816 = vmatpush1.bf16.msra.mxu0 %v1537
        %2817 = vmatprep.subr.bf16.mxu0 %v1554
        %2818 = vmatpush1.bf16.msra.mxu0 %v1553
        %2819 = vmatprep.subr.bf16.mxu0 %v1570
        %2820 = vmatpush1.bf16.msra.mxu0 %v1569
        %2821 = vmatprep.subr.bf16.mxu0 %v1586
        %2822 = vmatpush1.bf16.msra.mxu0 %v1585
        %2823 = vmatprep.subr.bf16.mxu0 0
        %2824 = vmatpush1.bf16.msra.mxu0 0
        %2825 = vmatprep.subr.bf16.mxu0 0
        %2826 = vmatpush1.bf16.msra.mxu0 0
        %2827 = vmatprep.subr.bf16.mxu0 0
        %2828 = vmatpush1.bf16.msra.mxu0 0
        %2829 = vmatprep.subr.bf16.mxu0 0
        %2830 = vmatpush1.bf16.msra.mxu0 0
        %2831 = vmatprep.subr.bf16.mxu0 0
        %2832 = vmatpush1.bf16.msra.mxu0 0
        %2833 = vmatprep.subr.bf16.mxu0 0
        %2834 = vmatpush1.bf16.msra.mxu0 0
        %2835 = vmatprep.subr.bf16.mxu0 0
        %2836 = vmatpush1.bf16.msra.mxu0 0
        %2837 = vmatprep.subr.bf16.mxu0 0
        %2838 = vmatpush1.bf16.msra.mxu0 0
        %2839 = vmatprep.subr.bf16.mxu0 0
        %2840 = vmatpush1.bf16.msra.mxu0 0
        %2841 = vmatprep.subr.bf16.mxu0 0
        %2842 = vmatpush1.bf16.msra.mxu0 0
        %2843 = vmatprep.subr.bf16.mxu0 0
        %2844 = vmatpush1.bf16.msra.mxu0 0
        %2845 = vmatprep.subr.bf16.mxu0 0
        %2846 = vmatpush1.bf16.msra.mxu0 0
        %2847 = vmatprep.mubr.bf16.mxu0 0
        %2848 = vmatmul.mubr.bf16.gmra.mrb[0].mxu0 %v1661
        %v2849 = vpop.f32.mrb[0].mxu0
        %v2850 = vadd.f32 %v1286, %v2849
        %v2851 = vpop.f32.mrb[0].mxu0
        %v2852 = vadd.f32 %v1290, %v2851
        %v2853 = vpop.f32.mrb[0].mxu0
        %v2854 = vadd.f32 %v1286, %v2853
        %v2855 = vpop.f32.mrb[0].mxu0
        %v2856 = vadd.f32 %v1290, %v2855
        %2857 = vmatprep.mubr.bf16.mxu0 0
        %2858 = vmatmul.mubr.bf16.gmra.mrb[0].mxu0 %v1664
        %v2859 = vpop.f32.mrb[0].mxu0
        %v2860 = vadd.f32 %v1286, %v2859
        %v2861 = vpop.f32.mrb[0].mxu0
        %v2862 = vadd.f32 %v1290, %v2861
        %v2863 = vpop.f32.mrb[0].mxu0
        %v2864 = vadd.f32 %v1286, %v2863
        %v2865 = vpop.f32.mrb[0].mxu0
        %v2866 = vadd.f32 %v1290, %v2865
        %2867 = vmatprep.mubr.bf16.mxu0 0
        %2868 = vmatmul.mubr.bf16.gmra.mrb[0].mxu0 %v1667
        %v2869 = vpop.f32.mrb[0].mxu0
        %v2870 = vadd.f32 %v1286, %v2869
        %v2871 = vpop.f32.mrb[0].mxu0
        %v2872 = vadd.f32 %v1290, %v2871
        %v2873 = vpop.f32.mrb[0].mxu0
        %v2874 = vadd.f32 %v1286, %v2873
        %v2875 = vpop.f32.mrb[0].mxu0
        %v2876 = vadd.f32 %v1290, %v2875
        %2877 = vmatprep.mubr.bf16.mxu0 0
        %2878 = vmatmul.mubr.bf16.gmra.mrb[0].mxu0 %v1670
        %v2879 = vpop.f32.mrb[0].mxu0
        %v2880 = vadd.f32 %v1286, %v2879
        %v2881 = vpop.f32.mrb[0].mxu0
        %v2882 = vadd.f32 %v1290, %v2881
        %v2883 = vpop.f32.mrb[0].mxu0
        %v2884 = vadd.f32 %v1286, %v2883
        %v2885 = vpop.f32.mrb[0].mxu0
        %v2886 = vadd.f32 %v1290, %v2885
        %2887 = vmatprep.mubr.bf16.mxu0 0
        %2888 = vmatmul.mubr.bf16.gmra.mrb[0].mxu0 %v1673
        %v2889 = vpop.f32.mrb[0].mxu0
        %v2890 = vadd.f32 %v1286, %v2889
        %v2891 = vpop.f32.mrb[0].mxu0
        %v2892 = vadd.f32 %v1290, %v2891
        %v2893 = vpop.f32.mrb[0].mxu0
        %v2894 = vadd.f32 %v1286, %v2893
        %v2895 = vpop.f32.mrb[0].mxu0
        %v2896 = vadd.f32 %v1290, %v2895
        %2897 = vmatprep.mubr.bf16.mxu0 0
        %2898 = vmatmul.mubr.bf16.gmra.mrb[0].mxu0 %v1676
        %v2899 = vpop.f32.mrb[0].mxu0
        %v2900 = vadd.f32 %v1286, %v2899
        %v2901 = vpop.f32.mrb[0].mxu0
        %v2902 = vadd.f32 %v1290, %v2901
        %v2903 = vpop.f32.mrb[0].mxu0
        %v2904 = vadd.f32 %v1286, %v2903
        %v2905 = vpop.f32.mrb[0].mxu0
        %v2906 = vadd.f32 %v1290, %v2905
        %2907 = vmatprep.mubr.bf16.mxu0 0
        %2908 = vmatmul.mubr.bf16.gmra.mrb[0].mxu0 %v1679
        %v2909 = vpop.f32.mrb[0].mxu0
        %v2910 = vadd.f32 %v1286, %v2909
        %v2911 = vpop.f32.mrb[0].mxu0
        %v2912 = vadd.f32 %v1290, %v2911
        %v2913 = vpop.f32.mrb[0].mxu0
        %v2914 = vadd.f32 %v1286, %v2913
        %v2915 = vpop.f32.mrb[0].mxu0
        %v2916 = vadd.f32 %v1290, %v2915
        %2917 = vmatprep.mubr.bf16.mxu0 0
        %2918 = vmatmul.mubr.bf16.gmra.mrb[0].mxu0 %v1682
        %v2919 = vpop.f32.mrb[0].mxu0
        %v2920 = vadd.f32 %v1286, %v2919
        %v2921 = vpop.f32.mrb[0].mxu0
        %v2922 = vadd.f32 %v1290, %v2921
        %v2923 = vpop.f32.mrb[0].mxu0
        %v2924 = vadd.f32 %v1286, %v2923
        %v2925 = vpop.f32.mrb[0].mxu0
        %v2926 = vadd.f32 %v1290, %v2925
        %2927 = vmatprep.mubr.bf16.mxu0 0
        %2928 = vmatmul.mubr.bf16.gmra.mrb[0].mxu0 %v1685
        %v2929 = vpop.f32.mrb[0].mxu0
        %v2930 = vadd.f32 %v1286, %v2929
        %v2931 = vpop.f32.mrb[0].mxu0
        %v2932 = vadd.f32 %v1290, %v2931
        %v2933 = vpop.f32.mrb[0].mxu0
        %v2934 = vadd.f32 %v1286, %v2933
        %v2935 = vpop.f32.mrb[0].mxu0
        %v2936 = vadd.f32 %v1290, %v2935
        %2937 = vmatprep.mubr.bf16.mxu0 0
        %2938 = vmatmul.mubr.bf16.gmra.mrb[0].mxu0 %v1688
        %v2939 = vpop.f32.mrb[0].mxu0
        %v2940 = vadd.f32 %v1286, %v2939
        %v2941 = vpop.f32.mrb[0].mxu0
        %v2942 = vadd.f32 %v1290, %v2941
        %v2943 = vpop.f32.mrb[0].mxu0
        %v2944 = vadd.f32 %v1286, %v2943
        %v2945 = vpop.f32.mrb[0].mxu0
        %v2946 = vadd.f32 %v1290, %v2945
        %2947 = vmatprep.mubr.bf16.mxu0 0
        %2948 = vmatmul.mubr.bf16.gmra.mrb[0].mxu0 %v1691
        %v2949 = vpop.f32.mrb[0].mxu0
        %v2950 = vadd.f32 %v1286, %v2949
        %v2951 = vpop.f32.mrb[0].mxu0
        %v2952 = vadd.f32 %v1290, %v2951
        %v2953 = vpop.f32.mrb[0].mxu0
        %v2954 = vadd.f32 %v1286, %v2953
        %v2955 = vpop.f32.mrb[0].mxu0
        %v2956 = vadd.f32 %v1290, %v2955
        %2957 = vmatprep.mubr.bf16.mxu0 0
        %2958 = vmatmul.mubr.bf16.gmra.mrb[0].mxu0 %v1694
        %v2959 = vpop.f32.mrb[0].mxu0
        %v2960 = vadd.f32 %v1286, %v2959
        %v2961 = vpop.f32.mrb[0].mxu0
        %v2962 = vadd.f32 %v1290, %v2961
        %v2963 = vpop.f32.mrb[0].mxu0
        %v2964 = vadd.f32 %v1286, %v2963
        %v2965 = vpop.f32.mrb[0].mxu0
        %v2966 = vadd.f32 %v1290, %v2965
        %2967 = vmatprep.mubr.bf16.mxu0 0
        %2968 = vmatmul.mubr.bf16.gmra.mrb[0].mxu0 %v1697
        %v2969 = vpop.f32.mrb[0].mxu0
        %v2970 = vadd.f32 %v1286, %v2969
        %v2971 = vpop.f32.mrb[0].mxu0
        %v2972 = vadd.f32 %v1290, %v2971
        %v2973 = vpop.f32.mrb[0].mxu0
        %v2974 = vadd.f32 %v1286, %v2973
        %v2975 = vpop.f32.mrb[0].mxu0
        %v2976 = vadd.f32 %v1290, %v2975
        %2977 = vmatprep.mubr.bf16.mxu0 0
        %2978 = vmatmul.mubr.bf16.gmra.mrb[0].mxu0 %v1700
        %v2979 = vpop.f32.mrb[0].mxu0
        %v2980 = vadd.f32 %v1286, %v2979
        %v2981 = vpop.f32.mrb[0].mxu0
        %v2982 = vadd.f32 %v1290, %v2981
        %v2983 = vpop.f32.mrb[0].mxu0
        %v2984 = vadd.f32 %v1286, %v2983
        %v2985 = vpop.f32.mrb[0].mxu0
        %v2986 = vadd.f32 %v1290, %v2985
        %2987 = vmatprep.mubr.bf16.mxu0 0
        %2988 = vmatmul.mubr.bf16.gmra.mrb[0].mxu0 %v1703
        %v2989 = vpop.f32.mrb[0].mxu0
        %v2990 = vadd.f32 %v1286, %v2989
        %v2991 = vpop.f32.mrb[0].mxu0
        %v2992 = vadd.f32 %v1290, %v2991
        %v2993 = vpop.f32.mrb[0].mxu0
        %v2994 = vadd.f32 %v1286, %v2993
        %v2995 = vpop.f32.mrb[0].mxu0
        %v2996 = vadd.f32 %v1290, %v2995
        %2997 = vmatprep.mubr.bf16.mxu0 0
        %2998 = vmatmul.mubr.bf16.gmra.mrb[0].mxu0 %v1706
        %v2999 = vpop.f32.mrb[0].mxu0
        %v3000 = vadd.f32 %v1286, %v2999
        %v3001 = vpop.f32.mrb[0].mxu0
        %v3002 = vadd.f32 %v1290, %v3001
        %v3003 = vpop.f32.mrb[0].mxu0
        %v3004 = vadd.f32 %v1286, %v3003
        %v3005 = vpop.f32.mrb[0].mxu0
        %v3006 = vadd.f32 %v1290, %v3005
        %3007 = vmatprep.mubr.bf16.mxu0 0
        %3008 = vmatmul.mubr.bf16.gmra.mrb[0].mxu0 %v1709
        %v3009 = vpop.f32.mrb[0].mxu0
        %v3010 = vadd.f32 %v1286, %v3009
        %v3011 = vpop.f32.mrb[0].mxu0
        %v3012 = vadd.f32 %v1290, %v3011
        %v3013 = vpop.f32.mrb[0].mxu0
        %v3014 = vadd.f32 %v1286, %v3013
        %v3015 = vpop.f32.mrb[0].mxu0
        %v3016 = vadd.f32 %v1290, %v3015
        %3017 = vmatprep.mubr.bf16.mxu0 0
        %3018 = vmatmul.mubr.bf16.gmra.mrb[0].mxu0 %v1712
        %v3019 = vpop.f32.mrb[0].mxu0
        %v3020 = vadd.f32 %v1286, %v3019
        %v3021 = vpop.f32.mrb[0].mxu0
        %v3022 = vadd.f32 %v1290, %v3021
        %v3023 = vpop.f32.mrb[0].mxu0
        %v3024 = vadd.f32 %v1286, %v3023
        %v3025 = vpop.f32.mrb[0].mxu0
        %v3026 = vadd.f32 %v1290, %v3025
        %3027 = vmatprep.mubr.bf16.mxu0 0
        %3028 = vmatmul.mubr.bf16.gmra.mrb[0].mxu0 %v1715
        %v3029 = vpop.f32.mrb[0].mxu0
        %v3030 = vadd.f32 %v1286, %v3029
        %v3031 = vpop.f32.mrb[0].mxu0
        %v3032 = vadd.f32 %v1290, %v3031
        %v3033 = vpop.f32.mrb[0].mxu0
        %v3034 = vadd.f32 %v1286, %v3033
        %v3035 = vpop.f32.mrb[0].mxu0
        %v3036 = vadd.f32 %v1290, %v3035
        %3037 = vmatprep.mubr.bf16.mxu0 0
        %3038 = vmatmul.mubr.bf16.gmra.mrb[0].mxu0 %v1718
        %v3039 = vpop.f32.mrb[0].mxu0
        %v3040 = vadd.f32 %v1286, %v3039
        %v3041 = vpop.f32.mrb[0].mxu0
        %v3042 = vadd.f32 %v1290, %v3041
        %v3043 = vpop.f32.mrb[0].mxu0
        %v3044 = vadd.f32 %v1286, %v3043
        %v3045 = vpop.f32.mrb[0].mxu0
        %v3046 = vadd.f32 %v1290, %v3045
        %3047 = vmatprep.mubr.bf16.mxu0 0
        %3048 = vmatmul.mubr.bf16.gmra.mrb[0].mxu0 %v1721
        %v3049 = vpop.f32.mrb[0].mxu0
        %v3050 = vadd.f32 %v1286, %v3049
        %v3051 = vpop.f32.mrb[0].mxu0
        %v3052 = vadd.f32 %v1290, %v3051
        %v3053 = vpop.f32.mrb[0].mxu0
        %v3054 = vadd.f32 %v1286, %v3053
        %v3055 = vpop.f32.mrb[0].mxu0
        %v3056 = vadd.f32 %v1290, %v3055
        %3057 = vmatprep.mubr.bf16.mxu0 0
        %3058 = vmatmul.mubr.bf16.gmra.mrb[0].mxu0 %v1724
        %v3059 = vpop.f32.mrb[0].mxu0
        %v3060 = vadd.f32 %v1286, %v3059
        %v3061 = vpop.f32.mrb[0].mxu0
        %v3062 = vadd.f32 %v1290, %v3061
        %v3063 = vpop.f32.mrb[0].mxu0
        %v3064 = vadd.f32 %v1286, %v3063
        %v3065 = vpop.f32.mrb[0].mxu0
        %v3066 = vadd.f32 %v1290, %v3065
        %3067 = vmatprep.mubr.bf16.mxu0 0
        %3068 = vmatmul.mubr.bf16.gmra.mrb[0].mxu0 %v1727
        %v3069 = vpop.f32.mrb[0].mxu0
        %v3070 = vadd.f32 %v1286, %v3069
        %v3071 = vpop.f32.mrb[0].mxu0
        %v3072 = vadd.f32 %v1290, %v3071
        %v3073 = vpop.f32.mrb[0].mxu0
        %v3074 = vadd.f32 %v1286, %v3073
        %v3075 = vpop.f32.mrb[0].mxu0
        %v3076 = vadd.f32 %v1290, %v3075
        %3077 = vmatprep.mubr.bf16.mxu0 0
        %3078 = vmatmul.mubr.bf16.gmra.mrb[0].mxu0 %v1730
        %v3079 = vpop.f32.mrb[0].mxu0
        %v3080 = vadd.f32 %v1286, %v3079
        %v3081 = vpop.f32.mrb[0].mxu0
        %v3082 = vadd.f32 %v1290, %v3081
        %v3083 = vpop.f32.mrb[0].mxu0
        %v3084 = vadd.f32 %v1286, %v3083
        %v3085 = vpop.f32.mrb[0].mxu0
        %v3086 = vadd.f32 %v1290, %v3085
        %3087 = vmatprep.mubr.bf16.mxu0 0
        %3088 = vmatmul.mubr.bf16.gmra.mrb[0].mxu0 %v1733
        %v3089 = vpop.f32.mrb[0].mxu0
        %v3090 = vadd.f32 %v1286, %v3089
        %v3091 = vpop.f32.mrb[0].mxu0
        %v3092 = vadd.f32 %v1290, %v3091
        %v3093 = vpop.f32.mrb[0].mxu0
        %v3094 = vadd.f32 %v1286, %v3093
        %v3095 = vpop.f32.mrb[0].mxu0
        %v3096 = vadd.f32 %v1290, %v3095
        %3097 = vmatprep.mubr.bf16.mxu0 0
        %3098 = vmatmul.mubr.bf16.gmra.mrb[0].mxu0 %v1736
        %v3099 = vpop.f32.mrb[0].mxu0
        %v3100 = vadd.f32 %v1286, %v3099
        %v3101 = vpop.f32.mrb[0].mxu0
        %v3102 = vadd.f32 %v1290, %v3101
        %v3103 = vpop.f32.mrb[0].mxu0
        %v3104 = vadd.f32 %v1286, %v3103
        %v3105 = vpop.f32.mrb[0].mxu0
        %v3106 = vadd.f32 %v1290, %v3105
        %3107 = vmatprep.mubr.bf16.mxu0 0
        %3108 = vmatmul.mubr.bf16.gmra.mrb[0].mxu0 %v1739
        %v3109 = vpop.f32.mrb[0].mxu0
        %v3110 = vadd.f32 %v1286, %v3109
        %v3111 = vpop.f32.mrb[0].mxu0
        %v3112 = vadd.f32 %v1290, %v3111
        %v3113 = vpop.f32.mrb[0].mxu0
        %v3114 = vadd.f32 %v1286, %v3113
        %v3115 = vpop.f32.mrb[0].mxu0
        %v3116 = vadd.f32 %v1290, %v3115
        %3117 = vmatprep.mubr.bf16.mxu0 0
        %3118 = vmatmul.mubr.bf16.gmra.mrb[0].mxu0 %v1742
        %v3119 = vpop.f32.mrb[0].mxu0
        %v3120 = vadd.f32 %v1286, %v3119
        %v3121 = vpop.f32.mrb[0].mxu0
        %v3122 = vadd.f32 %v1290, %v3121
        %v3123 = vpop.f32.mrb[0].mxu0
        %v3124 = vadd.f32 %v1286, %v3123
        %v3125 = vpop.f32.mrb[0].mxu0
        %v3126 = vadd.f32 %v1290, %v3125
        %3127 = vmatprep.mubr.bf16.mxu0 0
        %3128 = vmatmul.mubr.bf16.gmra.mrb[0].mxu0 %v1745
        %v3129 = vpop.f32.mrb[0].mxu0
        %v3130 = vadd.f32 %v1286, %v3129
        %v3131 = vpop.f32.mrb[0].mxu0
        %v3132 = vadd.f32 %v1290, %v3131
        %v3133 = vpop.f32.mrb[0].mxu0
        %v3134 = vadd.f32 %v1286, %v3133
        %v3135 = vpop.f32.mrb[0].mxu0
        %v3136 = vadd.f32 %v1290, %v3135
        %3137 = vmatprep.mubr.bf16.mxu0 0
        %3138 = vmatmul.mubr.bf16.gmra.mrb[0].mxu0 %v1748
        %v3139 = vpop.f32.mrb[0].mxu0
        %v3140 = vadd.f32 %v1286, %v3139
        %v3141 = vpop.f32.mrb[0].mxu0
        %v3142 = vadd.f32 %v1290, %v3141
        %v3143 = vpop.f32.mrb[0].mxu0
        %v3144 = vadd.f32 %v1286, %v3143
        %v3145 = vpop.f32.mrb[0].mxu0
        %v3146 = vadd.f32 %v1290, %v3145
        %3147 = vmatprep.mubr.bf16.mxu0 0
        %3148 = vmatmul.mubr.bf16.gmra.mrb[0].mxu0 %v1751
        %v3149 = vpop.f32.mrb[0].mxu0
        %v3150 = vadd.f32 %v1286, %v3149
        %v3151 = vpop.f32.mrb[0].mxu0
        %v3152 = vadd.f32 %v1290, %v3151
        %v3153 = vpop.f32.mrb[0].mxu0
        %v3154 = vadd.f32 %v1286, %v3153
        %v3155 = vpop.f32.mrb[0].mxu0
        %v3156 = vadd.f32 %v1290, %v3155
        %3157 = vmatprep.mubr.bf16.mxu0 0
        %3158 = vmatmul.mubr.bf16.gmra.mrb[0].mxu0 %v1754
        %v3159 = vpop.f32.mrb[0].mxu0
        %v3160 = vadd.f32 %v1286, %v3159
        %v3161 = vpop.f32.mrb[0].mxu0
        %v3162 = vadd.f32 %v1290, %v3161
        %v3163 = vpop.f32.mrb[0].mxu0
        %v3164 = vadd.f32 %v1286, %v3163
        %v3165 = vpop.f32.mrb[0].mxu0
        %v3166 = vadd.f32 %v1290, %v3165
        %3167 = vdwg.mxu0
        %3168 = vmatprep.subr.bf16.mxu0 %v1540
        %3169 = vmatpush1.bf16.msra.mxu0 %v1539
        %3170 = vmatprep.subr.bf16.mxu0 %v1556
        %3171 = vmatpush1.bf16.msra.mxu0 %v1555
        %3172 = vmatprep.subr.bf16.mxu0 %v1572
        %3173 = vmatpush1.bf16.msra.mxu0 %v1571
        %3174 = vmatprep.subr.bf16.mxu0 %v1588
        %3175 = vmatpush1.bf16.msra.mxu0 %v1587
        %3176 = vmatprep.subr.bf16.mxu0 0
        %3177 = vmatpush1.bf16.msra.mxu0 0
        %3178 = vmatprep.subr.bf16.mxu0 0
        %3179 = vmatpush1.bf16.msra.mxu0 0
        %3180 = vmatprep.subr.bf16.mxu0 0
        %3181 = vmatpush1.bf16.msra.mxu0 0
        %3182 = vmatprep.subr.bf16.mxu0 0
        %3183 = vmatpush1.bf16.msra.mxu0 0
        %3184 = vmatprep.subr.bf16.mxu0 0
        %3185 = vmatpush1.bf16.msra.mxu0 0
        %3186 = vmatprep.subr.bf16.mxu0 0
        %3187 = vmatpush1.bf16.msra.mxu0 0
        %3188 = vmatprep.subr.bf16.mxu0 0
        %3189 = vmatpush1.bf16.msra.mxu0 0
        %3190 = vmatprep.subr.bf16.mxu0 0
        %3191 = vmatpush1.bf16.msra.mxu0 0
        %3192 = vmatprep.subr.bf16.mxu0 0
        %3193 = vmatpush1.bf16.msra.mxu0 0
        %3194 = vmatprep.subr.bf16.mxu0 0
        %3195 = vmatpush1.bf16.msra.mxu0 0
        %3196 = vmatprep.subr.bf16.mxu0 0
        %3197 = vmatpush1.bf16.msra.mxu0 0
        %3198 = vmatprep.subr.bf16.mxu0 0
        %3199 = vmatpush1.bf16.msra.mxu0 0
        %3200 = vmatprep.mubr.bf16.mxu0 0
        %3201 = vmatmul.mubr.bf16.gmra.mrb[0].mxu0 %v1661
        %v3202 = vpop.f32.mrb[0].mxu0
        %v3203 = vadd.f32 %v1294, %v3202
        %v3204 = vpop.f32.mrb[0].mxu0
        %v3205 = vadd.f32 %v1298, %v3204
        %v3206 = vpop.f32.mrb[0].mxu0
        %v3207 = vadd.f32 %v1294, %v3206
        %v3208 = vpop.f32.mrb[0].mxu0
        %v3209 = vadd.f32 %v1298, %v3208
        %3210 = vmatprep.mubr.bf16.mxu0 0
        %3211 = vmatmul.mubr.bf16.gmra.mrb[0].mxu0 %v1664
        %v3212 = vpop.f32.mrb[0].mxu0
        %v3213 = vadd.f32 %v1294, %v3212
        %v3214 = vpop.f32.mrb[0].mxu0
        %v3215 = vadd.f32 %v1298, %v3214
        %v3216 = vpop.f32.mrb[0].mxu0
        %v3217 = vadd.f32 %v1294, %v3216
        %v3218 = vpop.f32.mrb[0].mxu0
        %v3219 = vadd.f32 %v1298, %v3218
        %3220 = vmatprep.mubr.bf16.mxu0 0
        %3221 = vmatmul.mubr.bf16.gmra.mrb[0].mxu0 %v1667
        %v3222 = vpop.f32.mrb[0].mxu0
        %v3223 = vadd.f32 %v1294, %v3222
        %v3224 = vpop.f32.mrb[0].mxu0
        %v3225 = vadd.f32 %v1298, %v3224
        %v3226 = vpop.f32.mrb[0].mxu0
        %v3227 = vadd.f32 %v1294, %v3226
        %v3228 = vpop.f32.mrb[0].mxu0
        %v3229 = vadd.f32 %v1298, %v3228
        %3230 = vmatprep.mubr.bf16.mxu0 0
        %3231 = vmatmul.mubr.bf16.gmra.mrb[0].mxu0 %v1670
        %v3232 = vpop.f32.mrb[0].mxu0
        %v3233 = vadd.f32 %v1294, %v3232
        %v3234 = vpop.f32.mrb[0].mxu0
        %v3235 = vadd.f32 %v1298, %v3234
        %v3236 = vpop.f32.mrb[0].mxu0
        %v3237 = vadd.f32 %v1294, %v3236
        %v3238 = vpop.f32.mrb[0].mxu0
        %v3239 = vadd.f32 %v1298, %v3238
        %3240 = vmatprep.mubr.bf16.mxu0 0
        %3241 = vmatmul.mubr.bf16.gmra.mrb[0].mxu0 %v1673
        %v3242 = vpop.f32.mrb[0].mxu0
        %v3243 = vadd.f32 %v1294, %v3242
        %v3244 = vpop.f32.mrb[0].mxu0
        %v3245 = vadd.f32 %v1298, %v3244
        %v3246 = vpop.f32.mrb[0].mxu0
        %v3247 = vadd.f32 %v1294, %v3246
        %v3248 = vpop.f32.mrb[0].mxu0
        %v3249 = vadd.f32 %v1298, %v3248
        %3250 = vmatprep.mubr.bf16.mxu0 0
        %3251 = vmatmul.mubr.bf16.gmra.mrb[0].mxu0 %v1676
        %v3252 = vpop.f32.mrb[0].mxu0
        %v3253 = vadd.f32 %v1294, %v3252
        %v3254 = vpop.f32.mrb[0].mxu0
        %v3255 = vadd.f32 %v1298, %v3254
        %v3256 = vpop.f32.mrb[0].mxu0
        %v3257 = vadd.f32 %v1294, %v3256
        %v3258 = vpop.f32.mrb[0].mxu0
        %v3259 = vadd.f32 %v1298, %v3258
        %3260 = vmatprep.mubr.bf16.mxu0 0
        %3261 = vmatmul.mubr.bf16.gmra.mrb[0].mxu0 %v1679
        %v3262 = vpop.f32.mrb[0].mxu0
        %v3263 = vadd.f32 %v1294, %v3262
        %v3264 = vpop.f32.mrb[0].mxu0
        %v3265 = vadd.f32 %v1298, %v3264
        %v3266 = vpop.f32.mrb[0].mxu0
        %v3267 = vadd.f32 %v1294, %v3266
        %v3268 = vpop.f32.mrb[0].mxu0
        %v3269 = vadd.f32 %v1298, %v3268
        %3270 = vmatprep.mubr.bf16.mxu0 0
        %3271 = vmatmul.mubr.bf16.gmra.mrb[0].mxu0 %v1682
        %v3272 = vpop.f32.mrb[0].mxu0
        %v3273 = vadd.f32 %v1294, %v3272
        %v3274 = vpop.f32.mrb[0].mxu0
        %v3275 = vadd.f32 %v1298, %v3274
        %v3276 = vpop.f32.mrb[0].mxu0
        %v3277 = vadd.f32 %v1294, %v3276
        %v3278 = vpop.f32.mrb[0].mxu0
        %v3279 = vadd.f32 %v1298, %v3278
        %3280 = vmatprep.mubr.bf16.mxu0 0
        %3281 = vmatmul.mubr.bf16.gmra.mrb[0].mxu0 %v1685
        %v3282 = vpop.f32.mrb[0].mxu0
        %v3283 = vadd.f32 %v1294, %v3282
        %v3284 = vpop.f32.mrb[0].mxu0
        %v3285 = vadd.f32 %v1298, %v3284
        %v3286 = vpop.f32.mrb[0].mxu0
        %v3287 = vadd.f32 %v1294, %v3286
        %v3288 = vpop.f32.mrb[0].mxu0
        %v3289 = vadd.f32 %v1298, %v3288
        %3290 = vmatprep.mubr.bf16.mxu0 0
        %3291 = vmatmul.mubr.bf16.gmra.mrb[0].mxu0 %v1688
        %v3292 = vpop.f32.mrb[0].mxu0
        %v3293 = vadd.f32 %v1294, %v3292
        %v3294 = vpop.f32.mrb[0].mxu0
        %v3295 = vadd.f32 %v1298, %v3294
        %v3296 = vpop.f32.mrb[0].mxu0
        %v3297 = vadd.f32 %v1294, %v3296
        %v3298 = vpop.f32.mrb[0].mxu0
        %v3299 = vadd.f32 %v1298, %v3298
        %3300 = vmatprep.mubr.bf16.mxu0 0
        %3301 = vmatmul.mubr.bf16.gmra.mrb[0].mxu0 %v1691
        %v3302 = vpop.f32.mrb[0].mxu0
        %v3303 = vadd.f32 %v1294, %v3302
        %v3304 = vpop.f32.mrb[0].mxu0
        %v3305 = vadd.f32 %v1298, %v3304
        %v3306 = vpop.f32.mrb[0].mxu0
        %v3307 = vadd.f32 %v1294, %v3306
        %v3308 = vpop.f32.mrb[0].mxu0
        %v3309 = vadd.f32 %v1298, %v3308
        %3310 = vmatprep.mubr.bf16.mxu0 0
        %3311 = vmatmul.mubr.bf16.gmra.mrb[0].mxu0 %v1694
        %v3312 = vpop.f32.mrb[0].mxu0
        %v3313 = vadd.f32 %v1294, %v3312
        %v3314 = vpop.f32.mrb[0].mxu0
        %v3315 = vadd.f32 %v1298, %v3314
        %v3316 = vpop.f32.mrb[0].mxu0
        %v3317 = vadd.f32 %v1294, %v3316
        %v3318 = vpop.f32.mrb[0].mxu0
        %v3319 = vadd.f32 %v1298, %v3318
        %3320 = vmatprep.mubr.bf16.mxu0 0
        %3321 = vmatmul.mubr.bf16.gmra.mrb[0].mxu0 %v1697
        %v3322 = vpop.f32.mrb[0].mxu0
        %v3323 = vadd.f32 %v1294, %v3322
        %v3324 = vpop.f32.mrb[0].mxu0
        %v3325 = vadd.f32 %v1298, %v3324
        %v3326 = vpop.f32.mrb[0].mxu0
        %v3327 = vadd.f32 %v1294, %v3326
        %v3328 = vpop.f32.mrb[0].mxu0
        %v3329 = vadd.f32 %v1298, %v3328
        %3330 = vmatprep.mubr.bf16.mxu0 0
        %3331 = vmatmul.mubr.bf16.gmra.mrb[0].mxu0 %v1700
        %v3332 = vpop.f32.mrb[0].mxu0
        %v3333 = vadd.f32 %v1294, %v3332
        %v3334 = vpop.f32.mrb[0].mxu0
        %v3335 = vadd.f32 %v1298, %v3334
        %v3336 = vpop.f32.mrb[0].mxu0
        %v3337 = vadd.f32 %v1294, %v3336
        %v3338 = vpop.f32.mrb[0].mxu0
        %v3339 = vadd.f32 %v1298, %v3338
        %3340 = vmatprep.mubr.bf16.mxu0 0
        %3341 = vmatmul.mubr.bf16.gmra.mrb[0].mxu0 %v1703
        %v3342 = vpop.f32.mrb[0].mxu0
        %v3343 = vadd.f32 %v1294, %v3342
        %v3344 = vpop.f32.mrb[0].mxu0
        %v3345 = vadd.f32 %v1298, %v3344
        %v3346 = vpop.f32.mrb[0].mxu0
        %v3347 = vadd.f32 %v1294, %v3346
        %v3348 = vpop.f32.mrb[0].mxu0
        %v3349 = vadd.f32 %v1298, %v3348
        %3350 = vmatprep.mubr.bf16.mxu0 0
        %3351 = vmatmul.mubr.bf16.gmra.mrb[0].mxu0 %v1706
        %v3352 = vpop.f32.mrb[0].mxu0
        %v3353 = vadd.f32 %v1294, %v3352
        %v3354 = vpop.f32.mrb[0].mxu0
        %v3355 = vadd.f32 %v1298, %v3354
        %v3356 = vpop.f32.mrb[0].mxu0
        %v3357 = vadd.f32 %v1294, %v3356
        %v3358 = vpop.f32.mrb[0].mxu0
        %v3359 = vadd.f32 %v1298, %v3358
        %3360 = vmatprep.mubr.bf16.mxu0 0
        %3361 = vmatmul.mubr.bf16.gmra.mrb[0].mxu0 %v1709
        %v3362 = vpop.f32.mrb[0].mxu0
        %v3363 = vadd.f32 %v1294, %v3362
        %v3364 = vpop.f32.mrb[0].mxu0
        %v3365 = vadd.f32 %v1298, %v3364
        %v3366 = vpop.f32.mrb[0].mxu0
        %v3367 = vadd.f32 %v1294, %v3366
        %v3368 = vpop.f32.mrb[0].mxu0
        %v3369 = vadd.f32 %v1298, %v3368
        %3370 = vmatprep.mubr.bf16.mxu0 0
        %3371 = vmatmul.mubr.bf16.gmra.mrb[0].mxu0 %v1712
        %v3372 = vpop.f32.mrb[0].mxu0
        %v3373 = vadd.f32 %v1294, %v3372
        %v3374 = vpop.f32.mrb[0].mxu0
        %v3375 = vadd.f32 %v1298, %v3374
        %v3376 = vpop.f32.mrb[0].mxu0
        %v3377 = vadd.f32 %v1294, %v3376
        %v3378 = vpop.f32.mrb[0].mxu0
        %v3379 = vadd.f32 %v1298, %v3378
        %3380 = vmatprep.mubr.bf16.mxu0 0
        %3381 = vmatmul.mubr.bf16.gmra.mrb[0].mxu0 %v1715
        %v3382 = vpop.f32.mrb[0].mxu0
        %v3383 = vadd.f32 %v1294, %v3382
        %v3384 = vpop.f32.mrb[0].mxu0
        %v3385 = vadd.f32 %v1298, %v3384
        %v3386 = vpop.f32.mrb[0].mxu0
        %v3387 = vadd.f32 %v1294, %v3386
        %v3388 = vpop.f32.mrb[0].mxu0
        %v3389 = vadd.f32 %v1298, %v3388
        %3390 = vmatprep.mubr.bf16.mxu0 0
        %3391 = vmatmul.mubr.bf16.gmra.mrb[0].mxu0 %v1718
        %v3392 = vpop.f32.mrb[0].mxu0
        %v3393 = vadd.f32 %v1294, %v3392
        %v3394 = vpop.f32.mrb[0].mxu0
        %v3395 = vadd.f32 %v1298, %v3394
        %v3396 = vpop.f32.mrb[0].mxu0
        %v3397 = vadd.f32 %v1294, %v3396
        %v3398 = vpop.f32.mrb[0].mxu0
        %v3399 = vadd.f32 %v1298, %v3398
        %3400 = vmatprep.mubr.bf16.mxu0 0
        %3401 = vmatmul.mubr.bf16.gmra.mrb[0].mxu0 %v1721
        %v3402 = vpop.f32.mrb[0].mxu0
        %v3403 = vadd.f32 %v1294, %v3402
        %v3404 = vpop.f32.mrb[0].mxu0
        %v3405 = vadd.f32 %v1298, %v3404
        %v3406 = vpop.f32.mrb[0].mxu0
        %v3407 = vadd.f32 %v1294, %v3406
        %v3408 = vpop.f32.mrb[0].mxu0
        %v3409 = vadd.f32 %v1298, %v3408
        %3410 = vmatprep.mubr.bf16.mxu0 0
        %3411 = vmatmul.mubr.bf16.gmra.mrb[0].mxu0 %v1724
        %v3412 = vpop.f32.mrb[0].mxu0
        %v3413 = vadd.f32 %v1294, %v3412
        %v3414 = vpop.f32.mrb[0].mxu0
        %v3415 = vadd.f32 %v1298, %v3414
        %v3416 = vpop.f32.mrb[0].mxu0
        %v3417 = vadd.f32 %v1294, %v3416
        %v3418 = vpop.f32.mrb[0].mxu0
        %v3419 = vadd.f32 %v1298, %v3418
        %3420 = vmatprep.mubr.bf16.mxu0 0
        %3421 = vmatmul.mubr.bf16.gmra.mrb[0].mxu0 %v1727
        %v3422 = vpop.f32.mrb[0].mxu0
        %v3423 = vadd.f32 %v1294, %v3422
        %v3424 = vpop.f32.mrb[0].mxu0
        %v3425 = vadd.f32 %v1298, %v3424
        %v3426 = vpop.f32.mrb[0].mxu0
        %v3427 = vadd.f32 %v1294, %v3426
        %v3428 = vpop.f32.mrb[0].mxu0
        %v3429 = vadd.f32 %v1298, %v3428
        %3430 = vmatprep.mubr.bf16.mxu0 0
        %3431 = vmatmul.mubr.bf16.gmra.mrb[0].mxu0 %v1730
        %v3432 = vpop.f32.mrb[0].mxu0
        %v3433 = vadd.f32 %v1294, %v3432
        %v3434 = vpop.f32.mrb[0].mxu0
        %v3435 = vadd.f32 %v1298, %v3434
        %v3436 = vpop.f32.mrb[0].mxu0
        %v3437 = vadd.f32 %v1294, %v3436
        %v3438 = vpop.f32.mrb[0].mxu0
        %v3439 = vadd.f32 %v1298, %v3438
        %3440 = vmatprep.mubr.bf16.mxu0 0
        %3441 = vmatmul.mubr.bf16.gmra.mrb[0].mxu0 %v1733
        %v3442 = vpop.f32.mrb[0].mxu0
        %v3443 = vadd.f32 %v1294, %v3442
        %v3444 = vpop.f32.mrb[0].mxu0
        %v3445 = vadd.f32 %v1298, %v3444
        %v3446 = vpop.f32.mrb[0].mxu0
        %v3447 = vadd.f32 %v1294, %v3446
        %v3448 = vpop.f32.mrb[0].mxu0
        %v3449 = vadd.f32 %v1298, %v3448
        %3450 = vmatprep.mubr.bf16.mxu0 0
        %3451 = vmatmul.mubr.bf16.gmra.mrb[0].mxu0 %v1736
        %v3452 = vpop.f32.mrb[0].mxu0
        %v3453 = vadd.f32 %v1294, %v3452
        %v3454 = vpop.f32.mrb[0].mxu0
        %v3455 = vadd.f32 %v1298, %v3454
        %v3456 = vpop.f32.mrb[0].mxu0
        %v3457 = vadd.f32 %v1294, %v3456
        %v3458 = vpop.f32.mrb[0].mxu0
        %v3459 = vadd.f32 %v1298, %v3458
        %3460 = vmatprep.mubr.bf16.mxu0 0
        %3461 = vmatmul.mubr.bf16.gmra.mrb[0].mxu0 %v1739
        %v3462 = vpop.f32.mrb[0].mxu0
        %v3463 = vadd.f32 %v1294, %v3462
        %v3464 = vpop.f32.mrb[0].mxu0
        %v3465 = vadd.f32 %v1298, %v3464
        %v3466 = vpop.f32.mrb[0].mxu0
        %v3467 = vadd.f32 %v1294, %v3466
        %v3468 = vpop.f32.mrb[0].mxu0
        %v3469 = vadd.f32 %v1298, %v3468
        %3470 = vmatprep.mubr.bf16.mxu0 0
        %3471 = vmatmul.mubr.bf16.gmra.mrb[0].mxu0 %v1742
        %v3472 = vpop.f32.mrb[0].mxu0
        %v3473 = vadd.f32 %v1294, %v3472
        %v3474 = vpop.f32.mrb[0].mxu0
        %v3475 = vadd.f32 %v1298, %v3474
        %v3476 = vpop.f32.mrb[0].mxu0
        %v3477 = vadd.f32 %v1294, %v3476
        %v3478 = vpop.f32.mrb[0].mxu0
        %v3479 = vadd.f32 %v1298, %v3478
        %3480 = vmatprep.mubr.bf16.mxu0 0
        %3481 = vmatmul.mubr.bf16.gmra.mrb[0].mxu0 %v1745
        %v3482 = vpop.f32.mrb[0].mxu0
        %v3483 = vadd.f32 %v1294, %v3482
        %v3484 = vpop.f32.mrb[0].mxu0
        %v3485 = vadd.f32 %v1298, %v3484
        %v3486 = vpop.f32.mrb[0].mxu0
        %v3487 = vadd.f32 %v1294, %v3486
        %v3488 = vpop.f32.mrb[0].mxu0
        %v3489 = vadd.f32 %v1298, %v3488
        %3490 = vmatprep.mubr.bf16.mxu0 0
        %3491 = vmatmul.mubr.bf16.gmra.mrb[0].mxu0 %v1748
        %v3492 = vpop.f32.mrb[0].mxu0
        %v3493 = vadd.f32 %v1294, %v3492
        %v3494 = vpop.f32.mrb[0].mxu0
        %v3495 = vadd.f32 %v1298, %v3494
        %v3496 = vpop.f32.mrb[0].mxu0
        %v3497 = vadd.f32 %v1294, %v3496
        %v3498 = vpop.f32.mrb[0].mxu0
        %v3499 = vadd.f32 %v1298, %v3498
        %3500 = vmatprep.mubr.bf16.mxu0 0
        %3501 = vmatmul.mubr.bf16.gmra.mrb[0].mxu0 %v1751
        %v3502 = vpop.f32.mrb[0].mxu0
        %v3503 = vadd.f32 %v1294, %v3502
        %v3504 = vpop.f32.mrb[0].mxu0
        %v3505 = vadd.f32 %v1298, %v3504
        %v3506 = vpop.f32.mrb[0].mxu0
        %v3507 = vadd.f32 %v1294, %v3506
        %v3508 = vpop.f32.mrb[0].mxu0
        %v3509 = vadd.f32 %v1298, %v3508
        %3510 = vmatprep.mubr.bf16.mxu0 0
        %3511 = vmatmul.mubr.bf16.gmra.mrb[0].mxu0 %v1754
        %v3512 = vpop.f32.mrb[0].mxu0
        %v3513 = vadd.f32 %v1294, %v3512
        %v3514 = vpop.f32.mrb[0].mxu0
        %v3515 = vadd.f32 %v1298, %v3514
        %v3516 = vpop.f32.mrb[0].mxu0
        %v3517 = vadd.f32 %v1294, %v3516
        %v3518 = vpop.f32.mrb[0].mxu0
        %v3519 = vadd.f32 %v1298, %v3518
        %3520 = vdwg.mxu0
        %3521 = vmatprep.subr.bf16.mxu0 %v1542
        %3522 = vmatpush1.bf16.msra.mxu0 %v1541
        %3523 = vmatprep.subr.bf16.mxu0 %v1558
        %3524 = vmatpush1.bf16.msra.mxu0 %v1557
        %3525 = vmatprep.subr.bf16.mxu0 %v1574
        %3526 = vmatpush1.bf16.msra.mxu0 %v1573
        %3527 = vmatprep.subr.bf16.mxu0 %v1590
        %3528 = vmatpush1.bf16.msra.mxu0 %v1589
        %3529 = vmatprep.subr.bf16.mxu0 0
        %3530 = vmatpush1.bf16.msra.mxu0 0
        %3531 = vmatprep.subr.bf16.mxu0 0
        %3532 = vmatpush1.bf16.msra.mxu0 0
        %3533 = vmatprep.subr.bf16.mxu0 0
        %3534 = vmatpush1.bf16.msra.mxu0 0
        %3535 = vmatprep.subr.bf16.mxu0 0
        %3536 = vmatpush1.bf16.msra.mxu0 0
        %3537 = vmatprep.subr.bf16.mxu0 0
        %3538 = vmatpush1.bf16.msra.mxu0 0
        %3539 = vmatprep.subr.bf16.mxu0 0
        %3540 = vmatpush1.bf16.msra.mxu0 0
        %3541 = vmatprep.subr.bf16.mxu0 0
        %3542 = vmatpush1.bf16.msra.mxu0 0
        %3543 = vmatprep.subr.bf16.mxu0 0
        %3544 = vmatpush1.bf16.msra.mxu0 0
        %3545 = vmatprep.subr.bf16.mxu0 0
        %3546 = vmatpush1.bf16.msra.mxu0 0
        %3547 = vmatprep.subr.bf16.mxu0 0
        %3548 = vmatpush1.bf16.msra.mxu0 0
        %3549 = vmatprep.subr.bf16.mxu0 0
        %3550 = vmatpush1.bf16.msra.mxu0 0
        %3551 = vmatprep.subr.bf16.mxu0 0
        %3552 = vmatpush1.bf16.msra.mxu0 0
        %3553 = vmatprep.mubr.bf16.mxu0 0
        %3554 = vmatmul.mubr.bf16.gmra.mrb[0].mxu0 %v1661
        %v3555 = vpop.f32.mrb[0].mxu0
        %v3556 = vadd.f32 %v1302, %v3555
        %v3557 = vpop.f32.mrb[0].mxu0
        %v3558 = vadd.f32 %v1306, %v3557
        %v3559 = vpop.f32.mrb[0].mxu0
        %v3560 = vadd.f32 %v1302, %v3559
        %v3561 = vpop.f32.mrb[0].mxu0
        %v3562 = vadd.f32 %v1306, %v3561
        %3563 = vmatprep.mubr.bf16.mxu0 0
        %3564 = vmatmul.mubr.bf16.gmra.mrb[0].mxu0 %v1664
        %v3565 = vpop.f32.mrb[0].mxu0
        %v3566 = vadd.f32 %v1302, %v3565
        %v3567 = vpop.f32.mrb[0].mxu0
        %v3568 = vadd.f32 %v1306, %v3567
        %v3569 = vpop.f32.mrb[0].mxu0
        %v3570 = vadd.f32 %v1302, %v3569
        %v3571 = vpop.f32.mrb[0].mxu0
        %v3572 = vadd.f32 %v1306, %v3571
        %3573 = vmatprep.mubr.bf16.mxu0 0
        %3574 = vmatmul.mubr.bf16.gmra.mrb[0].mxu0 %v1667
        %v3575 = vpop.f32.mrb[0].mxu0
        %v3576 = vadd.f32 %v1302, %v3575
        %v3577 = vpop.f32.mrb[0].mxu0
        %v3578 = vadd.f32 %v1306, %v3577
        %v3579 = vpop.f32.mrb[0].mxu0
        %v3580 = vadd.f32 %v1302, %v3579
        %v3581 = vpop.f32.mrb[0].mxu0
        %v3582 = vadd.f32 %v1306, %v3581
        %3583 = vmatprep.mubr.bf16.mxu0 0
        %3584 = vmatmul.mubr.bf16.gmra.mrb[0].mxu0 %v1670
        %v3585 = vpop.f32.mrb[0].mxu0
        %v3586 = vadd.f32 %v1302, %v3585
        %v3587 = vpop.f32.mrb[0].mxu0
        %v3588 = vadd.f32 %v1306, %v3587
        %v3589 = vpop.f32.mrb[0].mxu0
        %v3590 = vadd.f32 %v1302, %v3589
        %v3591 = vpop.f32.mrb[0].mxu0
        %v3592 = vadd.f32 %v1306, %v3591
        %3593 = vmatprep.mubr.bf16.mxu0 0
        %3594 = vmatmul.mubr.bf16.gmra.mrb[0].mxu0 %v1673
        %v3595 = vpop.f32.mrb[0].mxu0
        %v3596 = vadd.f32 %v1302, %v3595
        %v3597 = vpop.f32.mrb[0].mxu0
        %v3598 = vadd.f32 %v1306, %v3597
        %v3599 = vpop.f32.mrb[0].mxu0
        %v3600 = vadd.f32 %v1302, %v3599
        %v3601 = vpop.f32.mrb[0].mxu0
        %v3602 = vadd.f32 %v1306, %v3601
        %3603 = vmatprep.mubr.bf16.mxu0 0
        %3604 = vmatmul.mubr.bf16.gmra.mrb[0].mxu0 %v1676
        %v3605 = vpop.f32.mrb[0].mxu0
        %v3606 = vadd.f32 %v1302, %v3605
        %v3607 = vpop.f32.mrb[0].mxu0
        %v3608 = vadd.f32 %v1306, %v3607
        %v3609 = vpop.f32.mrb[0].mxu0
        %v3610 = vadd.f32 %v1302, %v3609
        %v3611 = vpop.f32.mrb[0].mxu0
        %v3612 = vadd.f32 %v1306, %v3611
        %3613 = vmatprep.mubr.bf16.mxu0 0
        %3614 = vmatmul.mubr.bf16.gmra.mrb[0].mxu0 %v1679
        %v3615 = vpop.f32.mrb[0].mxu0
        %v3616 = vadd.f32 %v1302, %v3615
        %v3617 = vpop.f32.mrb[0].mxu0
        %v3618 = vadd.f32 %v1306, %v3617
        %v3619 = vpop.f32.mrb[0].mxu0
        %v3620 = vadd.f32 %v1302, %v3619
        %v3621 = vpop.f32.mrb[0].mxu0
        %v3622 = vadd.f32 %v1306, %v3621
        %3623 = vmatprep.mubr.bf16.mxu0 0
        %3624 = vmatmul.mubr.bf16.gmra.mrb[0].mxu0 %v1682
        %v3625 = vpop.f32.mrb[0].mxu0
        %v3626 = vadd.f32 %v1302, %v3625
        %v3627 = vpop.f32.mrb[0].mxu0
        %v3628 = vadd.f32 %v1306, %v3627
        %v3629 = vpop.f32.mrb[0].mxu0
        %v3630 = vadd.f32 %v1302, %v3629
        %v3631 = vpop.f32.mrb[0].mxu0
        %v3632 = vadd.f32 %v1306, %v3631
        %3633 = vmatprep.mubr.bf16.mxu0 0
        %3634 = vmatmul.mubr.bf16.gmra.mrb[0].mxu0 %v1685
        %v3635 = vpop.f32.mrb[0].mxu0
        %v3636 = vadd.f32 %v1302, %v3635
        %v3637 = vpop.f32.mrb[0].mxu0
        %v3638 = vadd.f32 %v1306, %v3637
        %v3639 = vpop.f32.mrb[0].mxu0
        %v3640 = vadd.f32 %v1302, %v3639
        %v3641 = vpop.f32.mrb[0].mxu0
        %v3642 = vadd.f32 %v1306, %v3641
        %3643 = vmatprep.mubr.bf16.mxu0 0
        %3644 = vmatmul.mubr.bf16.gmra.mrb[0].mxu0 %v1688
        %v3645 = vpop.f32.mrb[0].mxu0
        %v3646 = vadd.f32 %v1302, %v3645
        %v3647 = vpop.f32.mrb[0].mxu0
        %v3648 = vadd.f32 %v1306, %v3647
        %v3649 = vpop.f32.mrb[0].mxu0
        %v3650 = vadd.f32 %v1302, %v3649
        %v3651 = vpop.f32.mrb[0].mxu0
        %v3652 = vadd.f32 %v1306, %v3651
        %3653 = vmatprep.mubr.bf16.mxu0 0
        %3654 = vmatmul.mubr.bf16.gmra.mrb[0].mxu0 %v1691
        %v3655 = vpop.f32.mrb[0].mxu0
        %v3656 = vadd.f32 %v1302, %v3655
        %v3657 = vpop.f32.mrb[0].mxu0
        %v3658 = vadd.f32 %v1306, %v3657
        %v3659 = vpop.f32.mrb[0].mxu0
        %v3660 = vadd.f32 %v1302, %v3659
        %v3661 = vpop.f32.mrb[0].mxu0
        %v3662 = vadd.f32 %v1306, %v3661
        %3663 = vmatprep.mubr.bf16.mxu0 0
        %3664 = vmatmul.mubr.bf16.gmra.mrb[0].mxu0 %v1694
        %v3665 = vpop.f32.mrb[0].mxu0
        %v3666 = vadd.f32 %v1302, %v3665
        %v3667 = vpop.f32.mrb[0].mxu0
        %v3668 = vadd.f32 %v1306, %v3667
        %v3669 = vpop.f32.mrb[0].mxu0
        %v3670 = vadd.f32 %v1302, %v3669
        %v3671 = vpop.f32.mrb[0].mxu0
        %v3672 = vadd.f32 %v1306, %v3671
        %3673 = vmatprep.mubr.bf16.mxu0 0
        %3674 = vmatmul.mubr.bf16.gmra.mrb[0].mxu0 %v1697
        %v3675 = vpop.f32.mrb[0].mxu0
        %v3676 = vadd.f32 %v1302, %v3675
        %v3677 = vpop.f32.mrb[0].mxu0
        %v3678 = vadd.f32 %v1306, %v3677
        %v3679 = vpop.f32.mrb[0].mxu0
        %v3680 = vadd.f32 %v1302, %v3679
        %v3681 = vpop.f32.mrb[0].mxu0
        %v3682 = vadd.f32 %v1306, %v3681
        %3683 = vmatprep.mubr.bf16.mxu0 0
        %3684 = vmatmul.mubr.bf16.gmra.mrb[0].mxu0 %v1700
        %v3685 = vpop.f32.mrb[0].mxu0
        %v3686 = vadd.f32 %v1302, %v3685
        %v3687 = vpop.f32.mrb[0].mxu0
        %v3688 = vadd.f32 %v1306, %v3687
        %v3689 = vpop.f32.mrb[0].mxu0
        %v3690 = vadd.f32 %v1302, %v3689
        %v3691 = vpop.f32.mrb[0].mxu0
        %v3692 = vadd.f32 %v1306, %v3691
        %3693 = vmatprep.mubr.bf16.mxu0 0
        %3694 = vmatmul.mubr.bf16.gmra.mrb[0].mxu0 %v1703
        %v3695 = vpop.f32.mrb[0].mxu0
        %v3696 = vadd.f32 %v1302, %v3695
        %v3697 = vpop.f32.mrb[0].mxu0
        %v3698 = vadd.f32 %v1306, %v3697
        %v3699 = vpop.f32.mrb[0].mxu0
        %v3700 = vadd.f32 %v1302, %v3699
        %v3701 = vpop.f32.mrb[0].mxu0
        %v3702 = vadd.f32 %v1306, %v3701
        %3703 = vmatprep.mubr.bf16.mxu0 0
        %3704 = vmatmul.mubr.bf16.gmra.mrb[0].mxu0 %v1706
        %v3705 = vpop.f32.mrb[0].mxu0
        %v3706 = vadd.f32 %v1302, %v3705
        %v3707 = vpop.f32.mrb[0].mxu0
        %v3708 = vadd.f32 %v1306, %v3707
        %v3709 = vpop.f32.mrb[0].mxu0
        %v3710 = vadd.f32 %v1302, %v3709
        %v3711 = vpop.f32.mrb[0].mxu0
        %v3712 = vadd.f32 %v1306, %v3711
        %3713 = vmatprep.mubr.bf16.mxu0 0
        %3714 = vmatmul.mubr.bf16.gmra.mrb[0].mxu0 %v1709
        %v3715 = vpop.f32.mrb[0].mxu0
        %v3716 = vadd.f32 %v1302, %v3715
        %v3717 = vpop.f32.mrb[0].mxu0
        %v3718 = vadd.f32 %v1306, %v3717
        %v3719 = vpop.f32.mrb[0].mxu0
        %v3720 = vadd.f32 %v1302, %v3719
        %v3721 = vpop.f32.mrb[0].mxu0
        %v3722 = vadd.f32 %v1306, %v3721
        %3723 = vmatprep.mubr.bf16.mxu0 0
        %3724 = vmatmul.mubr.bf16.gmra.mrb[0].mxu0 %v1712
        %v3725 = vpop.f32.mrb[0].mxu0
        %v3726 = vadd.f32 %v1302, %v3725
        %v3727 = vpop.f32.mrb[0].mxu0
        %v3728 = vadd.f32 %v1306, %v3727
        %v3729 = vpop.f32.mrb[0].mxu0
        %v3730 = vadd.f32 %v1302, %v3729
        %v3731 = vpop.f32.mrb[0].mxu0
        %v3732 = vadd.f32 %v1306, %v3731
        %3733 = vmatprep.mubr.bf16.mxu0 0
        %3734 = vmatmul.mubr.bf16.gmra.mrb[0].mxu0 %v1715
        %v3735 = vpop.f32.mrb[0].mxu0
        %v3736 = vadd.f32 %v1302, %v3735
        %v3737 = vpop.f32.mrb[0].mxu0
        %v3738 = vadd.f32 %v1306, %v3737
        %v3739 = vpop.f32.mrb[0].mxu0
        %v3740 = vadd.f32 %v1302, %v3739
        %v3741 = vpop.f32.mrb[0].mxu0
        %v3742 = vadd.f32 %v1306, %v3741
        %3743 = vmatprep.mubr.bf16.mxu0 0
        %3744 = vmatmul.mubr.bf16.gmra.mrb[0].mxu0 %v1718
        %v3745 = vpop.f32.mrb[0].mxu0
        %v3746 = vadd.f32 %v1302, %v3745
        %v3747 = vpop.f32.mrb[0].mxu0
        %v3748 = vadd.f32 %v1306, %v3747
        %v3749 = vpop.f32.mrb[0].mxu0
        %v3750 = vadd.f32 %v1302, %v3749
        %v3751 = vpop.f32.mrb[0].mxu0
        %v3752 = vadd.f32 %v1306, %v3751
        %3753 = vmatprep.mubr.bf16.mxu0 0
        %3754 = vmatmul.mubr.bf16.gmra.mrb[0].mxu0 %v1721
        %v3755 = vpop.f32.mrb[0].mxu0
        %v3756 = vadd.f32 %v1302, %v3755
        %v3757 = vpop.f32.mrb[0].mxu0
        %v3758 = vadd.f32 %v1306, %v3757
        %v3759 = vpop.f32.mrb[0].mxu0
        %v3760 = vadd.f32 %v1302, %v3759
        %v3761 = vpop.f32.mrb[0].mxu0
        %v3762 = vadd.f32 %v1306, %v3761
        %3763 = vmatprep.mubr.bf16.mxu0 0
        %3764 = vmatmul.mubr.bf16.gmra.mrb[0].mxu0 %v1724
        %v3765 = vpop.f32.mrb[0].mxu0
        %v3766 = vadd.f32 %v1302, %v3765
        %v3767 = vpop.f32.mrb[0].mxu0
        %v3768 = vadd.f32 %v1306, %v3767
        %v3769 = vpop.f32.mrb[0].mxu0
        %v3770 = vadd.f32 %v1302, %v3769
        %v3771 = vpop.f32.mrb[0].mxu0
        %v3772 = vadd.f32 %v1306, %v3771
        %3773 = vmatprep.mubr.bf16.mxu0 0
        %3774 = vmatmul.mubr.bf16.gmra.mrb[0].mxu0 %v1727
        %v3775 = vpop.f32.mrb[0].mxu0
        %v3776 = vadd.f32 %v1302, %v3775
        %v3777 = vpop.f32.mrb[0].mxu0
        %v3778 = vadd.f32 %v1306, %v3777
        %v3779 = vpop.f32.mrb[0].mxu0
        %v3780 = vadd.f32 %v1302, %v3779
        %v3781 = vpop.f32.mrb[0].mxu0
        %v3782 = vadd.f32 %v1306, %v3781
        %3783 = vmatprep.mubr.bf16.mxu0 0
        %3784 = vmatmul.mubr.bf16.gmra.mrb[0].mxu0 %v1730
        %v3785 = vpop.f32.mrb[0].mxu0
        %v3786 = vadd.f32 %v1302, %v3785
        %v3787 = vpop.f32.mrb[0].mxu0
        %v3788 = vadd.f32 %v1306, %v3787
        %v3789 = vpop.f32.mrb[0].mxu0
        %v3790 = vadd.f32 %v1302, %v3789
        %v3791 = vpop.f32.mrb[0].mxu0
        %v3792 = vadd.f32 %v1306, %v3791
        %3793 = vmatprep.mubr.bf16.mxu0 0
        %3794 = vmatmul.mubr.bf16.gmra.mrb[0].mxu0 %v1733
        %v3795 = vpop.f32.mrb[0].mxu0
        %v3796 = vadd.f32 %v1302, %v3795
        %v3797 = vpop.f32.mrb[0].mxu0
        %v3798 = vadd.f32 %v1306, %v3797
        %v3799 = vpop.f32.mrb[0].mxu0
        %v3800 = vadd.f32 %v1302, %v3799
        %v3801 = vpop.f32.mrb[0].mxu0
        %v3802 = vadd.f32 %v1306, %v3801
        %3803 = vmatprep.mubr.bf16.mxu0 0
        %3804 = vmatmul.mubr.bf16.gmra.mrb[0].mxu0 %v1736
        %v3805 = vpop.f32.mrb[0].mxu0
        %v3806 = vadd.f32 %v1302, %v3805
        %v3807 = vpop.f32.mrb[0].mxu0
        %v3808 = vadd.f32 %v1306, %v3807
        %v3809 = vpop.f32.mrb[0].mxu0
        %v3810 = vadd.f32 %v1302, %v3809
        %v3811 = vpop.f32.mrb[0].mxu0
        %v3812 = vadd.f32 %v1306, %v3811
        %3813 = vmatprep.mubr.bf16.mxu0 0
        %3814 = vmatmul.mubr.bf16.gmra.mrb[0].mxu0 %v1739
        %v3815 = vpop.f32.mrb[0].mxu0
        %v3816 = vadd.f32 %v1302, %v3815
        %v3817 = vpop.f32.mrb[0].mxu0
        %v3818 = vadd.f32 %v1306, %v3817
        %v3819 = vpop.f32.mrb[0].mxu0
        %v3820 = vadd.f32 %v1302, %v3819
        %v3821 = vpop.f32.mrb[0].mxu0
        %v3822 = vadd.f32 %v1306, %v3821
        %3823 = vmatprep.mubr.bf16.mxu0 0
        %3824 = vmatmul.mubr.bf16.gmra.mrb[0].mxu0 %v1742
        %v3825 = vpop.f32.mrb[0].mxu0
        %v3826 = vadd.f32 %v1302, %v3825
        %v3827 = vpop.f32.mrb[0].mxu0
        %v3828 = vadd.f32 %v1306, %v3827
        %v3829 = vpop.f32.mrb[0].mxu0
        %v3830 = vadd.f32 %v1302, %v3829
        %v3831 = vpop.f32.mrb[0].mxu0
        %v3832 = vadd.f32 %v1306, %v3831
        %3833 = vmatprep.mubr.bf16.mxu0 0
        %3834 = vmatmul.mubr.bf16.gmra.mrb[0].mxu0 %v1745
        %v3835 = vpop.f32.mrb[0].mxu0
        %v3836 = vadd.f32 %v1302, %v3835
        %v3837 = vpop.f32.mrb[0].mxu0
        %v3838 = vadd.f32 %v1306, %v3837
        %v3839 = vpop.f32.mrb[0].mxu0
        %v3840 = vadd.f32 %v1302, %v3839
        %v3841 = vpop.f32.mrb[0].mxu0
        %v3842 = vadd.f32 %v1306, %v3841
        %3843 = vmatprep.mubr.bf16.mxu0 0
        %3844 = vmatmul.mubr.bf16.gmra.mrb[0].mxu0 %v1748
        %v3845 = vpop.f32.mrb[0].mxu0
        %v3846 = vadd.f32 %v1302, %v3845
        %v3847 = vpop.f32.mrb[0].mxu0
        %v3848 = vadd.f32 %v1306, %v3847
        %v3849 = vpop.f32.mrb[0].mxu0
        %v3850 = vadd.f32 %v1302, %v3849
        %v3851 = vpop.f32.mrb[0].mxu0
        %v3852 = vadd.f32 %v1306, %v3851
        %3853 = vmatprep.mubr.bf16.mxu0 0
        %3854 = vmatmul.mubr.bf16.gmra.mrb[0].mxu0 %v1751
        %v3855 = vpop.f32.mrb[0].mxu0
        %v3856 = vadd.f32 %v1302, %v3855
        %v3857 = vpop.f32.mrb[0].mxu0
        %v3858 = vadd.f32 %v1306, %v3857
        %v3859 = vpop.f32.mrb[0].mxu0
        %v3860 = vadd.f32 %v1302, %v3859
        %v3861 = vpop.f32.mrb[0].mxu0
        %v3862 = vadd.f32 %v1306, %v3861
        %3863 = vmatprep.mubr.bf16.mxu0 0
        %3864 = vmatmul.mubr.bf16.gmra.mrb[0].mxu0 %v1754
        %v3865 = vpop.f32.mrb[0].mxu0
        %v3866 = vadd.f32 %v1302, %v3865
        %v3867 = vpop.f32.mrb[0].mxu0
        %v3868 = vadd.f32 %v1306, %v3867
        %v3869 = vpop.f32.mrb[0].mxu0
        %v3870 = vadd.f32 %v1302, %v3869
        %v3871 = vpop.f32.mrb[0].mxu0
        %v3872 = vadd.f32 %v1306, %v3871
        %3873 = vdwg.mxu0
        %3874 = vmatprep.subr.bf16.mxu0 %v1544
        %3875 = vmatpush1.bf16.msra.mxu0 %v1543
        %3876 = vmatprep.subr.bf16.mxu0 %v1560
        %3877 = vmatpush1.bf16.msra.mxu0 %v1559
        %3878 = vmatprep.subr.bf16.mxu0 %v1576
        %3879 = vmatpush1.bf16.msra.mxu0 %v1575
        %3880 = vmatprep.subr.bf16.mxu0 %v1592
        %3881 = vmatpush1.bf16.msra.mxu0 %v1591
        %3882 = vmatprep.subr.bf16.mxu0 0
        %3883 = vmatpush1.bf16.msra.mxu0 0
        %3884 = vmatprep.subr.bf16.mxu0 0
        %3885 = vmatpush1.bf16.msra.mxu0 0
        %3886 = vmatprep.subr.bf16.mxu0 0
        %3887 = vmatpush1.bf16.msra.mxu0 0
        %3888 = vmatprep.subr.bf16.mxu0 0
        %3889 = vmatpush1.bf16.msra.mxu0 0
        %3890 = vmatprep.subr.bf16.mxu0 0
        %3891 = vmatpush1.bf16.msra.mxu0 0
        %3892 = vmatprep.subr.bf16.mxu0 0
        %3893 = vmatpush1.bf16.msra.mxu0 0
        %3894 = vmatprep.subr.bf16.mxu0 0
        %3895 = vmatpush1.bf16.msra.mxu0 0
        %3896 = vmatprep.subr.bf16.mxu0 0
        %3897 = vmatpush1.bf16.msra.mxu0 0
        %3898 = vmatprep.subr.bf16.mxu0 0
        %3899 = vmatpush1.bf16.msra.mxu0 0
        %3900 = vmatprep.subr.bf16.mxu0 0
        %3901 = vmatpush1.bf16.msra.mxu0 0
        %3902 = vmatprep.subr.bf16.mxu0 0
        %3903 = vmatpush1.bf16.msra.mxu0 0
        %3904 = vmatprep.subr.bf16.mxu0 0
        %3905 = vmatpush1.bf16.msra.mxu0 0
        %3906 = vmatprep.mubr.bf16.mxu0 0
        %3907 = vmatmul.mubr.bf16.gmra.mrb[0].mxu0 %v1661
        %v3908 = vpop.f32.mrb[0].mxu0
        %v3909 = vadd.f32 %v1310, %v3908
        %v3910 = vpop.f32.mrb[0].mxu0
        %v3911 = vadd.f32 %v1314, %v3910
        %v3912 = vpop.f32.mrb[0].mxu0
        %v3913 = vadd.f32 %v1310, %v3912
        %v3914 = vpop.f32.mrb[0].mxu0
        %v3915 = vadd.f32 %v1314, %v3914
        %3916 = vmatprep.mubr.bf16.mxu0 0
        %3917 = vmatmul.mubr.bf16.gmra.mrb[0].mxu0 %v1664
        %v3918 = vpop.f32.mrb[0].mxu0
        %v3919 = vadd.f32 %v1310, %v3918
        %v3920 = vpop.f32.mrb[0].mxu0
        %v3921 = vadd.f32 %v1314, %v3920
        %v3922 = vpop.f32.mrb[0].mxu0
        %v3923 = vadd.f32 %v1310, %v3922
        %v3924 = vpop.f32.mrb[0].mxu0
        %v3925 = vadd.f32 %v1314, %v3924
        %3926 = vmatprep.mubr.bf16.mxu0 0
        %3927 = vmatmul.mubr.bf16.gmra.mrb[0].mxu0 %v1667
        %v3928 = vpop.f32.mrb[0].mxu0
        %v3929 = vadd.f32 %v1310, %v3928
        %v3930 = vpop.f32.mrb[0].mxu0
        %v3931 = vadd.f32 %v1314, %v3930
        %v3932 = vpop.f32.mrb[0].mxu0
        %v3933 = vadd.f32 %v1310, %v3932
        %v3934 = vpop.f32.mrb[0].mxu0
        %v3935 = vadd.f32 %v1314, %v3934
        %3936 = vmatprep.mubr.bf16.mxu0 0
        %3937 = vmatmul.mubr.bf16.gmra.mrb[0].mxu0 %v1670
        %v3938 = vpop.f32.mrb[0].mxu0
        %v3939 = vadd.f32 %v1310, %v3938
        %v3940 = vpop.f32.mrb[0].mxu0
        %v3941 = vadd.f32 %v1314, %v3940
        %v3942 = vpop.f32.mrb[0].mxu0
        %v3943 = vadd.f32 %v1310, %v3942
        %v3944 = vpop.f32.mrb[0].mxu0
        %v3945 = vadd.f32 %v1314, %v3944
        %3946 = vmatprep.mubr.bf16.mxu0 0
        %3947 = vmatmul.mubr.bf16.gmra.mrb[0].mxu0 %v1673
        %v3948 = vpop.f32.mrb[0].mxu0
        %v3949 = vadd.f32 %v1310, %v3948
        %v3950 = vpop.f32.mrb[0].mxu0
        %v3951 = vadd.f32 %v1314, %v3950
        %v3952 = vpop.f32.mrb[0].mxu0
        %v3953 = vadd.f32 %v1310, %v3952
        %v3954 = vpop.f32.mrb[0].mxu0
        %v3955 = vadd.f32 %v1314, %v3954
        %3956 = vmatprep.mubr.bf16.mxu0 0
        %3957 = vmatmul.mubr.bf16.gmra.mrb[0].mxu0 %v1676
        %v3958 = vpop.f32.mrb[0].mxu0
        %v3959 = vadd.f32 %v1310, %v3958
        %v3960 = vpop.f32.mrb[0].mxu0
        %v3961 = vadd.f32 %v1314, %v3960
        %v3962 = vpop.f32.mrb[0].mxu0
        %v3963 = vadd.f32 %v1310, %v3962
        %v3964 = vpop.f32.mrb[0].mxu0
        %v3965 = vadd.f32 %v1314, %v3964
        %3966 = vmatprep.mubr.bf16.mxu0 0
        %3967 = vmatmul.mubr.bf16.gmra.mrb[0].mxu0 %v1679
        %v3968 = vpop.f32.mrb[0].mxu0
        %v3969 = vadd.f32 %v1310, %v3968
        %v3970 = vpop.f32.mrb[0].mxu0
        %v3971 = vadd.f32 %v1314, %v3970
        %v3972 = vpop.f32.mrb[0].mxu0
        %v3973 = vadd.f32 %v1310, %v3972
        %v3974 = vpop.f32.mrb[0].mxu0
        %v3975 = vadd.f32 %v1314, %v3974
        %3976 = vmatprep.mubr.bf16.mxu0 0
        %3977 = vmatmul.mubr.bf16.gmra.mrb[0].mxu0 %v1682
        %v3978 = vpop.f32.mrb[0].mxu0
        %v3979 = vadd.f32 %v1310, %v3978
        %v3980 = vpop.f32.mrb[0].mxu0
        %v3981 = vadd.f32 %v1314, %v3980
        %v3982 = vpop.f32.mrb[0].mxu0
        %v3983 = vadd.f32 %v1310, %v3982
        %v3984 = vpop.f32.mrb[0].mxu0
        %v3985 = vadd.f32 %v1314, %v3984
        %3986 = vmatprep.mubr.bf16.mxu0 0
        %3987 = vmatmul.mubr.bf16.gmra.mrb[0].mxu0 %v1685
        %v3988 = vpop.f32.mrb[0].mxu0
        %v3989 = vadd.f32 %v1310, %v3988
        %v3990 = vpop.f32.mrb[0].mxu0
        %v3991 = vadd.f32 %v1314, %v3990
        %v3992 = vpop.f32.mrb[0].mxu0
        %v3993 = vadd.f32 %v1310, %v3992
        %v3994 = vpop.f32.mrb[0].mxu0
        %v3995 = vadd.f32 %v1314, %v3994
        %3996 = vmatprep.mubr.bf16.mxu0 0
        %3997 = vmatmul.mubr.bf16.gmra.mrb[0].mxu0 %v1688
        %v3998 = vpop.f32.mrb[0].mxu0
        %v3999 = vadd.f32 %v1310, %v3998
        %v4000 = vpop.f32.mrb[0].mxu0
        %v4001 = vadd.f32 %v1314, %v4000
        %v4002 = vpop.f32.mrb[0].mxu0
        %v4003 = vadd.f32 %v1310, %v4002
        %v4004 = vpop.f32.mrb[0].mxu0
        %v4005 = vadd.f32 %v1314, %v4004
        %4006 = vmatprep.mubr.bf16.mxu0 0
        %4007 = vmatmul.mubr.bf16.gmra.mrb[0].mxu0 %v1691
        %v4008 = vpop.f32.mrb[0].mxu0
        %v4009 = vadd.f32 %v1310, %v4008
        %v4010 = vpop.f32.mrb[0].mxu0
        %v4011 = vadd.f32 %v1314, %v4010
        %v4012 = vpop.f32.mrb[0].mxu0
        %v4013 = vadd.f32 %v1310, %v4012
        %v4014 = vpop.f32.mrb[0].mxu0
        %v4015 = vadd.f32 %v1314, %v4014
        %4016 = vmatprep.mubr.bf16.mxu0 0
        %4017 = vmatmul.mubr.bf16.gmra.mrb[0].mxu0 %v1694
        %v4018 = vpop.f32.mrb[0].mxu0
        %v4019 = vadd.f32 %v1310, %v4018
        %v4020 = vpop.f32.mrb[0].mxu0
        %v4021 = vadd.f32 %v1314, %v4020
        %v4022 = vpop.f32.mrb[0].mxu0
        %v4023 = vadd.f32 %v1310, %v4022
        %v4024 = vpop.f32.mrb[0].mxu0
        %v4025 = vadd.f32 %v1314, %v4024
        %4026 = vmatprep.mubr.bf16.mxu0 0
        %4027 = vmatmul.mubr.bf16.gmra.mrb[0].mxu0 %v1697
        %v4028 = vpop.f32.mrb[0].mxu0
        %v4029 = vadd.f32 %v1310, %v4028
        %v4030 = vpop.f32.mrb[0].mxu0
        %v4031 = vadd.f32 %v1314, %v4030
        %v4032 = vpop.f32.mrb[0].mxu0
        %v4033 = vadd.f32 %v1310, %v4032
        %v4034 = vpop.f32.mrb[0].mxu0
        %v4035 = vadd.f32 %v1314, %v4034
        %4036 = vmatprep.mubr.bf16.mxu0 0
        %4037 = vmatmul.mubr.bf16.gmra.mrb[0].mxu0 %v1700
        %v4038 = vpop.f32.mrb[0].mxu0
        %v4039 = vadd.f32 %v1310, %v4038
        %v4040 = vpop.f32.mrb[0].mxu0
        %v4041 = vadd.f32 %v1314, %v4040
        %v4042 = vpop.f32.mrb[0].mxu0
        %v4043 = vadd.f32 %v1310, %v4042
        %v4044 = vpop.f32.mrb[0].mxu0
        %v4045 = vadd.f32 %v1314, %v4044
        %4046 = vmatprep.mubr.bf16.mxu0 0
        %4047 = vmatmul.mubr.bf16.gmra.mrb[0].mxu0 %v1703
        %v4048 = vpop.f32.mrb[0].mxu0
        %v4049 = vadd.f32 %v1310, %v4048
        %v4050 = vpop.f32.mrb[0].mxu0
        %v4051 = vadd.f32 %v1314, %v4050
        %v4052 = vpop.f32.mrb[0].mxu0
        %v4053 = vadd.f32 %v1310, %v4052
        %v4054 = vpop.f32.mrb[0].mxu0
        %v4055 = vadd.f32 %v1314, %v4054
        %4056 = vmatprep.mubr.bf16.mxu0 0
        %4057 = vmatmul.mubr.bf16.gmra.mrb[0].mxu0 %v1706
        %v4058 = vpop.f32.mrb[0].mxu0
        %v4059 = vadd.f32 %v1310, %v4058
        %v4060 = vpop.f32.mrb[0].mxu0
        %v4061 = vadd.f32 %v1314, %v4060
        %v4062 = vpop.f32.mrb[0].mxu0
        %v4063 = vadd.f32 %v1310, %v4062
        %v4064 = vpop.f32.mrb[0].mxu0
        %v4065 = vadd.f32 %v1314, %v4064
        %4066 = vmatprep.mubr.bf16.mxu0 0
        %4067 = vmatmul.mubr.bf16.gmra.mrb[0].mxu0 %v1709
        %v4068 = vpop.f32.mrb[0].mxu0
        %v4069 = vadd.f32 %v1310, %v4068
        %v4070 = vpop.f32.mrb[0].mxu0
        %v4071 = vadd.f32 %v1314, %v4070
        %v4072 = vpop.f32.mrb[0].mxu0
        %v4073 = vadd.f32 %v1310, %v4072
        %v4074 = vpop.f32.mrb[0].mxu0
        %v4075 = vadd.f32 %v1314, %v4074
        %4076 = vmatprep.mubr.bf16.mxu0 0
        %4077 = vmatmul.mubr.bf16.gmra.mrb[0].mxu0 %v1712
        %v4078 = vpop.f32.mrb[0].mxu0
        %v4079 = vadd.f32 %v1310, %v4078
        %v4080 = vpop.f32.mrb[0].mxu0
        %v4081 = vadd.f32 %v1314, %v4080
        %v4082 = vpop.f32.mrb[0].mxu0
        %v4083 = vadd.f32 %v1310, %v4082
        %v4084 = vpop.f32.mrb[0].mxu0
        %v4085 = vadd.f32 %v1314, %v4084
        %4086 = vmatprep.mubr.bf16.mxu0 0
        %4087 = vmatmul.mubr.bf16.gmra.mrb[0].mxu0 %v1715
        %v4088 = vpop.f32.mrb[0].mxu0
        %v4089 = vadd.f32 %v1310, %v4088
        %v4090 = vpop.f32.mrb[0].mxu0
        %v4091 = vadd.f32 %v1314, %v4090
        %v4092 = vpop.f32.mrb[0].mxu0
        %v4093 = vadd.f32 %v1310, %v4092
        %v4094 = vpop.f32.mrb[0].mxu0
        %v4095 = vadd.f32 %v1314, %v4094
        %4096 = vmatprep.mubr.bf16.mxu0 0
        %4097 = vmatmul.mubr.bf16.gmra.mrb[0].mxu0 %v1718
        %v4098 = vpop.f32.mrb[0].mxu0
        %v4099 = vadd.f32 %v1310, %v4098
        %v4100 = vpop.f32.mrb[0].mxu0
        %v4101 = vadd.f32 %v1314, %v4100
        %v4102 = vpop.f32.mrb[0].mxu0
        %v4103 = vadd.f32 %v1310, %v4102
        %v4104 = vpop.f32.mrb[0].mxu0
        %v4105 = vadd.f32 %v1314, %v4104
        %4106 = vmatprep.mubr.bf16.mxu0 0
        %4107 = vmatmul.mubr.bf16.gmra.mrb[0].mxu0 %v1721
        %v4108 = vpop.f32.mrb[0].mxu0
        %v4109 = vadd.f32 %v1310, %v4108
        %v4110 = vpop.f32.mrb[0].mxu0
        %v4111 = vadd.f32 %v1314, %v4110
        %v4112 = vpop.f32.mrb[0].mxu0
        %v4113 = vadd.f32 %v1310, %v4112
        %v4114 = vpop.f32.mrb[0].mxu0
        %v4115 = vadd.f32 %v1314, %v4114
        %4116 = vmatprep.mubr.bf16.mxu0 0
        %4117 = vmatmul.mubr.bf16.gmra.mrb[0].mxu0 %v1724
        %v4118 = vpop.f32.mrb[0].mxu0
        %v4119 = vadd.f32 %v1310, %v4118
        %v4120 = vpop.f32.mrb[0].mxu0
        %v4121 = vadd.f32 %v1314, %v4120
        %v4122 = vpop.f32.mrb[0].mxu0
        %v4123 = vadd.f32 %v1310, %v4122
        %v4124 = vpop.f32.mrb[0].mxu0
        %v4125 = vadd.f32 %v1314, %v4124
        %4126 = vmatprep.mubr.bf16.mxu0 0
        %4127 = vmatmul.mubr.bf16.gmra.mrb[0].mxu0 %v1727
        %v4128 = vpop.f32.mrb[0].mxu0
        %v4129 = vadd.f32 %v1310, %v4128
        %v4130 = vpop.f32.mrb[0].mxu0
        %v4131 = vadd.f32 %v1314, %v4130
        %v4132 = vpop.f32.mrb[0].mxu0
        %v4133 = vadd.f32 %v1310, %v4132
        %v4134 = vpop.f32.mrb[0].mxu0
        %v4135 = vadd.f32 %v1314, %v4134
        %4136 = vmatprep.mubr.bf16.mxu0 0
        %4137 = vmatmul.mubr.bf16.gmra.mrb[0].mxu0 %v1730
        %v4138 = vpop.f32.mrb[0].mxu0
        %v4139 = vadd.f32 %v1310, %v4138
        %v4140 = vpop.f32.mrb[0].mxu0
        %v4141 = vadd.f32 %v1314, %v4140
        %v4142 = vpop.f32.mrb[0].mxu0
        %v4143 = vadd.f32 %v1310, %v4142
        %v4144 = vpop.f32.mrb[0].mxu0
        %v4145 = vadd.f32 %v1314, %v4144
        %4146 = vmatprep.mubr.bf16.mxu0 0
        %4147 = vmatmul.mubr.bf16.gmra.mrb[0].mxu0 %v1733
        %v4148 = vpop.f32.mrb[0].mxu0
        %v4149 = vadd.f32 %v1310, %v4148
        %v4150 = vpop.f32.mrb[0].mxu0
        %v4151 = vadd.f32 %v1314, %v4150
        %v4152 = vpop.f32.mrb[0].mxu0
        %v4153 = vadd.f32 %v1310, %v4152
        %v4154 = vpop.f32.mrb[0].mxu0
        %v4155 = vadd.f32 %v1314, %v4154
        %4156 = vmatprep.mubr.bf16.mxu0 0
        %4157 = vmatmul.mubr.bf16.gmra.mrb[0].mxu0 %v1736
        %v4158 = vpop.f32.mrb[0].mxu0
        %v4159 = vadd.f32 %v1310, %v4158
        %v4160 = vpop.f32.mrb[0].mxu0
        %v4161 = vadd.f32 %v1314, %v4160
        %v4162 = vpop.f32.mrb[0].mxu0
        %v4163 = vadd.f32 %v1310, %v4162
        %v4164 = vpop.f32.mrb[0].mxu0
        %v4165 = vadd.f32 %v1314, %v4164
        %4166 = vmatprep.mubr.bf16.mxu0 0
        %4167 = vmatmul.mubr.bf16.gmra.mrb[0].mxu0 %v1739
        %v4168 = vpop.f32.mrb[0].mxu0
        %v4169 = vadd.f32 %v1310, %v4168
        %v4170 = vpop.f32.mrb[0].mxu0
        %v4171 = vadd.f32 %v1314, %v4170
        %v4172 = vpop.f32.mrb[0].mxu0
        %v4173 = vadd.f32 %v1310, %v4172
        %v4174 = vpop.f32.mrb[0].mxu0
        %v4175 = vadd.f32 %v1314, %v4174
        %4176 = vmatprep.mubr.bf16.mxu0 0
        %4177 = vmatmul.mubr.bf16.gmra.mrb[0].mxu0 %v1742
        %v4178 = vpop.f32.mrb[0].mxu0
        %v4179 = vadd.f32 %v1310, %v4178
        %v4180 = vpop.f32.mrb[0].mxu0
        %v4181 = vadd.f32 %v1314, %v4180
        %v4182 = vpop.f32.mrb[0].mxu0
        %v4183 = vadd.f32 %v1310, %v4182
        %v4184 = vpop.f32.mrb[0].mxu0
        %v4185 = vadd.f32 %v1314, %v4184
        %4186 = vmatprep.mubr.bf16.mxu0 0
        %4187 = vmatmul.mubr.bf16.gmra.mrb[0].mxu0 %v1745
        %v4188 = vpop.f32.mrb[0].mxu0
        %v4189 = vadd.f32 %v1310, %v4188
        %v4190 = vpop.f32.mrb[0].mxu0
        %v4191 = vadd.f32 %v1314, %v4190
        %v4192 = vpop.f32.mrb[0].mxu0
        %v4193 = vadd.f32 %v1310, %v4192
        %v4194 = vpop.f32.mrb[0].mxu0
        %v4195 = vadd.f32 %v1314, %v4194
        %4196 = vmatprep.mubr.bf16.mxu0 0
        %4197 = vmatmul.mubr.bf16.gmra.mrb[0].mxu0 %v1748
        %v4198 = vpop.f32.mrb[0].mxu0
        %v4199 = vadd.f32 %v1310, %v4198
        %v4200 = vpop.f32.mrb[0].mxu0
        %v4201 = vadd.f32 %v1314, %v4200
        %v4202 = vpop.f32.mrb[0].mxu0
        %v4203 = vadd.f32 %v1310, %v4202
        %v4204 = vpop.f32.mrb[0].mxu0
        %v4205 = vadd.f32 %v1314, %v4204
        %4206 = vmatprep.mubr.bf16.mxu0 0
        %4207 = vmatmul.mubr.bf16.gmra.mrb[0].mxu0 %v1751
        %v4208 = vpop.f32.mrb[0].mxu0
        %v4209 = vadd.f32 %v1310, %v4208
        %v4210 = vpop.f32.mrb[0].mxu0
        %v4211 = vadd.f32 %v1314, %v4210
        %v4212 = vpop.f32.mrb[0].mxu0
        %v4213 = vadd.f32 %v1310, %v4212
        %v4214 = vpop.f32.mrb[0].mxu0
        %v4215 = vadd.f32 %v1314, %v4214
        %4216 = vmatprep.mubr.bf16.mxu0 0
        %4217 = vmatmul.mubr.bf16.gmra.mrb[0].mxu0 %v1754
        %v4218 = vpop.f32.mrb[0].mxu0
        %v4219 = vadd.f32 %v1310, %v4218
        %v4220 = vpop.f32.mrb[0].mxu0
        %v4221 = vadd.f32 %v1314, %v4220
        %v4222 = vpop.f32.mrb[0].mxu0
        %v4223 = vadd.f32 %v1310, %v4222
        %v4224 = vpop.f32.mrb[0].mxu0
        %v4225 = vadd.f32 %v1314, %v4224
        %4226 = vdwg.mxu0
        %4227 = vmatprep.subr.bf16.mxu0 %v1546
        %4228 = vmatpush1.bf16.msra.mxu0 %v1545
        %4229 = vmatprep.subr.bf16.mxu0 %v1562
        %4230 = vmatpush1.bf16.msra.mxu0 %v1561
        %4231 = vmatprep.subr.bf16.mxu0 %v1578
        %4232 = vmatpush1.bf16.msra.mxu0 %v1577
        %4233 = vmatprep.subr.bf16.mxu0 %v1594
        %4234 = vmatpush1.bf16.msra.mxu0 %v1593
        %4235 = vmatprep.subr.bf16.mxu0 0
        %4236 = vmatpush1.bf16.msra.mxu0 0
        %4237 = vmatprep.subr.bf16.mxu0 0
        %4238 = vmatpush1.bf16.msra.mxu0 0
        %4239 = vmatprep.subr.bf16.mxu0 0
        %4240 = vmatpush1.bf16.msra.mxu0 0
        %4241 = vmatprep.subr.bf16.mxu0 0
        %4242 = vmatpush1.bf16.msra.mxu0 0
        %4243 = vmatprep.subr.bf16.mxu0 0
        %4244 = vmatpush1.bf16.msra.mxu0 0
        %4245 = vmatprep.subr.bf16.mxu0 0
        %4246 = vmatpush1.bf16.msra.mxu0 0
        %4247 = vmatprep.subr.bf16.mxu0 0
        %4248 = vmatpush1.bf16.msra.mxu0 0
        %4249 = vmatprep.subr.bf16.mxu0 0
        %4250 = vmatpush1.bf16.msra.mxu0 0
        %4251 = vmatprep.subr.bf16.mxu0 0
        %4252 = vmatpush1.bf16.msra.mxu0 0
        %4253 = vmatprep.subr.bf16.mxu0 0
        %4254 = vmatpush1.bf16.msra.mxu0 0
        %4255 = vmatprep.subr.bf16.mxu0 0
        %4256 = vmatpush1.bf16.msra.mxu0 0
        %4257 = vmatprep.subr.bf16.mxu0 0
        %4258 = vmatpush1.bf16.msra.mxu0 0
        %4259 = vmatprep.mubr.bf16.mxu0 0
        %4260 = vmatmul.mubr.bf16.gmra.mrb[0].mxu0 %v1661
        %v4261 = vpop.f32.mrb[0].mxu0
        %v4262 = vadd.f32 %v1318, %v4261
        %v4263 = vpop.f32.mrb[0].mxu0
        %v4264 = vadd.f32 %v1322, %v4263
        %v4265 = vpop.f32.mrb[0].mxu0
        %v4266 = vadd.f32 %v1318, %v4265
        %v4267 = vpop.f32.mrb[0].mxu0
        %v4268 = vadd.f32 %v1322, %v4267
        %4269 = vmatprep.mubr.bf16.mxu0 0
        %4270 = vmatmul.mubr.bf16.gmra.mrb[0].mxu0 %v1664
        %v4271 = vpop.f32.mrb[0].mxu0
        %v4272 = vadd.f32 %v1318, %v4271
        %v4273 = vpop.f32.mrb[0].mxu0
        %v4274 = vadd.f32 %v1322, %v4273
        %v4275 = vpop.f32.mrb[0].mxu0
        %v4276 = vadd.f32 %v1318, %v4275
        %v4277 = vpop.f32.mrb[0].mxu0
        %v4278 = vadd.f32 %v1322, %v4277
        %4279 = vmatprep.mubr.bf16.mxu0 0
        %4280 = vmatmul.mubr.bf16.gmra.mrb[0].mxu0 %v1667
        %v4281 = vpop.f32.mrb[0].mxu0
        %v4282 = vadd.f32 %v1318, %v4281
        %v4283 = vpop.f32.mrb[0].mxu0
        %v4284 = vadd.f32 %v1322, %v4283
        %v4285 = vpop.f32.mrb[0].mxu0
        %v4286 = vadd.f32 %v1318, %v4285
        %v4287 = vpop.f32.mrb[0].mxu0
        %v4288 = vadd.f32 %v1322, %v4287
        %4289 = vmatprep.mubr.bf16.mxu0 0
        %4290 = vmatmul.mubr.bf16.gmra.mrb[0].mxu0 %v1670
        %v4291 = vpop.f32.mrb[0].mxu0
        %v4292 = vadd.f32 %v1318, %v4291
        %v4293 = vpop.f32.mrb[0].mxu0
        %v4294 = vadd.f32 %v1322, %v4293
        %v4295 = vpop.f32.mrb[0].mxu0
        %v4296 = vadd.f32 %v1318, %v4295
        %v4297 = vpop.f32.mrb[0].mxu0
        %v4298 = vadd.f32 %v1322, %v4297
        %4299 = vmatprep.mubr.bf16.mxu0 0
        %4300 = vmatmul.mubr.bf16.gmra.mrb[0].mxu0 %v1673
        %v4301 = vpop.f32.mrb[0].mxu0
        %v4302 = vadd.f32 %v1318, %v4301
        %v4303 = vpop.f32.mrb[0].mxu0
        %v4304 = vadd.f32 %v1322, %v4303
        %v4305 = vpop.f32.mrb[0].mxu0
        %v4306 = vadd.f32 %v1318, %v4305
        %v4307 = vpop.f32.mrb[0].mxu0
        %v4308 = vadd.f32 %v1322, %v4307
        %4309 = vmatprep.mubr.bf16.mxu0 0
        %4310 = vmatmul.mubr.bf16.gmra.mrb[0].mxu0 %v1676
        %v4311 = vpop.f32.mrb[0].mxu0
        %v4312 = vadd.f32 %v1318, %v4311
        %v4313 = vpop.f32.mrb[0].mxu0
        %v4314 = vadd.f32 %v1322, %v4313
        %v4315 = vpop.f32.mrb[0].mxu0
        %v4316 = vadd.f32 %v1318, %v4315
        %v4317 = vpop.f32.mrb[0].mxu0
        %v4318 = vadd.f32 %v1322, %v4317
        %4319 = vmatprep.mubr.bf16.mxu0 0
        %4320 = vmatmul.mubr.bf16.gmra.mrb[0].mxu0 %v1679
        %v4321 = vpop.f32.mrb[0].mxu0
        %v4322 = vadd.f32 %v1318, %v4321
        %v4323 = vpop.f32.mrb[0].mxu0
        %v4324 = vadd.f32 %v1322, %v4323
        %v4325 = vpop.f32.mrb[0].mxu0
        %v4326 = vadd.f32 %v1318, %v4325
        %v4327 = vpop.f32.mrb[0].mxu0
        %v4328 = vadd.f32 %v1322, %v4327
        %4329 = vmatprep.mubr.bf16.mxu0 0
        %4330 = vmatmul.mubr.bf16.gmra.mrb[0].mxu0 %v1682
        %v4331 = vpop.f32.mrb[0].mxu0
        %v4332 = vadd.f32 %v1318, %v4331
        %v4333 = vpop.f32.mrb[0].mxu0
        %v4334 = vadd.f32 %v1322, %v4333
        %v4335 = vpop.f32.mrb[0].mxu0
        %v4336 = vadd.f32 %v1318, %v4335
        %v4337 = vpop.f32.mrb[0].mxu0
        %v4338 = vadd.f32 %v1322, %v4337
        %4339 = vmatprep.mubr.bf16.mxu0 0
        %4340 = vmatmul.mubr.bf16.gmra.mrb[0].mxu0 %v1685
        %v4341 = vpop.f32.mrb[0].mxu0
        %v4342 = vadd.f32 %v1318, %v4341
        %v4343 = vpop.f32.mrb[0].mxu0
        %v4344 = vadd.f32 %v1322, %v4343
        %v4345 = vpop.f32.mrb[0].mxu0
        %v4346 = vadd.f32 %v1318, %v4345
        %v4347 = vpop.f32.mrb[0].mxu0
        %v4348 = vadd.f32 %v1322, %v4347
        %4349 = vmatprep.mubr.bf16.mxu0 0
        %4350 = vmatmul.mubr.bf16.gmra.mrb[0].mxu0 %v1688
        %v4351 = vpop.f32.mrb[0].mxu0
        %v4352 = vadd.f32 %v1318, %v4351
        %v4353 = vpop.f32.mrb[0].mxu0
        %v4354 = vadd.f32 %v1322, %v4353
        %v4355 = vpop.f32.mrb[0].mxu0
        %v4356 = vadd.f32 %v1318, %v4355
        %v4357 = vpop.f32.mrb[0].mxu0
        %v4358 = vadd.f32 %v1322, %v4357
        %4359 = vmatprep.mubr.bf16.mxu0 0
        %4360 = vmatmul.mubr.bf16.gmra.mrb[0].mxu0 %v1691
        %v4361 = vpop.f32.mrb[0].mxu0
        %v4362 = vadd.f32 %v1318, %v4361
        %v4363 = vpop.f32.mrb[0].mxu0
        %v4364 = vadd.f32 %v1322, %v4363
        %v4365 = vpop.f32.mrb[0].mxu0
        %v4366 = vadd.f32 %v1318, %v4365
        %v4367 = vpop.f32.mrb[0].mxu0
        %v4368 = vadd.f32 %v1322, %v4367
        %4369 = vmatprep.mubr.bf16.mxu0 0
        %4370 = vmatmul.mubr.bf16.gmra.mrb[0].mxu0 %v1694
        %v4371 = vpop.f32.mrb[0].mxu0
        %v4372 = vadd.f32 %v1318, %v4371
        %v4373 = vpop.f32.mrb[0].mxu0
        %v4374 = vadd.f32 %v1322, %v4373
        %v4375 = vpop.f32.mrb[0].mxu0
        %v4376 = vadd.f32 %v1318, %v4375
        %v4377 = vpop.f32.mrb[0].mxu0
        %v4378 = vadd.f32 %v1322, %v4377
        %4379 = vmatprep.mubr.bf16.mxu0 0
        %4380 = vmatmul.mubr.bf16.gmra.mrb[0].mxu0 %v1697
        %v4381 = vpop.f32.mrb[0].mxu0
        %v4382 = vadd.f32 %v1318, %v4381
        %v4383 = vpop.f32.mrb[0].mxu0
        %v4384 = vadd.f32 %v1322, %v4383
        %v4385 = vpop.f32.mrb[0].mxu0
        %v4386 = vadd.f32 %v1318, %v4385
        %v4387 = vpop.f32.mrb[0].mxu0
        %v4388 = vadd.f32 %v1322, %v4387
        %4389 = vmatprep.mubr.bf16.mxu0 0
        %4390 = vmatmul.mubr.bf16.gmra.mrb[0].mxu0 %v1700
        %v4391 = vpop.f32.mrb[0].mxu0
        %v4392 = vadd.f32 %v1318, %v4391
        %v4393 = vpop.f32.mrb[0].mxu0
        %v4394 = vadd.f32 %v1322, %v4393
        %v4395 = vpop.f32.mrb[0].mxu0
        %v4396 = vadd.f32 %v1318, %v4395
        %v4397 = vpop.f32.mrb[0].mxu0
        %v4398 = vadd.f32 %v1322, %v4397
        %4399 = vmatprep.mubr.bf16.mxu0 0
        %4400 = vmatmul.mubr.bf16.gmra.mrb[0].mxu0 %v1703
        %v4401 = vpop.f32.mrb[0].mxu0
        %v4402 = vadd.f32 %v1318, %v4401
        %v4403 = vpop.f32.mrb[0].mxu0
        %v4404 = vadd.f32 %v1322, %v4403
        %v4405 = vpop.f32.mrb[0].mxu0
        %v4406 = vadd.f32 %v1318, %v4405
        %v4407 = vpop.f32.mrb[0].mxu0
        %v4408 = vadd.f32 %v1322, %v4407
        %4409 = vmatprep.mubr.bf16.mxu0 0
        %4410 = vmatmul.mubr.bf16.gmra.mrb[0].mxu0 %v1706
        %v4411 = vpop.f32.mrb[0].mxu0
        %v4412 = vadd.f32 %v1318, %v4411
        %v4413 = vpop.f32.mrb[0].mxu0
        %v4414 = vadd.f32 %v1322, %v4413
        %v4415 = vpop.f32.mrb[0].mxu0
        %v4416 = vadd.f32 %v1318, %v4415
        %v4417 = vpop.f32.mrb[0].mxu0
        %v4418 = vadd.f32 %v1322, %v4417
        %4419 = vmatprep.mubr.bf16.mxu0 0
        %4420 = vmatmul.mubr.bf16.gmra.mrb[0].mxu0 %v1709
        %v4421 = vpop.f32.mrb[0].mxu0
        %v4422 = vadd.f32 %v1318, %v4421
        %v4423 = vpop.f32.mrb[0].mxu0
        %v4424 = vadd.f32 %v1322, %v4423
        %v4425 = vpop.f32.mrb[0].mxu0
        %v4426 = vadd.f32 %v1318, %v4425
        %v4427 = vpop.f32.mrb[0].mxu0
        %v4428 = vadd.f32 %v1322, %v4427
        %4429 = vmatprep.mubr.bf16.mxu0 0
        %4430 = vmatmul.mubr.bf16.gmra.mrb[0].mxu0 %v1712
        %v4431 = vpop.f32.mrb[0].mxu0
        %v4432 = vadd.f32 %v1318, %v4431
        %v4433 = vpop.f32.mrb[0].mxu0
        %v4434 = vadd.f32 %v1322, %v4433
        %v4435 = vpop.f32.mrb[0].mxu0
        %v4436 = vadd.f32 %v1318, %v4435
        %v4437 = vpop.f32.mrb[0].mxu0
        %v4438 = vadd.f32 %v1322, %v4437
        %4439 = vmatprep.mubr.bf16.mxu0 0
        %4440 = vmatmul.mubr.bf16.gmra.mrb[0].mxu0 %v1715
        %v4441 = vpop.f32.mrb[0].mxu0
        %v4442 = vadd.f32 %v1318, %v4441
        %v4443 = vpop.f32.mrb[0].mxu0
        %v4444 = vadd.f32 %v1322, %v4443
        %v4445 = vpop.f32.mrb[0].mxu0
        %v4446 = vadd.f32 %v1318, %v4445
        %v4447 = vpop.f32.mrb[0].mxu0
        %v4448 = vadd.f32 %v1322, %v4447
        %4449 = vmatprep.mubr.bf16.mxu0 0
        %4450 = vmatmul.mubr.bf16.gmra.mrb[0].mxu0 %v1718
        %v4451 = vpop.f32.mrb[0].mxu0
        %v4452 = vadd.f32 %v1318, %v4451
        %v4453 = vpop.f32.mrb[0].mxu0
        %v4454 = vadd.f32 %v1322, %v4453
        %v4455 = vpop.f32.mrb[0].mxu0
        %v4456 = vadd.f32 %v1318, %v4455
        %v4457 = vpop.f32.mrb[0].mxu0
        %v4458 = vadd.f32 %v1322, %v4457
        %4459 = vmatprep.mubr.bf16.mxu0 0
        %4460 = vmatmul.mubr.bf16.gmra.mrb[0].mxu0 %v1721
        %v4461 = vpop.f32.mrb[0].mxu0
        %v4462 = vadd.f32 %v1318, %v4461
        %v4463 = vpop.f32.mrb[0].mxu0
        %v4464 = vadd.f32 %v1322, %v4463
        %v4465 = vpop.f32.mrb[0].mxu0
        %v4466 = vadd.f32 %v1318, %v4465
        %v4467 = vpop.f32.mrb[0].mxu0
        %v4468 = vadd.f32 %v1322, %v4467
        %4469 = vmatprep.mubr.bf16.mxu0 0
        %4470 = vmatmul.mubr.bf16.gmra.mrb[0].mxu0 %v1724
        %v4471 = vpop.f32.mrb[0].mxu0
        %v4472 = vadd.f32 %v1318, %v4471
        %v4473 = vpop.f32.mrb[0].mxu0
        %v4474 = vadd.f32 %v1322, %v4473
        %v4475 = vpop.f32.mrb[0].mxu0
        %v4476 = vadd.f32 %v1318, %v4475
        %v4477 = vpop.f32.mrb[0].mxu0
        %v4478 = vadd.f32 %v1322, %v4477
        %4479 = vmatprep.mubr.bf16.mxu0 0
        %4480 = vmatmul.mubr.bf16.gmra.mrb[0].mxu0 %v1727
        %v4481 = vpop.f32.mrb[0].mxu0
        %v4482 = vadd.f32 %v1318, %v4481
        %v4483 = vpop.f32.mrb[0].mxu0
        %v4484 = vadd.f32 %v1322, %v4483
        %v4485 = vpop.f32.mrb[0].mxu0
        %v4486 = vadd.f32 %v1318, %v4485
        %v4487 = vpop.f32.mrb[0].mxu0
        %v4488 = vadd.f32 %v1322, %v4487
        %4489 = vmatprep.mubr.bf16.mxu0 0
        %4490 = vmatmul.mubr.bf16.gmra.mrb[0].mxu0 %v1730
        %v4491 = vpop.f32.mrb[0].mxu0
        %v4492 = vadd.f32 %v1318, %v4491
        %v4493 = vpop.f32.mrb[0].mxu0
        %v4494 = vadd.f32 %v1322, %v4493
        %v4495 = vpop.f32.mrb[0].mxu0
        %v4496 = vadd.f32 %v1318, %v4495
        %v4497 = vpop.f32.mrb[0].mxu0
        %v4498 = vadd.f32 %v1322, %v4497
        %4499 = vmatprep.mubr.bf16.mxu0 0
        %4500 = vmatmul.mubr.bf16.gmra.mrb[0].mxu0 %v1733
        %v4501 = vpop.f32.mrb[0].mxu0
        %v4502 = vadd.f32 %v1318, %v4501
        %v4503 = vpop.f32.mrb[0].mxu0
        %v4504 = vadd.f32 %v1322, %v4503
        %v4505 = vpop.f32.mrb[0].mxu0
        %v4506 = vadd.f32 %v1318, %v4505
        %v4507 = vpop.f32.mrb[0].mxu0
        %v4508 = vadd.f32 %v1322, %v4507
        %4509 = vmatprep.mubr.bf16.mxu0 0
        %4510 = vmatmul.mubr.bf16.gmra.mrb[0].mxu0 %v1736
        %v4511 = vpop.f32.mrb[0].mxu0
        %v4512 = vadd.f32 %v1318, %v4511
        %v4513 = vpop.f32.mrb[0].mxu0
        %v4514 = vadd.f32 %v1322, %v4513
        %v4515 = vpop.f32.mrb[0].mxu0
        %v4516 = vadd.f32 %v1318, %v4515
        %v4517 = vpop.f32.mrb[0].mxu0
        %v4518 = vadd.f32 %v1322, %v4517
        %4519 = vmatprep.mubr.bf16.mxu0 0
        %4520 = vmatmul.mubr.bf16.gmra.mrb[0].mxu0 %v1739
        %v4521 = vpop.f32.mrb[0].mxu0
        %v4522 = vadd.f32 %v1318, %v4521
        %v4523 = vpop.f32.mrb[0].mxu0
        %v4524 = vadd.f32 %v1322, %v4523
        %v4525 = vpop.f32.mrb[0].mxu0
        %v4526 = vadd.f32 %v1318, %v4525
        %v4527 = vpop.f32.mrb[0].mxu0
        %v4528 = vadd.f32 %v1322, %v4527
        %4529 = vmatprep.mubr.bf16.mxu0 0
        %4530 = vmatmul.mubr.bf16.gmra.mrb[0].mxu0 %v1742
        %v4531 = vpop.f32.mrb[0].mxu0
        %v4532 = vadd.f32 %v1318, %v4531
        %v4533 = vpop.f32.mrb[0].mxu0
        %v4534 = vadd.f32 %v1322, %v4533
        %v4535 = vpop.f32.mrb[0].mxu0
        %v4536 = vadd.f32 %v1318, %v4535
        %v4537 = vpop.f32.mrb[0].mxu0
        %v4538 = vadd.f32 %v1322, %v4537
        %4539 = vmatprep.mubr.bf16.mxu0 0
        %4540 = vmatmul.mubr.bf16.gmra.mrb[0].mxu0 %v1745
        %v4541 = vpop.f32.mrb[0].mxu0
        %v4542 = vadd.f32 %v1318, %v4541
        %v4543 = vpop.f32.mrb[0].mxu0
        %v4544 = vadd.f32 %v1322, %v4543
        %v4545 = vpop.f32.mrb[0].mxu0
        %v4546 = vadd.f32 %v1318, %v4545
        %v4547 = vpop.f32.mrb[0].mxu0
        %v4548 = vadd.f32 %v1322, %v4547
        %4549 = vmatprep.mubr.bf16.mxu0 0
        %4550 = vmatmul.mubr.bf16.gmra.mrb[0].mxu0 %v1748
        %v4551 = vpop.f32.mrb[0].mxu0
        %v4552 = vadd.f32 %v1318, %v4551
        %v4553 = vpop.f32.mrb[0].mxu0
        %v4554 = vadd.f32 %v1322, %v4553
        %v4555 = vpop.f32.mrb[0].mxu0
        %v4556 = vadd.f32 %v1318, %v4555
        %v4557 = vpop.f32.mrb[0].mxu0
        %v4558 = vadd.f32 %v1322, %v4557
        %4559 = vmatprep.mubr.bf16.mxu0 0
        %4560 = vmatmul.mubr.bf16.gmra.mrb[0].mxu0 %v1751
        %v4561 = vpop.f32.mrb[0].mxu0
        %v4562 = vadd.f32 %v1318, %v4561
        %v4563 = vpop.f32.mrb[0].mxu0
        %v4564 = vadd.f32 %v1322, %v4563
        %v4565 = vpop.f32.mrb[0].mxu0
        %v4566 = vadd.f32 %v1318, %v4565
        %v4567 = vpop.f32.mrb[0].mxu0
        %v4568 = vadd.f32 %v1322, %v4567
        %4569 = vmatprep.mubr.bf16.mxu0 0
        %4570 = vmatmul.mubr.bf16.gmra.mrb[0].mxu0 %v1754
        %v4571 = vpop.f32.mrb[0].mxu0
        %v4572 = vadd.f32 %v1318, %v4571
        %v4573 = vpop.f32.mrb[0].mxu0
        %v4574 = vadd.f32 %v1322, %v4573
        %v4575 = vpop.f32.mrb[0].mxu0
        %v4576 = vadd.f32 %v1318, %v4575
        %v4577 = vpop.f32.mrb[0].mxu0
        %v4578 = vadd.f32 %v1322, %v4577
        %4579 = vdwg.mxu0
        %v4580 = vmax.f32 %v1791, 0.0
        %v4581 = vmax.f32 %v1793, 0.0
        %v4582 = vmax.f32 %v2144, 0.0
        %v4583 = vmax.f32 %v2146, 0.0
        %v4584 = vmax.f32 %v2497, 0.0
        %v4585 = vmax.f32 %v2499, 0.0
        %v4586 = vmax.f32 %v2850, 0.0
        %v4587 = vmax.f32 %v2852, 0.0
        %v4588 = vmax.f32 %v3203, 0.0
        %v4589 = vmax.f32 %v3205, 0.0
        %v4590 = vmax.f32 %v3556, 0.0
        %v4591 = vmax.f32 %v3558, 0.0
        %v4592 = vmax.f32 %v3909, 0.0
        %v4593 = vmax.f32 %v3911, 0.0
        %v4594 = vmax.f32 %v4262, 0.0
        %v4595 = vmax.f32 %v4264, 0.0
        %v4596 = vmax.f32 %v1795, 0.0
        %v4597 = vmax.f32 %v1797, 0.0
        %v4598 = vmax.f32 %v2148, 0.0
        %v4599 = vmax.f32 %v2150, 0.0
        %v4600 = vmax.f32 %v2501, 0.0
        %v4601 = vmax.f32 %v2503, 0.0
        %v4602 = vmax.f32 %v2854, 0.0
        %v4603 = vmax.f32 %v2856, 0.0
        %v4604 = vmax.f32 %v3207, 0.0
        %v4605 = vmax.f32 %v3209, 0.0
        %v4606 = vmax.f32 %v3560, 0.0
        %v4607 = vmax.f32 %v3562, 0.0
        %v4608 = vmax.f32 %v3913, 0.0
        %v4609 = vmax.f32 %v3915, 0.0
        %v4610 = vmax.f32 %v4266, 0.0
        %v4611 = vmax.f32 %v4268, 0.0
        %v4612 = vmax.f32 %v1801, 0.0
        %v4613 = vmax.f32 %v1803, 0.0
        %v4614 = vmax.f32 %v2154, 0.0
        %v4615 = vmax.f32 %v2156, 0.0
        %v4616 = vmax.f32 %v2507, 0.0
        %v4617 = vmax.f32 %v2509, 0.0
        %v4618 = vmax.f32 %v2860, 0.0
        %v4619 = vmax.f32 %v2862, 0.0
        %v4620 = vmax.f32 %v3213, 0.0
        %v4621 = vmax.f32 %v3215, 0.0
        %v4622 = vmax.f32 %v3566, 0.0
        %v4623 = vmax.f32 %v3568, 0.0
        %v4624 = vmax.f32 %v3919, 0.0
        %v4625 = vmax.f32 %v3921, 0.0
        %v4626 = vmax.f32 %v4272, 0.0
        %v4627 = vmax.f32 %v4274, 0.0
        %v4628 = vmax.f32 %v1805, 0.0
        %v4629 = vmax.f32 %v1807, 0.0
        %v4630 = vmax.f32 %v2158, 0.0
        %v4631 = vmax.f32 %v2160, 0.0
        %v4632 = vmax.f32 %v2511, 0.0
        %v4633 = vmax.f32 %v2513, 0.0
        %v4634 = vmax.f32 %v2864, 0.0
        %v4635 = vmax.f32 %v2866, 0.0
        %v4636 = vmax.f32 %v3217, 0.0
        %v4637 = vmax.f32 %v3219, 0.0
        %v4638 = vmax.f32 %v3570, 0.0
        %v4639 = vmax.f32 %v3572, 0.0
        %v4640 = vmax.f32 %v3923, 0.0
        %v4641 = vmax.f32 %v3925, 0.0
        %v4642 = vmax.f32 %v4276, 0.0
        %v4643 = vmax.f32 %v4278, 0.0
        %v4644 = vmax.f32 %v1811, 0.0
        %v4645 = vmax.f32 %v1813, 0.0
        %v4646 = vmax.f32 %v2164, 0.0
        %v4647 = vmax.f32 %v2166, 0.0
        %v4648 = vmax.f32 %v2517, 0.0
        %v4649 = vmax.f32 %v2519, 0.0
        %v4650 = vmax.f32 %v2870, 0.0
        %v4651 = vmax.f32 %v2872, 0.0
        %v4652 = vmax.f32 %v3223, 0.0
        %v4653 = vmax.f32 %v3225, 0.0
        %v4654 = vmax.f32 %v3576, 0.0
        %v4655 = vmax.f32 %v3578, 0.0
        %v4656 = vmax.f32 %v3929, 0.0
        %v4657 = vmax.f32 %v3931, 0.0
        %v4658 = vmax.f32 %v4282, 0.0
        %v4659 = vmax.f32 %v4284, 0.0
        %v4660 = vmax.f32 %v1815, 0.0
        %v4661 = vmax.f32 %v1817, 0.0
        %v4662 = vmax.f32 %v2168, 0.0
        %v4663 = vmax.f32 %v2170, 0.0
        %v4664 = vmax.f32 %v2521, 0.0
        %v4665 = vmax.f32 %v2523, 0.0
        %v4666 = vmax.f32 %v2874, 0.0
        %v4667 = vmax.f32 %v2876, 0.0
        %v4668 = vmax.f32 %v3227, 0.0
        %v4669 = vmax.f32 %v3229, 0.0
        %v4670 = vmax.f32 %v3580, 0.0
        %v4671 = vmax.f32 %v3582, 0.0
        %v4672 = vmax.f32 %v3933, 0.0
        %v4673 = vmax.f32 %v3935, 0.0
        %v4674 = vmax.f32 %v4286, 0.0
        %v4675 = vmax.f32 %v4288, 0.0
        %v4676 = vmax.f32 %v1821, 0.0
        %v4677 = vmax.f32 %v1823, 0.0
        %v4678 = vmax.f32 %v2174, 0.0
        %v4679 = vmax.f32 %v2176, 0.0
        %v4680 = vmax.f32 %v2527, 0.0
        %v4681 = vmax.f32 %v2529, 0.0
        %v4682 = vmax.f32 %v2880, 0.0
        %v4683 = vmax.f32 %v2882, 0.0
        %v4684 = vmax.f32 %v3233, 0.0
        %v4685 = vmax.f32 %v3235, 0.0
        %v4686 = vmax.f32 %v3586, 0.0
        %v4687 = vmax.f32 %v3588, 0.0
        %v4688 = vmax.f32 %v3939, 0.0
        %v4689 = vmax.f32 %v3941, 0.0
        %v4690 = vmax.f32 %v4292, 0.0
        %v4691 = vmax.f32 %v4294, 0.0
        %v4692 = vmax.f32 %v1825, 0.0
        %v4693 = vmax.f32 %v1827, 0.0
        %v4694 = vmax.f32 %v2178, 0.0
        %v4695 = vmax.f32 %v2180, 0.0
        %v4696 = vmax.f32 %v2531, 0.0
        %v4697 = vmax.f32 %v2533, 0.0
        %v4698 = vmax.f32 %v2884, 0.0
        %v4699 = vmax.f32 %v2886, 0.0
        %v4700 = vmax.f32 %v3237, 0.0
        %v4701 = vmax.f32 %v3239, 0.0
        %v4702 = vmax.f32 %v3590, 0.0
        %v4703 = vmax.f32 %v3592, 0.0
        %v4704 = vmax.f32 %v3943, 0.0
        %v4705 = vmax.f32 %v3945, 0.0
        %v4706 = vmax.f32 %v4296, 0.0
        %v4707 = vmax.f32 %v4298, 0.0
        %v4708 = vmax.f32 %v1831, 0.0
        %v4709 = vmax.f32 %v1833, 0.0
        %v4710 = vmax.f32 %v2184, 0.0
        %v4711 = vmax.f32 %v2186, 0.0
        %v4712 = vmax.f32 %v2537, 0.0
        %v4713 = vmax.f32 %v2539, 0.0
        %v4714 = vmax.f32 %v2890, 0.0
        %v4715 = vmax.f32 %v2892, 0.0
        %v4716 = vmax.f32 %v3243, 0.0
        %v4717 = vmax.f32 %v3245, 0.0
        %v4718 = vmax.f32 %v3596, 0.0
        %v4719 = vmax.f32 %v3598, 0.0
        %v4720 = vmax.f32 %v3949, 0.0
        %v4721 = vmax.f32 %v3951, 0.0
        %v4722 = vmax.f32 %v4302, 0.0
        %v4723 = vmax.f32 %v4304, 0.0
        %v4724 = vmax.f32 %v1835, 0.0
        %v4725 = vmax.f32 %v1837, 0.0
        %v4726 = vmax.f32 %v2188, 0.0
        %v4727 = vmax.f32 %v2190, 0.0
        %v4728 = vmax.f32 %v2541, 0.0
        %v4729 = vmax.f32 %v2543, 0.0
        %v4730 = vmax.f32 %v2894, 0.0
        %v4731 = vmax.f32 %v2896, 0.0
        %v4732 = vmax.f32 %v3247, 0.0
        %v4733 = vmax.f32 %v3249, 0.0
        %v4734 = vmax.f32 %v3600, 0.0
        %v4735 = vmax.f32 %v3602, 0.0
        %v4736 = vmax.f32 %v3953, 0.0
        %v4737 = vmax.f32 %v3955, 0.0
        %v4738 = vmax.f32 %v4306, 0.0
        %v4739 = vmax.f32 %v4308, 0.0
        %v4740 = vmax.f32 %v1841, 0.0
        %v4741 = vmax.f32 %v1843, 0.0
        %v4742 = vmax.f32 %v2194, 0.0
        %v4743 = vmax.f32 %v2196, 0.0
        %v4744 = vmax.f32 %v2547, 0.0
        %v4745 = vmax.f32 %v2549, 0.0
        %v4746 = vmax.f32 %v2900, 0.0
        %v4747 = vmax.f32 %v2902, 0.0
        %v4748 = vmax.f32 %v3253, 0.0
        %v4749 = vmax.f32 %v3255, 0.0
        %v4750 = vmax.f32 %v3606, 0.0
        %v4751 = vmax.f32 %v3608, 0.0
        %v4752 = vmax.f32 %v3959, 0.0
        %v4753 = vmax.f32 %v3961, 0.0
        %v4754 = vmax.f32 %v4312, 0.0
        %v4755 = vmax.f32 %v4314, 0.0
        %v4756 = vmax.f32 %v1845, 0.0
        %v4757 = vmax.f32 %v1847, 0.0
        %v4758 = vmax.f32 %v2198, 0.0
        %v4759 = vmax.f32 %v2200, 0.0
        %v4760 = vmax.f32 %v2551, 0.0
        %v4761 = vmax.f32 %v2553, 0.0
        %v4762 = vmax.f32 %v2904, 0.0
        %v4763 = vmax.f32 %v2906, 0.0
        %v4764 = vmax.f32 %v3257, 0.0
        %v4765 = vmax.f32 %v3259, 0.0
        %v4766 = vmax.f32 %v3610, 0.0
        %v4767 = vmax.f32 %v3612, 0.0
        %v4768 = vmax.f32 %v3963, 0.0
        %v4769 = vmax.f32 %v3965, 0.0
        %v4770 = vmax.f32 %v4316, 0.0
        %v4771 = vmax.f32 %v4318, 0.0
        %v4772 = vmax.f32 %v1851, 0.0
        %v4773 = vmax.f32 %v1853, 0.0
        %v4774 = vmax.f32 %v2204, 0.0
        %v4775 = vmax.f32 %v2206, 0.0
        %v4776 = vmax.f32 %v2557, 0.0
        %v4777 = vmax.f32 %v2559, 0.0
        %v4778 = vmax.f32 %v2910, 0.0
        %v4779 = vmax.f32 %v2912, 0.0
        %v4780 = vmax.f32 %v3263, 0.0
        %v4781 = vmax.f32 %v3265, 0.0
        %v4782 = vmax.f32 %v3616, 0.0
        %v4783 = vmax.f32 %v3618, 0.0
        %v4784 = vmax.f32 %v3969, 0.0
        %v4785 = vmax.f32 %v3971, 0.0
        %v4786 = vmax.f32 %v4322, 0.0
        %v4787 = vmax.f32 %v4324, 0.0
        %v4788 = vmax.f32 %v1855, 0.0
        %v4789 = vmax.f32 %v1857, 0.0
        %v4790 = vmax.f32 %v2208, 0.0
        %v4791 = vmax.f32 %v2210, 0.0
        %v4792 = vmax.f32 %v2561, 0.0
        %v4793 = vmax.f32 %v2563, 0.0
        %v4794 = vmax.f32 %v2914, 0.0
        %v4795 = vmax.f32 %v2916, 0.0
        %v4796 = vmax.f32 %v3267, 0.0
        %v4797 = vmax.f32 %v3269, 0.0
        %v4798 = vmax.f32 %v3620, 0.0
        %v4799 = vmax.f32 %v3622, 0.0
        %v4800 = vmax.f32 %v3973, 0.0
        %v4801 = vmax.f32 %v3975, 0.0
        %v4802 = vmax.f32 %v4326, 0.0
        %v4803 = vmax.f32 %v4328, 0.0
        %v4804 = vmax.f32 %v1861, 0.0
        %v4805 = vmax.f32 %v1863, 0.0
        %v4806 = vmax.f32 %v2214, 0.0
        %v4807 = vmax.f32 %v2216, 0.0
        %v4808 = vmax.f32 %v2567, 0.0
        %v4809 = vmax.f32 %v2569, 0.0
        %v4810 = vmax.f32 %v2920, 0.0
        %v4811 = vmax.f32 %v2922, 0.0
        %v4812 = vmax.f32 %v3273, 0.0
        %v4813 = vmax.f32 %v3275, 0.0
        %v4814 = vmax.f32 %v3626, 0.0
        %v4815 = vmax.f32 %v3628, 0.0
        %v4816 = vmax.f32 %v3979, 0.0
        %v4817 = vmax.f32 %v3981, 0.0
        %v4818 = vmax.f32 %v4332, 0.0
        %v4819 = vmax.f32 %v4334, 0.0
        %v4820 = vmax.f32 %v1865, 0.0
        %v4821 = vmax.f32 %v1867, 0.0
        %v4822 = vmax.f32 %v2218, 0.0
        %v4823 = vmax.f32 %v2220, 0.0
        %v4824 = vmax.f32 %v2571, 0.0
        %v4825 = vmax.f32 %v2573, 0.0
        %v4826 = vmax.f32 %v2924, 0.0
        %v4827 = vmax.f32 %v2926, 0.0
        %v4828 = vmax.f32 %v3277, 0.0
        %v4829 = vmax.f32 %v3279, 0.0
        %v4830 = vmax.f32 %v3630, 0.0
        %v4831 = vmax.f32 %v3632, 0.0
        %v4832 = vmax.f32 %v3983, 0.0
        %v4833 = vmax.f32 %v3985, 0.0
        %v4834 = vmax.f32 %v4336, 0.0
        %v4835 = vmax.f32 %v4338, 0.0
        %v4836 = vmax.f32 %v1871, 0.0
        %v4837 = vmax.f32 %v1873, 0.0
        %v4838 = vmax.f32 %v2224, 0.0
        %v4839 = vmax.f32 %v2226, 0.0
        %v4840 = vmax.f32 %v2577, 0.0
        %v4841 = vmax.f32 %v2579, 0.0
        %v4842 = vmax.f32 %v2930, 0.0
        %v4843 = vmax.f32 %v2932, 0.0
        %v4844 = vmax.f32 %v3283, 0.0
        %v4845 = vmax.f32 %v3285, 0.0
        %v4846 = vmax.f32 %v3636, 0.0
        %v4847 = vmax.f32 %v3638, 0.0
        %v4848 = vmax.f32 %v3989, 0.0
        %v4849 = vmax.f32 %v3991, 0.0
        %v4850 = vmax.f32 %v4342, 0.0
        %v4851 = vmax.f32 %v4344, 0.0
        %v4852 = vmax.f32 %v1875, 0.0
        %v4853 = vmax.f32 %v1877, 0.0
        %v4854 = vmax.f32 %v2228, 0.0
        %v4855 = vmax.f32 %v2230, 0.0
        %v4856 = vmax.f32 %v2581, 0.0
        %v4857 = vmax.f32 %v2583, 0.0
        %v4858 = vmax.f32 %v2934, 0.0
        %v4859 = vmax.f32 %v2936, 0.0
        %v4860 = vmax.f32 %v3287, 0.0
        %v4861 = vmax.f32 %v3289, 0.0
        %v4862 = vmax.f32 %v3640, 0.0
        %v4863 = vmax.f32 %v3642, 0.0
        %v4864 = vmax.f32 %v3993, 0.0
        %v4865 = vmax.f32 %v3995, 0.0
        %v4866 = vmax.f32 %v4346, 0.0
        %v4867 = vmax.f32 %v4348, 0.0
        %v4868 = vmax.f32 %v1881, 0.0
        %v4869 = vmax.f32 %v1883, 0.0
        %v4870 = vmax.f32 %v2234, 0.0
        %v4871 = vmax.f32 %v2236, 0.0
        %v4872 = vmax.f32 %v2587, 0.0
        %v4873 = vmax.f32 %v2589, 0.0
        %v4874 = vmax.f32 %v2940, 0.0
        %v4875 = vmax.f32 %v2942, 0.0
        %v4876 = vmax.f32 %v3293, 0.0
        %v4877 = vmax.f32 %v3295, 0.0
        %v4878 = vmax.f32 %v3646, 0.0
        %v4879 = vmax.f32 %v3648, 0.0
        %v4880 = vmax.f32 %v3999, 0.0
        %v4881 = vmax.f32 %v4001, 0.0
        %v4882 = vmax.f32 %v4352, 0.0
        %v4883 = vmax.f32 %v4354, 0.0
        %v4884 = vmax.f32 %v1885, 0.0
        %v4885 = vmax.f32 %v1887, 0.0
        %v4886 = vmax.f32 %v2238, 0.0
        %v4887 = vmax.f32 %v2240, 0.0
        %v4888 = vmax.f32 %v2591, 0.0
        %v4889 = vmax.f32 %v2593, 0.0
        %v4890 = vmax.f32 %v2944, 0.0
        %v4891 = vmax.f32 %v2946, 0.0
        %v4892 = vmax.f32 %v3297, 0.0
        %v4893 = vmax.f32 %v3299, 0.0
        %v4894 = vmax.f32 %v3650, 0.0
        %v4895 = vmax.f32 %v3652, 0.0
        %v4896 = vmax.f32 %v4003, 0.0
        %v4897 = vmax.f32 %v4005, 0.0
        %v4898 = vmax.f32 %v4356, 0.0
        %v4899 = vmax.f32 %v4358, 0.0
        %v4900 = vmax.f32 %v1891, 0.0
        %v4901 = vmax.f32 %v1893, 0.0
        %v4902 = vmax.f32 %v2244, 0.0
        %v4903 = vmax.f32 %v2246, 0.0
        %v4904 = vmax.f32 %v2597, 0.0
        %v4905 = vmax.f32 %v2599, 0.0
        %v4906 = vmax.f32 %v2950, 0.0
        %v4907 = vmax.f32 %v2952, 0.0
        %v4908 = vmax.f32 %v3303, 0.0
        %v4909 = vmax.f32 %v3305, 0.0
        %v4910 = vmax.f32 %v3656, 0.0
        %v4911 = vmax.f32 %v3658, 0.0
        %v4912 = vmax.f32 %v4009, 0.0
        %v4913 = vmax.f32 %v4011, 0.0
        %v4914 = vmax.f32 %v4362, 0.0
        %v4915 = vmax.f32 %v4364, 0.0
        %v4916 = vmax.f32 %v1895, 0.0
        %v4917 = vmax.f32 %v1897, 0.0
        %v4918 = vmax.f32 %v2248, 0.0
        %v4919 = vmax.f32 %v2250, 0.0
        %v4920 = vmax.f32 %v2601, 0.0
        %v4921 = vmax.f32 %v2603, 0.0
        %v4922 = vmax.f32 %v2954, 0.0
        %v4923 = vmax.f32 %v2956, 0.0
        %v4924 = vmax.f32 %v3307, 0.0
        %v4925 = vmax.f32 %v3309, 0.0
        %v4926 = vmax.f32 %v3660, 0.0
        %v4927 = vmax.f32 %v3662, 0.0
        %v4928 = vmax.f32 %v4013, 0.0
        %v4929 = vmax.f32 %v4015, 0.0
        %v4930 = vmax.f32 %v4366, 0.0
        %v4931 = vmax.f32 %v4368, 0.0
        %v4932 = vmax.f32 %v1901, 0.0
        %v4933 = vmax.f32 %v1903, 0.0
        %v4934 = vmax.f32 %v2254, 0.0
        %v4935 = vmax.f32 %v2256, 0.0
        %v4936 = vmax.f32 %v2607, 0.0
        %v4937 = vmax.f32 %v2609, 0.0
        %v4938 = vmax.f32 %v2960, 0.0
        %v4939 = vmax.f32 %v2962, 0.0
        %v4940 = vmax.f32 %v3313, 0.0
        %v4941 = vmax.f32 %v3315, 0.0
        %v4942 = vmax.f32 %v3666, 0.0
        %v4943 = vmax.f32 %v3668, 0.0
        %v4944 = vmax.f32 %v4019, 0.0
        %v4945 = vmax.f32 %v4021, 0.0
        %v4946 = vmax.f32 %v4372, 0.0
        %v4947 = vmax.f32 %v4374, 0.0
        %v4948 = vmax.f32 %v1905, 0.0
        %v4949 = vmax.f32 %v1907, 0.0
        %v4950 = vmax.f32 %v2258, 0.0
        %v4951 = vmax.f32 %v2260, 0.0
        %v4952 = vmax.f32 %v2611, 0.0
        %v4953 = vmax.f32 %v2613, 0.0
        %v4954 = vmax.f32 %v2964, 0.0
        %v4955 = vmax.f32 %v2966, 0.0
        %v4956 = vmax.f32 %v3317, 0.0
        %v4957 = vmax.f32 %v3319, 0.0
        %v4958 = vmax.f32 %v3670, 0.0
        %v4959 = vmax.f32 %v3672, 0.0
        %v4960 = vmax.f32 %v4023, 0.0
        %v4961 = vmax.f32 %v4025, 0.0
        %v4962 = vmax.f32 %v4376, 0.0
        %v4963 = vmax.f32 %v4378, 0.0
        %v4964 = vmax.f32 %v1911, 0.0
        %v4965 = vmax.f32 %v1913, 0.0
        %v4966 = vmax.f32 %v2264, 0.0
        %v4967 = vmax.f32 %v2266, 0.0
        %v4968 = vmax.f32 %v2617, 0.0
        %v4969 = vmax.f32 %v2619, 0.0
        %v4970 = vmax.f32 %v2970, 0.0
        %v4971 = vmax.f32 %v2972, 0.0
        %v4972 = vmax.f32 %v3323, 0.0
        %v4973 = vmax.f32 %v3325, 0.0
        %v4974 = vmax.f32 %v3676, 0.0
        %v4975 = vmax.f32 %v3678, 0.0
        %v4976 = vmax.f32 %v4029, 0.0
        %v4977 = vmax.f32 %v4031, 0.0
        %v4978 = vmax.f32 %v4382, 0.0
        %v4979 = vmax.f32 %v4384, 0.0
        %v4980 = vmax.f32 %v1915, 0.0
        %v4981 = vmax.f32 %v1917, 0.0
        %v4982 = vmax.f32 %v2268, 0.0
        %v4983 = vmax.f32 %v2270, 0.0
        %v4984 = vmax.f32 %v2621, 0.0
        %v4985 = vmax.f32 %v2623, 0.0
        %v4986 = vmax.f32 %v2974, 0.0
        %v4987 = vmax.f32 %v2976, 0.0
        %v4988 = vmax.f32 %v3327, 0.0
        %v4989 = vmax.f32 %v3329, 0.0
        %v4990 = vmax.f32 %v3680, 0.0
        %v4991 = vmax.f32 %v3682, 0.0
        %v4992 = vmax.f32 %v4033, 0.0
        %v4993 = vmax.f32 %v4035, 0.0
        %v4994 = vmax.f32 %v4386, 0.0
        %v4995 = vmax.f32 %v4388, 0.0
        %v4996 = vmax.f32 %v1921, 0.0
        %v4997 = vmax.f32 %v1923, 0.0
        %v4998 = vmax.f32 %v2274, 0.0
        %v4999 = vmax.f32 %v2276, 0.0
        %v5000 = vmax.f32 %v2627, 0.0
        %v5001 = vmax.f32 %v2629, 0.0
        %v5002 = vmax.f32 %v2980, 0.0
        %v5003 = vmax.f32 %v2982, 0.0
        %v5004 = vmax.f32 %v3333, 0.0
        %v5005 = vmax.f32 %v3335, 0.0
        %v5006 = vmax.f32 %v3686, 0.0
        %v5007 = vmax.f32 %v3688, 0.0
        %v5008 = vmax.f32 %v4039, 0.0
        %v5009 = vmax.f32 %v4041, 0.0
        %v5010 = vmax.f32 %v4392, 0.0
        %v5011 = vmax.f32 %v4394, 0.0
        %v5012 = vmax.f32 %v1925, 0.0
        %v5013 = vmax.f32 %v1927, 0.0
        %v5014 = vmax.f32 %v2278, 0.0
        %v5015 = vmax.f32 %v2280, 0.0
        %v5016 = vmax.f32 %v2631, 0.0
        %v5017 = vmax.f32 %v2633, 0.0
        %v5018 = vmax.f32 %v2984, 0.0
        %v5019 = vmax.f32 %v2986, 0.0
        %v5020 = vmax.f32 %v3337, 0.0
        %v5021 = vmax.f32 %v3339, 0.0
        %v5022 = vmax.f32 %v3690, 0.0
        %v5023 = vmax.f32 %v3692, 0.0
        %v5024 = vmax.f32 %v4043, 0.0
        %v5025 = vmax.f32 %v4045, 0.0
        %v5026 = vmax.f32 %v4396, 0.0
        %v5027 = vmax.f32 %v4398, 0.0
        %v5028 = vmax.f32 %v1931, 0.0
        %v5029 = vmax.f32 %v1933, 0.0
        %v5030 = vmax.f32 %v2284, 0.0
        %v5031 = vmax.f32 %v2286, 0.0
        %v5032 = vmax.f32 %v2637, 0.0
        %v5033 = vmax.f32 %v2639, 0.0
        %v5034 = vmax.f32 %v2990, 0.0
        %v5035 = vmax.f32 %v2992, 0.0
        %v5036 = vmax.f32 %v3343, 0.0
        %v5037 = vmax.f32 %v3345, 0.0
        %v5038 = vmax.f32 %v3696, 0.0
        %v5039 = vmax.f32 %v3698, 0.0
        %v5040 = vmax.f32 %v4049, 0.0
        %v5041 = vmax.f32 %v4051, 0.0
        %v5042 = vmax.f32 %v4402, 0.0
        %v5043 = vmax.f32 %v4404, 0.0
        %v5044 = vmax.f32 %v1935, 0.0
        %v5045 = vmax.f32 %v1937, 0.0
        %v5046 = vmax.f32 %v2288, 0.0
        %v5047 = vmax.f32 %v2290, 0.0
        %v5048 = vmax.f32 %v2641, 0.0
        %v5049 = vmax.f32 %v2643, 0.0
        %v5050 = vmax.f32 %v2994, 0.0
        %v5051 = vmax.f32 %v2996, 0.0
        %v5052 = vmax.f32 %v3347, 0.0
        %v5053 = vmax.f32 %v3349, 0.0
        %v5054 = vmax.f32 %v3700, 0.0
        %v5055 = vmax.f32 %v3702, 0.0
        %v5056 = vmax.f32 %v4053, 0.0
        %v5057 = vmax.f32 %v4055, 0.0
        %v5058 = vmax.f32 %v4406, 0.0
        %v5059 = vmax.f32 %v4408, 0.0
        %v5060 = vmax.f32 %v1941, 0.0
        %v5061 = vmax.f32 %v1943, 0.0
        %v5062 = vmax.f32 %v2294, 0.0
        %v5063 = vmax.f32 %v2296, 0.0
        %v5064 = vmax.f32 %v2647, 0.0
        %v5065 = vmax.f32 %v2649, 0.0
        %v5066 = vmax.f32 %v3000, 0.0
        %v5067 = vmax.f32 %v3002, 0.0
        %v5068 = vmax.f32 %v3353, 0.0
        %v5069 = vmax.f32 %v3355, 0.0
        %v5070 = vmax.f32 %v3706, 0.0
        %v5071 = vmax.f32 %v3708, 0.0
        %v5072 = vmax.f32 %v4059, 0.0
        %v5073 = vmax.f32 %v4061, 0.0
        %v5074 = vmax.f32 %v4412, 0.0
        %v5075 = vmax.f32 %v4414, 0.0
        %v5076 = vmax.f32 %v1945, 0.0
        %v5077 = vmax.f32 %v1947, 0.0
        %v5078 = vmax.f32 %v2298, 0.0
        %v5079 = vmax.f32 %v2300, 0.0
        %v5080 = vmax.f32 %v2651, 0.0
        %v5081 = vmax.f32 %v2653, 0.0
        %v5082 = vmax.f32 %v3004, 0.0
        %v5083 = vmax.f32 %v3006, 0.0
        %v5084 = vmax.f32 %v3357, 0.0
        %v5085 = vmax.f32 %v3359, 0.0
        %v5086 = vmax.f32 %v3710, 0.0
        %v5087 = vmax.f32 %v3712, 0.0
        %v5088 = vmax.f32 %v4063, 0.0
        %v5089 = vmax.f32 %v4065, 0.0
        %v5090 = vmax.f32 %v4416, 0.0
        %v5091 = vmax.f32 %v4418, 0.0
        %v5092 = vmax.f32 %v1951, 0.0
        %v5093 = vmax.f32 %v1953, 0.0
        %v5094 = vmax.f32 %v2304, 0.0
        %v5095 = vmax.f32 %v2306, 0.0
        %v5096 = vmax.f32 %v2657, 0.0
        %v5097 = vmax.f32 %v2659, 0.0
        %v5098 = vmax.f32 %v3010, 0.0
        %v5099 = vmax.f32 %v3012, 0.0
        %v5100 = vmax.f32 %v3363, 0.0
        %v5101 = vmax.f32 %v3365, 0.0
        %v5102 = vmax.f32 %v3716, 0.0
        %v5103 = vmax.f32 %v3718, 0.0
        %v5104 = vmax.f32 %v4069, 0.0
        %v5105 = vmax.f32 %v4071, 0.0
        %v5106 = vmax.f32 %v4422, 0.0
        %v5107 = vmax.f32 %v4424, 0.0
        %v5108 = vmax.f32 %v1955, 0.0
        %v5109 = vmax.f32 %v1957, 0.0
        %v5110 = vmax.f32 %v2308, 0.0
        %v5111 = vmax.f32 %v2310, 0.0
        %v5112 = vmax.f32 %v2661, 0.0
        %v5113 = vmax.f32 %v2663, 0.0
        %v5114 = vmax.f32 %v3014, 0.0
        %v5115 = vmax.f32 %v3016, 0.0
        %v5116 = vmax.f32 %v3367, 0.0
        %v5117 = vmax.f32 %v3369, 0.0
        %v5118 = vmax.f32 %v3720, 0.0
        %v5119 = vmax.f32 %v3722, 0.0
        %v5120 = vmax.f32 %v4073, 0.0
        %v5121 = vmax.f32 %v4075, 0.0
        %v5122 = vmax.f32 %v4426, 0.0
        %v5123 = vmax.f32 %v4428, 0.0
        %v5124 = vmax.f32 %v1961, 0.0
        %v5125 = vmax.f32 %v1963, 0.0
        %v5126 = vmax.f32 %v2314, 0.0
        %v5127 = vmax.f32 %v2316, 0.0
        %v5128 = vmax.f32 %v2667, 0.0
        %v5129 = vmax.f32 %v2669, 0.0
        %v5130 = vmax.f32 %v3020, 0.0
        %v5131 = vmax.f32 %v3022, 0.0
        %v5132 = vmax.f32 %v3373, 0.0
        %v5133 = vmax.f32 %v3375, 0.0
        %v5134 = vmax.f32 %v3726, 0.0
        %v5135 = vmax.f32 %v3728, 0.0
        %v5136 = vmax.f32 %v4079, 0.0
        %v5137 = vmax.f32 %v4081, 0.0
        %v5138 = vmax.f32 %v4432, 0.0
        %v5139 = vmax.f32 %v4434, 0.0
        %v5140 = vmax.f32 %v1965, 0.0
        %v5141 = vmax.f32 %v1967, 0.0
        %v5142 = vmax.f32 %v2318, 0.0
        %v5143 = vmax.f32 %v2320, 0.0
        %v5144 = vmax.f32 %v2671, 0.0
        %v5145 = vmax.f32 %v2673, 0.0
        %v5146 = vmax.f32 %v3024, 0.0
        %v5147 = vmax.f32 %v3026, 0.0
        %v5148 = vmax.f32 %v3377, 0.0
        %v5149 = vmax.f32 %v3379, 0.0
        %v5150 = vmax.f32 %v3730, 0.0
        %v5151 = vmax.f32 %v3732, 0.0
        %v5152 = vmax.f32 %v4083, 0.0
        %v5153 = vmax.f32 %v4085, 0.0
        %v5154 = vmax.f32 %v4436, 0.0
        %v5155 = vmax.f32 %v4438, 0.0
        %v5156 = vmax.f32 %v1971, 0.0
        %v5157 = vmax.f32 %v1973, 0.0
        %v5158 = vmax.f32 %v2324, 0.0
        %v5159 = vmax.f32 %v2326, 0.0
        %v5160 = vmax.f32 %v2677, 0.0
        %v5161 = vmax.f32 %v2679, 0.0
        %v5162 = vmax.f32 %v3030, 0.0
        %v5163 = vmax.f32 %v3032, 0.0
        %v5164 = vmax.f32 %v3383, 0.0
        %v5165 = vmax.f32 %v3385, 0.0
        %v5166 = vmax.f32 %v3736, 0.0
        %v5167 = vmax.f32 %v3738, 0.0
        %v5168 = vmax.f32 %v4089, 0.0
        %v5169 = vmax.f32 %v4091, 0.0
        %v5170 = vmax.f32 %v4442, 0.0
        %v5171 = vmax.f32 %v4444, 0.0
        %v5172 = vmax.f32 %v1975, 0.0
        %v5173 = vmax.f32 %v1977, 0.0
        %v5174 = vmax.f32 %v2328, 0.0
        %v5175 = vmax.f32 %v2330, 0.0
        %v5176 = vmax.f32 %v2681, 0.0
        %v5177 = vmax.f32 %v2683, 0.0
        %v5178 = vmax.f32 %v3034, 0.0
        %v5179 = vmax.f32 %v3036, 0.0
        %v5180 = vmax.f32 %v3387, 0.0
        %v5181 = vmax.f32 %v3389, 0.0
        %v5182 = vmax.f32 %v3740, 0.0
        %v5183 = vmax.f32 %v3742, 0.0
        %v5184 = vmax.f32 %v4093, 0.0
        %v5185 = vmax.f32 %v4095, 0.0
        %v5186 = vmax.f32 %v4446, 0.0
        %v5187 = vmax.f32 %v4448, 0.0
        %v5188 = vmax.f32 %v1981, 0.0
        %v5189 = vmax.f32 %v1983, 0.0
        %v5190 = vmax.f32 %v2334, 0.0
        %v5191 = vmax.f32 %v2336, 0.0
        %v5192 = vmax.f32 %v2687, 0.0
        %v5193 = vmax.f32 %v2689, 0.0
        %v5194 = vmax.f32 %v3040, 0.0
        %v5195 = vmax.f32 %v3042, 0.0
        %v5196 = vmax.f32 %v3393, 0.0
        %v5197 = vmax.f32 %v3395, 0.0
        %v5198 = vmax.f32 %v3746, 0.0
        %v5199 = vmax.f32 %v3748, 0.0
        %v5200 = vmax.f32 %v4099, 0.0
        %v5201 = vmax.f32 %v4101, 0.0
        %v5202 = vmax.f32 %v4452, 0.0
        %v5203 = vmax.f32 %v4454, 0.0
        %v5204 = vmax.f32 %v1985, 0.0
        %v5205 = vmax.f32 %v1987, 0.0
        %v5206 = vmax.f32 %v2338, 0.0
        %v5207 = vmax.f32 %v2340, 0.0
        %v5208 = vmax.f32 %v2691, 0.0
        %v5209 = vmax.f32 %v2693, 0.0
        %v5210 = vmax.f32 %v3044, 0.0
        %v5211 = vmax.f32 %v3046, 0.0
        %v5212 = vmax.f32 %v3397, 0.0
        %v5213 = vmax.f32 %v3399, 0.0
        %v5214 = vmax.f32 %v3750, 0.0
        %v5215 = vmax.f32 %v3752, 0.0
        %v5216 = vmax.f32 %v4103, 0.0
        %v5217 = vmax.f32 %v4105, 0.0
        %v5218 = vmax.f32 %v4456, 0.0
        %v5219 = vmax.f32 %v4458, 0.0
        %v5220 = vmax.f32 %v1991, 0.0
        %v5221 = vmax.f32 %v1993, 0.0
        %v5222 = vmax.f32 %v2344, 0.0
        %v5223 = vmax.f32 %v2346, 0.0
        %v5224 = vmax.f32 %v2697, 0.0
        %v5225 = vmax.f32 %v2699, 0.0
        %v5226 = vmax.f32 %v3050, 0.0
        %v5227 = vmax.f32 %v3052, 0.0
        %v5228 = vmax.f32 %v3403, 0.0
        %v5229 = vmax.f32 %v3405, 0.0
        %v5230 = vmax.f32 %v3756, 0.0
        %v5231 = vmax.f32 %v3758, 0.0
        %v5232 = vmax.f32 %v4109, 0.0
        %v5233 = vmax.f32 %v4111, 0.0
        %v5234 = vmax.f32 %v4462, 0.0
        %v5235 = vmax.f32 %v4464, 0.0
        %v5236 = vmax.f32 %v1995, 0.0
        %v5237 = vmax.f32 %v1997, 0.0
        %v5238 = vmax.f32 %v2348, 0.0
        %v5239 = vmax.f32 %v2350, 0.0
        %v5240 = vmax.f32 %v2701, 0.0
        %v5241 = vmax.f32 %v2703, 0.0
        %v5242 = vmax.f32 %v3054, 0.0
        %v5243 = vmax.f32 %v3056, 0.0
        %v5244 = vmax.f32 %v3407, 0.0
        %v5245 = vmax.f32 %v3409, 0.0
        %v5246 = vmax.f32 %v3760, 0.0
        %v5247 = vmax.f32 %v3762, 0.0
        %v5248 = vmax.f32 %v4113, 0.0
        %v5249 = vmax.f32 %v4115, 0.0
        %v5250 = vmax.f32 %v4466, 0.0
        %v5251 = vmax.f32 %v4468, 0.0
        %v5252 = vmax.f32 %v2001, 0.0
        %v5253 = vmax.f32 %v2003, 0.0
        %v5254 = vmax.f32 %v2354, 0.0
        %v5255 = vmax.f32 %v2356, 0.0
        %v5256 = vmax.f32 %v2707, 0.0
        %v5257 = vmax.f32 %v2709, 0.0
        %v5258 = vmax.f32 %v3060, 0.0
        %v5259 = vmax.f32 %v3062, 0.0
        %v5260 = vmax.f32 %v3413, 0.0
        %v5261 = vmax.f32 %v3415, 0.0
        %v5262 = vmax.f32 %v3766, 0.0
        %v5263 = vmax.f32 %v3768, 0.0
        %v5264 = vmax.f32 %v4119, 0.0
        %v5265 = vmax.f32 %v4121, 0.0
        %v5266 = vmax.f32 %v4472, 0.0
        %v5267 = vmax.f32 %v4474, 0.0
        %v5268 = vmax.f32 %v2005, 0.0
        %v5269 = vmax.f32 %v2007, 0.0
        %v5270 = vmax.f32 %v2358, 0.0
        %v5271 = vmax.f32 %v2360, 0.0
        %v5272 = vmax.f32 %v2711, 0.0
        %v5273 = vmax.f32 %v2713, 0.0
        %v5274 = vmax.f32 %v3064, 0.0
        %v5275 = vmax.f32 %v3066, 0.0
        %v5276 = vmax.f32 %v3417, 0.0
        %v5277 = vmax.f32 %v3419, 0.0
        %v5278 = vmax.f32 %v3770, 0.0
        %v5279 = vmax.f32 %v3772, 0.0
        %v5280 = vmax.f32 %v4123, 0.0
        %v5281 = vmax.f32 %v4125, 0.0
        %v5282 = vmax.f32 %v4476, 0.0
        %v5283 = vmax.f32 %v4478, 0.0
        %v5284 = vmax.f32 %v2011, 0.0
        %v5285 = vmax.f32 %v2013, 0.0
        %v5286 = vmax.f32 %v2364, 0.0
        %v5287 = vmax.f32 %v2366, 0.0
        %v5288 = vmax.f32 %v2717, 0.0
        %v5289 = vmax.f32 %v2719, 0.0
        %v5290 = vmax.f32 %v3070, 0.0
        %v5291 = vmax.f32 %v3072, 0.0
        %v5292 = vmax.f32 %v3423, 0.0
        %v5293 = vmax.f32 %v3425, 0.0
        %v5294 = vmax.f32 %v3776, 0.0
        %v5295 = vmax.f32 %v3778, 0.0
        %v5296 = vmax.f32 %v4129, 0.0
        %v5297 = vmax.f32 %v4131, 0.0
        %v5298 = vmax.f32 %v4482, 0.0
        %v5299 = vmax.f32 %v4484, 0.0
        %v5300 = vmax.f32 %v2015, 0.0
        %v5301 = vmax.f32 %v2017, 0.0
        %v5302 = vmax.f32 %v2368, 0.0
        %v5303 = vmax.f32 %v2370, 0.0
        %v5304 = vmax.f32 %v2721, 0.0
        %v5305 = vmax.f32 %v2723, 0.0
        %v5306 = vmax.f32 %v3074, 0.0
        %v5307 = vmax.f32 %v3076, 0.0
        %v5308 = vmax.f32 %v3427, 0.0
        %v5309 = vmax.f32 %v3429, 0.0
        %v5310 = vmax.f32 %v3780, 0.0
        %v5311 = vmax.f32 %v3782, 0.0
        %v5312 = vmax.f32 %v4133, 0.0
        %v5313 = vmax.f32 %v4135, 0.0
        %v5314 = vmax.f32 %v4486, 0.0
        %v5315 = vmax.f32 %v4488, 0.0
        %v5316 = vmax.f32 %v2021, 0.0
        %v5317 = vmax.f32 %v2023, 0.0
        %v5318 = vmax.f32 %v2374, 0.0
        %v5319 = vmax.f32 %v2376, 0.0
        %v5320 = vmax.f32 %v2727, 0.0
        %v5321 = vmax.f32 %v2729, 0.0
        %v5322 = vmax.f32 %v3080, 0.0
        %v5323 = vmax.f32 %v3082, 0.0
        %v5324 = vmax.f32 %v3433, 0.0
        %v5325 = vmax.f32 %v3435, 0.0
        %v5326 = vmax.f32 %v3786, 0.0
        %v5327 = vmax.f32 %v3788, 0.0
        %v5328 = vmax.f32 %v4139, 0.0
        %v5329 = vmax.f32 %v4141, 0.0
        %v5330 = vmax.f32 %v4492, 0.0
        %v5331 = vmax.f32 %v4494, 0.0
        %v5332 = vmax.f32 %v2025, 0.0
        %v5333 = vmax.f32 %v2027, 0.0
        %v5334 = vmax.f32 %v2378, 0.0
        %v5335 = vmax.f32 %v2380, 0.0
        %v5336 = vmax.f32 %v2731, 0.0
        %v5337 = vmax.f32 %v2733, 0.0
        %v5338 = vmax.f32 %v3084, 0.0
        %v5339 = vmax.f32 %v3086, 0.0
        %v5340 = vmax.f32 %v3437, 0.0
        %v5341 = vmax.f32 %v3439, 0.0
        %v5342 = vmax.f32 %v3790, 0.0
        %v5343 = vmax.f32 %v3792, 0.0
        %v5344 = vmax.f32 %v4143, 0.0
        %v5345 = vmax.f32 %v4145, 0.0
        %v5346 = vmax.f32 %v4496, 0.0
        %v5347 = vmax.f32 %v4498, 0.0
        %v5348 = vmax.f32 %v2031, 0.0
        %v5349 = vmax.f32 %v2033, 0.0
        %v5350 = vmax.f32 %v2384, 0.0
        %v5351 = vmax.f32 %v2386, 0.0
        %v5352 = vmax.f32 %v2737, 0.0
        %v5353 = vmax.f32 %v2739, 0.0
        %v5354 = vmax.f32 %v3090, 0.0
        %v5355 = vmax.f32 %v3092, 0.0
        %v5356 = vmax.f32 %v3443, 0.0
        %v5357 = vmax.f32 %v3445, 0.0
        %v5358 = vmax.f32 %v3796, 0.0
        %v5359 = vmax.f32 %v3798, 0.0
        %v5360 = vmax.f32 %v4149, 0.0
        %v5361 = vmax.f32 %v4151, 0.0
        %v5362 = vmax.f32 %v4502, 0.0
        %v5363 = vmax.f32 %v4504, 0.0
        %v5364 = vmax.f32 %v2035, 0.0
        %v5365 = vmax.f32 %v2037, 0.0
        %v5366 = vmax.f32 %v2388, 0.0
        %v5367 = vmax.f32 %v2390, 0.0
        %v5368 = vmax.f32 %v2741, 0.0
        %v5369 = vmax.f32 %v2743, 0.0
        %v5370 = vmax.f32 %v3094, 0.0
        %v5371 = vmax.f32 %v3096, 0.0
        %v5372 = vmax.f32 %v3447, 0.0
        %v5373 = vmax.f32 %v3449, 0.0
        %v5374 = vmax.f32 %v3800, 0.0
        %v5375 = vmax.f32 %v3802, 0.0
        %v5376 = vmax.f32 %v4153, 0.0
        %v5377 = vmax.f32 %v4155, 0.0
        %v5378 = vmax.f32 %v4506, 0.0
        %v5379 = vmax.f32 %v4508, 0.0
        %v5380 = vmax.f32 %v2041, 0.0
        %v5381 = vmax.f32 %v2043, 0.0
        %v5382 = vmax.f32 %v2394, 0.0
        %v5383 = vmax.f32 %v2396, 0.0
        %v5384 = vmax.f32 %v2747, 0.0
        %v5385 = vmax.f32 %v2749, 0.0
        %v5386 = vmax.f32 %v3100, 0.0
        %v5387 = vmax.f32 %v3102, 0.0
        %v5388 = vmax.f32 %v3453, 0.0
        %v5389 = vmax.f32 %v3455, 0.0
        %v5390 = vmax.f32 %v3806, 0.0
        %v5391 = vmax.f32 %v3808, 0.0
        %v5392 = vmax.f32 %v4159, 0.0
        %v5393 = vmax.f32 %v4161, 0.0
        %v5394 = vmax.f32 %v4512, 0.0
        %v5395 = vmax.f32 %v4514, 0.0
        %v5396 = vmax.f32 %v2045, 0.0
        %v5397 = vmax.f32 %v2047, 0.0
        %v5398 = vmax.f32 %v2398, 0.0
        %v5399 = vmax.f32 %v2400, 0.0
        %v5400 = vmax.f32 %v2751, 0.0
        %v5401 = vmax.f32 %v2753, 0.0
        %v5402 = vmax.f32 %v3104, 0.0
        %v5403 = vmax.f32 %v3106, 0.0
        %v5404 = vmax.f32 %v3457, 0.0
        %v5405 = vmax.f32 %v3459, 0.0
        %v5406 = vmax.f32 %v3810, 0.0
        %v5407 = vmax.f32 %v3812, 0.0
        %v5408 = vmax.f32 %v4163, 0.0
        %v5409 = vmax.f32 %v4165, 0.0
        %v5410 = vmax.f32 %v4516, 0.0
        %v5411 = vmax.f32 %v4518, 0.0
        %v5412 = vmax.f32 %v2051, 0.0
        %v5413 = vmax.f32 %v2053, 0.0
        %v5414 = vmax.f32 %v2404, 0.0
        %v5415 = vmax.f32 %v2406, 0.0
        %v5416 = vmax.f32 %v2757, 0.0
        %v5417 = vmax.f32 %v2759, 0.0
        %v5418 = vmax.f32 %v3110, 0.0
        %v5419 = vmax.f32 %v3112, 0.0
        %v5420 = vmax.f32 %v3463, 0.0
        %v5421 = vmax.f32 %v3465, 0.0
        %v5422 = vmax.f32 %v3816, 0.0
        %v5423 = vmax.f32 %v3818, 0.0
        %v5424 = vmax.f32 %v4169, 0.0
        %v5425 = vmax.f32 %v4171, 0.0
        %v5426 = vmax.f32 %v4522, 0.0
        %v5427 = vmax.f32 %v4524, 0.0
        %v5428 = vmax.f32 %v2055, 0.0
        %v5429 = vmax.f32 %v2057, 0.0
        %v5430 = vmax.f32 %v2408, 0.0
        %v5431 = vmax.f32 %v2410, 0.0
        %v5432 = vmax.f32 %v2761, 0.0
        %v5433 = vmax.f32 %v2763, 0.0
        %v5434 = vmax.f32 %v3114, 0.0
        %v5435 = vmax.f32 %v3116, 0.0
        %v5436 = vmax.f32 %v3467, 0.0
        %v5437 = vmax.f32 %v3469, 0.0
        %v5438 = vmax.f32 %v3820, 0.0
        %v5439 = vmax.f32 %v3822, 0.0
        %v5440 = vmax.f32 %v4173, 0.0
        %v5441 = vmax.f32 %v4175, 0.0
        %v5442 = vmax.f32 %v4526, 0.0
        %v5443 = vmax.f32 %v4528, 0.0
        %v5444 = vmax.f32 %v2061, 0.0
        %v5445 = vmax.f32 %v2063, 0.0
        %v5446 = vmax.f32 %v2414, 0.0
        %v5447 = vmax.f32 %v2416, 0.0
        %v5448 = vmax.f32 %v2767, 0.0
        %v5449 = vmax.f32 %v2769, 0.0
        %v5450 = vmax.f32 %v3120, 0.0
        %v5451 = vmax.f32 %v3122, 0.0
        %v5452 = vmax.f32 %v3473, 0.0
        %v5453 = vmax.f32 %v3475, 0.0
        %v5454 = vmax.f32 %v3826, 0.0
        %v5455 = vmax.f32 %v3828, 0.0
        %v5456 = vmax.f32 %v4179, 0.0
        %v5457 = vmax.f32 %v4181, 0.0
        %v5458 = vmax.f32 %v4532, 0.0
        %v5459 = vmax.f32 %v4534, 0.0
        %v5460 = vmax.f32 %v2065, 0.0
        %v5461 = vmax.f32 %v2067, 0.0
        %v5462 = vmax.f32 %v2418, 0.0
        %v5463 = vmax.f32 %v2420, 0.0
        %v5464 = vmax.f32 %v2771, 0.0
        %v5465 = vmax.f32 %v2773, 0.0
        %v5466 = vmax.f32 %v3124, 0.0
        %v5467 = vmax.f32 %v3126, 0.0
        %v5468 = vmax.f32 %v3477, 0.0
        %v5469 = vmax.f32 %v3479, 0.0
        %v5470 = vmax.f32 %v3830, 0.0
        %v5471 = vmax.f32 %v3832, 0.0
        %v5472 = vmax.f32 %v4183, 0.0
        %v5473 = vmax.f32 %v4185, 0.0
        %v5474 = vmax.f32 %v4536, 0.0
        %v5475 = vmax.f32 %v4538, 0.0
        %v5476 = vmax.f32 %v2071, 0.0
        %v5477 = vmax.f32 %v2073, 0.0
        %v5478 = vmax.f32 %v2424, 0.0
        %v5479 = vmax.f32 %v2426, 0.0
        %v5480 = vmax.f32 %v2777, 0.0
        %v5481 = vmax.f32 %v2779, 0.0
        %v5482 = vmax.f32 %v3130, 0.0
        %v5483 = vmax.f32 %v3132, 0.0
        %v5484 = vmax.f32 %v3483, 0.0
        %v5485 = vmax.f32 %v3485, 0.0
        %v5486 = vmax.f32 %v3836, 0.0
        %v5487 = vmax.f32 %v3838, 0.0
        %v5488 = vmax.f32 %v4189, 0.0
        %v5489 = vmax.f32 %v4191, 0.0
        %v5490 = vmax.f32 %v4542, 0.0
        %v5491 = vmax.f32 %v4544, 0.0
        %v5492 = vmax.f32 %v2075, 0.0
        %v5493 = vmax.f32 %v2077, 0.0
        %v5494 = vmax.f32 %v2428, 0.0
        %v5495 = vmax.f32 %v2430, 0.0
        %v5496 = vmax.f32 %v2781, 0.0
        %v5497 = vmax.f32 %v2783, 0.0
        %v5498 = vmax.f32 %v3134, 0.0
        %v5499 = vmax.f32 %v3136, 0.0
        %v5500 = vmax.f32 %v3487, 0.0
        %v5501 = vmax.f32 %v3489, 0.0
        %v5502 = vmax.f32 %v3840, 0.0
        %v5503 = vmax.f32 %v3842, 0.0
        %v5504 = vmax.f32 %v4193, 0.0
        %v5505 = vmax.f32 %v4195, 0.0
        %v5506 = vmax.f32 %v4546, 0.0
        %v5507 = vmax.f32 %v4548, 0.0
        %v5508 = vmax.f32 %v2081, 0.0
        %v5509 = vmax.f32 %v2083, 0.0
        %v5510 = vmax.f32 %v2434, 0.0
        %v5511 = vmax.f32 %v2436, 0.0
        %v5512 = vmax.f32 %v2787, 0.0
        %v5513 = vmax.f32 %v2789, 0.0
        %v5514 = vmax.f32 %v3140, 0.0
        %v5515 = vmax.f32 %v3142, 0.0
        %v5516 = vmax.f32 %v3493, 0.0
        %v5517 = vmax.f32 %v3495, 0.0
        %v5518 = vmax.f32 %v3846, 0.0
        %v5519 = vmax.f32 %v3848, 0.0
        %v5520 = vmax.f32 %v4199, 0.0
        %v5521 = vmax.f32 %v4201, 0.0
        %v5522 = vmax.f32 %v4552, 0.0
        %v5523 = vmax.f32 %v4554, 0.0
        %v5524 = vmax.f32 %v2085, 0.0
        %v5525 = vmax.f32 %v2087, 0.0
        %v5526 = vmax.f32 %v2438, 0.0
        %v5527 = vmax.f32 %v2440, 0.0
        %v5528 = vmax.f32 %v2791, 0.0
        %v5529 = vmax.f32 %v2793, 0.0
        %v5530 = vmax.f32 %v3144, 0.0
        %v5531 = vmax.f32 %v3146, 0.0
        %v5532 = vmax.f32 %v3497, 0.0
        %v5533 = vmax.f32 %v3499, 0.0
        %v5534 = vmax.f32 %v3850, 0.0
        %v5535 = vmax.f32 %v3852, 0.0
        %v5536 = vmax.f32 %v4203, 0.0
        %v5537 = vmax.f32 %v4205, 0.0
        %v5538 = vmax.f32 %v4556, 0.0
        %v5539 = vmax.f32 %v4558, 0.0
        %v5540 = vmax.f32 %v2091, 0.0
        %v5541 = vmax.f32 %v2093, 0.0
        %v5542 = vmax.f32 %v2444, 0.0
        %v5543 = vmax.f32 %v2446, 0.0
        %v5544 = vmax.f32 %v2797, 0.0
        %v5545 = vmax.f32 %v2799, 0.0
        %v5546 = vmax.f32 %v3150, 0.0
        %v5547 = vmax.f32 %v3152, 0.0
        %v5548 = vmax.f32 %v3503, 0.0
        %v5549 = vmax.f32 %v3505, 0.0
        %v5550 = vmax.f32 %v3856, 0.0
        %v5551 = vmax.f32 %v3858, 0.0
        %v5552 = vmax.f32 %v4209, 0.0
        %v5553 = vmax.f32 %v4211, 0.0
        %v5554 = vmax.f32 %v4562, 0.0
        %v5555 = vmax.f32 %v4564, 0.0
        %v5556 = vmax.f32 %v2095, 0.0
        %v5557 = vmax.f32 %v2097, 0.0
        %v5558 = vmax.f32 %v2448, 0.0
        %v5559 = vmax.f32 %v2450, 0.0
        %v5560 = vmax.f32 %v2801, 0.0
        %v5561 = vmax.f32 %v2803, 0.0
        %v5562 = vmax.f32 %v3154, 0.0
        %v5563 = vmax.f32 %v3156, 0.0
        %v5564 = vmax.f32 %v3507, 0.0
        %v5565 = vmax.f32 %v3509, 0.0
        %v5566 = vmax.f32 %v3860, 0.0
        %v5567 = vmax.f32 %v3862, 0.0
        %v5568 = vmax.f32 %v4213, 0.0
        %v5569 = vmax.f32 %v4215, 0.0
        %v5570 = vmax.f32 %v4566, 0.0
        %v5571 = vmax.f32 %v4568, 0.0
        %v5572 = vmax.f32 %v2101, 0.0
        %v5573 = vmax.f32 %v2103, 0.0
        %v5574 = vmax.f32 %v2454, 0.0
        %v5575 = vmax.f32 %v2456, 0.0
        %v5576 = vmax.f32 %v2807, 0.0
        %v5577 = vmax.f32 %v2809, 0.0
        %v5578 = vmax.f32 %v3160, 0.0
        %v5579 = vmax.f32 %v3162, 0.0
        %v5580 = vmax.f32 %v3513, 0.0
        %v5581 = vmax.f32 %v3515, 0.0
        %v5582 = vmax.f32 %v3866, 0.0
        %v5583 = vmax.f32 %v3868, 0.0
        %v5584 = vmax.f32 %v4219, 0.0
        %v5585 = vmax.f32 %v4221, 0.0
        %v5586 = vmax.f32 %v4572, 0.0
        %v5587 = vmax.f32 %v4574, 0.0
        %v5588 = vmax.f32 %v2105, 0.0
        %v5589 = vmax.f32 %v2107, 0.0
        %v5590 = vmax.f32 %v2458, 0.0
        %v5591 = vmax.f32 %v2460, 0.0
        %v5592 = vmax.f32 %v2811, 0.0
        %v5593 = vmax.f32 %v2813, 0.0
        %v5594 = vmax.f32 %v3164, 0.0
        %v5595 = vmax.f32 %v3166, 0.0
        %v5596 = vmax.f32 %v3517, 0.0
        %v5597 = vmax.f32 %v3519, 0.0
        %v5598 = vmax.f32 %v3870, 0.0
        %v5599 = vmax.f32 %v3872, 0.0
        %v5600 = vmax.f32 %v4223, 0.0
        %v5601 = vmax.f32 %v4225, 0.0
        %v5602 = vmax.f32 %v4576, 0.0
        %v5603 = vmax.f32 %v4578, 0.0
        %v5604 = vld [vmem:[#allocation2] sm:$0xff]
        %v5605 = vld [vmem:[#allocation2 + $0x8] sm:$0xff]
        %v5606 = vld [vmem:[#allocation2 + $0x10] sm:$0xff]
        %v5607 = vld [vmem:[#allocation2 + $0x18] sm:$0xff]
        %v5608 = vld [vmem:[#allocation2 + $0x20] sm:$0xff]
        %v5609 = vld [vmem:[#allocation2 + $0x28] sm:$0xff]
        %v5610 = vld [vmem:[#allocation2 + $0x30] sm:$0xff]
        %v5611 = vld [vmem:[#allocation2 + $0x38] sm:$0xff]
        %v5612 = vld [vmem:[#allocation2 + $0x40] sm:$0xff]
        %v5613 = vld [vmem:[#allocation2 + $0x48] sm:$0xff]
        %v5614 = vld [vmem:[#allocation2 + $0x50] sm:$0xff]
        %v5615 = vld [vmem:[#allocation2 + $0x58] sm:$0xff]
        %v5616 = vld [vmem:[#allocation2 + $0x60] sm:$0xff]
        %v5617 = vld [vmem:[#allocation2 + $0x68] sm:$0xff]
        %v5618 = vld [vmem:[#allocation2 + $0x70] sm:$0xff]
        %v5619 = vld [vmem:[#allocation2 + $0x78] sm:$0xff]
        %v5620 = vld [vmem:[#allocation2 + $0x80] sm:$0xff]
        %v5621 = vld [vmem:[#allocation2 + $0x88] sm:$0xff]
        %v5622 = vld [vmem:[#allocation2 + $0x90] sm:$0xff]
        %v5623 = vld [vmem:[#allocation2 + $0x98] sm:$0xff]
        %v5624 = vld [vmem:[#allocation2 + $0xa0] sm:$0xff]
        %v5625 = vld [vmem:[#allocation2 + $0xa8] sm:$0xff]
        %v5626 = vld [vmem:[#allocation2 + $0xb0] sm:$0xff]
        %v5627 = vld [vmem:[#allocation2 + $0xb8] sm:$0xff]
        %v5628 = vld [vmem:[#allocation2 + $0xc0] sm:$0xff]
        %v5629 = vld [vmem:[#allocation2 + $0xc8] sm:$0xff]
        %v5630 = vld [vmem:[#allocation2 + $0xd0] sm:$0xff]
        %v5631 = vld [vmem:[#allocation2 + $0xd8] sm:$0xff]
        %v5632 = vld [vmem:[#allocation2 + $0xe0] sm:$0xff]
        %v5633 = vld [vmem:[#allocation2 + $0xe8] sm:$0xff]
        %v5634 = vld [vmem:[#allocation2 + $0xf0] sm:$0xff]
        %v5635 = vld [vmem:[#allocation2 + $0xf8] sm:$0xff]
        %v5636 = vld [vmem:[#allocation2 + $0x100] sm:$0xff]
        %v5637 = vld [vmem:[#allocation2 + $0x108] sm:$0xff]
        %v5638 = vld [vmem:[#allocation2 + $0x110] sm:$0xff]
        %v5639 = vld [vmem:[#allocation2 + $0x118] sm:$0xff]
        %v5640 = vld [vmem:[#allocation2 + $0x120] sm:$0xff]
        %v5641 = vld [vmem:[#allocation2 + $0x128] sm:$0xff]
        %v5642 = vld [vmem:[#allocation2 + $0x130] sm:$0xff]
        %v5643 = vld [vmem:[#allocation2 + $0x138] sm:$0xff]
        %v5644 = vld [vmem:[#allocation2 + $0x140] sm:$0xff]
        %v5645 = vld [vmem:[#allocation2 + $0x148] sm:$0xff]
        %v5646 = vld [vmem:[#allocation2 + $0x150] sm:$0xff]
        %v5647 = vld [vmem:[#allocation2 + $0x158] sm:$0xff]
        %v5648 = vld [vmem:[#allocation2 + $0x160] sm:$0xff]
        %v5649 = vld [vmem:[#allocation2 + $0x168] sm:$0xff]
        %v5650 = vld [vmem:[#allocation2 + $0x170] sm:$0xff]
        %v5651 = vld [vmem:[#allocation2 + $0x178] sm:$0xff]
        %v5652 = vld [vmem:[#allocation2 + $0x180] sm:$0xff]
        %v5653 = vld [vmem:[#allocation2 + $0x188] sm:$0xff]
        %v5654 = vld [vmem:[#allocation2 + $0x190] sm:$0xff]
        %v5655 = vld [vmem:[#allocation2 + $0x198] sm:$0xff]
        %v5656 = vld [vmem:[#allocation2 + $0x1a0] sm:$0xff]
        %v5657 = vld [vmem:[#allocation2 + $0x1a8] sm:$0xff]
        %v5658 = vld [vmem:[#allocation2 + $0x1b0] sm:$0xff]
        %v5659 = vld [vmem:[#allocation2 + $0x1b8] sm:$0xff]
        %v5660 = vld [vmem:[#allocation2 + $0x1c0] sm:$0xff]
        %v5661 = vld [vmem:[#allocation2 + $0x1c8] sm:$0xff]
        %v5662 = vld [vmem:[#allocation2 + $0x1d0] sm:$0xff]
        %v5663 = vld [vmem:[#allocation2 + $0x1d8] sm:$0xff]
        %v5664 = vld [vmem:[#allocation2 + $0x1e0] sm:$0xff]
        %v5665 = vld [vmem:[#allocation2 + $0x1e8] sm:$0xff]
        %v5666 = vld [vmem:[#allocation2 + $0x1f0] sm:$0xff]
        %v5667 = vld [vmem:[#allocation2 + $0x1f8] sm:$0xff]
        %v5668 = vld [vmem:[#allocation2 + $0x200] sm:$0xff]
        %v5669 = vld [vmem:[#allocation2 + $0x208] sm:$0xff]
        %v5670 = vld [vmem:[#allocation2 + $0x210] sm:$0xff]
        %v5671 = vld [vmem:[#allocation2 + $0x218] sm:$0xff]
        %v5672 = vld [vmem:[#allocation2 + $0x220] sm:$0xff]
        %v5673 = vld [vmem:[#allocation2 + $0x228] sm:$0xff]
        %v5674 = vld [vmem:[#allocation2 + $0x230] sm:$0xff]
        %v5675 = vld [vmem:[#allocation2 + $0x238] sm:$0xff]
        %v5676 = vld [vmem:[#allocation2 + $0x240] sm:$0xff]
        %v5677 = vld [vmem:[#allocation2 + $0x248] sm:$0xff]
        %v5678 = vld [vmem:[#allocation2 + $0x250] sm:$0xff]
        %v5679 = vld [vmem:[#allocation2 + $0x258] sm:$0xff]
        %v5680 = vld [vmem:[#allocation2 + $0x260] sm:$0xff]
        %v5681 = vld [vmem:[#allocation2 + $0x268] sm:$0xff]
        %v5682 = vld [vmem:[#allocation2 + $0x270] sm:$0xff]
        %v5683 = vld [vmem:[#allocation2 + $0x278] sm:$0xff]
        %v5684 = vld [vmem:[#allocation2 + $0x280] sm:$0xff]
        %v5685 = vld [vmem:[#allocation2 + $0x288] sm:$0xff]
        %v5686 = vld [vmem:[#allocation2 + $0x290] sm:$0xff]
        %v5687 = vld [vmem:[#allocation2 + $0x298] sm:$0xff]
        %v5688 = vld [vmem:[#allocation2 + $0x2a0] sm:$0xff]
        %v5689 = vld [vmem:[#allocation2 + $0x2a8] sm:$0xff]
        %v5690 = vld [vmem:[#allocation2 + $0x2b0] sm:$0xff]
        %v5691 = vld [vmem:[#allocation2 + $0x2b8] sm:$0xff]
        %v5692 = vld [vmem:[#allocation2 + $0x2c0] sm:$0xff]
        %v5693 = vld [vmem:[#allocation2 + $0x2c8] sm:$0xff]
        %v5694 = vld [vmem:[#allocation2 + $0x2d0] sm:$0xff]
        %v5695 = vld [vmem:[#allocation2 + $0x2d8] sm:$0xff]
        %v5696 = vld [vmem:[#allocation2 + $0x2e0] sm:$0xff]
        %v5697 = vld [vmem:[#allocation2 + $0x2e8] sm:$0xff]
        %v5698 = vld [vmem:[#allocation2 + $0x2f0] sm:$0xff]
        %v5699 = vld [vmem:[#allocation2 + $0x2f8] sm:$0xff]
        %v5700 = vld [vmem:[#allocation2 + $0x300] sm:$0xff]
        %v5701 = vld [vmem:[#allocation2 + $0x308] sm:$0xff]
        %v5702 = vld [vmem:[#allocation2 + $0x310] sm:$0xff]
        %v5703 = vld [vmem:[#allocation2 + $0x318] sm:$0xff]
        %v5704 = vld [vmem:[#allocation2 + $0x320] sm:$0xff]
        %v5705 = vld [vmem:[#allocation2 + $0x328] sm:$0xff]
        %v5706 = vld [vmem:[#allocation2 + $0x330] sm:$0xff]
        %v5707 = vld [vmem:[#allocation2 + $0x338] sm:$0xff]
        %v5708 = vld [vmem:[#allocation2 + $0x340] sm:$0xff]
        %v5709 = vld [vmem:[#allocation2 + $0x348] sm:$0xff]
        %v5710 = vld [vmem:[#allocation2 + $0x350] sm:$0xff]
        %v5711 = vld [vmem:[#allocation2 + $0x358] sm:$0xff]
        %v5712 = vld [vmem:[#allocation2 + $0x360] sm:$0xff]
        %v5713 = vld [vmem:[#allocation2 + $0x368] sm:$0xff]
        %v5714 = vld [vmem:[#allocation2 + $0x370] sm:$0xff]
        %v5715 = vld [vmem:[#allocation2 + $0x378] sm:$0xff]
        %v5716 = vld [vmem:[#allocation2 + $0x380] sm:$0xff]
        %v5717 = vld [vmem:[#allocation2 + $0x388] sm:$0xff]
        %v5718 = vld [vmem:[#allocation2 + $0x390] sm:$0xff]
        %v5719 = vld [vmem:[#allocation2 + $0x398] sm:$0xff]
        %v5720 = vld [vmem:[#allocation2 + $0x3a0] sm:$0xff]
        %v5721 = vld [vmem:[#allocation2 + $0x3a8] sm:$0xff]
        %v5722 = vld [vmem:[#allocation2 + $0x3b0] sm:$0xff]
        %v5723 = vld [vmem:[#allocation2 + $0x3b8] sm:$0xff]
        %v5724 = vld [vmem:[#allocation2 + $0x3c0] sm:$0xff]
        %v5725 = vld [vmem:[#allocation2 + $0x3c8] sm:$0xff]
        %v5726 = vld [vmem:[#allocation2 + $0x3d0] sm:$0xff]
        %v5727 = vld [vmem:[#allocation2 + $0x3d8] sm:$0xff]
        %v5728 = vld [vmem:[#allocation2 + $0x3e0] sm:$0xff]
        %v5729 = vld [vmem:[#allocation2 + $0x3e8] sm:$0xff]
        %v5730 = vld [vmem:[#allocation2 + $0x3f0] sm:$0xff]
        %v5731 = vld [vmem:[#allocation2 + $0x3f8] sm:$0xff]
        %v5732 = vld [vmem:[%s304] sm:$0xff]
        %v5733 = vld [vmem:[%s304 + $0x8] sm:$0xff]
        %v5734 = vld [vmem:[%s304 + $0x10] sm:$0xff]
        %v5735 = vld [vmem:[%s304 + $0x18] sm:$0xff]
        %v5736 = vld [vmem:[%s304 + $0x20] sm:$0xff]
        %v5737 = vld [vmem:[%s304 + $0x28] sm:$0xff]
        %v5738 = vld [vmem:[%s304 + $0x30] sm:$0xff]
        %v5739 = vld [vmem:[%s304 + $0x38] sm:$0xff]
        %v5740 = vld [vmem:[%s304 + $0x40] sm:$0xff]
        %v5741 = vld [vmem:[%s304 + $0x48] sm:$0xff]
        %v5742 = vld [vmem:[%s304 + $0x50] sm:$0xff]
        %v5743 = vld [vmem:[%s304 + $0x58] sm:$0xff]
        %v5744 = vld [vmem:[%s304 + $0x60] sm:$0xff]
        %v5745 = vld [vmem:[%s304 + $0x68] sm:$0xff]
        %v5746 = vld [vmem:[%s304 + $0x70] sm:$0xff]
        %v5747 = vld [vmem:[%s304 + $0x78] sm:$0xff]
        %v5748 = vpack.c.bf16 %v4596, %v4580
        %v5749 = vpack.c.bf16 %v4597, %v4581
        %v5750 = vpack.c.bf16 %v4598, %v4582
        %v5751 = vpack.c.bf16 %v4599, %v4583
        %v5752 = vpack.c.bf16 %v4600, %v4584
        %v5753 = vpack.c.bf16 %v4601, %v4585
        %v5754 = vpack.c.bf16 %v4602, %v4586
        %v5755 = vpack.c.bf16 %v4603, %v4587
        %v5756 = vpack.c.bf16 %v4604, %v4588
        %v5757 = vpack.c.bf16 %v4605, %v4589
        %v5758 = vpack.c.bf16 %v4606, %v4590
        %v5759 = vpack.c.bf16 %v4607, %v4591
        %v5760 = vpack.c.bf16 %v4608, %v4592
        %v5761 = vpack.c.bf16 %v4609, %v4593
        %v5762 = vpack.c.bf16 %v4610, %v4594
        %v5763 = vpack.c.bf16 %v4611, %v4595
        %v5764 = vpack.c.bf16 %v4628, %v4612
        %v5765 = vpack.c.bf16 %v4629, %v4613
        %v5766 = vpack.c.bf16 %v4630, %v4614
        %v5767 = vpack.c.bf16 %v4631, %v4615
        %v5768 = vpack.c.bf16 %v4632, %v4616
        %v5769 = vpack.c.bf16 %v4633, %v4617
        %v5770 = vpack.c.bf16 %v4634, %v4618
        %v5771 = vpack.c.bf16 %v4635, %v4619
        %v5772 = vpack.c.bf16 %v4636, %v4620
        %v5773 = vpack.c.bf16 %v4637, %v4621
        %v5774 = vpack.c.bf16 %v4638, %v4622
        %v5775 = vpack.c.bf16 %v4639, %v4623
        %v5776 = vpack.c.bf16 %v4640, %v4624
        %v5777 = vpack.c.bf16 %v4641, %v4625
        %v5778 = vpack.c.bf16 %v4642, %v4626
        %v5779 = vpack.c.bf16 %v4643, %v4627
        %v5780 = vpack.c.bf16 %v4660, %v4644
        %v5781 = vpack.c.bf16 %v4661, %v4645
        %v5782 = vpack.c.bf16 %v4662, %v4646
        %v5783 = vpack.c.bf16 %v4663, %v4647
        %v5784 = vpack.c.bf16 %v4664, %v4648
        %v5785 = vpack.c.bf16 %v4665, %v4649
        %v5786 = vpack.c.bf16 %v4666, %v4650
        %v5787 = vpack.c.bf16 %v4667, %v4651
        %v5788 = vpack.c.bf16 %v4668, %v4652
        %v5789 = vpack.c.bf16 %v4669, %v4653
        %v5790 = vpack.c.bf16 %v4670, %v4654
        %v5791 = vpack.c.bf16 %v4671, %v4655
        %v5792 = vpack.c.bf16 %v4672, %v4656
        %v5793 = vpack.c.bf16 %v4673, %v4657
        %v5794 = vpack.c.bf16 %v4674, %v4658
        %v5795 = vpack.c.bf16 %v4675, %v4659
        %v5796 = vpack.c.bf16 %v4692, %v4676
        %v5797 = vpack.c.bf16 %v4693, %v4677
        %v5798 = vpack.c.bf16 %v4694, %v4678
        %v5799 = vpack.c.bf16 %v4695, %v4679
        %v5800 = vpack.c.bf16 %v4696, %v4680
        %v5801 = vpack.c.bf16 %v4697, %v4681
        %v5802 = vpack.c.bf16 %v4698, %v4682
        %v5803 = vpack.c.bf16 %v4699, %v4683
        %v5804 = vpack.c.bf16 %v4700, %v4684
        %v5805 = vpack.c.bf16 %v4701, %v4685
        %v5806 = vpack.c.bf16 %v4702, %v4686
        %v5807 = vpack.c.bf16 %v4703, %v4687
        %v5808 = vpack.c.bf16 %v4704, %v4688
        %v5809 = vpack.c.bf16 %v4705, %v4689
        %v5810 = vpack.c.bf16 %v4706, %v4690
        %v5811 = vpack.c.bf16 %v4707, %v4691
        %v5812 = vpack.c.bf16 %v4724, %v4708
        %v5813 = vpack.c.bf16 %v4725, %v4709
        %v5814 = vpack.c.bf16 %v4726, %v4710
        %v5815 = vpack.c.bf16 %v4727, %v4711
        %v5816 = vpack.c.bf16 %v4728, %v4712
        %v5817 = vpack.c.bf16 %v4729, %v4713
        %v5818 = vpack.c.bf16 %v4730, %v4714
        %v5819 = vpack.c.bf16 %v4731, %v4715
        %v5820 = vpack.c.bf16 %v4732, %v4716
        %v5821 = vpack.c.bf16 %v4733, %v4717
        %v5822 = vpack.c.bf16 %v4734, %v4718
        %v5823 = vpack.c.bf16 %v4735, %v4719
        %v5824 = vpack.c.bf16 %v4736, %v4720
        %v5825 = vpack.c.bf16 %v4737, %v4721
        %v5826 = vpack.c.bf16 %v4738, %v4722
        %v5827 = vpack.c.bf16 %v4739, %v4723
        %v5828 = vpack.c.bf16 %v4756, %v4740
        %v5829 = vpack.c.bf16 %v4757, %v4741
        %v5830 = vpack.c.bf16 %v4758, %v4742
        %v5831 = vpack.c.bf16 %v4759, %v4743
        %v5832 = vpack.c.bf16 %v4760, %v4744
        %v5833 = vpack.c.bf16 %v4761, %v4745
        %v5834 = vpack.c.bf16 %v4762, %v4746
        %v5835 = vpack.c.bf16 %v4763, %v4747
        %v5836 = vpack.c.bf16 %v4764, %v4748
        %v5837 = vpack.c.bf16 %v4765, %v4749
        %v5838 = vpack.c.bf16 %v4766, %v4750
        %v5839 = vpack.c.bf16 %v4767, %v4751
        %v5840 = vpack.c.bf16 %v4768, %v4752
        %v5841 = vpack.c.bf16 %v4769, %v4753
        %v5842 = vpack.c.bf16 %v4770, %v4754
        %v5843 = vpack.c.bf16 %v4771, %v4755
        %v5844 = vpack.c.bf16 %v4788, %v4772
        %v5845 = vpack.c.bf16 %v4789, %v4773
        %v5846 = vpack.c.bf16 %v4790, %v4774
        %v5847 = vpack.c.bf16 %v4791, %v4775
        %v5848 = vpack.c.bf16 %v4792, %v4776
        %v5849 = vpack.c.bf16 %v4793, %v4777
        %v5850 = vpack.c.bf16 %v4794, %v4778
        %v5851 = vpack.c.bf16 %v4795, %v4779
        %v5852 = vpack.c.bf16 %v4796, %v4780
        %v5853 = vpack.c.bf16 %v4797, %v4781
        %v5854 = vpack.c.bf16 %v4798, %v4782
        %v5855 = vpack.c.bf16 %v4799, %v4783
        %v5856 = vpack.c.bf16 %v4800, %v4784
        %v5857 = vpack.c.bf16 %v4801, %v4785
        %v5858 = vpack.c.bf16 %v4802, %v4786
        %v5859 = vpack.c.bf16 %v4803, %v4787
        %v5860 = vpack.c.bf16 %v4820, %v4804
        %v5861 = vpack.c.bf16 %v4821, %v4805
        %v5862 = vpack.c.bf16 %v4822, %v4806
        %v5863 = vpack.c.bf16 %v4823, %v4807
        %v5864 = vpack.c.bf16 %v4824, %v4808
        %v5865 = vpack.c.bf16 %v4825, %v4809
        %v5866 = vpack.c.bf16 %v4826, %v4810
        %v5867 = vpack.c.bf16 %v4827, %v4811
        %v5868 = vpack.c.bf16 %v4828, %v4812
        %v5869 = vpack.c.bf16 %v4829, %v4813
        %v5870 = vpack.c.bf16 %v4830, %v4814
        %v5871 = vpack.c.bf16 %v4831, %v4815
        %v5872 = vpack.c.bf16 %v4832, %v4816
        %v5873 = vpack.c.bf16 %v4833, %v4817
        %v5874 = vpack.c.bf16 %v4834, %v4818
        %v5875 = vpack.c.bf16 %v4835, %v4819
        %v5876 = vpack.c.bf16 %v4852, %v4836
        %v5877 = vpack.c.bf16 %v4853, %v4837
        %v5878 = vpack.c.bf16 %v4854, %v4838
        %v5879 = vpack.c.bf16 %v4855, %v4839
        %v5880 = vpack.c.bf16 %v4856, %v4840
        %v5881 = vpack.c.bf16 %v4857, %v4841
        %v5882 = vpack.c.bf16 %v4858, %v4842
        %v5883 = vpack.c.bf16 %v4859, %v4843
        %v5884 = vpack.c.bf16 %v4860, %v4844
        %v5885 = vpack.c.bf16 %v4861, %v4845
        %v5886 = vpack.c.bf16 %v4862, %v4846
        %v5887 = vpack.c.bf16 %v4863, %v4847
        %v5888 = vpack.c.bf16 %v4864, %v4848
        %v5889 = vpack.c.bf16 %v4865, %v4849
        %v5890 = vpack.c.bf16 %v4866, %v4850
        %v5891 = vpack.c.bf16 %v4867, %v4851
        %v5892 = vpack.c.bf16 %v4884, %v4868
        %v5893 = vpack.c.bf16 %v4885, %v4869
        %v5894 = vpack.c.bf16 %v4886, %v4870
        %v5895 = vpack.c.bf16 %v4887, %v4871
        %v5896 = vpack.c.bf16 %v4888, %v4872
        %v5897 = vpack.c.bf16 %v4889, %v4873
        %v5898 = vpack.c.bf16 %v4890, %v4874
        %v5899 = vpack.c.bf16 %v4891, %v4875
        %v5900 = vpack.c.bf16 %v4892, %v4876
        %v5901 = vpack.c.bf16 %v4893, %v4877
        %v5902 = vpack.c.bf16 %v4894, %v4878
        %v5903 = vpack.c.bf16 %v4895, %v4879
        %v5904 = vpack.c.bf16 %v4896, %v4880
        %v5905 = vpack.c.bf16 %v4897, %v4881
        %v5906 = vpack.c.bf16 %v4898, %v4882
        %v5907 = vpack.c.bf16 %v4899, %v4883
        %v5908 = vpack.c.bf16 %v4916, %v4900
        %v5909 = vpack.c.bf16 %v4917, %v4901
        %v5910 = vpack.c.bf16 %v4918, %v4902
        %v5911 = vpack.c.bf16 %v4919, %v4903
        %v5912 = vpack.c.bf16 %v4920, %v4904
        %v5913 = vpack.c.bf16 %v4921, %v4905
        %v5914 = vpack.c.bf16 %v4922, %v4906
        %v5915 = vpack.c.bf16 %v4923, %v4907
        %v5916 = vpack.c.bf16 %v4924, %v4908
        %v5917 = vpack.c.bf16 %v4925, %v4909
        %v5918 = vpack.c.bf16 %v4926, %v4910
        %v5919 = vpack.c.bf16 %v4927, %v4911
        %v5920 = vpack.c.bf16 %v4928, %v4912
        %v5921 = vpack.c.bf16 %v4929, %v4913
        %v5922 = vpack.c.bf16 %v4930, %v4914
        %v5923 = vpack.c.bf16 %v4931, %v4915
        %v5924 = vpack.c.bf16 %v4948, %v4932
        %v5925 = vpack.c.bf16 %v4949, %v4933
        %v5926 = vpack.c.bf16 %v4950, %v4934
        %v5927 = vpack.c.bf16 %v4951, %v4935
        %v5928 = vpack.c.bf16 %v4952, %v4936
        %v5929 = vpack.c.bf16 %v4953, %v4937
        %v5930 = vpack.c.bf16 %v4954, %v4938
        %v5931 = vpack.c.bf16 %v4955, %v4939
        %v5932 = vpack.c.bf16 %v4956, %v4940
        %v5933 = vpack.c.bf16 %v4957, %v4941
        %v5934 = vpack.c.bf16 %v4958, %v4942
        %v5935 = vpack.c.bf16 %v4959, %v4943
        %v5936 = vpack.c.bf16 %v4960, %v4944
        %v5937 = vpack.c.bf16 %v4961, %v4945
        %v5938 = vpack.c.bf16 %v4962, %v4946
        %v5939 = vpack.c.bf16 %v4963, %v4947
        %v5940 = vpack.c.bf16 %v4980, %v4964
        %v5941 = vpack.c.bf16 %v4981, %v4965
        %v5942 = vpack.c.bf16 %v4982, %v4966
        %v5943 = vpack.c.bf16 %v4983, %v4967
        %v5944 = vpack.c.bf16 %v4984, %v4968
        %v5945 = vpack.c.bf16 %v4985, %v4969
        %v5946 = vpack.c.bf16 %v4986, %v4970
        %v5947 = vpack.c.bf16 %v4987, %v4971
        %v5948 = vpack.c.bf16 %v4988, %v4972
        %v5949 = vpack.c.bf16 %v4989, %v4973
        %v5950 = vpack.c.bf16 %v4990, %v4974
        %v5951 = vpack.c.bf16 %v4991, %v4975
        %v5952 = vpack.c.bf16 %v4992, %v4976
        %v5953 = vpack.c.bf16 %v4993, %v4977
        %v5954 = vpack.c.bf16 %v4994, %v4978
        %v5955 = vpack.c.bf16 %v4995, %v4979
        %v5956 = vpack.c.bf16 %v5012, %v4996
        %v5957 = vpack.c.bf16 %v5013, %v4997
        %v5958 = vpack.c.bf16 %v5014, %v4998
        %v5959 = vpack.c.bf16 %v5015, %v4999
        %v5960 = vpack.c.bf16 %v5016, %v5000
        %v5961 = vpack.c.bf16 %v5017, %v5001
        %v5962 = vpack.c.bf16 %v5018, %v5002
        %v5963 = vpack.c.bf16 %v5019, %v5003
        %v5964 = vpack.c.bf16 %v5020, %v5004
        %v5965 = vpack.c.bf16 %v5021, %v5005
        %v5966 = vpack.c.bf16 %v5022, %v5006
        %v5967 = vpack.c.bf16 %v5023, %v5007
        %v5968 = vpack.c.bf16 %v5024, %v5008
        %v5969 = vpack.c.bf16 %v5025, %v5009
        %v5970 = vpack.c.bf16 %v5026, %v5010
        %v5971 = vpack.c.bf16 %v5027, %v5011
        %v5972 = vpack.c.bf16 %v5044, %v5028
        %v5973 = vpack.c.bf16 %v5045, %v5029
        %v5974 = vpack.c.bf16 %v5046, %v5030
        %v5975 = vpack.c.bf16 %v5047, %v5031
        %v5976 = vpack.c.bf16 %v5048, %v5032
        %v5977 = vpack.c.bf16 %v5049, %v5033
        %v5978 = vpack.c.bf16 %v5050, %v5034
        %v5979 = vpack.c.bf16 %v5051, %v5035
        %v5980 = vpack.c.bf16 %v5052, %v5036
        %v5981 = vpack.c.bf16 %v5053, %v5037
        %v5982 = vpack.c.bf16 %v5054, %v5038
        %v5983 = vpack.c.bf16 %v5055, %v5039
        %v5984 = vpack.c.bf16 %v5056, %v5040
        %v5985 = vpack.c.bf16 %v5057, %v5041
        %v5986 = vpack.c.bf16 %v5058, %v5042
        %v5987 = vpack.c.bf16 %v5059, %v5043
        %v5988 = vpack.c.bf16 %v5076, %v5060
        %v5989 = vpack.c.bf16 %v5077, %v5061
        %v5990 = vpack.c.bf16 %v5078, %v5062
        %v5991 = vpack.c.bf16 %v5079, %v5063
        %v5992 = vpack.c.bf16 %v5080, %v5064
        %v5993 = vpack.c.bf16 %v5081, %v5065
        %v5994 = vpack.c.bf16 %v5082, %v5066
        %v5995 = vpack.c.bf16 %v5083, %v5067
        %v5996 = vpack.c.bf16 %v5084, %v5068
        %v5997 = vpack.c.bf16 %v5085, %v5069
        %v5998 = vpack.c.bf16 %v5086, %v5070
        %v5999 = vpack.c.bf16 %v5087, %v5071
        %v6000 = vpack.c.bf16 %v5088, %v5072
        %v6001 = vpack.c.bf16 %v5089, %v5073
        %v6002 = vpack.c.bf16 %v5090, %v5074
        %v6003 = vpack.c.bf16 %v5091, %v5075
        %v6004 = vpack.c.bf16 %v5108, %v5092
        %v6005 = vpack.c.bf16 %v5109, %v5093
        %v6006 = vpack.c.bf16 %v5110, %v5094
        %v6007 = vpack.c.bf16 %v5111, %v5095
        %v6008 = vpack.c.bf16 %v5112, %v5096
        %v6009 = vpack.c.bf16 %v5113, %v5097
        %v6010 = vpack.c.bf16 %v5114, %v5098
        %v6011 = vpack.c.bf16 %v5115, %v5099
        %v6012 = vpack.c.bf16 %v5116, %v5100
        %v6013 = vpack.c.bf16 %v5117, %v5101
        %v6014 = vpack.c.bf16 %v5118, %v5102
        %v6015 = vpack.c.bf16 %v5119, %v5103
        %v6016 = vpack.c.bf16 %v5120, %v5104
        %v6017 = vpack.c.bf16 %v5121, %v5105
        %v6018 = vpack.c.bf16 %v5122, %v5106
        %v6019 = vpack.c.bf16 %v5123, %v5107
        %v6020 = vpack.c.bf16 %v5140, %v5124
        %v6021 = vpack.c.bf16 %v5141, %v5125
        %v6022 = vpack.c.bf16 %v5142, %v5126
        %v6023 = vpack.c.bf16 %v5143, %v5127
        %v6024 = vpack.c.bf16 %v5144, %v5128
        %v6025 = vpack.c.bf16 %v5145, %v5129
        %v6026 = vpack.c.bf16 %v5146, %v5130
        %v6027 = vpack.c.bf16 %v5147, %v5131
        %v6028 = vpack.c.bf16 %v5148, %v5132
        %v6029 = vpack.c.bf16 %v5149, %v5133
        %v6030 = vpack.c.bf16 %v5150, %v5134
        %v6031 = vpack.c.bf16 %v5151, %v5135
        %v6032 = vpack.c.bf16 %v5152, %v5136
        %v6033 = vpack.c.bf16 %v5153, %v5137
        %v6034 = vpack.c.bf16 %v5154, %v5138
        %v6035 = vpack.c.bf16 %v5155, %v5139
        %v6036 = vpack.c.bf16 %v5172, %v5156
        %v6037 = vpack.c.bf16 %v5173, %v5157
        %v6038 = vpack.c.bf16 %v5174, %v5158
        %v6039 = vpack.c.bf16 %v5175, %v5159
        %v6040 = vpack.c.bf16 %v5176, %v5160
        %v6041 = vpack.c.bf16 %v5177, %v5161
        %v6042 = vpack.c.bf16 %v5178, %v5162
        %v6043 = vpack.c.bf16 %v5179, %v5163
        %v6044 = vpack.c.bf16 %v5180, %v5164
        %v6045 = vpack.c.bf16 %v5181, %v5165
        %v6046 = vpack.c.bf16 %v5182, %v5166
        %v6047 = vpack.c.bf16 %v5183, %v5167
        %v6048 = vpack.c.bf16 %v5184, %v5168
        %v6049 = vpack.c.bf16 %v5185, %v5169
        %v6050 = vpack.c.bf16 %v5186, %v5170
        %v6051 = vpack.c.bf16 %v5187, %v5171
        %v6052 = vpack.c.bf16 %v5204, %v5188
        %v6053 = vpack.c.bf16 %v5205, %v5189
        %v6054 = vpack.c.bf16 %v5206, %v5190
        %v6055 = vpack.c.bf16 %v5207, %v5191
        %v6056 = vpack.c.bf16 %v5208, %v5192
        %v6057 = vpack.c.bf16 %v5209, %v5193
        %v6058 = vpack.c.bf16 %v5210, %v5194
        %v6059 = vpack.c.bf16 %v5211, %v5195
        %v6060 = vpack.c.bf16 %v5212, %v5196
        %v6061 = vpack.c.bf16 %v5213, %v5197
        %v6062 = vpack.c.bf16 %v5214, %v5198
        %v6063 = vpack.c.bf16 %v5215, %v5199
        %v6064 = vpack.c.bf16 %v5216, %v5200
        %v6065 = vpack.c.bf16 %v5217, %v5201
        %v6066 = vpack.c.bf16 %v5218, %v5202
        %v6067 = vpack.c.bf16 %v5219, %v5203
        %v6068 = vpack.c.bf16 %v5236, %v5220
        %v6069 = vpack.c.bf16 %v5237, %v5221
        %v6070 = vpack.c.bf16 %v5238, %v5222
        %v6071 = vpack.c.bf16 %v5239, %v5223
        %v6072 = vpack.c.bf16 %v5240, %v5224
        %v6073 = vpack.c.bf16 %v5241, %v5225
        %v6074 = vpack.c.bf16 %v5242, %v5226
        %v6075 = vpack.c.bf16 %v5243, %v5227
        %v6076 = vpack.c.bf16 %v5244, %v5228
        %v6077 = vpack.c.bf16 %v5245, %v5229
        %v6078 = vpack.c.bf16 %v5246, %v5230
        %v6079 = vpack.c.bf16 %v5247, %v5231
        %v6080 = vpack.c.bf16 %v5248, %v5232
        %v6081 = vpack.c.bf16 %v5249, %v5233
        %v6082 = vpack.c.bf16 %v5250, %v5234
        %v6083 = vpack.c.bf16 %v5251, %v5235
        %v6084 = vpack.c.bf16 %v5268, %v5252
        %v6085 = vpack.c.bf16 %v5269, %v5253
        %v6086 = vpack.c.bf16 %v5270, %v5254
        %v6087 = vpack.c.bf16 %v5271, %v5255
        %v6088 = vpack.c.bf16 %v5272, %v5256
        %v6089 = vpack.c.bf16 %v5273, %v5257
        %v6090 = vpack.c.bf16 %v5274, %v5258
        %v6091 = vpack.c.bf16 %v5275, %v5259
        %v6092 = vpack.c.bf16 %v5276, %v5260
        %v6093 = vpack.c.bf16 %v5277, %v5261
        %v6094 = vpack.c.bf16 %v5278, %v5262
        %v6095 = vpack.c.bf16 %v5279, %v5263
        %v6096 = vpack.c.bf16 %v5280, %v5264
        %v6097 = vpack.c.bf16 %v5281, %v5265
        %v6098 = vpack.c.bf16 %v5282, %v5266
        %v6099 = vpack.c.bf16 %v5283, %v5267
        %v6100 = vpack.c.bf16 %v5300, %v5284
        %v6101 = vpack.c.bf16 %v5301, %v5285
        %v6102 = vpack.c.bf16 %v5302, %v5286
        %v6103 = vpack.c.bf16 %v5303, %v5287
        %v6104 = vpack.c.bf16 %v5304, %v5288
        %v6105 = vpack.c.bf16 %v5305, %v5289
        %v6106 = vpack.c.bf16 %v5306, %v5290
        %v6107 = vpack.c.bf16 %v5307, %v5291
        %v6108 = vpack.c.bf16 %v5308, %v5292
        %v6109 = vpack.c.bf16 %v5309, %v5293
        %v6110 = vpack.c.bf16 %v5310, %v5294
        %v6111 = vpack.c.bf16 %v5311, %v5295
        %v6112 = vpack.c.bf16 %v5312, %v5296
        %v6113 = vpack.c.bf16 %v5313, %v5297
        %v6114 = vpack.c.bf16 %v5314, %v5298
        %v6115 = vpack.c.bf16 %v5315, %v5299
        %v6116 = vpack.c.bf16 %v5332, %v5316
        %v6117 = vpack.c.bf16 %v5333, %v5317
        %v6118 = vpack.c.bf16 %v5334, %v5318
        %v6119 = vpack.c.bf16 %v5335, %v5319
        %v6120 = vpack.c.bf16 %v5336, %v5320
        %v6121 = vpack.c.bf16 %v5337, %v5321
        %v6122 = vpack.c.bf16 %v5338, %v5322
        %v6123 = vpack.c.bf16 %v5339, %v5323
        %v6124 = vpack.c.bf16 %v5340, %v5324
        %v6125 = vpack.c.bf16 %v5341, %v5325
        %v6126 = vpack.c.bf16 %v5342, %v5326
        %v6127 = vpack.c.bf16 %v5343, %v5327
        %v6128 = vpack.c.bf16 %v5344, %v5328
        %v6129 = vpack.c.bf16 %v5345, %v5329
        %v6130 = vpack.c.bf16 %v5346, %v5330
        %v6131 = vpack.c.bf16 %v5347, %v5331
        %v6132 = vpack.c.bf16 %v5364, %v5348
        %v6133 = vpack.c.bf16 %v5365, %v5349
        %v6134 = vpack.c.bf16 %v5366, %v5350
        %v6135 = vpack.c.bf16 %v5367, %v5351
        %v6136 = vpack.c.bf16 %v5368, %v5352
        %v6137 = vpack.c.bf16 %v5369, %v5353
        %v6138 = vpack.c.bf16 %v5370, %v5354
        %v6139 = vpack.c.bf16 %v5371, %v5355
        %v6140 = vpack.c.bf16 %v5372, %v5356
        %v6141 = vpack.c.bf16 %v5373, %v5357
        %v6142 = vpack.c.bf16 %v5374, %v5358
        %v6143 = vpack.c.bf16 %v5375, %v5359
        %v6144 = vpack.c.bf16 %v5376, %v5360
        %v6145 = vpack.c.bf16 %v5377, %v5361
        %v6146 = vpack.c.bf16 %v5378, %v5362
        %v6147 = vpack.c.bf16 %v5379, %v5363
        %v6148 = vpack.c.bf16 %v5396, %v5380
        %v6149 = vpack.c.bf16 %v5397, %v5381
        %v6150 = vpack.c.bf16 %v5398, %v5382
        %v6151 = vpack.c.bf16 %v5399, %v5383
        %v6152 = vpack.c.bf16 %v5400, %v5384
        %v6153 = vpack.c.bf16 %v5401, %v5385
        %v6154 = vpack.c.bf16 %v5402, %v5386
        %v6155 = vpack.c.bf16 %v5403, %v5387
        %v6156 = vpack.c.bf16 %v5404, %v5388
        %v6157 = vpack.c.bf16 %v5405, %v5389
        %v6158 = vpack.c.bf16 %v5406, %v5390
        %v6159 = vpack.c.bf16 %v5407, %v5391
        %v6160 = vpack.c.bf16 %v5408, %v5392
        %v6161 = vpack.c.bf16 %v5409, %v5393
        %v6162 = vpack.c.bf16 %v5410, %v5394
        %v6163 = vpack.c.bf16 %v5411, %v5395
        %v6164 = vpack.c.bf16 %v5428, %v5412
        %v6165 = vpack.c.bf16 %v5429, %v5413
        %v6166 = vpack.c.bf16 %v5430, %v5414
        %v6167 = vpack.c.bf16 %v5431, %v5415
        %v6168 = vpack.c.bf16 %v5432, %v5416
        %v6169 = vpack.c.bf16 %v5433, %v5417
        %v6170 = vpack.c.bf16 %v5434, %v5418
        %v6171 = vpack.c.bf16 %v5435, %v5419
        %v6172 = vpack.c.bf16 %v5436, %v5420
        %v6173 = vpack.c.bf16 %v5437, %v5421
        %v6174 = vpack.c.bf16 %v5438, %v5422
        %v6175 = vpack.c.bf16 %v5439, %v5423
        %v6176 = vpack.c.bf16 %v5440, %v5424
        %v6177 = vpack.c.bf16 %v5441, %v5425
        %v6178 = vpack.c.bf16 %v5442, %v5426
        %v6179 = vpack.c.bf16 %v5443, %v5427
        %v6180 = vpack.c.bf16 %v5460, %v5444
        %v6181 = vpack.c.bf16 %v5461, %v5445
        %v6182 = vpack.c.bf16 %v5462, %v5446
        %v6183 = vpack.c.bf16 %v5463, %v5447
        %v6184 = vpack.c.bf16 %v5464, %v5448
        %v6185 = vpack.c.bf16 %v5465, %v5449
        %v6186 = vpack.c.bf16 %v5466, %v5450
        %v6187 = vpack.c.bf16 %v5467, %v5451
        %v6188 = vpack.c.bf16 %v5468, %v5452
        %v6189 = vpack.c.bf16 %v5469, %v5453
        %v6190 = vpack.c.bf16 %v5470, %v5454
        %v6191 = vpack.c.bf16 %v5471, %v5455
        %v6192 = vpack.c.bf16 %v5472, %v5456
        %v6193 = vpack.c.bf16 %v5473, %v5457
        %v6194 = vpack.c.bf16 %v5474, %v5458
        %v6195 = vpack.c.bf16 %v5475, %v5459
        %v6196 = vpack.c.bf16 %v5492, %v5476
        %v6197 = vpack.c.bf16 %v5493, %v5477
        %v6198 = vpack.c.bf16 %v5494, %v5478
        %v6199 = vpack.c.bf16 %v5495, %v5479
        %v6200 = vpack.c.bf16 %v5496, %v5480
        %v6201 = vpack.c.bf16 %v5497, %v5481
        %v6202 = vpack.c.bf16 %v5498, %v5482
        %v6203 = vpack.c.bf16 %v5499, %v5483
        %v6204 = vpack.c.bf16 %v5500, %v5484
        %v6205 = vpack.c.bf16 %v5501, %v5485
        %v6206 = vpack.c.bf16 %v5502, %v5486
        %v6207 = vpack.c.bf16 %v5503, %v5487
        %v6208 = vpack.c.bf16 %v5504, %v5488
        %v6209 = vpack.c.bf16 %v5505, %v5489
        %v6210 = vpack.c.bf16 %v5506, %v5490
        %v6211 = vpack.c.bf16 %v5507, %v5491
        %v6212 = vpack.c.bf16 %v5524, %v5508
        %v6213 = vpack.c.bf16 %v5525, %v5509
        %v6214 = vpack.c.bf16 %v5526, %v5510
        %v6215 = vpack.c.bf16 %v5527, %v5511
        %v6216 = vpack.c.bf16 %v5528, %v5512
        %v6217 = vpack.c.bf16 %v5529, %v5513
        %v6218 = vpack.c.bf16 %v5530, %v5514
        %v6219 = vpack.c.bf16 %v5531, %v5515
        %v6220 = vpack.c.bf16 %v5532, %v5516
        %v6221 = vpack.c.bf16 %v5533, %v5517
        %v6222 = vpack.c.bf16 %v5534, %v5518
        %v6223 = vpack.c.bf16 %v5535, %v5519
        %v6224 = vpack.c.bf16 %v5536, %v5520
        %v6225 = vpack.c.bf16 %v5537, %v5521
        %v6226 = vpack.c.bf16 %v5538, %v5522
        %v6227 = vpack.c.bf16 %v5539, %v5523
        %v6228 = vpack.c.bf16 %v5556, %v5540
        %v6229 = vpack.c.bf16 %v5557, %v5541
        %v6230 = vpack.c.bf16 %v5558, %v5542
        %v6231 = vpack.c.bf16 %v5559, %v5543
        %v6232 = vpack.c.bf16 %v5560, %v5544
        %v6233 = vpack.c.bf16 %v5561, %v5545
        %v6234 = vpack.c.bf16 %v5562, %v5546
        %v6235 = vpack.c.bf16 %v5563, %v5547
        %v6236 = vpack.c.bf16 %v5564, %v5548
        %v6237 = vpack.c.bf16 %v5565, %v5549
        %v6238 = vpack.c.bf16 %v5566, %v5550
        %v6239 = vpack.c.bf16 %v5567, %v5551
        %v6240 = vpack.c.bf16 %v5568, %v5552
        %v6241 = vpack.c.bf16 %v5569, %v5553
        %v6242 = vpack.c.bf16 %v5570, %v5554
        %v6243 = vpack.c.bf16 %v5571, %v5555
        %v6244 = vpack.c.bf16 %v5588, %v5572
        %v6245 = vpack.c.bf16 %v5589, %v5573
        %v6246 = vpack.c.bf16 %v5590, %v5574
        %v6247 = vpack.c.bf16 %v5591, %v5575
        %v6248 = vpack.c.bf16 %v5592, %v5576
        %v6249 = vpack.c.bf16 %v5593, %v5577
        %v6250 = vpack.c.bf16 %v5594, %v5578
        %v6251 = vpack.c.bf16 %v5595, %v5579
        %v6252 = vpack.c.bf16 %v5596, %v5580
        %v6253 = vpack.c.bf16 %v5597, %v5581
        %v6254 = vpack.c.bf16 %v5598, %v5582
        %v6255 = vpack.c.bf16 %v5599, %v5583
        %v6256 = vpack.c.bf16 %v5600, %v5584
        %v6257 = vpack.c.bf16 %v5601, %v5585
        %v6258 = vpack.c.bf16 %v5602, %v5586
        %v6259 = vpack.c.bf16 %v5603, %v5587
        %v6276 = vunpack.c.l.b16 %v5732
        %v6277 = vunpack.c.h.b16 %v5732
        %v6278 = vunpack.c.l.b16 %v5733
        %v6279 = vunpack.c.h.b16 %v5733
        %v6280 = vunpack.c.l.b16 %v5734
        %v6281 = vunpack.c.h.b16 %v5734
        %v6282 = vunpack.c.l.b16 %v5735
        %v6283 = vunpack.c.h.b16 %v5735
        %v6284 = vunpack.c.l.b16 %v5736
        %v6285 = vunpack.c.h.b16 %v5736
        %v6286 = vunpack.c.l.b16 %v5737
        %v6287 = vunpack.c.h.b16 %v5737
        %v6288 = vunpack.c.l.b16 %v5738
        %v6289 = vunpack.c.h.b16 %v5738
        %v6290 = vunpack.c.l.b16 %v5739
        %v6291 = vunpack.c.h.b16 %v5739
        %v6292 = vunpack.c.l.b16 %v5740
        %v6293 = vunpack.c.h.b16 %v5740
        %v6294 = vunpack.c.l.b16 %v5741
        %v6295 = vunpack.c.h.b16 %v5741
        %v6296 = vunpack.c.l.b16 %v5742
        %v6297 = vunpack.c.h.b16 %v5742
        %v6298 = vunpack.c.l.b16 %v5743
        %v6299 = vunpack.c.h.b16 %v5743
        %v6300 = vunpack.c.l.b16 %v5744
        %v6301 = vunpack.c.h.b16 %v5744
        %v6302 = vunpack.c.l.b16 %v5745
        %v6303 = vunpack.c.h.b16 %v5745
        %v6304 = vunpack.c.l.b16 %v5746
        %v6305 = vunpack.c.h.b16 %v5746
        %v6306 = vunpack.c.l.b16 %v5747
        %v6307 = vunpack.c.h.b16 %v5747
        %v6308 = vpack.c.b16 %v6280, %v6276
        %v6309 = vpack.c.b16 %v6281, %v6277
        %v6310 = vpack.c.b16 %v6282, %v6278
        %v6311 = vpack.c.b16 %v6283, %v6279
        %v6312 = vpack.c.b16 %v6288, %v6284
        %v6313 = vpack.c.b16 %v6289, %v6285
        %v6314 = vpack.c.b16 %v6290, %v6286
        %v6315 = vpack.c.b16 %v6291, %v6287
        %v6316 = vpack.c.b16 %v6296, %v6292
        %v6317 = vpack.c.b16 %v6297, %v6293
        %v6318 = vpack.c.b16 %v6298, %v6294
        %v6319 = vpack.c.b16 %v6299, %v6295
        %v6320 = vpack.c.b16 %v6304, %v6300
        %v6321 = vpack.c.b16 %v6305, %v6301
        %v6322 = vpack.c.b16 %v6306, %v6302
        %v6323 = vpack.c.b16 %v6307, %v6303
        %6340 = vmatprep.subr.bf16.mxu0 %v5749
        %6341 = vmatpush1.bf16.msra.mxu0 %v5748
        %6342 = vmatprep.subr.bf16.mxu0 %v5765
        %6343 = vmatpush1.bf16.msra.mxu0 %v5764
        %6344 = vmatprep.subr.bf16.mxu0 %v5781
        %6345 = vmatpush1.bf16.msra.mxu0 %v5780
        %6346 = vmatprep.subr.bf16.mxu0 %v5797
        %6347 = vmatpush1.bf16.msra.mxu0 %v5796
        %6348 = vmatprep.subr.bf16.mxu0 %v5813
        %6349 = vmatpush1.bf16.msra.mxu0 %v5812
        %6350 = vmatprep.subr.bf16.mxu0 %v5829
        %6351 = vmatpush1.bf16.msra.mxu0 %v5828
        %6352 = vmatprep.subr.bf16.mxu0 %v5845
        %6353 = vmatpush1.bf16.msra.mxu0 %v5844
        %6354 = vmatprep.subr.bf16.mxu0 %v5861
        %6355 = vmatpush1.bf16.msra.mxu0 %v5860
        %6356 = vmatprep.subr.bf16.mxu0 %v5877
        %6357 = vmatpush1.bf16.msra.mxu0 %v5876
        %6358 = vmatprep.subr.bf16.mxu0 %v5893
        %6359 = vmatpush1.bf16.msra.mxu0 %v5892
        %6360 = vmatprep.subr.bf16.mxu0 %v5909
        %6361 = vmatpush1.bf16.msra.mxu0 %v5908
        %6362 = vmatprep.subr.bf16.mxu0 %v5925
        %6363 = vmatpush1.bf16.msra.mxu0 %v5924
        %6364 = vmatprep.subr.bf16.mxu0 %v5941
        %6365 = vmatpush1.bf16.msra.mxu0 %v5940
        %6366 = vmatprep.subr.bf16.mxu0 %v5957
        %6367 = vmatpush1.bf16.msra.mxu0 %v5956
        %6368 = vmatprep.subr.bf16.mxu0 %v5973
        %6369 = vmatpush1.bf16.msra.mxu0 %v5972
        %6370 = vmatprep.subr.bf16.mxu0 %v5989
        %6371 = vmatpush1.bf16.msra.mxu0 %v5988
        %6372 = vmatprep.mubr.bf16.mxu0 %v6309
        %6373 = vmatmul.mubr.bf16.gmra.mrb[0].mxu0 %v6308
        %v6374 = vpop.f32.mrb[0].mxu0
        %v6375 = vadd.f32 0.0, %v6374
        %v6376 = vpop.f32.mrb[0].mxu0
        %v6377 = vadd.f32 0.0, %v6376
        %v6378 = vpop.f32.mrb[0].mxu0
        %v6379 = vadd.f32 0.0, %v6378
        %v6380 = vpop.f32.mrb[0].mxu0
        %v6381 = vadd.f32 0.0, %v6380
        %6382 = vmatprep.mubr.bf16.mxu0 %v6313
        %6383 = vmatmul.mubr.bf16.gmra.mrb[0].mxu0 %v6312
        %v6384 = vpop.f32.mrb[0].mxu0
        %v6385 = vadd.f32 0.0, %v6384
        %v6386 = vpop.f32.mrb[0].mxu0
        %v6387 = vadd.f32 0.0, %v6386
        %v6388 = vpop.f32.mrb[0].mxu0
        %v6389 = vadd.f32 0.0, %v6388
        %v6390 = vpop.f32.mrb[0].mxu0
        %v6391 = vadd.f32 0.0, %v6390
        %6392 = vmatprep.mubr.bf16.mxu0 %v6317
        %6393 = vmatmul.mubr.bf16.gmra.mrb[0].mxu0 %v6316
        %v6394 = vpop.f32.mrb[0].mxu0
        %v6395 = vadd.f32 0.0, %v6394
        %v6396 = vpop.f32.mrb[0].mxu0
        %v6397 = vadd.f32 0.0, %v6396
        %v6398 = vpop.f32.mrb[0].mxu0
        %v6399 = vadd.f32 0.0, %v6398
        %v6400 = vpop.f32.mrb[0].mxu0
        %v6401 = vadd.f32 0.0, %v6400
        %6402 = vmatprep.mubr.bf16.mxu0 %v6321
        %6403 = vmatmul.mubr.bf16.gmra.mrb[0].mxu0 %v6320
        %v6404 = vpop.f32.mrb[0].mxu0
        %v6405 = vadd.f32 0.0, %v6404
        %v6406 = vpop.f32.mrb[0].mxu0
        %v6407 = vadd.f32 0.0, %v6406
        %v6408 = vpop.f32.mrb[0].mxu0
        %v6409 = vadd.f32 0.0, %v6408
        %v6410 = vpop.f32.mrb[0].mxu0
        %v6411 = vadd.f32 0.0, %v6410
        %6412 = vdwg.mxu0
        %6413 = vmatprep.subr.bf16.mxu0 %v6005
        %6414 = vmatpush1.bf16.msra.mxu0 %v6004
        %6415 = vmatprep.subr.bf16.mxu0 %v6021
        %6416 = vmatpush1.bf16.msra.mxu0 %v6020
        %6417 = vmatprep.subr.bf16.mxu0 %v6037
        %6418 = vmatpush1.bf16.msra.mxu0 %v6036
        %6419 = vmatprep.subr.bf16.mxu0 %v6053
        %6420 = vmatpush1.bf16.msra.mxu0 %v6052
        %6421 = vmatprep.subr.bf16.mxu0 %v6069
        %6422 = vmatpush1.bf16.msra.mxu0 %v6068
        %6423 = vmatprep.subr.bf16.mxu0 %v6085
        %6424 = vmatpush1.bf16.msra.mxu0 %v6084
        %6425 = vmatprep.subr.bf16.mxu0 %v6101
        %6426 = vmatpush1.bf16.msra.mxu0 %v6100
        %6427 = vmatprep.subr.bf16.mxu0 %v6117
        %6428 = vmatpush1.bf16.msra.mxu0 %v6116
        %6429 = vmatprep.subr.bf16.mxu0 %v6133
        %6430 = vmatpush1.bf16.msra.mxu0 %v6132
        %6431 = vmatprep.subr.bf16.mxu0 %v6149
        %6432 = vmatpush1.bf16.msra.mxu0 %v6148
        %6433 = vmatprep.subr.bf16.mxu0 %v6165
        %6434 = vmatpush1.bf16.msra.mxu0 %v6164
        %6435 = vmatprep.subr.bf16.mxu0 %v6181
        %6436 = vmatpush1.bf16.msra.mxu0 %v6180
        %6437 = vmatprep.subr.bf16.mxu0 %v6197
        %6438 = vmatpush1.bf16.msra.mxu0 %v6196
        %6439 = vmatprep.subr.bf16.mxu0 %v6213
        %6440 = vmatpush1.bf16.msra.mxu0 %v6212
        %6441 = vmatprep.subr.bf16.mxu0 %v6229
        %6442 = vmatpush1.bf16.msra.mxu0 %v6228
        %6443 = vmatprep.subr.bf16.mxu0 %v6245
        %6444 = vmatpush1.bf16.msra.mxu0 %v6244
        %6445 = vmatprep.mubr.bf16.mxu0 %v6311
        %6446 = vmatmul.mubr.bf16.gmra.mrb[0].mxu0 %v6310
        %v6447 = vpop.f32.mrb[0].mxu0
        %v6448 = vadd.f32 %v6375, %v6447
        %v6449 = vpop.f32.mrb[0].mxu0
        %v6450 = vadd.f32 %v6377, %v6449
        %v6451 = vpop.f32.mrb[0].mxu0
        %v6452 = vadd.f32 %v6379, %v6451
        %v6453 = vpop.f32.mrb[0].mxu0
        %v6454 = vadd.f32 %v6381, %v6453
        %6455 = vmatprep.mubr.bf16.mxu0 %v6315
        %6456 = vmatmul.mubr.bf16.gmra.mrb[0].mxu0 %v6314
        %v6457 = vpop.f32.mrb[0].mxu0
        %v6458 = vadd.f32 %v6385, %v6457
        %v6459 = vpop.f32.mrb[0].mxu0
        %v6460 = vadd.f32 %v6387, %v6459
        %v6461 = vpop.f32.mrb[0].mxu0
        %v6462 = vadd.f32 %v6389, %v6461
        %v6463 = vpop.f32.mrb[0].mxu0
        %v6464 = vadd.f32 %v6391, %v6463
        %6465 = vmatprep.mubr.bf16.mxu0 %v6319
        %6466 = vmatmul.mubr.bf16.gmra.mrb[0].mxu0 %v6318
        %v6467 = vpop.f32.mrb[0].mxu0
        %v6468 = vadd.f32 %v6395, %v6467
        %v6469 = vpop.f32.mrb[0].mxu0
        %v6470 = vadd.f32 %v6397, %v6469
        %v6471 = vpop.f32.mrb[0].mxu0
        %v6472 = vadd.f32 %v6399, %v6471
        %v6473 = vpop.f32.mrb[0].mxu0
        %v6474 = vadd.f32 %v6401, %v6473
        %6475 = vmatprep.mubr.bf16.mxu0 %v6323
        %6476 = vmatmul.mubr.bf16.gmra.mrb[0].mxu0 %v6322
        %v6477 = vpop.f32.mrb[0].mxu0
        %v6478 = vadd.f32 %v6405, %v6477
        %v6479 = vpop.f32.mrb[0].mxu0
        %v6480 = vadd.f32 %v6407, %v6479
        %v6481 = vpop.f32.mrb[0].mxu0
        %v6482 = vadd.f32 %v6409, %v6481
        %v6483 = vpop.f32.mrb[0].mxu0
        %v6484 = vadd.f32 %v6411, %v6483
        %6485 = vdwg.mxu0
        %6486 = vmatprep.subr.bf16.mxu0 %v5751
        %6487 = vmatpush1.bf16.msra.mxu0 %v5750
        %6488 = vmatprep.subr.bf16.mxu0 %v5767
        %6489 = vmatpush1.bf16.msra.mxu0 %v5766
        %6490 = vmatprep.subr.bf16.mxu0 %v5783
        %6491 = vmatpush1.bf16.msra.mxu0 %v5782
        %6492 = vmatprep.subr.bf16.mxu0 %v5799
        %6493 = vmatpush1.bf16.msra.mxu0 %v5798
        %6494 = vmatprep.subr.bf16.mxu0 %v5815
        %6495 = vmatpush1.bf16.msra.mxu0 %v5814
        %6496 = vmatprep.subr.bf16.mxu0 %v5831
        %6497 = vmatpush1.bf16.msra.mxu0 %v5830
        %6498 = vmatprep.subr.bf16.mxu0 %v5847
        %6499 = vmatpush1.bf16.msra.mxu0 %v5846
        %6500 = vmatprep.subr.bf16.mxu0 %v5863
        %6501 = vmatpush1.bf16.msra.mxu0 %v5862
        %6502 = vmatprep.subr.bf16.mxu0 %v5879
        %6503 = vmatpush1.bf16.msra.mxu0 %v5878
        %6504 = vmatprep.subr.bf16.mxu0 %v5895
        %6505 = vmatpush1.bf16.msra.mxu0 %v5894
        %6506 = vmatprep.subr.bf16.mxu0 %v5911
        %6507 = vmatpush1.bf16.msra.mxu0 %v5910
        %6508 = vmatprep.subr.bf16.mxu0 %v5927
        %6509 = vmatpush1.bf16.msra.mxu0 %v5926
        %6510 = vmatprep.subr.bf16.mxu0 %v5943
        %6511 = vmatpush1.bf16.msra.mxu0 %v5942
        %6512 = vmatprep.subr.bf16.mxu0 %v5959
        %6513 = vmatpush1.bf16.msra.mxu0 %v5958
        %6514 = vmatprep.subr.bf16.mxu0 %v5975
        %6515 = vmatpush1.bf16.msra.mxu0 %v5974
        %6516 = vmatprep.subr.bf16.mxu0 %v5991
        %6517 = vmatpush1.bf16.msra.mxu0 %v5990
        %6518 = vmatprep.mubr.bf16.mxu0 %v6309
        %6519 = vmatmul.mubr.bf16.gmra.mrb[0].mxu0 %v6308
        %v6520 = vpop.f32.mrb[0].mxu0
        %v6521 = vadd.f32 0.0, %v6520
        %v6522 = vpop.f32.mrb[0].mxu0
        %v6523 = vadd.f32 0.0, %v6522
        %v6524 = vpop.f32.mrb[0].mxu0
        %v6525 = vadd.f32 0.0, %v6524
        %v6526 = vpop.f32.mrb[0].mxu0
        %v6527 = vadd.f32 0.0, %v6526
        %6528 = vmatprep.mubr.bf16.mxu0 %v6313
        %6529 = vmatmul.mubr.bf16.gmra.mrb[0].mxu0 %v6312
        %v6530 = vpop.f32.mrb[0].mxu0
        %v6531 = vadd.f32 0.0, %v6530
        %v6532 = vpop.f32.mrb[0].mxu0
        %v6533 = vadd.f32 0.0, %v6532
        %v6534 = vpop.f32.mrb[0].mxu0
        %v6535 = vadd.f32 0.0, %v6534
        %v6536 = vpop.f32.mrb[0].mxu0
        %v6537 = vadd.f32 0.0, %v6536
        %6538 = vmatprep.mubr.bf16.mxu0 %v6317
        %6539 = vmatmul.mubr.bf16.gmra.mrb[0].mxu0 %v6316
        %v6540 = vpop.f32.mrb[0].mxu0
        %v6541 = vadd.f32 0.0, %v6540
        %v6542 = vpop.f32.mrb[0].mxu0
        %v6543 = vadd.f32 0.0, %v6542
        %v6544 = vpop.f32.mrb[0].mxu0
        %v6545 = vadd.f32 0.0, %v6544
        %v6546 = vpop.f32.mrb[0].mxu0
        %v6547 = vadd.f32 0.0, %v6546
        %6548 = vmatprep.mubr.bf16.mxu0 %v6321
        %6549 = vmatmul.mubr.bf16.gmra.mrb[0].mxu0 %v6320
        %v6550 = vpop.f32.mrb[0].mxu0
        %v6551 = vadd.f32 0.0, %v6550
        %v6552 = vpop.f32.mrb[0].mxu0
        %v6553 = vadd.f32 0.0, %v6552
        %v6554 = vpop.f32.mrb[0].mxu0
        %v6555 = vadd.f32 0.0, %v6554
        %v6556 = vpop.f32.mrb[0].mxu0
        %v6557 = vadd.f32 0.0, %v6556
        %6558 = vdwg.mxu0
        %6559 = vmatprep.subr.bf16.mxu0 %v6007
        %6560 = vmatpush1.bf16.msra.mxu0 %v6006
        %6561 = vmatprep.subr.bf16.mxu0 %v6023
        %6562 = vmatpush1.bf16.msra.mxu0 %v6022
        %6563 = vmatprep.subr.bf16.mxu0 %v6039
        %6564 = vmatpush1.bf16.msra.mxu0 %v6038
        %6565 = vmatprep.subr.bf16.mxu0 %v6055
        %6566 = vmatpush1.bf16.msra.mxu0 %v6054
        %6567 = vmatprep.subr.bf16.mxu0 %v6071
        %6568 = vmatpush1.bf16.msra.mxu0 %v6070
        %6569 = vmatprep.subr.bf16.mxu0 %v6087
        %6570 = vmatpush1.bf16.msra.mxu0 %v6086
        %6571 = vmatprep.subr.bf16.mxu0 %v6103
        %6572 = vmatpush1.bf16.msra.mxu0 %v6102
        %6573 = vmatprep.subr.bf16.mxu0 %v6119
        %6574 = vmatpush1.bf16.msra.mxu0 %v6118
        %6575 = vmatprep.subr.bf16.mxu0 %v6135
        %6576 = vmatpush1.bf16.msra.mxu0 %v6134
        %6577 = vmatprep.subr.bf16.mxu0 %v6151
        %6578 = vmatpush1.bf16.msra.mxu0 %v6150
        %6579 = vmatprep.subr.bf16.mxu0 %v6167
        %6580 = vmatpush1.bf16.msra.mxu0 %v6166
        %6581 = vmatprep.subr.bf16.mxu0 %v6183
        %6582 = vmatpush1.bf16.msra.mxu0 %v6182
        %6583 = vmatprep.subr.bf16.mxu0 %v6199
        %6584 = vmatpush1.bf16.msra.mxu0 %v6198
        %6585 = vmatprep.subr.bf16.mxu0 %v6215
        %6586 = vmatpush1.bf16.msra.mxu0 %v6214
        %6587 = vmatprep.subr.bf16.mxu0 %v6231
        %6588 = vmatpush1.bf16.msra.mxu0 %v6230
        %6589 = vmatprep.subr.bf16.mxu0 %v6247
        %6590 = vmatpush1.bf16.msra.mxu0 %v6246
        %6591 = vmatprep.mubr.bf16.mxu0 %v6311
        %6592 = vmatmul.mubr.bf16.gmra.mrb[0].mxu0 %v6310
        %v6593 = vpop.f32.mrb[0].mxu0
        %v6594 = vadd.f32 %v6521, %v6593
        %v6595 = vpop.f32.mrb[0].mxu0
        %v6596 = vadd.f32 %v6523, %v6595
        %v6597 = vpop.f32.mrb[0].mxu0
        %v6598 = vadd.f32 %v6525, %v6597
        %v6599 = vpop.f32.mrb[0].mxu0
        %v6600 = vadd.f32 %v6527, %v6599
        %6601 = vmatprep.mubr.bf16.mxu0 %v6315
        %6602 = vmatmul.mubr.bf16.gmra.mrb[0].mxu0 %v6314
        %v6603 = vpop.f32.mrb[0].mxu0
        %v6604 = vadd.f32 %v6531, %v6603
        %v6605 = vpop.f32.mrb[0].mxu0
        %v6606 = vadd.f32 %v6533, %v6605
        %v6607 = vpop.f32.mrb[0].mxu0
        %v6608 = vadd.f32 %v6535, %v6607
        %v6609 = vpop.f32.mrb[0].mxu0
        %v6610 = vadd.f32 %v6537, %v6609
        %6611 = vmatprep.mubr.bf16.mxu0 %v6319
        %6612 = vmatmul.mubr.bf16.gmra.mrb[0].mxu0 %v6318
        %v6613 = vpop.f32.mrb[0].mxu0
        %v6614 = vadd.f32 %v6541, %v6613
        %v6615 = vpop.f32.mrb[0].mxu0
        %v6616 = vadd.f32 %v6543, %v6615
        %v6617 = vpop.f32.mrb[0].mxu0
        %v6618 = vadd.f32 %v6545, %v6617
        %v6619 = vpop.f32.mrb[0].mxu0
        %v6620 = vadd.f32 %v6547, %v6619
        %6621 = vmatprep.mubr.bf16.mxu0 %v6323
        %6622 = vmatmul.mubr.bf16.gmra.mrb[0].mxu0 %v6322
        %v6623 = vpop.f32.mrb[0].mxu0
        %v6624 = vadd.f32 %v6551, %v6623
        %v6625 = vpop.f32.mrb[0].mxu0
        %v6626 = vadd.f32 %v6553, %v6625
        %v6627 = vpop.f32.mrb[0].mxu0
        %v6628 = vadd.f32 %v6555, %v6627
        %v6629 = vpop.f32.mrb[0].mxu0
        %v6630 = vadd.f32 %v6557, %v6629
        %6631 = vdwg.mxu0
        %6632 = vmatprep.subr.bf16.mxu0 %v5753
        %6633 = vmatpush1.bf16.msra.mxu0 %v5752
        %6634 = vmatprep.subr.bf16.mxu0 %v5769
        %6635 = vmatpush1.bf16.msra.mxu0 %v5768
        %6636 = vmatprep.subr.bf16.mxu0 %v5785
        %6637 = vmatpush1.bf16.msra.mxu0 %v5784
        %6638 = vmatprep.subr.bf16.mxu0 %v5801
        %6639 = vmatpush1.bf16.msra.mxu0 %v5800
        %6640 = vmatprep.subr.bf16.mxu0 %v5817
        %6641 = vmatpush1.bf16.msra.mxu0 %v5816
        %6642 = vmatprep.subr.bf16.mxu0 %v5833
        %6643 = vmatpush1.bf16.msra.mxu0 %v5832
        %6644 = vmatprep.subr.bf16.mxu0 %v5849
        %6645 = vmatpush1.bf16.msra.mxu0 %v5848
        %6646 = vmatprep.subr.bf16.mxu0 %v5865
        %6647 = vmatpush1.bf16.msra.mxu0 %v5864
        %6648 = vmatprep.subr.bf16.mxu0 %v5881
        %6649 = vmatpush1.bf16.msra.mxu0 %v5880
        %6650 = vmatprep.subr.bf16.mxu0 %v5897
        %6651 = vmatpush1.bf16.msra.mxu0 %v5896
        %6652 = vmatprep.subr.bf16.mxu0 %v5913
        %6653 = vmatpush1.bf16.msra.mxu0 %v5912
        %6654 = vmatprep.subr.bf16.mxu0 %v5929
        %6655 = vmatpush1.bf16.msra.mxu0 %v5928
        %6656 = vmatprep.subr.bf16.mxu0 %v5945
        %6657 = vmatpush1.bf16.msra.mxu0 %v5944
        %6658 = vmatprep.subr.bf16.mxu0 %v5961
        %6659 = vmatpush1.bf16.msra.mxu0 %v5960
        %6660 = vmatprep.subr.bf16.mxu0 %v5977
        %6661 = vmatpush1.bf16.msra.mxu0 %v5976
        %6662 = vmatprep.subr.bf16.mxu0 %v5993
        %6663 = vmatpush1.bf16.msra.mxu0 %v5992
        %6664 = vmatprep.mubr.bf16.mxu0 %v6309
        %6665 = vmatmul.mubr.bf16.gmra.mrb[0].mxu0 %v6308
        %v6666 = vpop.f32.mrb[0].mxu0
        %v6667 = vadd.f32 0.0, %v6666
        %v6668 = vpop.f32.mrb[0].mxu0
        %v6669 = vadd.f32 0.0, %v6668
        %v6670 = vpop.f32.mrb[0].mxu0
        %v6671 = vadd.f32 0.0, %v6670
        %v6672 = vpop.f32.mrb[0].mxu0
        %v6673 = vadd.f32 0.0, %v6672
        %6674 = vmatprep.mubr.bf16.mxu0 %v6313
        %6675 = vmatmul.mubr.bf16.gmra.mrb[0].mxu0 %v6312
        %v6676 = vpop.f32.mrb[0].mxu0
        %v6677 = vadd.f32 0.0, %v6676
        %v6678 = vpop.f32.mrb[0].mxu0
        %v6679 = vadd.f32 0.0, %v6678
        %v6680 = vpop.f32.mrb[0].mxu0
        %v6681 = vadd.f32 0.0, %v6680
        %v6682 = vpop.f32.mrb[0].mxu0
        %v6683 = vadd.f32 0.0, %v6682
        %6684 = vmatprep.mubr.bf16.mxu0 %v6317
        %6685 = vmatmul.mubr.bf16.gmra.mrb[0].mxu0 %v6316
        %v6686 = vpop.f32.mrb[0].mxu0
        %v6687 = vadd.f32 0.0, %v6686
        %v6688 = vpop.f32.mrb[0].mxu0
        %v6689 = vadd.f32 0.0, %v6688
        %v6690 = vpop.f32.mrb[0].mxu0
        %v6691 = vadd.f32 0.0, %v6690
        %v6692 = vpop.f32.mrb[0].mxu0
        %v6693 = vadd.f32 0.0, %v6692
        %6694 = vmatprep.mubr.bf16.mxu0 %v6321
        %6695 = vmatmul.mubr.bf16.gmra.mrb[0].mxu0 %v6320
        %v6696 = vpop.f32.mrb[0].mxu0
        %v6697 = vadd.f32 0.0, %v6696
        %v6698 = vpop.f32.mrb[0].mxu0
        %v6699 = vadd.f32 0.0, %v6698
        %v6700 = vpop.f32.mrb[0].mxu0
        %v6701 = vadd.f32 0.0, %v6700
        %v6702 = vpop.f32.mrb[0].mxu0
        %v6703 = vadd.f32 0.0, %v6702
        %6704 = vdwg.mxu0
        %6705 = vmatprep.subr.bf16.mxu0 %v6009
        %6706 = vmatpush1.bf16.msra.mxu0 %v6008
        %6707 = vmatprep.subr.bf16.mxu0 %v6025
        %6708 = vmatpush1.bf16.msra.mxu0 %v6024
        %6709 = vmatprep.subr.bf16.mxu0 %v6041
        %6710 = vmatpush1.bf16.msra.mxu0 %v6040
        %6711 = vmatprep.subr.bf16.mxu0 %v6057
        %6712 = vmatpush1.bf16.msra.mxu0 %v6056
        %6713 = vmatprep.subr.bf16.mxu0 %v6073
        %6714 = vmatpush1.bf16.msra.mxu0 %v6072
        %6715 = vmatprep.subr.bf16.mxu0 %v6089
        %6716 = vmatpush1.bf16.msra.mxu0 %v6088
        %6717 = vmatprep.subr.bf16.mxu0 %v6105
        %6718 = vmatpush1.bf16.msra.mxu0 %v6104
        %6719 = vmatprep.subr.bf16.mxu0 %v6121
        %6720 = vmatpush1.bf16.msra.mxu0 %v6120
        %6721 = vmatprep.subr.bf16.mxu0 %v6137
        %6722 = vmatpush1.bf16.msra.mxu0 %v6136
        %6723 = vmatprep.subr.bf16.mxu0 %v6153
        %6724 = vmatpush1.bf16.msra.mxu0 %v6152
        %6725 = vmatprep.subr.bf16.mxu0 %v6169
        %6726 = vmatpush1.bf16.msra.mxu0 %v6168
        %6727 = vmatprep.subr.bf16.mxu0 %v6185
        %6728 = vmatpush1.bf16.msra.mxu0 %v6184
        %6729 = vmatprep.subr.bf16.mxu0 %v6201
        %6730 = vmatpush1.bf16.msra.mxu0 %v6200
        %6731 = vmatprep.subr.bf16.mxu0 %v6217
        %6732 = vmatpush1.bf16.msra.mxu0 %v6216
        %6733 = vmatprep.subr.bf16.mxu0 %v6233
        %6734 = vmatpush1.bf16.msra.mxu0 %v6232
        %6735 = vmatprep.subr.bf16.mxu0 %v6249
        %6736 = vmatpush1.bf16.msra.mxu0 %v6248
        %6737 = vmatprep.mubr.bf16.mxu0 %v6311
        %6738 = vmatmul.mubr.bf16.gmra.mrb[0].mxu0 %v6310
        %v6739 = vpop.f32.mrb[0].mxu0
        %v6740 = vadd.f32 %v6667, %v6739
        %v6741 = vpop.f32.mrb[0].mxu0
        %v6742 = vadd.f32 %v6669, %v6741
        %v6743 = vpop.f32.mrb[0].mxu0
        %v6744 = vadd.f32 %v6671, %v6743
        %v6745 = vpop.f32.mrb[0].mxu0
        %v6746 = vadd.f32 %v6673, %v6745
        %6747 = vmatprep.mubr.bf16.mxu0 %v6315
        %6748 = vmatmul.mubr.bf16.gmra.mrb[0].mxu0 %v6314
        %v6749 = vpop.f32.mrb[0].mxu0
        %v6750 = vadd.f32 %v6677, %v6749
        %v6751 = vpop.f32.mrb[0].mxu0
        %v6752 = vadd.f32 %v6679, %v6751
        %v6753 = vpop.f32.mrb[0].mxu0
        %v6754 = vadd.f32 %v6681, %v6753
        %v6755 = vpop.f32.mrb[0].mxu0
        %v6756 = vadd.f32 %v6683, %v6755
        %6757 = vmatprep.mubr.bf16.mxu0 %v6319
        %6758 = vmatmul.mubr.bf16.gmra.mrb[0].mxu0 %v6318
        %v6759 = vpop.f32.mrb[0].mxu0
        %v6760 = vadd.f32 %v6687, %v6759
        %v6761 = vpop.f32.mrb[0].mxu0
        %v6762 = vadd.f32 %v6689, %v6761
        %v6763 = vpop.f32.mrb[0].mxu0
        %v6764 = vadd.f32 %v6691, %v6763
        %v6765 = vpop.f32.mrb[0].mxu0
        %v6766 = vadd.f32 %v6693, %v6765
        %6767 = vmatprep.mubr.bf16.mxu0 %v6323
        %6768 = vmatmul.mubr.bf16.gmra.mrb[0].mxu0 %v6322
        %v6769 = vpop.f32.mrb[0].mxu0
        %v6770 = vadd.f32 %v6697, %v6769
        %v6771 = vpop.f32.mrb[0].mxu0
        %v6772 = vadd.f32 %v6699, %v6771
        %v6773 = vpop.f32.mrb[0].mxu0
        %v6774 = vadd.f32 %v6701, %v6773
        %v6775 = vpop.f32.mrb[0].mxu0
        %v6776 = vadd.f32 %v6703, %v6775
        %6777 = vdwg.mxu0
        %6778 = vmatprep.subr.bf16.mxu0 %v5755
        %6779 = vmatpush1.bf16.msra.mxu0 %v5754
        %6780 = vmatprep.subr.bf16.mxu0 %v5771
        %6781 = vmatpush1.bf16.msra.mxu0 %v5770
        %6782 = vmatprep.subr.bf16.mxu0 %v5787
        %6783 = vmatpush1.bf16.msra.mxu0 %v5786
        %6784 = vmatprep.subr.bf16.mxu0 %v5803
        %6785 = vmatpush1.bf16.msra.mxu0 %v5802
        %6786 = vmatprep.subr.bf16.mxu0 %v5819
        %6787 = vmatpush1.bf16.msra.mxu0 %v5818
        %6788 = vmatprep.subr.bf16.mxu0 %v5835
        %6789 = vmatpush1.bf16.msra.mxu0 %v5834
        %6790 = vmatprep.subr.bf16.mxu0 %v5851
        %6791 = vmatpush1.bf16.msra.mxu0 %v5850
        %6792 = vmatprep.subr.bf16.mxu0 %v5867
        %6793 = vmatpush1.bf16.msra.mxu0 %v5866
        %6794 = vmatprep.subr.bf16.mxu0 %v5883
        %6795 = vmatpush1.bf16.msra.mxu0 %v5882
        %6796 = vmatprep.subr.bf16.mxu0 %v5899
        %6797 = vmatpush1.bf16.msra.mxu0 %v5898
        %6798 = vmatprep.subr.bf16.mxu0 %v5915
        %6799 = vmatpush1.bf16.msra.mxu0 %v5914
        %6800 = vmatprep.subr.bf16.mxu0 %v5931
        %6801 = vmatpush1.bf16.msra.mxu0 %v5930
        %6802 = vmatprep.subr.bf16.mxu0 %v5947
        %6803 = vmatpush1.bf16.msra.mxu0 %v5946
        %6804 = vmatprep.subr.bf16.mxu0 %v5963
        %6805 = vmatpush1.bf16.msra.mxu0 %v5962
        %6806 = vmatprep.subr.bf16.mxu0 %v5979
        %6807 = vmatpush1.bf16.msra.mxu0 %v5978
        %6808 = vmatprep.subr.bf16.mxu0 %v5995
        %6809 = vmatpush1.bf16.msra.mxu0 %v5994
        %6810 = vmatprep.mubr.bf16.mxu0 %v6309
        %6811 = vmatmul.mubr.bf16.gmra.mrb[0].mxu0 %v6308
        %v6812 = vpop.f32.mrb[0].mxu0
        %v6813 = vadd.f32 0.0, %v6812
        %v6814 = vpop.f32.mrb[0].mxu0
        %v6815 = vadd.f32 0.0, %v6814
        %v6816 = vpop.f32.mrb[0].mxu0
        %v6817 = vadd.f32 0.0, %v6816
        %v6818 = vpop.f32.mrb[0].mxu0
        %v6819 = vadd.f32 0.0, %v6818
        %6820 = vmatprep.mubr.bf16.mxu0 %v6313
        %6821 = vmatmul.mubr.bf16.gmra.mrb[0].mxu0 %v6312
        %v6822 = vpop.f32.mrb[0].mxu0
        %v6823 = vadd.f32 0.0, %v6822
        %v6824 = vpop.f32.mrb[0].mxu0
        %v6825 = vadd.f32 0.0, %v6824
        %v6826 = vpop.f32.mrb[0].mxu0
        %v6827 = vadd.f32 0.0, %v6826
        %v6828 = vpop.f32.mrb[0].mxu0
        %v6829 = vadd.f32 0.0, %v6828
        %6830 = vmatprep.mubr.bf16.mxu0 %v6317
        %6831 = vmatmul.mubr.bf16.gmra.mrb[0].mxu0 %v6316
        %v6832 = vpop.f32.mrb[0].mxu0
        %v6833 = vadd.f32 0.0, %v6832
        %v6834 = vpop.f32.mrb[0].mxu0
        %v6835 = vadd.f32 0.0, %v6834
        %v6836 = vpop.f32.mrb[0].mxu0
        %v6837 = vadd.f32 0.0, %v6836
        %v6838 = vpop.f32.mrb[0].mxu0
        %v6839 = vadd.f32 0.0, %v6838
        %6840 = vmatprep.mubr.bf16.mxu0 %v6321
        %6841 = vmatmul.mubr.bf16.gmra.mrb[0].mxu0 %v6320
        %v6842 = vpop.f32.mrb[0].mxu0
        %v6843 = vadd.f32 0.0, %v6842
        %v6844 = vpop.f32.mrb[0].mxu0
        %v6845 = vadd.f32 0.0, %v6844
        %v6846 = vpop.f32.mrb[0].mxu0
        %v6847 = vadd.f32 0.0, %v6846
        %v6848 = vpop.f32.mrb[0].mxu0
        %v6849 = vadd.f32 0.0, %v6848
        %6850 = vdwg.mxu0
        %6851 = vmatprep.subr.bf16.mxu0 %v6011
        %6852 = vmatpush1.bf16.msra.mxu0 %v6010
        %6853 = vmatprep.subr.bf16.mxu0 %v6027
        %6854 = vmatpush1.bf16.msra.mxu0 %v6026
        %6855 = vmatprep.subr.bf16.mxu0 %v6043
        %6856 = vmatpush1.bf16.msra.mxu0 %v6042
        %6857 = vmatprep.subr.bf16.mxu0 %v6059
        %6858 = vmatpush1.bf16.msra.mxu0 %v6058
        %6859 = vmatprep.subr.bf16.mxu0 %v6075
        %6860 = vmatpush1.bf16.msra.mxu0 %v6074
        %6861 = vmatprep.subr.bf16.mxu0 %v6091
        %6862 = vmatpush1.bf16.msra.mxu0 %v6090
        %6863 = vmatprep.subr.bf16.mxu0 %v6107
        %6864 = vmatpush1.bf16.msra.mxu0 %v6106
        %6865 = vmatprep.subr.bf16.mxu0 %v6123
        %6866 = vmatpush1.bf16.msra.mxu0 %v6122
        %6867 = vmatprep.subr.bf16.mxu0 %v6139
        %6868 = vmatpush1.bf16.msra.mxu0 %v6138
        %6869 = vmatprep.subr.bf16.mxu0 %v6155
        %6870 = vmatpush1.bf16.msra.mxu0 %v6154
        %6871 = vmatprep.subr.bf16.mxu0 %v6171
        %6872 = vmatpush1.bf16.msra.mxu0 %v6170
        %6873 = vmatprep.subr.bf16.mxu0 %v6187
        %6874 = vmatpush1.bf16.msra.mxu0 %v6186
        %6875 = vmatprep.subr.bf16.mxu0 %v6203
        %6876 = vmatpush1.bf16.msra.mxu0 %v6202
        %6877 = vmatprep.subr.bf16.mxu0 %v6219
        %6878 = vmatpush1.bf16.msra.mxu0 %v6218
        %6879 = vmatprep.subr.bf16.mxu0 %v6235
        %6880 = vmatpush1.bf16.msra.mxu0 %v6234
        %6881 = vmatprep.subr.bf16.mxu0 %v6251
        %6882 = vmatpush1.bf16.msra.mxu0 %v6250
        %6883 = vmatprep.mubr.bf16.mxu0 %v6311
        %6884 = vmatmul.mubr.bf16.gmra.mrb[0].mxu0 %v6310
        %v6885 = vpop.f32.mrb[0].mxu0
        %v6886 = vadd.f32 %v6813, %v6885
        %v6887 = vpop.f32.mrb[0].mxu0
        %v6888 = vadd.f32 %v6815, %v6887
        %v6889 = vpop.f32.mrb[0].mxu0
        %v6890 = vadd.f32 %v6817, %v6889
        %v6891 = vpop.f32.mrb[0].mxu0
        %v6892 = vadd.f32 %v6819, %v6891
        %6893 = vmatprep.mubr.bf16.mxu0 %v6315
        %6894 = vmatmul.mubr.bf16.gmra.mrb[0].mxu0 %v6314
        %v6895 = vpop.f32.mrb[0].mxu0
        %v6896 = vadd.f32 %v6823, %v6895
        %v6897 = vpop.f32.mrb[0].mxu0
        %v6898 = vadd.f32 %v6825, %v6897
        %v6899 = vpop.f32.mrb[0].mxu0
        %v6900 = vadd.f32 %v6827, %v6899
        %v6901 = vpop.f32.mrb[0].mxu0
        %v6902 = vadd.f32 %v6829, %v6901
        %6903 = vmatprep.mubr.bf16.mxu0 %v6319
        %6904 = vmatmul.mubr.bf16.gmra.mrb[0].mxu0 %v6318
        %v6905 = vpop.f32.mrb[0].mxu0
        %v6906 = vadd.f32 %v6833, %v6905
        %v6907 = vpop.f32.mrb[0].mxu0
        %v6908 = vadd.f32 %v6835, %v6907
        %v6909 = vpop.f32.mrb[0].mxu0
        %v6910 = vadd.f32 %v6837, %v6909
        %v6911 = vpop.f32.mrb[0].mxu0
        %v6912 = vadd.f32 %v6839, %v6911
        %6913 = vmatprep.mubr.bf16.mxu0 %v6323
        %6914 = vmatmul.mubr.bf16.gmra.mrb[0].mxu0 %v6322
        %v6915 = vpop.f32.mrb[0].mxu0
        %v6916 = vadd.f32 %v6843, %v6915
        %v6917 = vpop.f32.mrb[0].mxu0
        %v6918 = vadd.f32 %v6845, %v6917
        %v6919 = vpop.f32.mrb[0].mxu0
        %v6920 = vadd.f32 %v6847, %v6919
        %v6921 = vpop.f32.mrb[0].mxu0
        %v6922 = vadd.f32 %v6849, %v6921
        %6923 = vdwg.mxu0
        %6924 = vmatprep.subr.bf16.mxu0 %v5757
        %6925 = vmatpush1.bf16.msra.mxu0 %v5756
        %6926 = vmatprep.subr.bf16.mxu0 %v5773
        %6927 = vmatpush1.bf16.msra.mxu0 %v5772
        %6928 = vmatprep.subr.bf16.mxu0 %v5789
        %6929 = vmatpush1.bf16.msra.mxu0 %v5788
        %6930 = vmatprep.subr.bf16.mxu0 %v5805
        %6931 = vmatpush1.bf16.msra.mxu0 %v5804
        %6932 = vmatprep.subr.bf16.mxu0 %v5821
        %6933 = vmatpush1.bf16.msra.mxu0 %v5820
        %6934 = vmatprep.subr.bf16.mxu0 %v5837
        %6935 = vmatpush1.bf16.msra.mxu0 %v5836
        %6936 = vmatprep.subr.bf16.mxu0 %v5853
        %6937 = vmatpush1.bf16.msra.mxu0 %v5852
        %6938 = vmatprep.subr.bf16.mxu0 %v5869
        %6939 = vmatpush1.bf16.msra.mxu0 %v5868
        %6940 = vmatprep.subr.bf16.mxu0 %v5885
        %6941 = vmatpush1.bf16.msra.mxu0 %v5884
        %6942 = vmatprep.subr.bf16.mxu0 %v5901
        %6943 = vmatpush1.bf16.msra.mxu0 %v5900
        %6944 = vmatprep.subr.bf16.mxu0 %v5917
        %6945 = vmatpush1.bf16.msra.mxu0 %v5916
        %6946 = vmatprep.subr.bf16.mxu0 %v5933
        %6947 = vmatpush1.bf16.msra.mxu0 %v5932
        %6948 = vmatprep.subr.bf16.mxu0 %v5949
        %6949 = vmatpush1.bf16.msra.mxu0 %v5948
        %6950 = vmatprep.subr.bf16.mxu0 %v5965
        %6951 = vmatpush1.bf16.msra.mxu0 %v5964
        %6952 = vmatprep.subr.bf16.mxu0 %v5981
        %6953 = vmatpush1.bf16.msra.mxu0 %v5980
        %6954 = vmatprep.subr.bf16.mxu0 %v5997
        %6955 = vmatpush1.bf16.msra.mxu0 %v5996
        %6956 = vmatprep.mubr.bf16.mxu0 %v6309
        %6957 = vmatmul.mubr.bf16.gmra.mrb[0].mxu0 %v6308
        %v6958 = vpop.f32.mrb[0].mxu0
        %v6959 = vadd.f32 0.0, %v6958
        %v6960 = vpop.f32.mrb[0].mxu0
        %v6961 = vadd.f32 0.0, %v6960
        %v6962 = vpop.f32.mrb[0].mxu0
        %v6963 = vadd.f32 0.0, %v6962
        %v6964 = vpop.f32.mrb[0].mxu0
        %v6965 = vadd.f32 0.0, %v6964
        %6966 = vmatprep.mubr.bf16.mxu0 %v6313
        %6967 = vmatmul.mubr.bf16.gmra.mrb[0].mxu0 %v6312
        %v6968 = vpop.f32.mrb[0].mxu0
        %v6969 = vadd.f32 0.0, %v6968
        %v6970 = vpop.f32.mrb[0].mxu0
        %v6971 = vadd.f32 0.0, %v6970
        %v6972 = vpop.f32.mrb[0].mxu0
        %v6973 = vadd.f32 0.0, %v6972
        %v6974 = vpop.f32.mrb[0].mxu0
        %v6975 = vadd.f32 0.0, %v6974
        %6976 = vmatprep.mubr.bf16.mxu0 %v6317
        %6977 = vmatmul.mubr.bf16.gmra.mrb[0].mxu0 %v6316
        %v6978 = vpop.f32.mrb[0].mxu0
        %v6979 = vadd.f32 0.0, %v6978
        %v6980 = vpop.f32.mrb[0].mxu0
        %v6981 = vadd.f32 0.0, %v6980
        %v6982 = vpop.f32.mrb[0].mxu0
        %v6983 = vadd.f32 0.0, %v6982
        %v6984 = vpop.f32.mrb[0].mxu0
        %v6985 = vadd.f32 0.0, %v6984
        %6986 = vmatprep.mubr.bf16.mxu0 %v6321
        %6987 = vmatmul.mubr.bf16.gmra.mrb[0].mxu0 %v6320
        %v6988 = vpop.f32.mrb[0].mxu0
        %v6989 = vadd.f32 0.0, %v6988
        %v6990 = vpop.f32.mrb[0].mxu0
        %v6991 = vadd.f32 0.0, %v6990
        %v6992 = vpop.f32.mrb[0].mxu0
        %v6993 = vadd.f32 0.0, %v6992
        %v6994 = vpop.f32.mrb[0].mxu0
        %v6995 = vadd.f32 0.0, %v6994
        %6996 = vdwg.mxu0
        %6997 = vmatprep.subr.bf16.mxu0 %v6013
        %6998 = vmatpush1.bf16.msra.mxu0 %v6012
        %6999 = vmatprep.subr.bf16.mxu0 %v6029
        %7000 = vmatpush1.bf16.msra.mxu0 %v6028
        %7001 = vmatprep.subr.bf16.mxu0 %v6045
        %7002 = vmatpush1.bf16.msra.mxu0 %v6044
        %7003 = vmatprep.subr.bf16.mxu0 %v6061
        %7004 = vmatpush1.bf16.msra.mxu0 %v6060
        %7005 = vmatprep.subr.bf16.mxu0 %v6077
        %7006 = vmatpush1.bf16.msra.mxu0 %v6076
        %7007 = vmatprep.subr.bf16.mxu0 %v6093
        %7008 = vmatpush1.bf16.msra.mxu0 %v6092
        %7009 = vmatprep.subr.bf16.mxu0 %v6109
        %7010 = vmatpush1.bf16.msra.mxu0 %v6108
        %7011 = vmatprep.subr.bf16.mxu0 %v6125
        %7012 = vmatpush1.bf16.msra.mxu0 %v6124
        %7013 = vmatprep.subr.bf16.mxu0 %v6141
        %7014 = vmatpush1.bf16.msra.mxu0 %v6140
        %7015 = vmatprep.subr.bf16.mxu0 %v6157
        %7016 = vmatpush1.bf16.msra.mxu0 %v6156
        %7017 = vmatprep.subr.bf16.mxu0 %v6173
        %7018 = vmatpush1.bf16.msra.mxu0 %v6172
        %7019 = vmatprep.subr.bf16.mxu0 %v6189
        %7020 = vmatpush1.bf16.msra.mxu0 %v6188
        %7021 = vmatprep.subr.bf16.mxu0 %v6205
        %7022 = vmatpush1.bf16.msra.mxu0 %v6204
        %7023 = vmatprep.subr.bf16.mxu0 %v6221
        %7024 = vmatpush1.bf16.msra.mxu0 %v6220
        %7025 = vmatprep.subr.bf16.mxu0 %v6237
        %7026 = vmatpush1.bf16.msra.mxu0 %v6236
        %7027 = vmatprep.subr.bf16.mxu0 %v6253
        %7028 = vmatpush1.bf16.msra.mxu0 %v6252
        %7029 = vmatprep.mubr.bf16.mxu0 %v6311
        %7030 = vmatmul.mubr.bf16.gmra.mrb[0].mxu0 %v6310
        %v7031 = vpop.f32.mrb[0].mxu0
        %v7032 = vadd.f32 %v6959, %v7031
        %v7033 = vpop.f32.mrb[0].mxu0
        %v7034 = vadd.f32 %v6961, %v7033
        %v7035 = vpop.f32.mrb[0].mxu0
        %v7036 = vadd.f32 %v6963, %v7035
        %v7037 = vpop.f32.mrb[0].mxu0
        %v7038 = vadd.f32 %v6965, %v7037
        %7039 = vmatprep.mubr.bf16.mxu0 %v6315
        %7040 = vmatmul.mubr.bf16.gmra.mrb[0].mxu0 %v6314
        %v7041 = vpop.f32.mrb[0].mxu0
        %v7042 = vadd.f32 %v6969, %v7041
        %v7043 = vpop.f32.mrb[0].mxu0
        %v7044 = vadd.f32 %v6971, %v7043
        %v7045 = vpop.f32.mrb[0].mxu0
        %v7046 = vadd.f32 %v6973, %v7045
        %v7047 = vpop.f32.mrb[0].mxu0
        %v7048 = vadd.f32 %v6975, %v7047
        %7049 = vmatprep.mubr.bf16.mxu0 %v6319
        %7050 = vmatmul.mubr.bf16.gmra.mrb[0].mxu0 %v6318
        %v7051 = vpop.f32.mrb[0].mxu0
        %v7052 = vadd.f32 %v6979, %v7051
        %v7053 = vpop.f32.mrb[0].mxu0
        %v7054 = vadd.f32 %v6981, %v7053
        %v7055 = vpop.f32.mrb[0].mxu0
        %v7056 = vadd.f32 %v6983, %v7055
        %v7057 = vpop.f32.mrb[0].mxu0
        %v7058 = vadd.f32 %v6985, %v7057
        %7059 = vmatprep.mubr.bf16.mxu0 %v6323
        %7060 = vmatmul.mubr.bf16.gmra.mrb[0].mxu0 %v6322
        %v7061 = vpop.f32.mrb[0].mxu0
        %v7062 = vadd.f32 %v6989, %v7061
        %v7063 = vpop.f32.mrb[0].mxu0
        %v7064 = vadd.f32 %v6991, %v7063
        %v7065 = vpop.f32.mrb[0].mxu0
        %v7066 = vadd.f32 %v6993, %v7065
        %v7067 = vpop.f32.mrb[0].mxu0
        %v7068 = vadd.f32 %v6995, %v7067
        %7069 = vdwg.mxu0
        %7070 = vmatprep.subr.bf16.mxu0 %v5759
        %7071 = vmatpush1.bf16.msra.mxu0 %v5758
        %7072 = vmatprep.subr.bf16.mxu0 %v5775
        %7073 = vmatpush1.bf16.msra.mxu0 %v5774
        %7074 = vmatprep.subr.bf16.mxu0 %v5791
        %7075 = vmatpush1.bf16.msra.mxu0 %v5790
        %7076 = vmatprep.subr.bf16.mxu0 %v5807
        %7077 = vmatpush1.bf16.msra.mxu0 %v5806
        %7078 = vmatprep.subr.bf16.mxu0 %v5823
        %7079 = vmatpush1.bf16.msra.mxu0 %v5822
        %7080 = vmatprep.subr.bf16.mxu0 %v5839
        %7081 = vmatpush1.bf16.msra.mxu0 %v5838
        %7082 = vmatprep.subr.bf16.mxu0 %v5855
        %7083 = vmatpush1.bf16.msra.mxu0 %v5854
        %7084 = vmatprep.subr.bf16.mxu0 %v5871
        %7085 = vmatpush1.bf16.msra.mxu0 %v5870
        %7086 = vmatprep.subr.bf16.mxu0 %v5887
        %7087 = vmatpush1.bf16.msra.mxu0 %v5886
        %7088 = vmatprep.subr.bf16.mxu0 %v5903
        %7089 = vmatpush1.bf16.msra.mxu0 %v5902
        %7090 = vmatprep.subr.bf16.mxu0 %v5919
        %7091 = vmatpush1.bf16.msra.mxu0 %v5918
        %7092 = vmatprep.subr.bf16.mxu0 %v5935
        %7093 = vmatpush1.bf16.msra.mxu0 %v5934
        %7094 = vmatprep.subr.bf16.mxu0 %v5951
        %7095 = vmatpush1.bf16.msra.mxu0 %v5950
        %7096 = vmatprep.subr.bf16.mxu0 %v5967
        %7097 = vmatpush1.bf16.msra.mxu0 %v5966
        %7098 = vmatprep.subr.bf16.mxu0 %v5983
        %7099 = vmatpush1.bf16.msra.mxu0 %v5982
        %7100 = vmatprep.subr.bf16.mxu0 %v5999
        %7101 = vmatpush1.bf16.msra.mxu0 %v5998
        %7102 = vmatprep.mubr.bf16.mxu0 %v6309
        %7103 = vmatmul.mubr.bf16.gmra.mrb[0].mxu0 %v6308
        %v7104 = vpop.f32.mrb[0].mxu0
        %v7105 = vadd.f32 0.0, %v7104
        %v7106 = vpop.f32.mrb[0].mxu0
        %v7107 = vadd.f32 0.0, %v7106
        %v7108 = vpop.f32.mrb[0].mxu0
        %v7109 = vadd.f32 0.0, %v7108
        %v7110 = vpop.f32.mrb[0].mxu0
        %v7111 = vadd.f32 0.0, %v7110
        %7112 = vmatprep.mubr.bf16.mxu0 %v6313
        %7113 = vmatmul.mubr.bf16.gmra.mrb[0].mxu0 %v6312
        %v7114 = vpop.f32.mrb[0].mxu0
        %v7115 = vadd.f32 0.0, %v7114
        %v7116 = vpop.f32.mrb[0].mxu0
        %v7117 = vadd.f32 0.0, %v7116
        %v7118 = vpop.f32.mrb[0].mxu0
        %v7119 = vadd.f32 0.0, %v7118
        %v7120 = vpop.f32.mrb[0].mxu0
        %v7121 = vadd.f32 0.0, %v7120
        %7122 = vmatprep.mubr.bf16.mxu0 %v6317
        %7123 = vmatmul.mubr.bf16.gmra.mrb[0].mxu0 %v6316
        %v7124 = vpop.f32.mrb[0].mxu0
        %v7125 = vadd.f32 0.0, %v7124
        %v7126 = vpop.f32.mrb[0].mxu0
        %v7127 = vadd.f32 0.0, %v7126
        %v7128 = vpop.f32.mrb[0].mxu0
        %v7129 = vadd.f32 0.0, %v7128
        %v7130 = vpop.f32.mrb[0].mxu0
        %v7131 = vadd.f32 0.0, %v7130
        %7132 = vmatprep.mubr.bf16.mxu0 %v6321
        %7133 = vmatmul.mubr.bf16.gmra.mrb[0].mxu0 %v6320
        %v7134 = vpop.f32.mrb[0].mxu0
        %v7135 = vadd.f32 0.0, %v7134
        %v7136 = vpop.f32.mrb[0].mxu0
        %v7137 = vadd.f32 0.0, %v7136
        %v7138 = vpop.f32.mrb[0].mxu0
        %v7139 = vadd.f32 0.0, %v7138
        %v7140 = vpop.f32.mrb[0].mxu0
        %v7141 = vadd.f32 0.0, %v7140
        %7142 = vdwg.mxu0
        %7143 = vmatprep.subr.bf16.mxu0 %v6015
        %7144 = vmatpush1.bf16.msra.mxu0 %v6014
        %7145 = vmatprep.subr.bf16.mxu0 %v6031
        %7146 = vmatpush1.bf16.msra.mxu0 %v6030
        %7147 = vmatprep.subr.bf16.mxu0 %v6047
        %7148 = vmatpush1.bf16.msra.mxu0 %v6046
        %7149 = vmatprep.subr.bf16.mxu0 %v6063
        %7150 = vmatpush1.bf16.msra.mxu0 %v6062
        %7151 = vmatprep.subr.bf16.mxu0 %v6079
        %7152 = vmatpush1.bf16.msra.mxu0 %v6078
        %7153 = vmatprep.subr.bf16.mxu0 %v6095
        %7154 = vmatpush1.bf16.msra.mxu0 %v6094
        %7155 = vmatprep.subr.bf16.mxu0 %v6111
        %7156 = vmatpush1.bf16.msra.mxu0 %v6110
        %7157 = vmatprep.subr.bf16.mxu0 %v6127
        %7158 = vmatpush1.bf16.msra.mxu0 %v6126
        %7159 = vmatprep.subr.bf16.mxu0 %v6143
        %7160 = vmatpush1.bf16.msra.mxu0 %v6142
        %7161 = vmatprep.subr.bf16.mxu0 %v6159
        %7162 = vmatpush1.bf16.msra.mxu0 %v6158
        %7163 = vmatprep.subr.bf16.mxu0 %v6175
        %7164 = vmatpush1.bf16.msra.mxu0 %v6174
        %7165 = vmatprep.subr.bf16.mxu0 %v6191
        %7166 = vmatpush1.bf16.msra.mxu0 %v6190
        %7167 = vmatprep.subr.bf16.mxu0 %v6207
        %7168 = vmatpush1.bf16.msra.mxu0 %v6206
        %7169 = vmatprep.subr.bf16.mxu0 %v6223
        %7170 = vmatpush1.bf16.msra.mxu0 %v6222
        %7171 = vmatprep.subr.bf16.mxu0 %v6239
        %7172 = vmatpush1.bf16.msra.mxu0 %v6238
        %7173 = vmatprep.subr.bf16.mxu0 %v6255
        %7174 = vmatpush1.bf16.msra.mxu0 %v6254
        %7175 = vmatprep.mubr.bf16.mxu0 %v6311
        %7176 = vmatmul.mubr.bf16.gmra.mrb[0].mxu0 %v6310
        %v7177 = vpop.f32.mrb[0].mxu0
        %v7178 = vadd.f32 %v7105, %v7177
        %v7179 = vpop.f32.mrb[0].mxu0
        %v7180 = vadd.f32 %v7107, %v7179
        %v7181 = vpop.f32.mrb[0].mxu0
        %v7182 = vadd.f32 %v7109, %v7181
        %v7183 = vpop.f32.mrb[0].mxu0
        %v7184 = vadd.f32 %v7111, %v7183
        %7185 = vmatprep.mubr.bf16.mxu0 %v6315
        %7186 = vmatmul.mubr.bf16.gmra.mrb[0].mxu0 %v6314
        %v7187 = vpop.f32.mrb[0].mxu0
        %v7188 = vadd.f32 %v7115, %v7187
        %v7189 = vpop.f32.mrb[0].mxu0
        %v7190 = vadd.f32 %v7117, %v7189
        %v7191 = vpop.f32.mrb[0].mxu0
        %v7192 = vadd.f32 %v7119, %v7191
        %v7193 = vpop.f32.mrb[0].mxu0
        %v7194 = vadd.f32 %v7121, %v7193
        %7195 = vmatprep.mubr.bf16.mxu0 %v6319
        %7196 = vmatmul.mubr.bf16.gmra.mrb[0].mxu0 %v6318
        %v7197 = vpop.f32.mrb[0].mxu0
        %v7198 = vadd.f32 %v7125, %v7197
        %v7199 = vpop.f32.mrb[0].mxu0
        %v7200 = vadd.f32 %v7127, %v7199
        %v7201 = vpop.f32.mrb[0].mxu0
        %v7202 = vadd.f32 %v7129, %v7201
        %v7203 = vpop.f32.mrb[0].mxu0
        %v7204 = vadd.f32 %v7131, %v7203
        %7205 = vmatprep.mubr.bf16.mxu0 %v6323
        %7206 = vmatmul.mubr.bf16.gmra.mrb[0].mxu0 %v6322
        %v7207 = vpop.f32.mrb[0].mxu0
        %v7208 = vadd.f32 %v7135, %v7207
        %v7209 = vpop.f32.mrb[0].mxu0
        %v7210 = vadd.f32 %v7137, %v7209
        %v7211 = vpop.f32.mrb[0].mxu0
        %v7212 = vadd.f32 %v7139, %v7211
        %v7213 = vpop.f32.mrb[0].mxu0
        %v7214 = vadd.f32 %v7141, %v7213
        %7215 = vdwg.mxu0
        %7216 = vmatprep.subr.bf16.mxu0 %v5761
        %7217 = vmatpush1.bf16.msra.mxu0 %v5760
        %7218 = vmatprep.subr.bf16.mxu0 %v5777
        %7219 = vmatpush1.bf16.msra.mxu0 %v5776
        %7220 = vmatprep.subr.bf16.mxu0 %v5793
        %7221 = vmatpush1.bf16.msra.mxu0 %v5792
        %7222 = vmatprep.subr.bf16.mxu0 %v5809
        %7223 = vmatpush1.bf16.msra.mxu0 %v5808
        %7224 = vmatprep.subr.bf16.mxu0 %v5825
        %7225 = vmatpush1.bf16.msra.mxu0 %v5824
        %7226 = vmatprep.subr.bf16.mxu0 %v5841
        %7227 = vmatpush1.bf16.msra.mxu0 %v5840
        %7228 = vmatprep.subr.bf16.mxu0 %v5857
        %7229 = vmatpush1.bf16.msra.mxu0 %v5856
        %7230 = vmatprep.subr.bf16.mxu0 %v5873
        %7231 = vmatpush1.bf16.msra.mxu0 %v5872
        %7232 = vmatprep.subr.bf16.mxu0 %v5889
        %7233 = vmatpush1.bf16.msra.mxu0 %v5888
        %7234 = vmatprep.subr.bf16.mxu0 %v5905
        %7235 = vmatpush1.bf16.msra.mxu0 %v5904
        %7236 = vmatprep.subr.bf16.mxu0 %v5921
        %7237 = vmatpush1.bf16.msra.mxu0 %v5920
        %7238 = vmatprep.subr.bf16.mxu0 %v5937
        %7239 = vmatpush1.bf16.msra.mxu0 %v5936
        %7240 = vmatprep.subr.bf16.mxu0 %v5953
        %7241 = vmatpush1.bf16.msra.mxu0 %v5952
        %7242 = vmatprep.subr.bf16.mxu0 %v5969
        %7243 = vmatpush1.bf16.msra.mxu0 %v5968
        %7244 = vmatprep.subr.bf16.mxu0 %v5985
        %7245 = vmatpush1.bf16.msra.mxu0 %v5984
        %7246 = vmatprep.subr.bf16.mxu0 %v6001
        %7247 = vmatpush1.bf16.msra.mxu0 %v6000
        %7248 = vmatprep.mubr.bf16.mxu0 %v6309
        %7249 = vmatmul.mubr.bf16.gmra.mrb[0].mxu0 %v6308
        %v7250 = vpop.f32.mrb[0].mxu0
        %v7251 = vadd.f32 0.0, %v7250
        %v7252 = vpop.f32.mrb[0].mxu0
        %v7253 = vadd.f32 0.0, %v7252
        %v7254 = vpop.f32.mrb[0].mxu0
        %v7255 = vadd.f32 0.0, %v7254
        %v7256 = vpop.f32.mrb[0].mxu0
        %v7257 = vadd.f32 0.0, %v7256
        %7258 = vmatprep.mubr.bf16.mxu0 %v6313
        %7259 = vmatmul.mubr.bf16.gmra.mrb[0].mxu0 %v6312
        %v7260 = vpop.f32.mrb[0].mxu0
        %v7261 = vadd.f32 0.0, %v7260
        %v7262 = vpop.f32.mrb[0].mxu0
        %v7263 = vadd.f32 0.0, %v7262
        %v7264 = vpop.f32.mrb[0].mxu0
        %v7265 = vadd.f32 0.0, %v7264
        %v7266 = vpop.f32.mrb[0].mxu0
        %v7267 = vadd.f32 0.0, %v7266
        %7268 = vmatprep.mubr.bf16.mxu0 %v6317
        %7269 = vmatmul.mubr.bf16.gmra.mrb[0].mxu0 %v6316
        %v7270 = vpop.f32.mrb[0].mxu0
        %v7271 = vadd.f32 0.0, %v7270
        %v7272 = vpop.f32.mrb[0].mxu0
        %v7273 = vadd.f32 0.0, %v7272
        %v7274 = vpop.f32.mrb[0].mxu0
        %v7275 = vadd.f32 0.0, %v7274
        %v7276 = vpop.f32.mrb[0].mxu0
        %v7277 = vadd.f32 0.0, %v7276
        %7278 = vmatprep.mubr.bf16.mxu0 %v6321
        %7279 = vmatmul.mubr.bf16.gmra.mrb[0].mxu0 %v6320
        %v7280 = vpop.f32.mrb[0].mxu0
        %v7281 = vadd.f32 0.0, %v7280
        %v7282 = vpop.f32.mrb[0].mxu0
        %v7283 = vadd.f32 0.0, %v7282
        %v7284 = vpop.f32.mrb[0].mxu0
        %v7285 = vadd.f32 0.0, %v7284
        %v7286 = vpop.f32.mrb[0].mxu0
        %v7287 = vadd.f32 0.0, %v7286
        %7288 = vdwg.mxu0
        %7289 = vmatprep.subr.bf16.mxu0 %v6017
        %7290 = vmatpush1.bf16.msra.mxu0 %v6016
        %7291 = vmatprep.subr.bf16.mxu0 %v6033
        %7292 = vmatpush1.bf16.msra.mxu0 %v6032
        %7293 = vmatprep.subr.bf16.mxu0 %v6049
        %7294 = vmatpush1.bf16.msra.mxu0 %v6048
        %7295 = vmatprep.subr.bf16.mxu0 %v6065
        %7296 = vmatpush1.bf16.msra.mxu0 %v6064
        %7297 = vmatprep.subr.bf16.mxu0 %v6081
        %7298 = vmatpush1.bf16.msra.mxu0 %v6080
        %7299 = vmatprep.subr.bf16.mxu0 %v6097
        %7300 = vmatpush1.bf16.msra.mxu0 %v6096
        %7301 = vmatprep.subr.bf16.mxu0 %v6113
        %7302 = vmatpush1.bf16.msra.mxu0 %v6112
        %7303 = vmatprep.subr.bf16.mxu0 %v6129
        %7304 = vmatpush1.bf16.msra.mxu0 %v6128
        %7305 = vmatprep.subr.bf16.mxu0 %v6145
        %7306 = vmatpush1.bf16.msra.mxu0 %v6144
        %7307 = vmatprep.subr.bf16.mxu0 %v6161
        %7308 = vmatpush1.bf16.msra.mxu0 %v6160
        %7309 = vmatprep.subr.bf16.mxu0 %v6177
        %7310 = vmatpush1.bf16.msra.mxu0 %v6176
        %7311 = vmatprep.subr.bf16.mxu0 %v6193
        %7312 = vmatpush1.bf16.msra.mxu0 %v6192
        %7313 = vmatprep.subr.bf16.mxu0 %v6209
        %7314 = vmatpush1.bf16.msra.mxu0 %v6208
        %7315 = vmatprep.subr.bf16.mxu0 %v6225
        %7316 = vmatpush1.bf16.msra.mxu0 %v6224
        %7317 = vmatprep.subr.bf16.mxu0 %v6241
        %7318 = vmatpush1.bf16.msra.mxu0 %v6240
        %7319 = vmatprep.subr.bf16.mxu0 %v6257
        %7320 = vmatpush1.bf16.msra.mxu0 %v6256
        %7321 = vmatprep.mubr.bf16.mxu0 %v6311
        %7322 = vmatmul.mubr.bf16.gmra.mrb[0].mxu0 %v6310
        %v7323 = vpop.f32.mrb[0].mxu0
        %v7324 = vadd.f32 %v7251, %v7323
        %v7325 = vpop.f32.mrb[0].mxu0
        %v7326 = vadd.f32 %v7253, %v7325
        %v7327 = vpop.f32.mrb[0].mxu0
        %v7328 = vadd.f32 %v7255, %v7327
        %v7329 = vpop.f32.mrb[0].mxu0
        %v7330 = vadd.f32 %v7257, %v7329
        %7331 = vmatprep.mubr.bf16.mxu0 %v6315
        %7332 = vmatmul.mubr.bf16.gmra.mrb[0].mxu0 %v6314
        %v7333 = vpop.f32.mrb[0].mxu0
        %v7334 = vadd.f32 %v7261, %v7333
        %v7335 = vpop.f32.mrb[0].mxu0
        %v7336 = vadd.f32 %v7263, %v7335
        %v7337 = vpop.f32.mrb[0].mxu0
        %v7338 = vadd.f32 %v7265, %v7337
        %v7339 = vpop.f32.mrb[0].mxu0
        %v7340 = vadd.f32 %v7267, %v7339
        %7341 = vmatprep.mubr.bf16.mxu0 %v6319
        %7342 = vmatmul.mubr.bf16.gmra.mrb[0].mxu0 %v6318
        %v7343 = vpop.f32.mrb[0].mxu0
        %v7344 = vadd.f32 %v7271, %v7343
        %v7345 = vpop.f32.mrb[0].mxu0
        %v7346 = vadd.f32 %v7273, %v7345
        %v7347 = vpop.f32.mrb[0].mxu0
        %v7348 = vadd.f32 %v7275, %v7347
        %v7349 = vpop.f32.mrb[0].mxu0
        %v7350 = vadd.f32 %v7277, %v7349
        %7351 = vmatprep.mubr.bf16.mxu0 %v6323
        %7352 = vmatmul.mubr.bf16.gmra.mrb[0].mxu0 %v6322
        %v7353 = vpop.f32.mrb[0].mxu0
        %v7354 = vadd.f32 %v7281, %v7353
        %v7355 = vpop.f32.mrb[0].mxu0
        %v7356 = vadd.f32 %v7283, %v7355
        %v7357 = vpop.f32.mrb[0].mxu0
        %v7358 = vadd.f32 %v7285, %v7357
        %v7359 = vpop.f32.mrb[0].mxu0
        %v7360 = vadd.f32 %v7287, %v7359
        %7361 = vdwg.mxu0
        %7362 = vmatprep.subr.bf16.mxu0 %v5763
        %7363 = vmatpush1.bf16.msra.mxu0 %v5762
        %7364 = vmatprep.subr.bf16.mxu0 %v5779
        %7365 = vmatpush1.bf16.msra.mxu0 %v5778
        %7366 = vmatprep.subr.bf16.mxu0 %v5795
        %7367 = vmatpush1.bf16.msra.mxu0 %v5794
        %7368 = vmatprep.subr.bf16.mxu0 %v5811
        %7369 = vmatpush1.bf16.msra.mxu0 %v5810
        %7370 = vmatprep.subr.bf16.mxu0 %v5827
        %7371 = vmatpush1.bf16.msra.mxu0 %v5826
        %7372 = vmatprep.subr.bf16.mxu0 %v5843
        %7373 = vmatpush1.bf16.msra.mxu0 %v5842
        %7374 = vmatprep.subr.bf16.mxu0 %v5859
        %7375 = vmatpush1.bf16.msra.mxu0 %v5858
        %7376 = vmatprep.subr.bf16.mxu0 %v5875
        %7377 = vmatpush1.bf16.msra.mxu0 %v5874
        %7378 = vmatprep.subr.bf16.mxu0 %v5891
        %7379 = vmatpush1.bf16.msra.mxu0 %v5890
        %7380 = vmatprep.subr.bf16.mxu0 %v5907
        %7381 = vmatpush1.bf16.msra.mxu0 %v5906
        %7382 = vmatprep.subr.bf16.mxu0 %v5923
        %7383 = vmatpush1.bf16.msra.mxu0 %v5922
        %7384 = vmatprep.subr.bf16.mxu0 %v5939
        %7385 = vmatpush1.bf16.msra.mxu0 %v5938
        %7386 = vmatprep.subr.bf16.mxu0 %v5955
        %7387 = vmatpush1.bf16.msra.mxu0 %v5954
        %7388 = vmatprep.subr.bf16.mxu0 %v5971
        %7389 = vmatpush1.bf16.msra.mxu0 %v5970
        %7390 = vmatprep.subr.bf16.mxu0 %v5987
        %7391 = vmatpush1.bf16.msra.mxu0 %v5986
        %7392 = vmatprep.subr.bf16.mxu0 %v6003
        %7393 = vmatpush1.bf16.msra.mxu0 %v6002
        %7394 = vmatprep.mubr.bf16.mxu0 %v6309
        %7395 = vmatmul.mubr.bf16.gmra.mrb[0].mxu0 %v6308
        %v7396 = vpop.f32.mrb[0].mxu0
        %v7397 = vadd.f32 0.0, %v7396
        %v7398 = vpop.f32.mrb[0].mxu0
        %v7399 = vadd.f32 0.0, %v7398
        %v7400 = vpop.f32.mrb[0].mxu0
        %v7401 = vadd.f32 0.0, %v7400
        %v7402 = vpop.f32.mrb[0].mxu0
        %v7403 = vadd.f32 0.0, %v7402
        %7404 = vmatprep.mubr.bf16.mxu0 %v6313
        %7405 = vmatmul.mubr.bf16.gmra.mrb[0].mxu0 %v6312
        %v7406 = vpop.f32.mrb[0].mxu0
        %v7407 = vadd.f32 0.0, %v7406
        %v7408 = vpop.f32.mrb[0].mxu0
        %v7409 = vadd.f32 0.0, %v7408
        %v7410 = vpop.f32.mrb[0].mxu0
        %v7411 = vadd.f32 0.0, %v7410
        %v7412 = vpop.f32.mrb[0].mxu0
        %v7413 = vadd.f32 0.0, %v7412
        %7414 = vmatprep.mubr.bf16.mxu0 %v6317
        %7415 = vmatmul.mubr.bf16.gmra.mrb[0].mxu0 %v6316
        %v7416 = vpop.f32.mrb[0].mxu0
        %v7417 = vadd.f32 0.0, %v7416
        %v7418 = vpop.f32.mrb[0].mxu0
        %v7419 = vadd.f32 0.0, %v7418
        %v7420 = vpop.f32.mrb[0].mxu0
        %v7421 = vadd.f32 0.0, %v7420
        %v7422 = vpop.f32.mrb[0].mxu0
        %v7423 = vadd.f32 0.0, %v7422
        %7424 = vmatprep.mubr.bf16.mxu0 %v6321
        %7425 = vmatmul.mubr.bf16.gmra.mrb[0].mxu0 %v6320
        %v7426 = vpop.f32.mrb[0].mxu0
        %v7427 = vadd.f32 0.0, %v7426
        %v7428 = vpop.f32.mrb[0].mxu0
        %v7429 = vadd.f32 0.0, %v7428
        %v7430 = vpop.f32.mrb[0].mxu0
        %v7431 = vadd.f32 0.0, %v7430
        %v7432 = vpop.f32.mrb[0].mxu0
        %v7433 = vadd.f32 0.0, %v7432
        %7434 = vdwg.mxu0
        %7435 = vmatprep.subr.bf16.mxu0 %v6019
        %7436 = vmatpush1.bf16.msra.mxu0 %v6018
        %7437 = vmatprep.subr.bf16.mxu0 %v6035
        %7438 = vmatpush1.bf16.msra.mxu0 %v6034
        %7439 = vmatprep.subr.bf16.mxu0 %v6051
        %7440 = vmatpush1.bf16.msra.mxu0 %v6050
        %7441 = vmatprep.subr.bf16.mxu0 %v6067
        %7442 = vmatpush1.bf16.msra.mxu0 %v6066
        %7443 = vmatprep.subr.bf16.mxu0 %v6083
        %7444 = vmatpush1.bf16.msra.mxu0 %v6082
        %7445 = vmatprep.subr.bf16.mxu0 %v6099
        %7446 = vmatpush1.bf16.msra.mxu0 %v6098
        %7447 = vmatprep.subr.bf16.mxu0 %v6115
        %7448 = vmatpush1.bf16.msra.mxu0 %v6114
        %7449 = vmatprep.subr.bf16.mxu0 %v6131
        %7450 = vmatpush1.bf16.msra.mxu0 %v6130
        %7451 = vmatprep.subr.bf16.mxu0 %v6147
        %7452 = vmatpush1.bf16.msra.mxu0 %v6146
        %7453 = vmatprep.subr.bf16.mxu0 %v6163
        %7454 = vmatpush1.bf16.msra.mxu0 %v6162
        %7455 = vmatprep.subr.bf16.mxu0 %v6179
        %7456 = vmatpush1.bf16.msra.mxu0 %v6178
        %7457 = vmatprep.subr.bf16.mxu0 %v6195
        %7458 = vmatpush1.bf16.msra.mxu0 %v6194
        %7459 = vmatprep.subr.bf16.mxu0 %v6211
        %7460 = vmatpush1.bf16.msra.mxu0 %v6210
        %7461 = vmatprep.subr.bf16.mxu0 %v6227
        %7462 = vmatpush1.bf16.msra.mxu0 %v6226
        %7463 = vmatprep.subr.bf16.mxu0 %v6243
        %7464 = vmatpush1.bf16.msra.mxu0 %v6242
        %7465 = vmatprep.subr.bf16.mxu0 %v6259
        %7466 = vmatpush1.bf16.msra.mxu0 %v6258
        %7467 = vmatprep.mubr.bf16.mxu0 %v6311
        %7468 = vmatmul.mubr.bf16.gmra.mrb[0].mxu0 %v6310
        %v7469 = vpop.f32.mrb[0].mxu0
        %v7470 = vadd.f32 %v7397, %v7469
        %v7471 = vpop.f32.mrb[0].mxu0
        %v7472 = vadd.f32 %v7399, %v7471
        %v7473 = vpop.f32.mrb[0].mxu0
        %v7474 = vadd.f32 %v7401, %v7473
        %v7475 = vpop.f32.mrb[0].mxu0
        %v7476 = vadd.f32 %v7403, %v7475
        %7477 = vmatprep.mubr.bf16.mxu0 %v6315
        %7478 = vmatmul.mubr.bf16.gmra.mrb[0].mxu0 %v6314
        %v7479 = vpop.f32.mrb[0].mxu0
        %v7480 = vadd.f32 %v7407, %v7479
        %v7481 = vpop.f32.mrb[0].mxu0
        %v7482 = vadd.f32 %v7409, %v7481
        %v7483 = vpop.f32.mrb[0].mxu0
        %v7484 = vadd.f32 %v7411, %v7483
        %v7485 = vpop.f32.mrb[0].mxu0
        %v7486 = vadd.f32 %v7413, %v7485
        %7487 = vmatprep.mubr.bf16.mxu0 %v6319
        %7488 = vmatmul.mubr.bf16.gmra.mrb[0].mxu0 %v6318
        %v7489 = vpop.f32.mrb[0].mxu0
        %v7490 = vadd.f32 %v7417, %v7489
        %v7491 = vpop.f32.mrb[0].mxu0
        %v7492 = vadd.f32 %v7419, %v7491
        %v7493 = vpop.f32.mrb[0].mxu0
        %v7494 = vadd.f32 %v7421, %v7493
        %v7495 = vpop.f32.mrb[0].mxu0
        %v7496 = vadd.f32 %v7423, %v7495
        %7497 = vmatprep.mubr.bf16.mxu0 %v6323
        %7498 = vmatmul.mubr.bf16.gmra.mrb[0].mxu0 %v6322
        %v7499 = vpop.f32.mrb[0].mxu0
        %v7500 = vadd.f32 %v7427, %v7499
        %v7501 = vpop.f32.mrb[0].mxu0
        %v7502 = vadd.f32 %v7429, %v7501
        %v7503 = vpop.f32.mrb[0].mxu0
        %v7504 = vadd.f32 %v7431, %v7503
        %v7505 = vpop.f32.mrb[0].mxu0
        %v7506 = vadd.f32 %v7433, %v7505
        %7507 = vdwg.mxu0
        %v7508 = vadd.f32 %v5604, %v6448
        %v7509 = vadd.f32 %v5605, %v6450
        %v7510 = vadd.f32 %v5606, %v6594
        %v7511 = vadd.f32 %v5607, %v6596
        %v7512 = vadd.f32 %v5608, %v6740
        %v7513 = vadd.f32 %v5609, %v6742
        %v7514 = vadd.f32 %v5610, %v6886
        %v7515 = vadd.f32 %v5611, %v6888
        %v7516 = vadd.f32 %v5612, %v7032
        %v7517 = vadd.f32 %v5613, %v7034
        %v7518 = vadd.f32 %v5614, %v7178
        %v7519 = vadd.f32 %v5615, %v7180
        %v7520 = vadd.f32 %v5616, %v7324
        %v7521 = vadd.f32 %v5617, %v7326
        %v7522 = vadd.f32 %v5618, %v7470
        %v7523 = vadd.f32 %v5619, %v7472
        %v7524 = vadd.f32 %v5620, %v6452
        %v7525 = vadd.f32 %v5621, %v6454
        %v7526 = vadd.f32 %v5622, %v6598
        %v7527 = vadd.f32 %v5623, %v6600
        %v7528 = vadd.f32 %v5624, %v6744
        %v7529 = vadd.f32 %v5625, %v6746
        %v7530 = vadd.f32 %v5626, %v6890
        %v7531 = vadd.f32 %v5627, %v6892
        %v7532 = vadd.f32 %v5628, %v7036
        %v7533 = vadd.f32 %v5629, %v7038
        %v7534 = vadd.f32 %v5630, %v7182
        %v7535 = vadd.f32 %v5631, %v7184
        %v7536 = vadd.f32 %v5632, %v7328
        %v7537 = vadd.f32 %v5633, %v7330
        %v7538 = vadd.f32 %v5634, %v7474
        %v7539 = vadd.f32 %v5635, %v7476
        %v7540 = vadd.f32 %v5636, %v6458
        %v7541 = vadd.f32 %v5637, %v6460
        %v7542 = vadd.f32 %v5638, %v6604
        %v7543 = vadd.f32 %v5639, %v6606
        %v7544 = vadd.f32 %v5640, %v6750
        %v7545 = vadd.f32 %v5641, %v6752
        %v7546 = vadd.f32 %v5642, %v6896
        %v7547 = vadd.f32 %v5643, %v6898
        %v7548 = vadd.f32 %v5644, %v7042
        %v7549 = vadd.f32 %v5645, %v7044
        %v7550 = vadd.f32 %v5646, %v7188
        %v7551 = vadd.f32 %v5647, %v7190
        %v7552 = vadd.f32 %v5648, %v7334
        %v7553 = vadd.f32 %v5649, %v7336
        %v7554 = vadd.f32 %v5650, %v7480
        %v7555 = vadd.f32 %v5651, %v7482
        %v7556 = vadd.f32 %v5652, %v6462
        %v7557 = vadd.f32 %v5653, %v6464
        %v7558 = vadd.f32 %v5654, %v6608
        %v7559 = vadd.f32 %v5655, %v6610
        %v7560 = vadd.f32 %v5656, %v6754
        %v7561 = vadd.f32 %v5657, %v6756
        %v7562 = vadd.f32 %v5658, %v6900
        %v7563 = vadd.f32 %v5659, %v6902
        %v7564 = vadd.f32 %v5660, %v7046
        %v7565 = vadd.f32 %v5661, %v7048
        %v7566 = vadd.f32 %v5662, %v7192
        %v7567 = vadd.f32 %v5663, %v7194
        %v7568 = vadd.f32 %v5664, %v7338
        %v7569 = vadd.f32 %v5665, %v7340
        %v7570 = vadd.f32 %v5666, %v7484
        %v7571 = vadd.f32 %v5667, %v7486
        %v7572 = vadd.f32 %v5668, %v6468
        %v7573 = vadd.f32 %v5669, %v6470
        %v7574 = vadd.f32 %v5670, %v6614
        %v7575 = vadd.f32 %v5671, %v6616
        %v7576 = vadd.f32 %v5672, %v6760
        %v7577 = vadd.f32 %v5673, %v6762
        %v7578 = vadd.f32 %v5674, %v6906
        %v7579 = vadd.f32 %v5675, %v6908
        %v7580 = vadd.f32 %v5676, %v7052
        %v7581 = vadd.f32 %v5677, %v7054
        %v7582 = vadd.f32 %v5678, %v7198
        %v7583 = vadd.f32 %v5679, %v7200
        %v7584 = vadd.f32 %v5680, %v7344
        %v7585 = vadd.f32 %v5681, %v7346
        %v7586 = vadd.f32 %v5682, %v7490
        %v7587 = vadd.f32 %v5683, %v7492
        %v7588 = vadd.f32 %v5684, %v6472
        %v7589 = vadd.f32 %v5685, %v6474
        %v7590 = vadd.f32 %v5686, %v6618
        %v7591 = vadd.f32 %v5687, %v6620
        %v7592 = vadd.f32 %v5688, %v6764
        %v7593 = vadd.f32 %v5689, %v6766
        %v7594 = vadd.f32 %v5690, %v6910
        %v7595 = vadd.f32 %v5691, %v6912
        %v7596 = vadd.f32 %v5692, %v7056
        %v7597 = vadd.f32 %v5693, %v7058
        %v7598 = vadd.f32 %v5694, %v7202
        %v7599 = vadd.f32 %v5695, %v7204
        %v7600 = vadd.f32 %v5696, %v7348
        %v7601 = vadd.f32 %v5697, %v7350
        %v7602 = vadd.f32 %v5698, %v7494
        %v7603 = vadd.f32 %v5699, %v7496
        %v7604 = vadd.f32 %v5700, %v6478
        %v7605 = vadd.f32 %v5701, %v6480
        %v7606 = vadd.f32 %v5702, %v6624
        %v7607 = vadd.f32 %v5703, %v6626
        %v7608 = vadd.f32 %v5704, %v6770
        %v7609 = vadd.f32 %v5705, %v6772
        %v7610 = vadd.f32 %v5706, %v6916
        %v7611 = vadd.f32 %v5707, %v6918
        %v7612 = vadd.f32 %v5708, %v7062
        %v7613 = vadd.f32 %v5709, %v7064
        %v7614 = vadd.f32 %v5710, %v7208
        %v7615 = vadd.f32 %v5711, %v7210
        %v7616 = vadd.f32 %v5712, %v7354
        %v7617 = vadd.f32 %v5713, %v7356
        %v7618 = vadd.f32 %v5714, %v7500
        %v7619 = vadd.f32 %v5715, %v7502
        %v7620 = vadd.f32 %v5716, %v6482
        %v7621 = vadd.f32 %v5717, %v6484
        %v7622 = vadd.f32 %v5718, %v6628
        %v7623 = vadd.f32 %v5719, %v6630
        %v7624 = vadd.f32 %v5720, %v6774
        %v7625 = vadd.f32 %v5721, %v6776
        %v7626 = vadd.f32 %v5722, %v6920
        %v7627 = vadd.f32 %v5723, %v6922
        %v7628 = vadd.f32 %v5724, %v7066
        %v7629 = vadd.f32 %v5725, %v7068
        %v7630 = vadd.f32 %v5726, %v7212
        %v7631 = vadd.f32 %v5727, %v7214
        %v7632 = vadd.f32 %v5728, %v7358
        %v7633 = vadd.f32 %v5729, %v7360
        %v7634 = vadd.f32 %v5730, %v7504
        %v7635 = vadd.f32 %v5731, %v7506
        %7636 = vst [vmem:[#allocation2] sm:$0xff] %v7508
        %7637 = vst [vmem:[#allocation2 + $0x8] sm:$0xff] %v7509
        %7638 = vst [vmem:[#allocation2 + $0x10] sm:$0xff] %v7510
        %7639 = vst [vmem:[#allocation2 + $0x18] sm:$0xff] %v7511
        %7640 = vst [vmem:[#allocation2 + $0x20] sm:$0xff] %v7512
        %7641 = vst [vmem:[#allocation2 + $0x28] sm:$0xff] %v7513
        %7642 = vst [vmem:[#allocation2 + $0x30] sm:$0xff] %v7514
        %7643 = vst [vmem:[#allocation2 + $0x38] sm:$0xff] %v7515
        %7644 = vst [vmem:[#allocation2 + $0x40] sm:$0xff] %v7516
        %7645 = vst [vmem:[#allocation2 + $0x48] sm:$0xff] %v7517
        %7646 = vst [vmem:[#allocation2 + $0x50] sm:$0xff] %v7518
        %7647 = vst [vmem:[#allocation2 + $0x58] sm:$0xff] %v7519
        %7648 = vst [vmem:[#allocation2 + $0x60] sm:$0xff] %v7520
        %7649 = vst [vmem:[#allocation2 + $0x68] sm:$0xff] %v7521
        %7650 = vst [vmem:[#allocation2 + $0x70] sm:$0xff] %v7522
        %7651 = vst [vmem:[#allocation2 + $0x78] sm:$0xff] %v7523
        %7652 = vst [vmem:[#allocation2 + $0x80] sm:$0xff] %v7524
        %7653 = vst [vmem:[#allocation2 + $0x88] sm:$0xff] %v7525
        %7654 = vst [vmem:[#allocation2 + $0x90] sm:$0xff] %v7526
        %7655 = vst [vmem:[#allocation2 + $0x98] sm:$0xff] %v7527
        %7656 = vst [vmem:[#allocation2 + $0xa0] sm:$0xff] %v7528
        %7657 = vst [vmem:[#allocation2 + $0xa8] sm:$0xff] %v7529
        %7658 = vst [vmem:[#allocation2 + $0xb0] sm:$0xff] %v7530
        %7659 = vst [vmem:[#allocation2 + $0xb8] sm:$0xff] %v7531
        %7660 = vst [vmem:[#allocation2 + $0xc0] sm:$0xff] %v7532
        %7661 = vst [vmem:[#allocation2 + $0xc8] sm:$0xff] %v7533
        %7662 = vst [vmem:[#allocation2 + $0xd0] sm:$0xff] %v7534
        %7663 = vst [vmem:[#allocation2 + $0xd8] sm:$0xff] %v7535
        %7664 = vst [vmem:[#allocation2 + $0xe0] sm:$0xff] %v7536
        %7665 = vst [vmem:[#allocation2 + $0xe8] sm:$0xff] %v7537
        %7666 = vst [vmem:[#allocation2 + $0xf0] sm:$0xff] %v7538
        %7667 = vst [vmem:[#allocation2 + $0xf8] sm:$0xff] %v7539
        %7668 = vst [vmem:[#allocation2 + $0x100] sm:$0xff] %v7540
        %7669 = vst [vmem:[#allocation2 + $0x108] sm:$0xff] %v7541
        %7670 = vst [vmem:[#allocation2 + $0x110] sm:$0xff] %v7542
        %7671 = vst [vmem:[#allocation2 + $0x118] sm:$0xff] %v7543
        %7672 = vst [vmem:[#allocation2 + $0x120] sm:$0xff] %v7544
        %7673 = vst [vmem:[#allocation2 + $0x128] sm:$0xff] %v7545
        %7674 = vst [vmem:[#allocation2 + $0x130] sm:$0xff] %v7546
        %7675 = vst [vmem:[#allocation2 + $0x138] sm:$0xff] %v7547
        %7676 = vst [vmem:[#allocation2 + $0x140] sm:$0xff] %v7548
        %7677 = vst [vmem:[#allocation2 + $0x148] sm:$0xff] %v7549
        %7678 = vst [vmem:[#allocation2 + $0x150] sm:$0xff] %v7550
        %7679 = vst [vmem:[#allocation2 + $0x158] sm:$0xff] %v7551
        %7680 = vst [vmem:[#allocation2 + $0x160] sm:$0xff] %v7552
        %7681 = vst [vmem:[#allocation2 + $0x168] sm:$0xff] %v7553
        %7682 = vst [vmem:[#allocation2 + $0x170] sm:$0xff] %v7554
        %7683 = vst [vmem:[#allocation2 + $0x178] sm:$0xff] %v7555
        %7684 = vst [vmem:[#allocation2 + $0x180] sm:$0xff] %v7556
        %7685 = vst [vmem:[#allocation2 + $0x188] sm:$0xff] %v7557
        %7686 = vst [vmem:[#allocation2 + $0x190] sm:$0xff] %v7558
        %7687 = vst [vmem:[#allocation2 + $0x198] sm:$0xff] %v7559
        %7688 = vst [vmem:[#allocation2 + $0x1a0] sm:$0xff] %v7560
        %7689 = vst [vmem:[#allocation2 + $0x1a8] sm:$0xff] %v7561
        %7690 = vst [vmem:[#allocation2 + $0x1b0] sm:$0xff] %v7562
        %7691 = vst [vmem:[#allocation2 + $0x1b8] sm:$0xff] %v7563
        %7692 = vst [vmem:[#allocation2 + $0x1c0] sm:$0xff] %v7564
        %7693 = vst [vmem:[#allocation2 + $0x1c8] sm:$0xff] %v7565
        %7694 = vst [vmem:[#allocation2 + $0x1d0] sm:$0xff] %v7566
        %7695 = vst [vmem:[#allocation2 + $0x1d8] sm:$0xff] %v7567
        %7696 = vst [vmem:[#allocation2 + $0x1e0] sm:$0xff] %v7568
        %7697 = vst [vmem:[#allocation2 + $0x1e8] sm:$0xff] %v7569
        %7698 = vst [vmem:[#allocation2 + $0x1f0] sm:$0xff] %v7570
        %7699 = vst [vmem:[#allocation2 + $0x1f8] sm:$0xff] %v7571
        %7700 = vst [vmem:[#allocation2 + $0x200] sm:$0xff] %v7572
        %7701 = vst [vmem:[#allocation2 + $0x208] sm:$0xff] %v7573
        %7702 = vst [vmem:[#allocation2 + $0x210] sm:$0xff] %v7574
        %7703 = vst [vmem:[#allocation2 + $0x218] sm:$0xff] %v7575
        %7704 = vst [vmem:[#allocation2 + $0x220] sm:$0xff] %v7576
        %7705 = vst [vmem:[#allocation2 + $0x228] sm:$0xff] %v7577
        %7706 = vst [vmem:[#allocation2 + $0x230] sm:$0xff] %v7578
        %7707 = vst [vmem:[#allocation2 + $0x238] sm:$0xff] %v7579
        %7708 = vst [vmem:[#allocation2 + $0x240] sm:$0xff] %v7580
        %7709 = vst [vmem:[#allocation2 + $0x248] sm:$0xff] %v7581
        %7710 = vst [vmem:[#allocation2 + $0x250] sm:$0xff] %v7582
        %7711 = vst [vmem:[#allocation2 + $0x258] sm:$0xff] %v7583
        %7712 = vst [vmem:[#allocation2 + $0x260] sm:$0xff] %v7584
        %7713 = vst [vmem:[#allocation2 + $0x268] sm:$0xff] %v7585
        %7714 = vst [vmem:[#allocation2 + $0x270] sm:$0xff] %v7586
        %7715 = vst [vmem:[#allocation2 + $0x278] sm:$0xff] %v7587
        %7716 = vst [vmem:[#allocation2 + $0x280] sm:$0xff] %v7588
        %7717 = vst [vmem:[#allocation2 + $0x288] sm:$0xff] %v7589
        %7718 = vst [vmem:[#allocation2 + $0x290] sm:$0xff] %v7590
        %7719 = vst [vmem:[#allocation2 + $0x298] sm:$0xff] %v7591
        %7720 = vst [vmem:[#allocation2 + $0x2a0] sm:$0xff] %v7592
        %7721 = vst [vmem:[#allocation2 + $0x2a8] sm:$0xff] %v7593
        %7722 = vst [vmem:[#allocation2 + $0x2b0] sm:$0xff] %v7594
        %7723 = vst [vmem:[#allocation2 + $0x2b8] sm:$0xff] %v7595
        %7724 = vst [vmem:[#allocation2 + $0x2c0] sm:$0xff] %v7596
        %7725 = vst [vmem:[#allocation2 + $0x2c8] sm:$0xff] %v7597
        %7726 = vst [vmem:[#allocation2 + $0x2d0] sm:$0xff] %v7598
        %7727 = vst [vmem:[#allocation2 + $0x2d8] sm:$0xff] %v7599
        %7728 = vst [vmem:[#allocation2 + $0x2e0] sm:$0xff] %v7600
        %7729 = vst [vmem:[#allocation2 + $0x2e8] sm:$0xff] %v7601
        %7730 = vst [vmem:[#allocation2 + $0x2f0] sm:$0xff] %v7602
        %7731 = vst [vmem:[#allocation2 + $0x2f8] sm:$0xff] %v7603
        %7732 = vst [vmem:[#allocation2 + $0x300] sm:$0xff] %v7604
        %7733 = vst [vmem:[#allocation2 + $0x308] sm:$0xff] %v7605
        %7734 = vst [vmem:[#allocation2 + $0x310] sm:$0xff] %v7606
        %7735 = vst [vmem:[#allocation2 + $0x318] sm:$0xff] %v7607
        %7736 = vst [vmem:[#allocation2 + $0x320] sm:$0xff] %v7608
        %7737 = vst [vmem:[#allocation2 + $0x328] sm:$0xff] %v7609
        %7738 = vst [vmem:[#allocation2 + $0x330] sm:$0xff] %v7610
        %7739 = vst [vmem:[#allocation2 + $0x338] sm:$0xff] %v7611
        %7740 = vst [vmem:[#allocation2 + $0x340] sm:$0xff] %v7612
        %7741 = vst [vmem:[#allocation2 + $0x348] sm:$0xff] %v7613
        %7742 = vst [vmem:[#allocation2 + $0x350] sm:$0xff] %v7614
        %7743 = vst [vmem:[#allocation2 + $0x358] sm:$0xff] %v7615
        %7744 = vst [vmem:[#allocation2 + $0x360] sm:$0xff] %v7616
        %7745 = vst [vmem:[#allocation2 + $0x368] sm:$0xff] %v7617
        %7746 = vst [vmem:[#allocation2 + $0x370] sm:$0xff] %v7618
        %7747 = vst [vmem:[#allocation2 + $0x378] sm:$0xff] %v7619
        %7748 = vst [vmem:[#allocation2 + $0x380] sm:$0xff] %v7620
        %7749 = vst [vmem:[#allocation2 + $0x388] sm:$0xff] %v7621
        %7750 = vst [vmem:[#allocation2 + $0x390] sm:$0xff] %v7622
        %7751 = vst [vmem:[#allocation2 + $0x398] sm:$0xff] %v7623
        %7752 = vst [vmem:[#allocation2 + $0x3a0] sm:$0xff] %v7624
        %7753 = vst [vmem:[#allocation2 + $0x3a8] sm:$0xff] %v7625
        %7754 = vst [vmem:[#allocation2 + $0x3b0] sm:$0xff] %v7626
        %7755 = vst [vmem:[#allocation2 + $0x3b8] sm:$0xff] %v7627
        %7756 = vst [vmem:[#allocation2 + $0x3c0] sm:$0xff] %v7628
        %7757 = vst [vmem:[#allocation2 + $0x3c8] sm:$0xff] %v7629
        %7758 = vst [vmem:[#allocation2 + $0x3d0] sm:$0xff] %v7630
        %7759 = vst [vmem:[#allocation2 + $0x3d8] sm:$0xff] %v7631
        %7760 = vst [vmem:[#allocation2 + $0x3e0] sm:$0xff] %v7632
        %7761 = vst [vmem:[#allocation2 + $0x3e8] sm:$0xff] %v7633
        %7762 = vst [vmem:[#allocation2 + $0x3f0] sm:$0xff] %v7634
        %7763 = vst [vmem:[#allocation2 + $0x3f8] sm:$0xff] %v7635
        %p7764 = scmp.eq.s32.totalorder %s31, 1
        // Predicated region
        $region61: #{tpu_custom_call.1} parent=43 // pred_check
          %p7765 = pneg %p7764
        $region62: #{tpu_custom_call.1} parent=43 // pred_check_branch
          %7767 = sbr.rel (%p7765) target = $region64
        $region63: #{tpu_custom_call.1} parent=43 // pred_region
          %v7768 = vld [vmem:[#allocation2] sm:$0xff]
          %v7769 = vld [vmem:[#allocation2 + $0x8] sm:$0xff]
          %v7770 = vld [vmem:[#allocation2 + $0x10] sm:$0xff]
          %v7771 = vld [vmem:[#allocation2 + $0x18] sm:$0xff]
          %v7772 = vld [vmem:[#allocation2 + $0x20] sm:$0xff]
          %v7773 = vld [vmem:[#allocation2 + $0x28] sm:$0xff]
          %v7774 = vld [vmem:[#allocation2 + $0x30] sm:$0xff]
          %v7775 = vld [vmem:[#allocation2 + $0x38] sm:$0xff]
          %v7776 = vld [vmem:[#allocation2 + $0x40] sm:$0xff]
          %v7777 = vld [vmem:[#allocation2 + $0x48] sm:$0xff]
          %v7778 = vld [vmem:[#allocation2 + $0x50] sm:$0xff]
          %v7779 = vld [vmem:[#allocation2 + $0x58] sm:$0xff]
          %v7780 = vld [vmem:[#allocation2 + $0x60] sm:$0xff]
          %v7781 = vld [vmem:[#allocation2 + $0x68] sm:$0xff]
          %v7782 = vld [vmem:[#allocation2 + $0x70] sm:$0xff]
          %v7783 = vld [vmem:[#allocation2 + $0x78] sm:$0xff]
          %v7784 = vld [vmem:[#allocation2 + $0x80] sm:$0xff]
          %v7785 = vld [vmem:[#allocation2 + $0x88] sm:$0xff]
          %v7786 = vld [vmem:[#allocation2 + $0x90] sm:$0xff]
          %v7787 = vld [vmem:[#allocation2 + $0x98] sm:$0xff]
          %v7788 = vld [vmem:[#allocation2 + $0xa0] sm:$0xff]
          %v7789 = vld [vmem:[#allocation2 + $0xa8] sm:$0xff]
          %v7790 = vld [vmem:[#allocation2 + $0xb0] sm:$0xff]
          %v7791 = vld [vmem:[#allocation2 + $0xb8] sm:$0xff]
          %v7792 = vld [vmem:[#allocation2 + $0xc0] sm:$0xff]
          %v7793 = vld [vmem:[#allocation2 + $0xc8] sm:$0xff]
          %v7794 = vld [vmem:[#allocation2 + $0xd0] sm:$0xff]
          %v7795 = vld [vmem:[#allocation2 + $0xd8] sm:$0xff]
          %v7796 = vld [vmem:[#allocation2 + $0xe0] sm:$0xff]
          %v7797 = vld [vmem:[#allocation2 + $0xe8] sm:$0xff]
          %v7798 = vld [vmem:[#allocation2 + $0xf0] sm:$0xff]
          %v7799 = vld [vmem:[#allocation2 + $0xf8] sm:$0xff]
          %v7800 = vld [vmem:[#allocation2 + $0x100] sm:$0xff]
          %v7801 = vld [vmem:[#allocation2 + $0x108] sm:$0xff]
          %v7802 = vld [vmem:[#allocation2 + $0x110] sm:$0xff]
          %v7803 = vld [vmem:[#allocation2 + $0x118] sm:$0xff]
          %v7804 = vld [vmem:[#allocation2 + $0x120] sm:$0xff]
          %v7805 = vld [vmem:[#allocation2 + $0x128] sm:$0xff]
          %v7806 = vld [vmem:[#allocation2 + $0x130] sm:$0xff]
          %v7807 = vld [vmem:[#allocation2 + $0x138] sm:$0xff]
          %v7808 = vld [vmem:[#allocation2 + $0x140] sm:$0xff]
          %v7809 = vld [vmem:[#allocation2 + $0x148] sm:$0xff]
          %v7810 = vld [vmem:[#allocation2 + $0x150] sm:$0xff]
          %v7811 = vld [vmem:[#allocation2 + $0x158] sm:$0xff]
          %v7812 = vld [vmem:[#allocation2 + $0x160] sm:$0xff]
          %v7813 = vld [vmem:[#allocation2 + $0x168] sm:$0xff]
          %v7814 = vld [vmem:[#allocation2 + $0x170] sm:$0xff]
          %v7815 = vld [vmem:[#allocation2 + $0x178] sm:$0xff]
          %v7816 = vld [vmem:[#allocation2 + $0x180] sm:$0xff]
          %v7817 = vld [vmem:[#allocation2 + $0x188] sm:$0xff]
          %v7818 = vld [vmem:[#allocation2 + $0x190] sm:$0xff]
          %v7819 = vld [vmem:[#allocation2 + $0x198] sm:$0xff]
          %v7820 = vld [vmem:[#allocation2 + $0x1a0] sm:$0xff]
          %v7821 = vld [vmem:[#allocation2 + $0x1a8] sm:$0xff]
          %v7822 = vld [vmem:[#allocation2 + $0x1b0] sm:$0xff]
          %v7823 = vld [vmem:[#allocation2 + $0x1b8] sm:$0xff]
          %v7824 = vld [vmem:[#allocation2 + $0x1c0] sm:$0xff]
          %v7825 = vld [vmem:[#allocation2 + $0x1c8] sm:$0xff]
          %v7826 = vld [vmem:[#allocation2 + $0x1d0] sm:$0xff]
          %v7827 = vld [vmem:[#allocation2 + $0x1d8] sm:$0xff]
          %v7828 = vld [vmem:[#allocation2 + $0x1e0] sm:$0xff]
          %v7829 = vld [vmem:[#allocation2 + $0x1e8] sm:$0xff]
          %v7830 = vld [vmem:[#allocation2 + $0x1f0] sm:$0xff]
          %v7831 = vld [vmem:[#allocation2 + $0x1f8] sm:$0xff]
          %v7832 = vld [vmem:[#allocation2 + $0x200] sm:$0xff]
          %v7833 = vld [vmem:[#allocation2 + $0x208] sm:$0xff]
          %v7834 = vld [vmem:[#allocation2 + $0x210] sm:$0xff]
          %v7835 = vld [vmem:[#allocation2 + $0x218] sm:$0xff]
          %v7836 = vld [vmem:[#allocation2 + $0x220] sm:$0xff]
          %v7837 = vld [vmem:[#allocation2 + $0x228] sm:$0xff]
          %v7838 = vld [vmem:[#allocation2 + $0x230] sm:$0xff]
          %v7839 = vld [vmem:[#allocation2 + $0x238] sm:$0xff]
          %v7840 = vld [vmem:[#allocation2 + $0x240] sm:$0xff]
          %v7841 = vld [vmem:[#allocation2 + $0x248] sm:$0xff]
          %v7842 = vld [vmem:[#allocation2 + $0x250] sm:$0xff]
          %v7843 = vld [vmem:[#allocation2 + $0x258] sm:$0xff]
          %v7844 = vld [vmem:[#allocation2 + $0x260] sm:$0xff]
          %v7845 = vld [vmem:[#allocation2 + $0x268] sm:$0xff]
          %v7846 = vld [vmem:[#allocation2 + $0x270] sm:$0xff]
          %v7847 = vld [vmem:[#allocation2 + $0x278] sm:$0xff]
          %v7848 = vld [vmem:[#allocation2 + $0x280] sm:$0xff]
          %v7849 = vld [vmem:[#allocation2 + $0x288] sm:$0xff]
          %v7850 = vld [vmem:[#allocation2 + $0x290] sm:$0xff]
          %v7851 = vld [vmem:[#allocation2 + $0x298] sm:$0xff]
          %v7852 = vld [vmem:[#allocation2 + $0x2a0] sm:$0xff]
          %v7853 = vld [vmem:[#allocation2 + $0x2a8] sm:$0xff]
          %v7854 = vld [vmem:[#allocation2 + $0x2b0] sm:$0xff]
          %v7855 = vld [vmem:[#allocation2 + $0x2b8] sm:$0xff]
          %v7856 = vld [vmem:[#allocation2 + $0x2c0] sm:$0xff]
          %v7857 = vld [vmem:[#allocation2 + $0x2c8] sm:$0xff]
          %v7858 = vld [vmem:[#allocation2 + $0x2d0] sm:$0xff]
          %v7859 = vld [vmem:[#allocation2 + $0x2d8] sm:$0xff]
          %v7860 = vld [vmem:[#allocation2 + $0x2e0] sm:$0xff]
          %v7861 = vld [vmem:[#allocation2 + $0x2e8] sm:$0xff]
          %v7862 = vld [vmem:[#allocation2 + $0x2f0] sm:$0xff]
          %v7863 = vld [vmem:[#allocation2 + $0x2f8] sm:$0xff]
          %v7864 = vld [vmem:[#allocation2 + $0x300] sm:$0xff]
          %v7865 = vld [vmem:[#allocation2 + $0x308] sm:$0xff]
          %v7866 = vld [vmem:[#allocation2 + $0x310] sm:$0xff]
          %v7867 = vld [vmem:[#allocation2 + $0x318] sm:$0xff]
          %v7868 = vld [vmem:[#allocation2 + $0x320] sm:$0xff]
          %v7869 = vld [vmem:[#allocation2 + $0x328] sm:$0xff]
          %v7870 = vld [vmem:[#allocation2 + $0x330] sm:$0xff]
          %v7871 = vld [vmem:[#allocation2 + $0x338] sm:$0xff]
          %v7872 = vld [vmem:[#allocation2 + $0x340] sm:$0xff]
          %v7873 = vld [vmem:[#allocation2 + $0x348] sm:$0xff]
          %v7874 = vld [vmem:[#allocation2 + $0x350] sm:$0xff]
          %v7875 = vld [vmem:[#allocation2 + $0x358] sm:$0xff]
          %v7876 = vld [vmem:[#allocation2 + $0x360] sm:$0xff]
          %v7877 = vld [vmem:[#allocation2 + $0x368] sm:$0xff]
          %v7878 = vld [vmem:[#allocation2 + $0x370] sm:$0xff]
          %v7879 = vld [vmem:[#allocation2 + $0x378] sm:$0xff]
          %v7880 = vld [vmem:[#allocation2 + $0x380] sm:$0xff]
          %v7881 = vld [vmem:[#allocation2 + $0x388] sm:$0xff]
          %v7882 = vld [vmem:[#allocation2 + $0x390] sm:$0xff]
          %v7883 = vld [vmem:[#allocation2 + $0x398] sm:$0xff]
          %v7884 = vld [vmem:[#allocation2 + $0x3a0] sm:$0xff]
          %v7885 = vld [vmem:[#allocation2 + $0x3a8] sm:$0xff]
          %v7886 = vld [vmem:[#allocation2 + $0x3b0] sm:$0xff]
          %v7887 = vld [vmem:[#allocation2 + $0x3b8] sm:$0xff]
          %v7888 = vld [vmem:[#allocation2 + $0x3c0] sm:$0xff]
          %v7889 = vld [vmem:[#allocation2 + $0x3c8] sm:$0xff]
          %v7890 = vld [vmem:[#allocation2 + $0x3d0] sm:$0xff]
          %v7891 = vld [vmem:[#allocation2 + $0x3d8] sm:$0xff]
          %v7892 = vld [vmem:[#allocation2 + $0x3e0] sm:$0xff]
          %v7893 = vld [vmem:[#allocation2 + $0x3e8] sm:$0xff]
          %v7894 = vld [vmem:[#allocation2 + $0x3f0] sm:$0xff]
          %v7895 = vld [vmem:[#allocation2 + $0x3f8] sm:$0xff]
          %v7896 = vmul.f32 %v7768, 0.0625
          %v7897 = vmul.f32 %v7769, 0.0625
          %v7898 = vmul.f32 %v7770, 0.0625
          %v7899 = vmul.f32 %v7771, 0.0625
          %v7900 = vmul.f32 %v7772, 0.0625
          %v7901 = vmul.f32 %v7773, 0.0625
          %v7902 = vmul.f32 %v7774, 0.0625
          %v7903 = vmul.f32 %v7775, 0.0625
          %v7904 = vmul.f32 %v7776, 0.0625
          %v7905 = vmul.f32 %v7777, 0.0625
          %v7906 = vmul.f32 %v7778, 0.0625
          %v7907 = vmul.f32 %v7779, 0.0625
          %v7908 = vmul.f32 %v7780, 0.0625
          %v7909 = vmul.f32 %v7781, 0.0625
          %v7910 = vmul.f32 %v7782, 0.0625
          %v7911 = vmul.f32 %v7783, 0.0625
          %v7912 = vmul.f32 %v7784, 0.0625
          %v7913 = vmul.f32 %v7785, 0.0625
          %v7914 = vmul.f32 %v7786, 0.0625
          %v7915 = vmul.f32 %v7787, 0.0625
          %v7916 = vmul.f32 %v7788, 0.0625
          %v7917 = vmul.f32 %v7789, 0.0625
          %v7918 = vmul.f32 %v7790, 0.0625
          %v7919 = vmul.f32 %v7791, 0.0625
          %v7920 = vmul.f32 %v7792, 0.0625
          %v7921 = vmul.f32 %v7793, 0.0625
          %v7922 = vmul.f32 %v7794, 0.0625
          %v7923 = vmul.f32 %v7795, 0.0625
          %v7924 = vmul.f32 %v7796, 0.0625
          %v7925 = vmul.f32 %v7797, 0.0625
          %v7926 = vmul.f32 %v7798, 0.0625
          %v7927 = vmul.f32 %v7799, 0.0625
          %v7928 = vmul.f32 %v7800, 0.0625
          %v7929 = vmul.f32 %v7801, 0.0625
          %v7930 = vmul.f32 %v7802, 0.0625
          %v7931 = vmul.f32 %v7803, 0.0625
          %v7932 = vmul.f32 %v7804, 0.0625
          %v7933 = vmul.f32 %v7805, 0.0625
          %v7934 = vmul.f32 %v7806, 0.0625
          %v7935 = vmul.f32 %v7807, 0.0625
          %v7936 = vmul.f32 %v7808, 0.0625
          %v7937 = vmul.f32 %v7809, 0.0625
          %v7938 = vmul.f32 %v7810, 0.0625
          %v7939 = vmul.f32 %v7811, 0.0625
          %v7940 = vmul.f32 %v7812, 0.0625
          %v7941 = vmul.f32 %v7813, 0.0625
          %v7942 = vmul.f32 %v7814, 0.0625
          %v7943 = vmul.f32 %v7815, 0.0625
          %v7944 = vmul.f32 %v7816, 0.0625
          %v7945 = vmul.f32 %v7817, 0.0625
          %v7946 = vmul.f32 %v7818, 0.0625
          %v7947 = vmul.f32 %v7819, 0.0625
          %v7948 = vmul.f32 %v7820, 0.0625
          %v7949 = vmul.f32 %v7821, 0.0625
          %v7950 = vmul.f32 %v7822, 0.0625
          %v7951 = vmul.f32 %v7823, 0.0625
          %v7952 = vmul.f32 %v7824, 0.0625
          %v7953 = vmul.f32 %v7825, 0.0625
          %v7954 = vmul.f32 %v7826, 0.0625
          %v7955 = vmul.f32 %v7827, 0.0625
          %v7956 = vmul.f32 %v7828, 0.0625
          %v7957 = vmul.f32 %v7829, 0.0625
          %v7958 = vmul.f32 %v7830, 0.0625
          %v7959 = vmul.f32 %v7831, 0.0625
          %v7960 = vmul.f32 %v7832, 0.0625
          %v7961 = vmul.f32 %v7833, 0.0625
          %v7962 = vmul.f32 %v7834, 0.0625
          %v7963 = vmul.f32 %v7835, 0.0625
          %v7964 = vmul.f32 %v7836, 0.0625
          %v7965 = vmul.f32 %v7837, 0.0625
          %v7966 = vmul.f32 %v7838, 0.0625
          %v7967 = vmul.f32 %v7839, 0.0625
          %v7968 = vmul.f32 %v7840, 0.0625
          %v7969 = vmul.f32 %v7841, 0.0625
          %v7970 = vmul.f32 %v7842, 0.0625
          %v7971 = vmul.f32 %v7843, 0.0625
          %v7972 = vmul.f32 %v7844, 0.0625
          %v7973 = vmul.f32 %v7845, 0.0625
          %v7974 = vmul.f32 %v7846, 0.0625
          %v7975 = vmul.f32 %v7847, 0.0625
          %v7976 = vmul.f32 %v7848, 0.0625
          %v7977 = vmul.f32 %v7849, 0.0625
          %v7978 = vmul.f32 %v7850, 0.0625
          %v7979 = vmul.f32 %v7851, 0.0625
          %v7980 = vmul.f32 %v7852, 0.0625
          %v7981 = vmul.f32 %v7853, 0.0625
          %v7982 = vmul.f32 %v7854, 0.0625
          %v7983 = vmul.f32 %v7855, 0.0625
          %v7984 = vmul.f32 %v7856, 0.0625
          %v7985 = vmul.f32 %v7857, 0.0625
          %v7986 = vmul.f32 %v7858, 0.0625
          %v7987 = vmul.f32 %v7859, 0.0625
          %v7988 = vmul.f32 %v7860, 0.0625
          %v7989 = vmul.f32 %v7861, 0.0625
          %v7990 = vmul.f32 %v7862, 0.0625
          %v7991 = vmul.f32 %v7863, 0.0625
          %v7992 = vmul.f32 %v7864, 0.0625
          %v7993 = vmul.f32 %v7865, 0.0625
          %v7994 = vmul.f32 %v7866, 0.0625
          %v7995 = vmul.f32 %v7867, 0.0625
          %v7996 = vmul.f32 %v7868, 0.0625
          %v7997 = vmul.f32 %v7869, 0.0625
          %v7998 = vmul.f32 %v7870, 0.0625
          %v7999 = vmul.f32 %v7871, 0.0625
          %v8000 = vmul.f32 %v7872, 0.0625
          %v8001 = vmul.f32 %v7873, 0.0625
          %v8002 = vmul.f32 %v7874, 0.0625
          %v8003 = vmul.f32 %v7875, 0.0625
          %v8004 = vmul.f32 %v7876, 0.0625
          %v8005 = vmul.f32 %v7877, 0.0625
          %v8006 = vmul.f32 %v7878, 0.0625
          %v8007 = vmul.f32 %v7879, 0.0625
          %v8008 = vmul.f32 %v7880, 0.0625
          %v8009 = vmul.f32 %v7881, 0.0625
          %v8010 = vmul.f32 %v7882, 0.0625
          %v8011 = vmul.f32 %v7883, 0.0625
          %v8012 = vmul.f32 %v7884, 0.0625
          %v8013 = vmul.f32 %v7885, 0.0625
          %v8014 = vmul.f32 %v7886, 0.0625
          %v8015 = vmul.f32 %v7887, 0.0625
          %v8016 = vmul.f32 %v7888, 0.0625
          %v8017 = vmul.f32 %v7889, 0.0625
          %v8018 = vmul.f32 %v7890, 0.0625
          %v8019 = vmul.f32 %v7891, 0.0625
          %v8020 = vmul.f32 %v7892, 0.0625
          %v8021 = vmul.f32 %v7893, 0.0625
          %v8022 = vmul.f32 %v7894, 0.0625
          %v8023 = vmul.f32 %v7895, 0.0625
          %8024 = vst [vmem:[%s341] sm:$0xff] %v7896
          %8025 = vst [vmem:[%s341 + $0x8] sm:$0xff] %v7897
          %8026 = vst [vmem:[%s341 + $0x10] sm:$0xff] %v7898
          %8027 = vst [vmem:[%s341 + $0x18] sm:$0xff] %v7899
          %8028 = vst [vmem:[%s341 + $0x20] sm:$0xff] %v7900
          %8029 = vst [vmem:[%s341 + $0x28] sm:$0xff] %v7901
          %8030 = vst [vmem:[%s341 + $0x30] sm:$0xff] %v7902
          %8031 = vst [vmem:[%s341 + $0x38] sm:$0xff] %v7903
          %8032 = vst [vmem:[%s341 + $0x40] sm:$0xff] %v7904
          %8033 = vst [vmem:[%s341 + $0x48] sm:$0xff] %v7905
          %8034 = vst [vmem:[%s341 + $0x50] sm:$0xff] %v7906
          %8035 = vst [vmem:[%s341 + $0x58] sm:$0xff] %v7907
          %8036 = vst [vmem:[%s341 + $0x60] sm:$0xff] %v7908
          %8037 = vst [vmem:[%s341 + $0x68] sm:$0xff] %v7909
          %8038 = vst [vmem:[%s341 + $0x70] sm:$0xff] %v7910
          %8039 = vst [vmem:[%s341 + $0x78] sm:$0xff] %v7911
          %8040 = vst [vmem:[%s341 + $0x80] sm:$0xff] %v7912
          %8041 = vst [vmem:[%s341 + $0x88] sm:$0xff] %v7913
          %8042 = vst [vmem:[%s341 + $0x90] sm:$0xff] %v7914
          %8043 = vst [vmem:[%s341 + $0x98] sm:$0xff] %v7915
          %8044 = vst [vmem:[%s341 + $0xa0] sm:$0xff] %v7916
          %8045 = vst [vmem:[%s341 + $0xa8] sm:$0xff] %v7917
          %8046 = vst [vmem:[%s341 + $0xb0] sm:$0xff] %v7918
          %8047 = vst [vmem:[%s341 + $0xb8] sm:$0xff] %v7919
          %8048 = vst [vmem:[%s341 + $0xc0] sm:$0xff] %v7920
          %8049 = vst [vmem:[%s341 + $0xc8] sm:$0xff] %v7921
          %8050 = vst [vmem:[%s341 + $0xd0] sm:$0xff] %v7922
          %8051 = vst [vmem:[%s341 + $0xd8] sm:$0xff] %v7923
          %8052 = vst [vmem:[%s341 + $0xe0] sm:$0xff] %v7924
          %8053 = vst [vmem:[%s341 + $0xe8] sm:$0xff] %v7925
          %8054 = vst [vmem:[%s341 + $0xf0] sm:$0xff] %v7926
          %8055 = vst [vmem:[%s341 + $0xf8] sm:$0xff] %v7927
          %8056 = vst [vmem:[%s341 + $0x100] sm:$0xff] %v7928
          %8057 = vst [vmem:[%s341 + $0x108] sm:$0xff] %v7929
          %8058 = vst [vmem:[%s341 + $0x110] sm:$0xff] %v7930
          %8059 = vst [vmem:[%s341 + $0x118] sm:$0xff] %v7931
          %8060 = vst [vmem:[%s341 + $0x120] sm:$0xff] %v7932
          %8061 = vst [vmem:[%s341 + $0x128] sm:$0xff] %v7933
          %8062 = vst [vmem:[%s341 + $0x130] sm:$0xff] %v7934
          %8063 = vst [vmem:[%s341 + $0x138] sm:$0xff] %v7935
          %8064 = vst [vmem:[%s341 + $0x140] sm:$0xff] %v7936
          %8065 = vst [vmem:[%s341 + $0x148] sm:$0xff] %v7937
          %8066 = vst [vmem:[%s341 + $0x150] sm:$0xff] %v7938
          %8067 = vst [vmem:[%s341 + $0x158] sm:$0xff] %v7939
          %8068 = vst [vmem:[%s341 + $0x160] sm:$0xff] %v7940
          %8069 = vst [vmem:[%s341 + $0x168] sm:$0xff] %v7941
          %8070 = vst [vmem:[%s341 + $0x170] sm:$0xff] %v7942
          %8071 = vst [vmem:[%s341 + $0x178] sm:$0xff] %v7943
          %8072 = vst [vmem:[%s341 + $0x180] sm:$0xff] %v7944
          %8073 = vst [vmem:[%s341 + $0x188] sm:$0xff] %v7945
          %8074 = vst [vmem:[%s341 + $0x190] sm:$0xff] %v7946
          %8075 = vst [vmem:[%s341 + $0x198] sm:$0xff] %v7947
          %8076 = vst [vmem:[%s341 + $0x1a0] sm:$0xff] %v7948
          %8077 = vst [vmem:[%s341 + $0x1a8] sm:$0xff] %v7949
          %8078 = vst [vmem:[%s341 + $0x1b0] sm:$0xff] %v7950
          %8079 = vst [vmem:[%s341 + $0x1b8] sm:$0xff] %v7951
          %8080 = vst [vmem:[%s341 + $0x1c0] sm:$0xff] %v7952
          %8081 = vst [vmem:[%s341 + $0x1c8] sm:$0xff] %v7953
          %8082 = vst [vmem:[%s341 + $0x1d0] sm:$0xff] %v7954
          %8083 = vst [vmem:[%s341 + $0x1d8] sm:$0xff] %v7955
          %8084 = vst [vmem:[%s341 + $0x1e0] sm:$0xff] %v7956
          %8085 = vst [vmem:[%s341 + $0x1e8] sm:$0xff] %v7957
          %8086 = vst [vmem:[%s341 + $0x1f0] sm:$0xff] %v7958
          %8087 = vst [vmem:[%s341 + $0x1f8] sm:$0xff] %v7959
          %8088 = vst [vmem:[%s341 + $0x200] sm:$0xff] %v7960
          %8089 = vst [vmem:[%s341 + $0x208] sm:$0xff] %v7961
          %8090 = vst [vmem:[%s341 + $0x210] sm:$0xff] %v7962
          %8091 = vst [vmem:[%s341 + $0x218] sm:$0xff] %v7963
          %8092 = vst [vmem:[%s341 + $0x220] sm:$0xff] %v7964
          %8093 = vst [vmem:[%s341 + $0x228] sm:$0xff] %v7965
          %8094 = vst [vmem:[%s341 + $0x230] sm:$0xff] %v7966
          %8095 = vst [vmem:[%s341 + $0x238] sm:$0xff] %v7967
          %8096 = vst [vmem:[%s341 + $0x240] sm:$0xff] %v7968
          %8097 = vst [vmem:[%s341 + $0x248] sm:$0xff] %v7969
          %8098 = vst [vmem:[%s341 + $0x250] sm:$0xff] %v7970
          %8099 = vst [vmem:[%s341 + $0x258] sm:$0xff] %v7971
          %8100 = vst [vmem:[%s341 + $0x260] sm:$0xff] %v7972
          %8101 = vst [vmem:[%s341 + $0x268] sm:$0xff] %v7973
          %8102 = vst [vmem:[%s341 + $0x270] sm:$0xff] %v7974
          %8103 = vst [vmem:[%s341 + $0x278] sm:$0xff] %v7975
          %8104 = vst [vmem:[%s341 + $0x280] sm:$0xff] %v7976
          %8105 = vst [vmem:[%s341 + $0x288] sm:$0xff] %v7977
          %8106 = vst [vmem:[%s341 + $0x290] sm:$0xff] %v7978
          %8107 = vst [vmem:[%s341 + $0x298] sm:$0xff] %v7979
          %8108 = vst [vmem:[%s341 + $0x2a0] sm:$0xff] %v7980
          %8109 = vst [vmem:[%s341 + $0x2a8] sm:$0xff] %v7981
          %8110 = vst [vmem:[%s341 + $0x2b0] sm:$0xff] %v7982
          %8111 = vst [vmem:[%s341 + $0x2b8] sm:$0xff] %v7983
          %8112 = vst [vmem:[%s341 + $0x2c0] sm:$0xff] %v7984
          %8113 = vst [vmem:[%s341 + $0x2c8] sm:$0xff] %v7985
          %8114 = vst [vmem:[%s341 + $0x2d0] sm:$0xff] %v7986
          %8115 = vst [vmem:[%s341 + $0x2d8] sm:$0xff] %v7987
          %8116 = vst [vmem:[%s341 + $0x2e0] sm:$0xff] %v7988
          %8117 = vst [vmem:[%s341 + $0x2e8] sm:$0xff] %v7989
          %8118 = vst [vmem:[%s341 + $0x2f0] sm:$0xff] %v7990
          %8119 = vst [vmem:[%s341 + $0x2f8] sm:$0xff] %v7991
          %8120 = vst [vmem:[%s341 + $0x300] sm:$0xff] %v7992
          %8121 = vst [vmem:[%s341 + $0x308] sm:$0xff] %v7993
          %8122 = vst [vmem:[%s341 + $0x310] sm:$0xff] %v7994
          %8123 = vst [vmem:[%s341 + $0x318] sm:$0xff] %v7995
          %8124 = vst [vmem:[%s341 + $0x320] sm:$0xff] %v7996
          %8125 = vst [vmem:[%s341 + $0x328] sm:$0xff] %v7997
          %8126 = vst [vmem:[%s341 + $0x330] sm:$0xff] %v7998
          %8127 = vst [vmem:[%s341 + $0x338] sm:$0xff] %v7999
          %8128 = vst [vmem:[%s341 + $0x340] sm:$0xff] %v8000
          %8129 = vst [vmem:[%s341 + $0x348] sm:$0xff] %v8001
          %8130 = vst [vmem:[%s341 + $0x350] sm:$0xff] %v8002
          %8131 = vst [vmem:[%s341 + $0x358] sm:$0xff] %v8003
          %8132 = vst [vmem:[%s341 + $0x360] sm:$0xff] %v8004
          %8133 = vst [vmem:[%s341 + $0x368] sm:$0xff] %v8005
          %8134 = vst [vmem:[%s341 + $0x370] sm:$0xff] %v8006
          %8135 = vst [vmem:[%s341 + $0x378] sm:$0xff] %v8007
          %8136 = vst [vmem:[%s341 + $0x380] sm:$0xff] %v8008
          %8137 = vst [vmem:[%s341 + $0x388] sm:$0xff] %v8009
          %8138 = vst [vmem:[%s341 + $0x390] sm:$0xff] %v8010
          %8139 = vst [vmem:[%s341 + $0x398] sm:$0xff] %v8011
          %8140 = vst [vmem:[%s341 + $0x3a0] sm:$0xff] %v8012
          %8141 = vst [vmem:[%s341 + $0x3a8] sm:$0xff] %v8013
          %8142 = vst [vmem:[%s341 + $0x3b0] sm:$0xff] %v8014
          %8143 = vst [vmem:[%s341 + $0x3b8] sm:$0xff] %v8015
          %8144 = vst [vmem:[%s341 + $0x3c0] sm:$0xff] %v8016
          %8145 = vst [vmem:[%s341 + $0x3c8] sm:$0xff] %v8017
          %8146 = vst [vmem:[%s341 + $0x3d0] sm:$0xff] %v8018
          %8147 = vst [vmem:[%s341 + $0x3d8] sm:$0xff] %v8019
          %8148 = vst [vmem:[%s341 + $0x3e0] sm:$0xff] %v8020
          %8149 = vst [vmem:[%s341 + $0x3e8] sm:$0xff] %v8021
          %8150 = vst [vmem:[%s341 + $0x3f0] sm:$0xff] %v8022
          %8151 = vst [vmem:[%s341 + $0x3f8] sm:$0xff] %v8023
        $region64: #{tpu_custom_call.1} parent=43 // pred_fallthru
          _
        %s8152 = sand.u32 %s186, 1
        %s8153 = scalar_lea.sflag [#allocation5], %s8152
        %s8154 = sand.u32 %s186, 1
        %s8155 = smul.addr %s8154, 1024
        %s8156 = scalar_lea.vmem [#allocation9], %s8155
        // Predicated region
        $region65: #{tpu_custom_call.1} parent=43 // pred_check
          %p8157 = pneg %p196
        $region66: #{tpu_custom_call.1} parent=43 // pred_check_branch
          %8159 = sbr.rel (%p8157) target = $region68
        $region67: #{tpu_custom_call.1} parent=43 // pred_region
          %s8161 = ssub.s32 16384, 16384
          %8162 = vsyncadd %s8153, %s8161
          %s8163 = smul.addr %s30, 128
          %s8164 = smul.addr %s8163, 128
          %s8165 = scalar_lea.hbm %s6, %s8164
          %s8166 = sshll.u32 %s8156, 4
          %s8167 = int_to_ptr.vmem [resolvable:$true] %s8166
          %8172 = dma.vmem_to_hbm [thread:$0]  %s8167, 16384, %s8165, %s8153, 2048, 2048, 128
        $region68: #{tpu_custom_call.1} parent=43 // pred_fallthru
          _
      $region44: #{tpu_custom_call.1} parent=5 // pred_fallthru
        _
      %p8173 = scmp.le.s32.totalorder 2, %s21
      // Predicated region
      $region69: #{tpu_custom_call.1} parent=5 // pred_check
        %p8174 = pneg %p8173
      $region70: #{tpu_custom_call.1} parent=5 // pred_check_branch
        %8176 = sbr.rel (%p8174) target = $region72
      $region71: #{tpu_custom_call.1} parent=5 // pred_region
        %s8177 = ssub.s32 %s21, 2
        // Predicated region
        $region73: #{tpu_custom_call.1} parent=71 // pred_check
          %p8178 = pneg %p202
        $region74: #{tpu_custom_call.1} parent=71 // pred_check_branch
          %8180 = sbr.rel (%p8178) target = $region76
        $region75: #{tpu_custom_call.1} parent=71 // pred_region
          %s8181 = sand.u32 %s187, 1
          %s8182 = scalar_lea.sflag [#allocation5], %s8181
          %s8183 = sand.u32 %s187, 1
          %s8184 = smul.addr %s8183, 1024
          %s8185 = scalar_lea.vmem [#allocation9], %s8184
          %8186 = dma.done %s8182, 16384
        $region76: #{tpu_custom_call.1} parent=71 // pred_fallthru
          _
      $region72: #{tpu_custom_call.1} parent=5 // pred_fallthru
        _
    $region6: #{tpu_custom_call.1} parent=1 // loop_footer
      %s25 = sadd.s32 1, %s21
    $region7: #{tpu_custom_call.1} parent=1 // loop_footer_branch
      %20 = sbr.rel target = $region3
    $region8: #{tpu_custom_call.1} parent=1 // loop_exit
      _
    %8187 = vsyncpa [#allocation4], 1
    %s8188 = scalar_lea.sflag [#allocation4], 1
    %8189 = vsyncpa %s8188, 1
    %8190 = vsyncpa [#allocation7], 1
    %s8191 = scalar_lea.sflag [#allocation7], 1
    %8192 = vsyncpa %s8191, 1
    %8193 = vsyncpa [#allocation5], 1
    %s8194 = scalar_lea.sflag [#allocation5], 1
    %8195 = vsyncpa %s8194, 1

</llo_original>
